<compile_context>
chip_gen: v5e
topology: v5e:2x2
jax: 0.10.0
libtpu: 0.0.40
codegen_flags: <defaults>
</compile_context>

<pallas_src>
import jax
import jax.numpy as jnp
from jax import lax
from jax.experimental import pallas as pl
from jax.experimental.pallas import tpu as pltpu

N_FEATURES = 3            # networks53.n_features
RECEPTIVE_FIELD = 1024    # hard-coded in Disc
N_CONVS = 11              # int(np.log2(1024)) + 1
NEG_SLOPE = 0.2           # LeakyReLU slope
MXU_DEPTH = 256           # v6e/v7x systolic contraction depth (v5e: 128)


# ------------------------- in-kernel building blocks -------------------------

def _leaky(x):
    # LeakyReLU(0.2): mul + max (2 VALU ops) instead of cmp + mul + select.
    return jnp.maximum(x, NEG_SLOPE * x)


def _shift_lanes(x, s, t_iota=None):
    """out[:, t] = x[:, t + s] for 0 <= t+s < L, else 0.  Static s, 0 < |s| < L."""
    C, L = x.shape
    if L % 128 == 0:
        # Lane-dense case: XLU rotate + iota mask; no zero-padded VMEM transient.
        rolled = pltpu.roll(x, shift=(-s) % L, axis=1)
        if t_iota is None:
            t_iota = lax.broadcasted_iota(jnp.int32, (C, L), 1)
        if s > 0:
            return jnp.where(t_iota < L - s, rolled, 0.0)
        return jnp.where(t_iota >= -s, rolled, 0.0)
    # Non-lane-aligned (toy) L: static slice + small zero block.
    z = jnp.zeros((C, abs(s)), x.dtype)
    if s > 0:
        return jnp.concatenate([x[:, s:], z], axis=1)
    return jnp.concatenate([z, x[:, :L + s]], axis=1)


def _conv3_same(x, w, dilation):
    """'same' 3-tap Conv1d (no bias), NCL.  x: f32 (C, L); w: bf16 (C_out, 3*C)
    with tap-major columns.  Returns f32 (C_out, L) (MXU, f32 accumulation)."""
    C, L = x.shape
    d = dilation
    xc = x.astype(jnp.bfloat16)                       # centre tap operand
    wc = w[:, C:2 * C]
    if d >= L:                                        # +/-d taps read only padding
        return jnp.dot(wc, xc, preferred_element_type=jnp.float32)
    t_iota = None
    if L % 128 == 0:
        t_iota = lax.broadcasted_iota(jnp.int32, (C, L), 1)
    xm = _shift_lanes(x, -d, t_iota).astype(jnp.bfloat16)   # tap 0: x[:, t-d]
    xp = _shift_lanes(x, +d, t_iota).astype(jnp.bfloat16)   # tap 2: x[:, t+d]
    if 3 * C <= MXU_DEPTH:
        # Small C_in: fuse taps into one wide-K matmul so K fills the MXU.
        stk = jnp.concatenate([xm, xc, xp], axis=0)
        return jnp.dot(w, stk, preferred_element_type=jnp.float32)
    # Large C_in: K=C already fills the MXU; per-tap dots avoid the (3C, L)
    # stacked transient (saves vst traffic and v7x VMEM headroom).
    acc = jnp.dot(wc, xc, preferred_element_type=jnp.float32)
    acc = acc + jnp.dot(w[:, :C], xm, preferred_element_type=jnp.float32)
    acc = acc + jnp.dot(w[:, 2 * C:], xp, preferred_element_type=jnp.float32)
    return acc


def _conv17_same(x, w):
    """'same' 17-tap Conv1d, dilation 1, pad 8 (convw1/convp1).  C_in is 2 or 3,
    so the cheap zero-pad + static-slice tap stack is kept (pad is only 8)."""
    C, L = x.shape
    K, pad = 17, 8
    valid = [k for k in range(K) if abs(k - pad) < L]
    xb = x.astype(jnp.bfloat16)
    if len(valid) == 1:
        return jnp.dot(w[:, pad * C:(pad + 1) * C], xb,
                       preferred_element_type=jnp.float32)
    k0, k1 = valid[0], valid[-1]
    z = jnp.zeros((C, pad), xb.dtype)
    xpad = jnp.concatenate([z, xb, z], axis=1)        # (C, L + 16)
    stk = jnp.concatenate([xpad[:, k:k + L] for k in valid], axis=0)
    return jnp.dot(w[:, k0 * C:(k1 + 1) * C], stk,
                   preferred_element_type=jnp.float32)


def _tcn_block(xs, c0w_list, c0b_ref, csw_ref, csb_ref, ocw_list, ocb_ref):
    """TCNBlock(in_c, out_c, 1024) forward (eval mode), NCL layout.

    `xs` / `c0w_list` / `ocw_list` are parallel lists so a channel-concatenated
    input (res1) is handled without materialising the concat."""
    # out_conv (1x1) -- present in every Disc block (in_channels != out_channels).
    ret = ocb_ref[...]                                       # (C_out, 1) broadcasts
    for x, w in zip(xs, ocw_list):
        ret = ret + jnp.dot(w[...], x.astype(jnp.bfloat16),
                            preferred_element_type=jnp.float32)
    # conv 0: dilation 1.
    y = c0b_ref[...]
    for x, w in zip(xs, c0w_list):
        y = y + _conv3_same(x, w[...], 1)
    ret = ret + y
    # convs 1..10: dilation 2**i.
    # TODO(synk): Dropout(0.05) is stochastic; identity here (eval-mode forward).
    # TODO(synk): if VMEM gets tight at production ndf, wrap each conv's shifted
    #   operands in pl.run_scoped (sequential scopes reuse the same offset) or
    #   move the dilation index onto a grid / emit_pipeline axis.
    for i in range(1, N_CONVS):
        y = _leaky(y)
        y = _conv3_same(y, csw_ref[i - 1], 2 ** i) + csb_ref[i - 1]
        ret = ret + y
    return _leaky(ret)


# --------------------------------- kernel ------------------------------------

def disc_kernel(p_ref, w_ref,
                cw1_w, cw1_b, cp1_w, cp1_b,
                rw0_c0w, rw0_c0b, rw0_csw, rw0_csb, rw0_ocw, rw0_ocb,
                rp0_c0w, rp0_c0b, rp0_csw, rp0_csb, rp0_ocw, rp0_ocb,
                r1_c0wp, r1_c0ww, r1_c0b, r1_csw, r1_csb, r1_ocwp, r1_ocww, r1_ocb,
                lin_w, lin_b,
                out_ref):
    p_cl = p_ref[0]                                   # (n_features, L)
    w_cl = w_ref[0]                                   # (2, L)
    # --- w branch: convw1 (k=17, pad=8) -> resw0 ---
    w = _conv17_same(w_cl, cw1_w[...]) + cw1_b[...]
    w = _tcn_block([w], [rw0_c0w], rw0_c0b, rw0_csw, rw0_csb, [rw0_ocw], rw0_ocb)
    # --- p branch: convp1 (k=17, pad=8) -> resp0 ---
    p = _conv17_same(p_cl, cp1_w[...]) + cp1_b[...]
    p = _tcn_block([p], [rp0_c0w], rp0_c0b, rp0_csw, rp0_csb, [rp0_ocw], rp0_ocb)
    # --- res1 on torch.cat([p, w], dim=1): concat folded into pre-split weights ---
    # TODO(synk): at small ndf (3*2ndf << MXU depth) a single fused-K matmul on a
    #   materialised (4ndf, L) concat would be marginally cheaper; noise-level.
    x = _tcn_block([p, w], [r1_c0wp, r1_c0ww], r1_c0b, r1_csw, r1_csb,
                   [r1_ocwp, r1_ocww], r1_ocb)
    # --- lin0 over torch .flatten(1, 2): (c*L + t) order == this (C, L) layout ---
    r = jnp.sum(x * lin_w[...], axis=1, keepdims=True)      # (6*ndf, 1), f32
    r = jnp.sum(r, axis=0, keepdims=True) + lin_b[...]      # (1, 1)
    out_ref[...] = r.reshape(1, 1, 1)


# -------------------------------- wrapper -------------------------------------

def _const_spec(x, single_buffer):
    zeros = (0,) * x.ndim
    if single_buffer:
        # Constant index map -> block never changes; one resident buffer suffices.
        return pl.BlockSpec(x.shape, lambda b, _z=zeros: _z,
                            pipeline_mode=pl.Buffered(buffer_count=1))
    return pl.BlockSpec(x.shape, lambda b, _z=zeros: _z)


def _vmem_limit_bytes(params, L):
    """Size the VMEM budget from actual residency instead of a flat constant."""
    try:
        cap = int(pltpu.get_tpu_info().vmem_capacity_bytes)   # 128 MiB / 64 MiB (v7x)
    except Exception:
        cap = 128 << 20
    weights = sum(int(x.size) * x.dtype.itemsize for x in params)
    c_out = max(int(x.shape[0]) for x in params if x.ndim == 2)   # ~ 6*ndf
    transient = 12 * c_out * max(L, 128) * 4   # f32 accumulators + shifted operands
    need = 2 * weights + transient + (8 << 20)  # 2x weights: double-buffer fallback
    return int(min(max(need, 32 << 20), cap - (4 << 20)))


def disc_forward(params, p_, w_):
    """p_: (B, n_features, L), w_: (B, 2, L)  (PyTorch NCL).  Returns (B,)."""
    B, _, L = p_.shape
    p_ = p_.astype(jnp.float32)
    w_ = w_.astype(jnp.float32)
    inputs = (p_, w_) + tuple(params)
    vmem_limit = _vmem_limit_bytes(params, L)

    def build(single_buffer_weights):
        in_specs = ([pl.BlockSpec((1, N_FEATURES, L), lambda b: (b, 0, 0)),
                     pl.BlockSpec((1, 2, L), lambda b: (b, 0, 0))]
                    + [_const_spec(x, single_buffer_weights) for x in params])
        return pl.pallas_call(
            disc_kernel,
            out_shape=jax.ShapeDtypeStruct((B, 1, 1), jnp.float32),
            grid=(B,),
            in_specs=in_specs,
            out_specs=pl.BlockSpec((1, 1, 1), lambda b: (b, 0, 0)),
            compiler_params=pltpu.CompilerParams(
                # TODO(synk): try pltpu.CORE_PARALLEL on v7x to confirm the batch
                # axis really lands on both TensorCores.
                dimension_semantics=("parallel",),
                vmem_limit_bytes=vmem_limit),
        )

    try:
        out = build(True)(*inputs)
    except Exception:
        # TODO(synk): pipeline_mode=pl.Buffered(1) not supported on this jax
        # build -> fall back to default (double-buffered) weight specs.
        out = build(False)(*inputs)
    return out[:, 0, 0]


# --------------------------- deterministic params -----------------------------

def init_torch_params(key, ndf, seq_len):
    """Synthetic parameters in PyTorch layouts (Conv1d weight: (C_out, C_in, K))."""
    keys = iter(jax.random.split(key, 96))

    def nrm(shape, scale=0.1):
        return scale * jax.random.normal(next(keys), shape, jnp.float32)

    def tcn(ic, oc):
        convs = []
        for i in range(N_CONVS):
            cin = ic if i == 0 else oc
            convs.append((nrm((oc, cin, 3)), nrm((oc,), 0.01)))
        return {"convs": convs, "out_conv": (nrm((oc, ic, 1)), nrm((oc,), 0.01))}

    return {
        "convw1": (nrm((ndf, 2, 17)), nrm((ndf,), 0.01)),
        "convp1": (nrm((ndf, N_FEATURES, 17)), nrm((ndf,), 0.01)),
        "resw0": tcn(ndf, 2 * ndf),
        "resp0": tcn(ndf, 2 * ndf),
        "res1": tcn(4 * ndf, 6 * ndf),
        "lin0": (nrm((1, 6 * ndf * seq_len)), nrm((1,), 0.01)),
    }


def prepare_params(tp, ndf, seq_len, *, weight_dtype=jnp.bfloat16):
    """PyTorch-layout params -> kernel layout: bf16 tap-major flattened conv
    weights (MXU operands), f32 biases / lin0 (VPU path stays f32 for v5e)."""
    def flat(w):                  # (oc, ci, k) -> (oc, k*ci), tap-major columns
        oc, ci, k = w.shape
        return jnp.transpose(w, (0, 2, 1)).reshape(oc, k * ci).astype(weight_dtype)

    def col(b):                   # (c,) -> (c, 1), f32
        return b.reshape(-1, 1).astype(jnp.float32)

    def tcn(block):
        c0w, c0b = block["convs"][0]
        csw = jnp.stack([flat(w) for w, _ in block["convs"][1:]])
        csb = jnp.stack([col(b) for _, b in block["convs"][1:]])
        ocw, ocb = block["out_conv"]
        return (flat(c0w), col(c0b), csw, csb,
                ocw[:, :, 0].astype(weight_dtype), col(ocb))

    cw1w, cw1b = tp["convw1"]
    cp1w, cp1b = tp["convp1"]
    resw0 = tcn(tp["resw0"])
    resp0 = tcn(tp["resp0"])

    # res1 consumes cat([p, w], dim=1); split its first-layer / out_conv weights
    # along C_in so the kernel never materialises the activation concat.
    half = 2 * ndf
    r1 = tp["res1"]
    c0w, c0b = r1["convs"][0]
    csw = jnp.stack([flat(w) for w, _ in r1["convs"][1:]])
    csb = jnp.stack([col(b) for _, b in r1["convs"][1:]])
    ocw, ocb = r1["out_conv"]
    res1 = (flat(c0w[:, :half, :]), flat(c0w[:, half:, :]), col(c0b),
            csw, csb,
            ocw[:, :half, 0].astype(weight_dtype),
            ocw[:, half:, 0].astype(weight_dtype), col(ocb))

    lw, lb = tp["lin0"]
    lin_w = lw.reshape(6 * ndf, seq_len).astype(jnp.float32)   # flatten(1,2) layout
    lin_b = lb.reshape(1, 1).astype(jnp.float32)
    return ((flat(cw1w), col(cw1b), flat(cp1w), col(cp1b))
            + resw0 + resp0 + res1 + (lin_w, lin_b))


def bf16_roundtrip_weights(tp):
    """Round-trip conv weights through bf16 so the f32 reference uses the same
    effective (stored-precision) weights as the kernel."""
    def rt(w):
        return w.astype(jnp.bfloat16).astype(jnp.float32)

    def tcn(block):
        return {"convs": [(rt(w), b) for w, b in block["convs"]],
                "out_conv": (rt(block["out_conv"][0]), block["out_conv"][1])}

    return {"convw1": (rt(tp["convw1"][0]), tp["convw1"][1]),
            "convp1": (rt(tp["convp1"][0]), tp["convp1"][1]),
            "resw0": tcn(tp["resw0"]), "resp0": tcn(tp["resp0"]),
            "res1": tcn(tp["res1"]), "lin0": tp["lin0"]}


# ----------------------------- pure-JAX reference -----------------------------

def _ref_conv1d(x, w, b, dilation, pad):
    y = lax.conv_general_dilated(
        x, w, window_strides=(1,), padding=[(pad, pad)],
        rhs_dilation=(dilation,), dimension_numbers=("NCH", "OIH", "NCH"))
    return y + b[None, :, None]


def _ref_tcn(x, block):
    act = lambda v: jnp.where(v >= 0, v, NEG_SLOPE * v)
    y = x
    outs = []
    for i in range(N_CONVS):
        if i > 0:
            y = act(y)
        w, b = block["convs"][i]
        d = 2 ** i
        y = _ref_conv1d(y, w, b, d, d)
        outs.append(y)
    ocw, ocb = block["out_conv"]
    ret = _ref_conv1d(x, ocw, ocb, 1, 0)
    for o in outs:
        ret = ret + o
    return act(ret)


def disc_reference(tp, p_, w_):
    w = _ref_conv1d(w_, *tp["convw1"], 1, 8)
    w = _ref_tcn(w, tp["resw0"])
    p = _ref_conv1d(p_, *tp["convp1"], 1, 8)
    p = _ref_tcn(p, tp["resp0"])
    x = _ref_tcn(jnp.concatenate([p, w], axis=1), tp["res1"])
    lw, lb = tp["lin0"]
    return x.reshape(x.shape[0], -1) @ lw[0] + lb[0]


if __name__ == "__main__":
    # Small but lane-aligned (L multiple of 128) so the roll+mask shift path and
    # the conv tap logic are actually exercised; dilations 128..1024 exceed L and
    # exercise the centre-tap-only path.
    ndf, seq_len, batch = 4, 128, 2
    key = jax.random.PRNGKey(0)
    kp, kw, kparams = jax.random.split(key, 3)
    p_ = jax.random.normal(kp, (batch, N_FEATURES, seq_len), jnp.float32)
    w_ = jax.random.normal(kw, (batch, 2, seq_len), jnp.float32)

    torch_params = init_torch_params(kparams, ndf, seq_len)
    params = prepare_params(torch_params, ndf, seq_len)

    out = jax.block_until_ready(disc_forward(params, p_, w_))
    assert out.shape == (batch,) and out.dtype == jnp.float32

    # Reference uses the same bf16-stored weights (f32 math); tolerance covers
    # bf16 rounding of the matmul activations inside the kernel.
    ref = jax.block_until_ready(disc_reference(bf16_roundtrip_weights(torch_params),
                                               p_, w_))
    assert jnp.allclose(out, ref, rtol=5e-2, atol=5e-2), (out, ref)

    print("KERNEL_OK")
</pallas_src>

<mosaic_0001>
module attributes {stable_mosaic.version = 11 : i64} {
  func.func @disc_kernel(%arg0: i32, %arg1: memref<1x3x128xf32, #tpu.memory_space<vmem>>, %arg2: memref<1x2x128xf32, #tpu.memory_space<vmem>>, %arg3: memref<4x34xbf16, #tpu.memory_space<vmem>>, %arg4: memref<4x1xf32, #tpu.memory_space<vmem>>, %arg5: memref<4x51xbf16, #tpu.memory_space<vmem>>, %arg6: memref<4x1xf32, #tpu.memory_space<vmem>>, %arg7: memref<8x12xbf16, #tpu.memory_space<vmem>>, %arg8: memref<8x1xf32, #tpu.memory_space<vmem>>, %arg9: memref<10x8x24xbf16, #tpu.memory_space<vmem>>, %arg10: memref<10x8x1xf32, #tpu.memory_space<vmem>>, %arg11: memref<8x4xbf16, #tpu.memory_space<vmem>>, %arg12: memref<8x1xf32, #tpu.memory_space<vmem>>, %arg13: memref<8x12xbf16, #tpu.memory_space<vmem>>, %arg14: memref<8x1xf32, #tpu.memory_space<vmem>>, %arg15: memref<10x8x24xbf16, #tpu.memory_space<vmem>>, %arg16: memref<10x8x1xf32, #tpu.memory_space<vmem>>, %arg17: memref<8x4xbf16, #tpu.memory_space<vmem>>, %arg18: memref<8x1xf32, #tpu.memory_space<vmem>>, %arg19: memref<24x24xbf16, #tpu.memory_space<vmem>>, %arg20: memref<24x24xbf16, #tpu.memory_space<vmem>>, %arg21: memref<24x1xf32, #tpu.memory_space<vmem>>, %arg22: memref<10x24x72xbf16, #tpu.memory_space<vmem>>, %arg23: memref<10x24x1xf32, #tpu.memory_space<vmem>>, %arg24: memref<24x8xbf16, #tpu.memory_space<vmem>>, %arg25: memref<24x8xbf16, #tpu.memory_space<vmem>>, %arg26: memref<24x1xf32, #tpu.memory_space<vmem>>, %arg27: memref<24x128xf32, #tpu.memory_space<vmem>>, %arg28: memref<1x1xf32, #tpu.memory_space<vmem>>, %arg29: memref<1x1x1xf32, #tpu.memory_space<vmem>>) attributes {dimension_semantics = [#tpu.dimension_semantics<parallel>], iteration_bounds = array<i64: 2>, scalar_prefetch = 0 : i64, scratch_operands = 0 : i64, tpu.core_type = #tpu.core_type<tc>, window_params = [{transform_indices = @transform_0, window_bounds = array<i64: 1, 3, 128>}, {transform_indices = @transform_1, window_bounds = array<i64: 1, 2, 128>}, {pipeline_mode = #tpu.pipeline_mode<synchronous>, transform_indices = @transform_2, window_bounds = array<i64: 4, 34>}, {pipeline_mode = #tpu.pipeline_mode<synchronous>, transform_indices = @transform_3, window_bounds = array<i64: 4, 1>}, {pipeline_mode = #tpu.pipeline_mode<synchronous>, transform_indices = @transform_4, window_bounds = array<i64: 4, 51>}, {pipeline_mode = #tpu.pipeline_mode<synchronous>, transform_indices = @transform_5, window_bounds = array<i64: 4, 1>}, {pipeline_mode = #tpu.pipeline_mode<synchronous>, transform_indices = @transform_6, window_bounds = array<i64: 8, 12>}, {pipeline_mode = #tpu.pipeline_mode<synchronous>, transform_indices = @transform_7, window_bounds = array<i64: 8, 1>}, {pipeline_mode = #tpu.pipeline_mode<synchronous>, transform_indices = @transform_8, window_bounds = array<i64: 10, 8, 24>}, {pipeline_mode = #tpu.pipeline_mode<synchronous>, transform_indices = @transform_9, window_bounds = array<i64: 10, 8, 1>}, {pipeline_mode = #tpu.pipeline_mode<synchronous>, transform_indices = @transform_10, window_bounds = array<i64: 8, 4>}, {pipeline_mode = #tpu.pipeline_mode<synchronous>, transform_indices = @transform_11, window_bounds = array<i64: 8, 1>}, {pipeline_mode = #tpu.pipeline_mode<synchronous>, transform_indices = @transform_12, window_bounds = array<i64: 8, 12>}, {pipeline_mode = #tpu.pipeline_mode<synchronous>, transform_indices = @transform_13, window_bounds = array<i64: 8, 1>}, {pipeline_mode = #tpu.pipeline_mode<synchronous>, transform_indices = @transform_14, window_bounds = array<i64: 10, 8, 24>}, {pipeline_mode = #tpu.pipeline_mode<synchronous>, transform_indices = @transform_15, window_bounds = array<i64: 10, 8, 1>}, {pipeline_mode = #tpu.pipeline_mode<synchronous>, transform_indices = @transform_16, window_bounds = array<i64: 8, 4>}, {pipeline_mode = #tpu.pipeline_mode<synchronous>, transform_indices = @transform_17, window_bounds = array<i64: 8, 1>}, {pipeline_mode = #tpu.pipeline_mode<synchronous>, transform_indices = @transform_18, window_bounds = array<i64: 24, 24>}, {pipeline_mode = #tpu.pipeline_mode<synchronous>, transform_indices = @transform_19, window_bounds = array<i64: 24, 24>}, {pipeline_mode = #tpu.pipeline_mode<synchronous>, transform_indices = @transform_20, window_bounds = array<i64: 24, 1>}, {pipeline_mode = #tpu.pipeline_mode<synchronous>, transform_indices = @transform_21, window_bounds = array<i64: 10, 24, 72>}, {pipeline_mode = #tpu.pipeline_mode<synchronous>, transform_indices = @transform_22, window_bounds = array<i64: 10, 24, 1>}, {pipeline_mode = #tpu.pipeline_mode<synchronous>, transform_indices = @transform_23, window_bounds = array<i64: 24, 8>}, {pipeline_mode = #tpu.pipeline_mode<synchronous>, transform_indices = @transform_24, window_bounds = array<i64: 24, 8>}, {pipeline_mode = #tpu.pipeline_mode<synchronous>, transform_indices = @transform_25, window_bounds = array<i64: 24, 1>}, {pipeline_mode = #tpu.pipeline_mode<synchronous>, transform_indices = @transform_26, window_bounds = array<i64: 24, 128>}, {pipeline_mode = #tpu.pipeline_mode<synchronous>, transform_indices = @transform_27, window_bounds = array<i64: 1, 1>}, {transform_indices = @transform_28, window_bounds = array<i64: 1, 1, 1>}]} {
    %c0 = arith.constant 0 : index
    %c0_0 = arith.constant 0 : index
    %c0_1 = arith.constant 0 : index
    %0 = vector.load %arg1[%c0, %c0_0, %c0_1] : memref<1x3x128xf32, #tpu.memory_space<vmem>>, vector<1x3x128xf32>
    %1 = vector.shape_cast %0 : vector<1x3x128xf32> to vector<3x128xf32>
    %c0_2 = arith.constant 0 : index
    %c0_3 = arith.constant 0 : index
    %c0_4 = arith.constant 0 : index
    %2 = vector.load %arg2[%c0_2, %c0_3, %c0_4] : memref<1x2x128xf32, #tpu.memory_space<vmem>>, vector<1x2x128xf32>
    %3 = vector.shape_cast %2 : vector<1x2x128xf32> to vector<2x128xf32>
    %c0_5 = arith.constant 0 : index
    %c0_6 = arith.constant 0 : index
    %4 = vector.load %arg3[%c0_5, %c0_6] : memref<4x34xbf16, #tpu.memory_space<vmem>>, vector<4x34xbf16>
    %5 = arith.truncf %3 : vector<2x128xf32> to vector<2x128xbf16>
    %cst = arith.constant 0.000000e+00 : bf16
    %6 = vector.broadcast %cst : bf16 to vector<2x8xbf16>
    %7 = tpu.concatenate %6, %5, %6 in 1 : vector<2x8xbf16>, vector<2x128xbf16>, vector<2x8xbf16> -> vector<2x144xbf16>
    %8 = vector.extract_strided_slice %7 {offsets = [0, 0], sizes = [2, 128], strides = [1, 1]} : vector<2x144xbf16> to vector<2x128xbf16>
    %9 = vector.extract_strided_slice %7 {offsets = [0, 1], sizes = [2, 128], strides = [1, 1]} : vector<2x144xbf16> to vector<2x128xbf16>
    %10 = vector.extract_strided_slice %7 {offsets = [0, 2], sizes = [2, 128], strides = [1, 1]} : vector<2x144xbf16> to vector<2x128xbf16>
    %11 = vector.extract_strided_slice %7 {offsets = [0, 3], sizes = [2, 128], strides = [1, 1]} : vector<2x144xbf16> to vector<2x128xbf16>
    %12 = vector.extract_strided_slice %7 {offsets = [0, 4], sizes = [2, 128], strides = [1, 1]} : vector<2x144xbf16> to vector<2x128xbf16>
    %13 = vector.extract_strided_slice %7 {offsets = [0, 5], sizes = [2, 128], strides = [1, 1]} : vector<2x144xbf16> to vector<2x128xbf16>
    %14 = vector.extract_strided_slice %7 {offsets = [0, 6], sizes = [2, 128], strides = [1, 1]} : vector<2x144xbf16> to vector<2x128xbf16>
    %15 = vector.extract_strided_slice %7 {offsets = [0, 7], sizes = [2, 128], strides = [1, 1]} : vector<2x144xbf16> to vector<2x128xbf16>
    %16 = vector.extract_strided_slice %7 {offsets = [0, 8], sizes = [2, 128], strides = [1, 1]} : vector<2x144xbf16> to vector<2x128xbf16>
    %17 = vector.extract_strided_slice %7 {offsets = [0, 9], sizes = [2, 128], strides = [1, 1]} : vector<2x144xbf16> to vector<2x128xbf16>
    %18 = vector.extract_strided_slice %7 {offsets = [0, 10], sizes = [2, 128], strides = [1, 1]} : vector<2x144xbf16> to vector<2x128xbf16>
    %19 = vector.extract_strided_slice %7 {offsets = [0, 11], sizes = [2, 128], strides = [1, 1]} : vector<2x144xbf16> to vector<2x128xbf16>
    %20 = vector.extract_strided_slice %7 {offsets = [0, 12], sizes = [2, 128], strides = [1, 1]} : vector<2x144xbf16> to vector<2x128xbf16>
    %21 = vector.extract_strided_slice %7 {offsets = [0, 13], sizes = [2, 128], strides = [1, 1]} : vector<2x144xbf16> to vector<2x128xbf16>
    %22 = vector.extract_strided_slice %7 {offsets = [0, 14], sizes = [2, 128], strides = [1, 1]} : vector<2x144xbf16> to vector<2x128xbf16>
    %23 = vector.extract_strided_slice %7 {offsets = [0, 15], sizes = [2, 128], strides = [1, 1]} : vector<2x144xbf16> to vector<2x128xbf16>
    %24 = vector.extract_strided_slice %7 {offsets = [0, 16], sizes = [2, 128], strides = [1, 1]} : vector<2x144xbf16> to vector<2x128xbf16>
    %25 = tpu.concatenate %8, %9, %10, %11, %12, %13, %14, %15, %16, %17, %18, %19, %20, %21, %22, %23 in 0 : vector<2x128xbf16>, vector<2x128xbf16>, vector<2x128xbf16>, vector<2x128xbf16>, vector<2x128xbf16>, vector<2x128xbf16>, vector<2x128xbf16>, vector<2x128xbf16>, vector<2x128xbf16>, vector<2x128xbf16>, vector<2x128xbf16>, vector<2x128xbf16>, vector<2x128xbf16>, vector<2x128xbf16>, vector<2x128xbf16>, vector<2x128xbf16> -> vector<32x128xbf16>
    %26 = tpu.concatenate %25, %24 in 0 : vector<32x128xbf16>, vector<2x128xbf16> -> vector<34x128xbf16>
    %cst_7 = arith.constant dense<0.000000e+00> : vector<4x128xf32>
    %27 = tpu.matmul %4, %26, %cst_7 {dimension_numbers = #tpu.dot_dimension_numbers<[1], [0], [0], [1], [0, 0, 1, 1], [], []>} : vector<4x34xbf16>, vector<34x128xbf16>, vector<4x128xf32> -> vector<4x128xf32>
    %c0_8 = arith.constant 0 : index
    %c0_9 = arith.constant 0 : index
    %28 = vector.load %arg4[%c0_8, %c0_9] : memref<4x1xf32, #tpu.memory_space<vmem>>, vector<4x1xf32>
    %29 = vector.broadcast %28 : vector<4x1xf32> to vector<4x128xf32>
    %30 = arith.addf %27, %29 : vector<4x128xf32>
    %c0_10 = arith.constant 0 : index
    %c0_11 = arith.constant 0 : index
    %31 = vector.load %arg12[%c0_10, %c0_11] : memref<8x1xf32, #tpu.memory_space<vmem>>, vector<8x1xf32>
    %c0_12 = arith.constant 0 : index
    %c0_13 = arith.constant 0 : index
    %32 = vector.load %arg11[%c0_12, %c0_13] : memref<8x4xbf16, #tpu.memory_space<vmem>>, vector<8x4xbf16>
    %33 = arith.truncf %30 : vector<4x128xf32> to vector<4x128xbf16>
    %cst_14 = arith.constant dense<0.000000e+00> : vector<8x128xf32>
    %34 = tpu.matmul %32, %33, %cst_14 {dimension_numbers = #tpu.dot_dimension_numbers<[1], [0], [0], [1], [0, 0, 1, 1], [], []>} : vector<8x4xbf16>, vector<4x128xbf16>, vector<8x128xf32> -> vector<8x128xf32>
    %35 = vector.broadcast %31 : vector<8x1xf32> to vector<8x128xf32>
    %36 = arith.addf %35, %34 : vector<8x128xf32>
    %c0_15 = arith.constant 0 : index
    %c0_16 = arith.constant 0 : index
    %37 = vector.load %arg8[%c0_15, %c0_16] : memref<8x1xf32, #tpu.memory_space<vmem>>, vector<8x1xf32>
    %c0_17 = arith.constant 0 : index
    %c0_18 = arith.constant 0 : index
    %38 = vector.load %arg7[%c0_17, %c0_18] : memref<8x12xbf16, #tpu.memory_space<vmem>>, vector<8x12xbf16>
    %39 = arith.truncf %30 : vector<4x128xf32> to vector<4x128xbf16>
    %40 = tpu.iota {dimensions = array<i32: 1>} : vector<4x128xi32>
    %c1_i32 = arith.constant 1 : i32
    %41 = tpu.dynamic_rotate %30 by %c1_i32 dim 1 : vector<4x128xf32>, i32 -> vector<4x128xf32>
    %c1_i32_19 = arith.constant 1 : i32
    %42 = vector.broadcast %c1_i32_19 : i32 to vector<4x128xi32>
    %43 = arith.cmpi sge, %40, %42 : vector<4x128xi32>
    %cst_20 = arith.constant 0.000000e+00 : f32
    %44 = vector.broadcast %cst_20 : f32 to vector<4x128xf32>
    %45 = arith.select %43, %41, %44 : vector<4x128xi1>, vector<4x128xf32>
    %46 = arith.truncf %45 : vector<4x128xf32> to vector<4x128xbf16>
    %c127_i32 = arith.constant 127 : i32
    %47 = tpu.dynamic_rotate %30 by %c127_i32 dim 1 : vector<4x128xf32>, i32 -> vector<4x128xf32>
    %c127_i32_21 = arith.constant 127 : i32
    %48 = vector.broadcast %c127_i32_21 : i32 to vector<4x128xi32>
    %49 = arith.cmpi slt, %40, %48 : vector<4x128xi32>
    %cst_22 = arith.constant 0.000000e+00 : f32
    %50 = vector.broadcast %cst_22 : f32 to vector<4x128xf32>
    %51 = arith.select %49, %47, %50 : vector<4x128xi1>, vector<4x128xf32>
    %52 = arith.truncf %51 : vector<4x128xf32> to vector<4x128xbf16>
    %53 = tpu.concatenate %46, %39, %52 in 0 : vector<4x128xbf16>, vector<4x128xbf16>, vector<4x128xbf16> -> vector<12x128xbf16>
    %cst_23 = arith.constant dense<0.000000e+00> : vector<8x128xf32>
    %54 = tpu.matmul %38, %53, %cst_23 {dimension_numbers = #tpu.dot_dimension_numbers<[1], [0], [0], [1], [0, 0, 1, 1], [], []>} : vector<8x12xbf16>, vector<12x128xbf16>, vector<8x128xf32> -> vector<8x128xf32>
    %55 = vector.broadcast %37 : vector<8x1xf32> to vector<8x128xf32>
    %56 = arith.addf %55, %54 : vector<8x128xf32>
    %57 = arith.addf %36, %56 : vector<8x128xf32>
    %cst_24 = arith.constant 2.000000e-01 : f32
    %58 = vector.broadcast %cst_24 : f32 to vector<8x128xf32>
    %59 = arith.mulf %58, %56 : vector<8x128xf32>
    %60 = arith.maximumf %56, %59 : vector<8x128xf32>
    %c0_25 = arith.constant 0 : index
    %c0_26 = arith.constant 0 : index
    %c0_27 = arith.constant 0 : index
    %61 = vector.load %arg9[%c0_25, %c0_26, %c0_27] : memref<10x8x24xbf16, #tpu.memory_space<vmem>>, vector<1x8x24xbf16>
    %62 = vector.shape_cast %61 : vector<1x8x24xbf16> to vector<8x24xbf16>
    %63 = arith.truncf %60 : vector<8x128xf32> to vector<8x128xbf16>
    %64 = tpu.iota {dimensions = array<i32: 1>} : vector<8x128xi32>
    %c2_i32 = arith.constant 2 : i32
    %65 = tpu.dynamic_rotate %60 by %c2_i32 dim 1 : vector<8x128xf32>, i32 -> vector<8x128xf32>
    %c2_i32_28 = arith.constant 2 : i32
    %66 = vector.broadcast %c2_i32_28 : i32 to vector<8x128xi32>
    %67 = arith.cmpi sge, %64, %66 : vector<8x128xi32>
    %cst_29 = arith.constant 0.000000e+00 : f32
    %68 = vector.broadcast %cst_29 : f32 to vector<8x128xf32>
    %69 = arith.select %67, %65, %68 : vector<8x128xi1>, vector<8x128xf32>
    %70 = arith.truncf %69 : vector<8x128xf32> to vector<8x128xbf16>
    %c126_i32 = arith.constant 126 : i32
    %71 = tpu.dynamic_rotate %60 by %c126_i32 dim 1 : vector<8x128xf32>, i32 -> vector<8x128xf32>
    %c126_i32_30 = arith.constant 126 : i32
    %72 = vector.broadcast %c126_i32_30 : i32 to vector<8x128xi32>
    %73 = arith.cmpi slt, %64, %72 : vector<8x128xi32>
    %cst_31 = arith.constant 0.000000e+00 : f32
    %74 = vector.broadcast %cst_31 : f32 to vector<8x128xf32>
    %75 = arith.select %73, %71, %74 : vector<8x128xi1>, vector<8x128xf32>
    %76 = arith.truncf %75 : vector<8x128xf32> to vector<8x128xbf16>
    %77 = tpu.concatenate %70, %63, %76 in 0 : vector<8x128xbf16>, vector<8x128xbf16>, vector<8x128xbf16> -> vector<24x128xbf16>
    %cst_32 = arith.constant dense<0.000000e+00> : vector<8x128xf32>
    %78 = tpu.matmul %62, %77, %cst_32 {dimension_numbers = #tpu.dot_dimension_numbers<[1], [0], [0], [1], [0, 0, 1, 1], [], []>} : vector<8x24xbf16>, vector<24x128xbf16>, vector<8x128xf32> -> vector<8x128xf32>
    %c0_33 = arith.constant 0 : index
    %c0_34 = arith.constant 0 : index
    %c0_35 = arith.constant 0 : index
    %79 = vector.load %arg10[%c0_33, %c0_34, %c0_35] : memref<10x8x1xf32, #tpu.memory_space<vmem>>, vector<1x8x1xf32>
    %80 = vector.shape_cast %79 : vector<1x8x1xf32> to vector<8x1xf32>
    %81 = vector.broadcast %80 : vector<8x1xf32> to vector<8x128xf32>
    %82 = arith.addf %78, %81 : vector<8x128xf32>
    %83 = arith.addf %57, %82 : vector<8x128xf32>
    %cst_36 = arith.constant 2.000000e-01 : f32
    %84 = vector.broadcast %cst_36 : f32 to vector<8x128xf32>
    %85 = arith.mulf %84, %82 : vector<8x128xf32>
    %86 = arith.maximumf %82, %85 : vector<8x128xf32>
    %c1 = arith.constant 1 : index
    %c0_37 = arith.constant 0 : index
    %c0_38 = arith.constant 0 : index
    %87 = vector.load %arg9[%c1, %c0_37, %c0_38] : memref<10x8x24xbf16, #tpu.memory_space<vmem>>, vector<1x8x24xbf16>
    %88 = vector.shape_cast %87 : vector<1x8x24xbf16> to vector<8x24xbf16>
    %89 = arith.truncf %86 : vector<8x128xf32> to vector<8x128xbf16>
    %90 = tpu.iota {dimensions = array<i32: 1>} : vector<8x128xi32>
    %c4_i32 = arith.constant 4 : i32
    %91 = tpu.dynamic_rotate %86 by %c4_i32 dim 1 : vector<8x128xf32>, i32 -> vector<8x128xf32>
    %c4_i32_39 = arith.constant 4 : i32
    %92 = vector.broadcast %c4_i32_39 : i32 to vector<8x128xi32>
    %93 = arith.cmpi sge, %90, %92 : vector<8x128xi32>
    %cst_40 = arith.constant 0.000000e+00 : f32
    %94 = vector.broadcast %cst_40 : f32 to vector<8x128xf32>
    %95 = arith.select %93, %91, %94 : vector<8x128xi1>, vector<8x128xf32>
    %96 = arith.truncf %95 : vector<8x128xf32> to vector<8x128xbf16>
    %c124_i32 = arith.constant 124 : i32
    %97 = tpu.dynamic_rotate %86 by %c124_i32 dim 1 : vector<8x128xf32>, i32 -> vector<8x128xf32>
    %c124_i32_41 = arith.constant 124 : i32
    %98 = vector.broadcast %c124_i32_41 : i32 to vector<8x128xi32>
    %99 = arith.cmpi slt, %90, %98 : vector<8x128xi32>
    %cst_42 = arith.constant 0.000000e+00 : f32
    %100 = vector.broadcast %cst_42 : f32 to vector<8x128xf32>
    %101 = arith.select %99, %97, %100 : vector<8x128xi1>, vector<8x128xf32>
    %102 = arith.truncf %101 : vector<8x128xf32> to vector<8x128xbf16>
    %103 = tpu.concatenate %96, %89, %102 in 0 : vector<8x128xbf16>, vector<8x128xbf16>, vector<8x128xbf16> -> vector<24x128xbf16>
    %cst_43 = arith.constant dense<0.000000e+00> : vector<8x128xf32>
    %104 = tpu.matmul %88, %103, %cst_43 {dimension_numbers = #tpu.dot_dimension_numbers<[1], [0], [0], [1], [0, 0, 1, 1], [], []>} : vector<8x24xbf16>, vector<24x128xbf16>, vector<8x128xf32> -> vector<8x128xf32>
    %c1_44 = arith.constant 1 : index
    %c0_45 = arith.constant 0 : index
    %c0_46 = arith.constant 0 : index
    %105 = vector.load %arg10[%c1_44, %c0_45, %c0_46] : memref<10x8x1xf32, #tpu.memory_space<vmem>>, vector<1x8x1xf32>
    %106 = vector.shape_cast %105 : vector<1x8x1xf32> to vector<8x1xf32>
    %107 = vector.broadcast %106 : vector<8x1xf32> to vector<8x128xf32>
    %108 = arith.addf %104, %107 : vector<8x128xf32>
    %109 = arith.addf %83, %108 : vector<8x128xf32>
    %cst_47 = arith.constant 2.000000e-01 : f32
    %110 = vector.broadcast %cst_47 : f32 to vector<8x128xf32>
    %111 = arith.mulf %110, %108 : vector<8x128xf32>
    %112 = arith.maximumf %108, %111 : vector<8x128xf32>
    %c2 = arith.constant 2 : index
    %c0_48 = arith.constant 0 : index
    %c0_49 = arith.constant 0 : index
    %113 = vector.load %arg9[%c2, %c0_48, %c0_49] : memref<10x8x24xbf16, #tpu.memory_space<vmem>>, vector<1x8x24xbf16>
    %114 = vector.shape_cast %113 : vector<1x8x24xbf16> to vector<8x24xbf16>
    %115 = arith.truncf %112 : vector<8x128xf32> to vector<8x128xbf16>
    %116 = tpu.iota {dimensions = array<i32: 1>} : vector<8x128xi32>
    %c8_i32 = arith.constant 8 : i32
    %117 = tpu.dynamic_rotate %112 by %c8_i32 dim 1 : vector<8x128xf32>, i32 -> vector<8x128xf32>
    %c8_i32_50 = arith.constant 8 : i32
    %118 = vector.broadcast %c8_i32_50 : i32 to vector<8x128xi32>
    %119 = arith.cmpi sge, %116, %118 : vector<8x128xi32>
    %cst_51 = arith.constant 0.000000e+00 : f32
    %120 = vector.broadcast %cst_51 : f32 to vector<8x128xf32>
    %121 = arith.select %119, %117, %120 : vector<8x128xi1>, vector<8x128xf32>
    %122 = arith.truncf %121 : vector<8x128xf32> to vector<8x128xbf16>
    %c120_i32 = arith.constant 120 : i32
    %123 = tpu.dynamic_rotate %112 by %c120_i32 dim 1 : vector<8x128xf32>, i32 -> vector<8x128xf32>
    %c120_i32_52 = arith.constant 120 : i32
    %124 = vector.broadcast %c120_i32_52 : i32 to vector<8x128xi32>
    %125 = arith.cmpi slt, %116, %124 : vector<8x128xi32>
    %cst_53 = arith.constant 0.000000e+00 : f32
    %126 = vector.broadcast %cst_53 : f32 to vector<8x128xf32>
    %127 = arith.select %125, %123, %126 : vector<8x128xi1>, vector<8x128xf32>
    %128 = arith.truncf %127 : vector<8x128xf32> to vector<8x128xbf16>
    %129 = tpu.concatenate %122, %115, %128 in 0 : vector<8x128xbf16>, vector<8x128xbf16>, vector<8x128xbf16> -> vector<24x128xbf16>
    %cst_54 = arith.constant dense<0.000000e+00> : vector<8x128xf32>
    %130 = tpu.matmul %114, %129, %cst_54 {dimension_numbers = #tpu.dot_dimension_numbers<[1], [0], [0], [1], [0, 0, 1, 1], [], []>} : vector<8x24xbf16>, vector<24x128xbf16>, vector<8x128xf32> -> vector<8x128xf32>
    %c2_55 = arith.constant 2 : index
    %c0_56 = arith.constant 0 : index
    %c0_57 = arith.constant 0 : index
    %131 = vector.load %arg10[%c2_55, %c0_56, %c0_57] : memref<10x8x1xf32, #tpu.memory_space<vmem>>, vector<1x8x1xf32>
    %132 = vector.shape_cast %131 : vector<1x8x1xf32> to vector<8x1xf32>
    %133 = vector.broadcast %132 : vector<8x1xf32> to vector<8x128xf32>
    %134 = arith.addf %130, %133 : vector<8x128xf32>
    %135 = arith.addf %109, %134 : vector<8x128xf32>
    %cst_58 = arith.constant 2.000000e-01 : f32
    %136 = vector.broadcast %cst_58 : f32 to vector<8x128xf32>
    %137 = arith.mulf %136, %134 : vector<8x128xf32>
    %138 = arith.maximumf %134, %137 : vector<8x128xf32>
    %c3 = arith.constant 3 : index
    %c0_59 = arith.constant 0 : index
    %c0_60 = arith.constant 0 : index
    %139 = vector.load %arg9[%c3, %c0_59, %c0_60] : memref<10x8x24xbf16, #tpu.memory_space<vmem>>, vector<1x8x24xbf16>
    %140 = vector.shape_cast %139 : vector<1x8x24xbf16> to vector<8x24xbf16>
    %141 = arith.truncf %138 : vector<8x128xf32> to vector<8x128xbf16>
    %142 = tpu.iota {dimensions = array<i32: 1>} : vector<8x128xi32>
    %c16_i32 = arith.constant 16 : i32
    %143 = tpu.dynamic_rotate %138 by %c16_i32 dim 1 : vector<8x128xf32>, i32 -> vector<8x128xf32>
    %c16_i32_61 = arith.constant 16 : i32
    %144 = vector.broadcast %c16_i32_61 : i32 to vector<8x128xi32>
    %145 = arith.cmpi sge, %142, %144 : vector<8x128xi32>
    %cst_62 = arith.constant 0.000000e+00 : f32
    %146 = vector.broadcast %cst_62 : f32 to vector<8x128xf32>
    %147 = arith.select %145, %143, %146 : vector<8x128xi1>, vector<8x128xf32>
    %148 = arith.truncf %147 : vector<8x128xf32> to vector<8x128xbf16>
    %c112_i32 = arith.constant 112 : i32
    %149 = tpu.dynamic_rotate %138 by %c112_i32 dim 1 : vector<8x128xf32>, i32 -> vector<8x128xf32>
    %c112_i32_63 = arith.constant 112 : i32
    %150 = vector.broadcast %c112_i32_63 : i32 to vector<8x128xi32>
    %151 = arith.cmpi slt, %142, %150 : vector<8x128xi32>
    %cst_64 = arith.constant 0.000000e+00 : f32
    %152 = vector.broadcast %cst_64 : f32 to vector<8x128xf32>
    %153 = arith.select %151, %149, %152 : vector<8x128xi1>, vector<8x128xf32>
    %154 = arith.truncf %153 : vector<8x128xf32> to vector<8x128xbf16>
    %155 = tpu.concatenate %148, %141, %154 in 0 : vector<8x128xbf16>, vector<8x128xbf16>, vector<8x128xbf16> -> vector<24x128xbf16>
    %cst_65 = arith.constant dense<0.000000e+00> : vector<8x128xf32>
    %156 = tpu.matmul %140, %155, %cst_65 {dimension_numbers = #tpu.dot_dimension_numbers<[1], [0], [0], [1], [0, 0, 1, 1], [], []>} : vector<8x24xbf16>, vector<24x128xbf16>, vector<8x128xf32> -> vector<8x128xf32>
    %c3_66 = arith.constant 3 : index
    %c0_67 = arith.constant 0 : index
    %c0_68 = arith.constant 0 : index
    %157 = vector.load %arg10[%c3_66, %c0_67, %c0_68] : memref<10x8x1xf32, #tpu.memory_space<vmem>>, vector<1x8x1xf32>
    %158 = vector.shape_cast %157 : vector<1x8x1xf32> to vector<8x1xf32>
    %159 = vector.broadcast %158 : vector<8x1xf32> to vector<8x128xf32>
    %160 = arith.addf %156, %159 : vector<8x128xf32>
    %161 = arith.addf %135, %160 : vector<8x128xf32>
    %cst_69 = arith.constant 2.000000e-01 : f32
    %162 = vector.broadcast %cst_69 : f32 to vector<8x128xf32>
    %163 = arith.mulf %162, %160 : vector<8x128xf32>
    %164 = arith.maximumf %160, %163 : vector<8x128xf32>
    %c4 = arith.constant 4 : index
    %c0_70 = arith.constant 0 : index
    %c0_71 = arith.constant 0 : index
    %165 = vector.load %arg9[%c4, %c0_70, %c0_71] : memref<10x8x24xbf16, #tpu.memory_space<vmem>>, vector<1x8x24xbf16>
    %166 = vector.shape_cast %165 : vector<1x8x24xbf16> to vector<8x24xbf16>
    %167 = arith.truncf %164 : vector<8x128xf32> to vector<8x128xbf16>
    %168 = tpu.iota {dimensions = array<i32: 1>} : vector<8x128xi32>
    %c32_i32 = arith.constant 32 : i32
    %169 = tpu.dynamic_rotate %164 by %c32_i32 dim 1 : vector<8x128xf32>, i32 -> vector<8x128xf32>
    %c32_i32_72 = arith.constant 32 : i32
    %170 = vector.broadcast %c32_i32_72 : i32 to vector<8x128xi32>
    %171 = arith.cmpi sge, %168, %170 : vector<8x128xi32>
    %cst_73 = arith.constant 0.000000e+00 : f32
    %172 = vector.broadcast %cst_73 : f32 to vector<8x128xf32>
    %173 = arith.select %171, %169, %172 : vector<8x128xi1>, vector<8x128xf32>
    %174 = arith.truncf %173 : vector<8x128xf32> to vector<8x128xbf16>
    %c96_i32 = arith.constant 96 : i32
    %175 = tpu.dynamic_rotate %164 by %c96_i32 dim 1 : vector<8x128xf32>, i32 -> vector<8x128xf32>
    %c96_i32_74 = arith.constant 96 : i32
    %176 = vector.broadcast %c96_i32_74 : i32 to vector<8x128xi32>
    %177 = arith.cmpi slt, %168, %176 : vector<8x128xi32>
    %cst_75 = arith.constant 0.000000e+00 : f32
    %178 = vector.broadcast %cst_75 : f32 to vector<8x128xf32>
    %179 = arith.select %177, %175, %178 : vector<8x128xi1>, vector<8x128xf32>
    %180 = arith.truncf %179 : vector<8x128xf32> to vector<8x128xbf16>
    %181 = tpu.concatenate %174, %167, %180 in 0 : vector<8x128xbf16>, vector<8x128xbf16>, vector<8x128xbf16> -> vector<24x128xbf16>
    %cst_76 = arith.constant dense<0.000000e+00> : vector<8x128xf32>
    %182 = tpu.matmul %166, %181, %cst_76 {dimension_numbers = #tpu.dot_dimension_numbers<[1], [0], [0], [1], [0, 0, 1, 1], [], []>} : vector<8x24xbf16>, vector<24x128xbf16>, vector<8x128xf32> -> vector<8x128xf32>
    %c4_77 = arith.constant 4 : index
    %c0_78 = arith.constant 0 : index
    %c0_79 = arith.constant 0 : index
    %183 = vector.load %arg10[%c4_77, %c0_78, %c0_79] : memref<10x8x1xf32, #tpu.memory_space<vmem>>, vector<1x8x1xf32>
    %184 = vector.shape_cast %183 : vector<1x8x1xf32> to vector<8x1xf32>
    %185 = vector.broadcast %184 : vector<8x1xf32> to vector<8x128xf32>
    %186 = arith.addf %182, %185 : vector<8x128xf32>
    %187 = arith.addf %161, %186 : vector<8x128xf32>
    %cst_80 = arith.constant 2.000000e-01 : f32
    %188 = vector.broadcast %cst_80 : f32 to vector<8x128xf32>
    %189 = arith.mulf %188, %186 : vector<8x128xf32>
    %190 = arith.maximumf %186, %189 : vector<8x128xf32>
    %c5 = arith.constant 5 : index
    %c0_81 = arith.constant 0 : index
    %c0_82 = arith.constant 0 : index
    %191 = vector.load %arg9[%c5, %c0_81, %c0_82] : memref<10x8x24xbf16, #tpu.memory_space<vmem>>, vector<1x8x24xbf16>
    %192 = vector.shape_cast %191 : vector<1x8x24xbf16> to vector<8x24xbf16>
    %193 = arith.truncf %190 : vector<8x128xf32> to vector<8x128xbf16>
    %194 = tpu.iota {dimensions = array<i32: 1>} : vector<8x128xi32>
    %c64_i32 = arith.constant 64 : i32
    %195 = tpu.dynamic_rotate %190 by %c64_i32 dim 1 : vector<8x128xf32>, i32 -> vector<8x128xf32>
    %c64_i32_83 = arith.constant 64 : i32
    %196 = vector.broadcast %c64_i32_83 : i32 to vector<8x128xi32>
    %197 = arith.cmpi sge, %194, %196 : vector<8x128xi32>
    %cst_84 = arith.constant 0.000000e+00 : f32
    %198 = vector.broadcast %cst_84 : f32 to vector<8x128xf32>
    %199 = arith.select %197, %195, %198 : vector<8x128xi1>, vector<8x128xf32>
    %200 = arith.truncf %199 : vector<8x128xf32> to vector<8x128xbf16>
    %c64_i32_85 = arith.constant 64 : i32
    %201 = tpu.dynamic_rotate %190 by %c64_i32_85 dim 1 : vector<8x128xf32>, i32 -> vector<8x128xf32>
    %c64_i32_86 = arith.constant 64 : i32
    %202 = vector.broadcast %c64_i32_86 : i32 to vector<8x128xi32>
    %203 = arith.cmpi slt, %194, %202 : vector<8x128xi32>
    %cst_87 = arith.constant 0.000000e+00 : f32
    %204 = vector.broadcast %cst_87 : f32 to vector<8x128xf32>
    %205 = arith.select %203, %201, %204 : vector<8x128xi1>, vector<8x128xf32>
    %206 = arith.truncf %205 : vector<8x128xf32> to vector<8x128xbf16>
    %207 = tpu.concatenate %200, %193, %206 in 0 : vector<8x128xbf16>, vector<8x128xbf16>, vector<8x128xbf16> -> vector<24x128xbf16>
    %cst_88 = arith.constant dense<0.000000e+00> : vector<8x128xf32>
    %208 = tpu.matmul %192, %207, %cst_88 {dimension_numbers = #tpu.dot_dimension_numbers<[1], [0], [0], [1], [0, 0, 1, 1], [], []>} : vector<8x24xbf16>, vector<24x128xbf16>, vector<8x128xf32> -> vector<8x128xf32>
    %c5_89 = arith.constant 5 : index
    %c0_90 = arith.constant 0 : index
    %c0_91 = arith.constant 0 : index
    %209 = vector.load %arg10[%c5_89, %c0_90, %c0_91] : memref<10x8x1xf32, #tpu.memory_space<vmem>>, vector<1x8x1xf32>
    %210 = vector.shape_cast %209 : vector<1x8x1xf32> to vector<8x1xf32>
    %211 = vector.broadcast %210 : vector<8x1xf32> to vector<8x128xf32>
    %212 = arith.addf %208, %211 : vector<8x128xf32>
    %213 = arith.addf %187, %212 : vector<8x128xf32>
    %cst_92 = arith.constant 2.000000e-01 : f32
    %214 = vector.broadcast %cst_92 : f32 to vector<8x128xf32>
    %215 = arith.mulf %214, %212 : vector<8x128xf32>
    %216 = arith.maximumf %212, %215 : vector<8x128xf32>
    %c6 = arith.constant 6 : index
    %c0_93 = arith.constant 0 : index
    %c0_94 = arith.constant 0 : index
    %217 = vector.load %arg9[%c6, %c0_93, %c0_94] : memref<10x8x24xbf16, #tpu.memory_space<vmem>>, vector<1x8x24xbf16>
    %218 = vector.shape_cast %217 : vector<1x8x24xbf16> to vector<8x24xbf16>
    %219 = arith.truncf %216 : vector<8x128xf32> to vector<8x128xbf16>
    %220 = vector.extract_strided_slice %218 {offsets = [0, 8], sizes = [8, 8], strides = [1, 1]} : vector<8x24xbf16> to vector<8x8xbf16>
    %cst_95 = arith.constant dense<0.000000e+00> : vector<8x128xf32>
    %221 = tpu.matmul %220, %219, %cst_95 {dimension_numbers = #tpu.dot_dimension_numbers<[1], [0], [0], [1], [0, 0, 1, 1], [], []>} : vector<8x8xbf16>, vector<8x128xbf16>, vector<8x128xf32> -> vector<8x128xf32>
    %c6_96 = arith.constant 6 : index
    %c0_97 = arith.constant 0 : index
    %c0_98 = arith.constant 0 : index
    %222 = vector.load %arg10[%c6_96, %c0_97, %c0_98] : memref<10x8x1xf32, #tpu.memory_space<vmem>>, vector<1x8x1xf32>
    %223 = vector.shape_cast %222 : vector<1x8x1xf32> to vector<8x1xf32>
    %224 = vector.broadcast %223 : vector<8x1xf32> to vector<8x128xf32>
    %225 = arith.addf %221, %224 : vector<8x128xf32>
    %226 = arith.addf %213, %225 : vector<8x128xf32>
    %cst_99 = arith.constant 2.000000e-01 : f32
    %227 = vector.broadcast %cst_99 : f32 to vector<8x128xf32>
    %228 = arith.mulf %227, %225 : vector<8x128xf32>
    %229 = arith.maximumf %225, %228 : vector<8x128xf32>
    %c7 = arith.constant 7 : index
    %c0_100 = arith.constant 0 : index
    %c0_101 = arith.constant 0 : index
    %230 = vector.load %arg9[%c7, %c0_100, %c0_101] : memref<10x8x24xbf16, #tpu.memory_space<vmem>>, vector<1x8x24xbf16>
    %231 = vector.shape_cast %230 : vector<1x8x24xbf16> to vector<8x24xbf16>
    %232 = arith.truncf %229 : vector<8x128xf32> to vector<8x128xbf16>
    %233 = vector.extract_strided_slice %231 {offsets = [0, 8], sizes = [8, 8], strides = [1, 1]} : vector<8x24xbf16> to vector<8x8xbf16>
    %cst_102 = arith.constant dense<0.000000e+00> : vector<8x128xf32>
    %234 = tpu.matmul %233, %232, %cst_102 {dimension_numbers = #tpu.dot_dimension_numbers<[1], [0], [0], [1], [0, 0, 1, 1], [], []>} : vector<8x8xbf16>, vector<8x128xbf16>, vector<8x128xf32> -> vector<8x128xf32>
    %c7_103 = arith.constant 7 : index
    %c0_104 = arith.constant 0 : index
    %c0_105 = arith.constant 0 : index
    %235 = vector.load %arg10[%c7_103, %c0_104, %c0_105] : memref<10x8x1xf32, #tpu.memory_space<vmem>>, vector<1x8x1xf32>
    %236 = vector.shape_cast %235 : vector<1x8x1xf32> to vector<8x1xf32>
    %237 = vector.broadcast %236 : vector<8x1xf32> to vector<8x128xf32>
    %238 = arith.addf %234, %237 : vector<8x128xf32>
    %239 = arith.addf %226, %238 : vector<8x128xf32>
    %cst_106 = arith.constant 2.000000e-01 : f32
    %240 = vector.broadcast %cst_106 : f32 to vector<8x128xf32>
    %241 = arith.mulf %240, %238 : vector<8x128xf32>
    %242 = arith.maximumf %238, %241 : vector<8x128xf32>
    %c8 = arith.constant 8 : index
    %c0_107 = arith.constant 0 : index
    %c0_108 = arith.constant 0 : index
    %243 = vector.load %arg9[%c8, %c0_107, %c0_108] : memref<10x8x24xbf16, #tpu.memory_space<vmem>>, vector<1x8x24xbf16>
    %244 = vector.shape_cast %243 : vector<1x8x24xbf16> to vector<8x24xbf16>
    %245 = arith.truncf %242 : vector<8x128xf32> to vector<8x128xbf16>
    %246 = vector.extract_strided_slice %244 {offsets = [0, 8], sizes = [8, 8], strides = [1, 1]} : vector<8x24xbf16> to vector<8x8xbf16>
    %cst_109 = arith.constant dense<0.000000e+00> : vector<8x128xf32>
    %247 = tpu.matmul %246, %245, %cst_109 {dimension_numbers = #tpu.dot_dimension_numbers<[1], [0], [0], [1], [0, 0, 1, 1], [], []>} : vector<8x8xbf16>, vector<8x128xbf16>, vector<8x128xf32> -> vector<8x128xf32>
    %c8_110 = arith.constant 8 : index
    %c0_111 = arith.constant 0 : index
    %c0_112 = arith.constant 0 : index
    %248 = vector.load %arg10[%c8_110, %c0_111, %c0_112] : memref<10x8x1xf32, #tpu.memory_space<vmem>>, vector<1x8x1xf32>
    %249 = vector.shape_cast %248 : vector<1x8x1xf32> to vector<8x1xf32>
    %250 = vector.broadcast %249 : vector<8x1xf32> to vector<8x128xf32>
    %251 = arith.addf %247, %250 : vector<8x128xf32>
    %252 = arith.addf %239, %251 : vector<8x128xf32>
    %cst_113 = arith.constant 2.000000e-01 : f32
    %253 = vector.broadcast %cst_113 : f32 to vector<8x128xf32>
    %254 = arith.mulf %253, %251 : vector<8x128xf32>
    %255 = arith.maximumf %251, %254 : vector<8x128xf32>
    %c9 = arith.constant 9 : index
    %c0_114 = arith.constant 0 : index
    %c0_115 = arith.constant 0 : index
    %256 = vector.load %arg9[%c9, %c0_114, %c0_115] : memref<10x8x24xbf16, #tpu.memory_space<vmem>>, vector<1x8x24xbf16>
    %257 = vector.shape_cast %256 : vector<1x8x24xbf16> to vector<8x24xbf16>
    %258 = arith.truncf %255 : vector<8x128xf32> to vector<8x128xbf16>
    %259 = vector.extract_strided_slice %257 {offsets = [0, 8], sizes = [8, 8], strides = [1, 1]} : vector<8x24xbf16> to vector<8x8xbf16>
    %cst_116 = arith.constant dense<0.000000e+00> : vector<8x128xf32>
    %260 = tpu.matmul %259, %258, %cst_116 {dimension_numbers = #tpu.dot_dimension_numbers<[1], [0], [0], [1], [0, 0, 1, 1], [], []>} : vector<8x8xbf16>, vector<8x128xbf16>, vector<8x128xf32> -> vector<8x128xf32>
    %c9_117 = arith.constant 9 : index
    %c0_118 = arith.constant 0 : index
    %c0_119 = arith.constant 0 : index
    %261 = vector.load %arg10[%c9_117, %c0_118, %c0_119] : memref<10x8x1xf32, #tpu.memory_space<vmem>>, vector<1x8x1xf32>
    %262 = vector.shape_cast %261 : vector<1x8x1xf32> to vector<8x1xf32>
    %263 = vector.broadcast %262 : vector<8x1xf32> to vector<8x128xf32>
    %264 = arith.addf %260, %263 : vector<8x128xf32>
    %265 = arith.addf %252, %264 : vector<8x128xf32>
    %cst_120 = arith.constant 2.000000e-01 : f32
    %266 = vector.broadcast %cst_120 : f32 to vector<8x128xf32>
    %267 = arith.mulf %266, %265 : vector<8x128xf32>
    %268 = arith.maximumf %265, %267 : vector<8x128xf32>
    %c0_121 = arith.constant 0 : index
    %c0_122 = arith.constant 0 : index
    %269 = vector.load %arg5[%c0_121, %c0_122] : memref<4x51xbf16, #tpu.memory_space<vmem>>, vector<4x51xbf16>
    %270 = arith.truncf %1 : vector<3x128xf32> to vector<3x128xbf16>
    %cst_123 = arith.constant 0.000000e+00 : bf16
    %271 = vector.broadcast %cst_123 : bf16 to vector<3x8xbf16>
    %272 = tpu.concatenate %271, %270, %271 in 1 : vector<3x8xbf16>, vector<3x128xbf16>, vector<3x8xbf16> -> vector<3x144xbf16>
    %273 = vector.extract_strided_slice %272 {offsets = [0, 0], sizes = [3, 128], strides = [1, 1]} : vector<3x144xbf16> to vector<3x128xbf16>
    %274 = vector.extract_strided_slice %272 {offsets = [0, 1], sizes = [3, 128], strides = [1, 1]} : vector<3x144xbf16> to vector<3x128xbf16>
    %275 = vector.extract_strided_slice %272 {offsets = [0, 2], sizes = [3, 128], strides = [1, 1]} : vector<3x144xbf16> to vector<3x128xbf16>
    %276 = vector.extract_strided_slice %272 {offsets = [0, 3], sizes = [3, 128], strides = [1, 1]} : vector<3x144xbf16> to vector<3x128xbf16>
    %277 = vector.extract_strided_slice %272 {offsets = [0, 4], sizes = [3, 128], strides = [1, 1]} : vector<3x144xbf16> to vector<3x128xbf16>
    %278 = vector.extract_strided_slice %272 {offsets = [0, 5], sizes = [3, 128], strides = [1, 1]} : vector<3x144xbf16> to vector<3x128xbf16>
    %279 = vector.extract_strided_slice %272 {offsets = [0, 6], sizes = [3, 128], strides = [1, 1]} : vector<3x144xbf16> to vector<3x128xbf16>
    %280 = vector.extract_strided_slice %272 {offsets = [0, 7], sizes = [3, 128], strides = [1, 1]} : vector<3x144xbf16> to vector<3x128xbf16>
    %281 = vector.extract_strided_slice %272 {offsets = [0, 8], sizes = [3, 128], strides = [1, 1]} : vector<3x144xbf16> to vector<3x128xbf16>
    %282 = vector.extract_strided_slice %272 {offsets = [0, 9], sizes = [3, 128], strides = [1, 1]} : vector<3x144xbf16> to vector<3x128xbf16>
    %283 = vector.extract_strided_slice %272 {offsets = [0, 10], sizes = [3, 128], strides = [1, 1]} : vector<3x144xbf16> to vector<3x128xbf16>
    %284 = vector.extract_strided_slice %272 {offsets = [0, 11], sizes = [3, 128], strides = [1, 1]} : vector<3x144xbf16> to vector<3x128xbf16>
    %285 = vector.extract_strided_slice %272 {offsets = [0, 12], sizes = [3, 128], strides = [1, 1]} : vector<3x144xbf16> to vector<3x128xbf16>
    %286 = vector.extract_strided_slice %272 {offsets = [0, 13], sizes = [3, 128], strides = [1, 1]} : vector<3x144xbf16> to vector<3x128xbf16>
    %287 = vector.extract_strided_slice %272 {offsets = [0, 14], sizes = [3, 128], strides = [1, 1]} : vector<3x144xbf16> to vector<3x128xbf16>
    %288 = vector.extract_strided_slice %272 {offsets = [0, 15], sizes = [3, 128], strides = [1, 1]} : vector<3x144xbf16> to vector<3x128xbf16>
    %289 = vector.extract_strided_slice %272 {offsets = [0, 16], sizes = [3, 128], strides = [1, 1]} : vector<3x144xbf16> to vector<3x128xbf16>
    %290 = tpu.concatenate %273, %274, %275, %276, %277, %278, %279, %280, %281, %282, %283, %284, %285, %286, %287, %288 in 0 : vector<3x128xbf16>, vector<3x128xbf16>, vector<3x128xbf16>, vector<3x128xbf16>, vector<3x128xbf16>, vector<3x128xbf16>, vector<3x128xbf16>, vector<3x128xbf16>, vector<3x128xbf16>, vector<3x128xbf16>, vector<3x128xbf16>, vector<3x128xbf16>, vector<3x128xbf16>, vector<3x128xbf16>, vector<3x128xbf16>, vector<3x128xbf16> -> vector<48x128xbf16>
    %291 = tpu.concatenate %290, %289 in 0 : vector<48x128xbf16>, vector<3x128xbf16> -> vector<51x128xbf16>
    %cst_124 = arith.constant dense<0.000000e+00> : vector<4x128xf32>
    %292 = tpu.matmul %269, %291, %cst_124 {dimension_numbers = #tpu.dot_dimension_numbers<[1], [0], [0], [1], [0, 0, 1, 1], [], []>} : vector<4x51xbf16>, vector<51x128xbf16>, vector<4x128xf32> -> vector<4x128xf32>
    %c0_125 = arith.constant 0 : index
    %c0_126 = arith.constant 0 : index
    %293 = vector.load %arg6[%c0_125, %c0_126] : memref<4x1xf32, #tpu.memory_space<vmem>>, vector<4x1xf32>
    %294 = vector.broadcast %293 : vector<4x1xf32> to vector<4x128xf32>
    %295 = arith.addf %292, %294 : vector<4x128xf32>
    %c0_127 = arith.constant 0 : index
    %c0_128 = arith.constant 0 : index
    %296 = vector.load %arg18[%c0_127, %c0_128] : memref<8x1xf32, #tpu.memory_space<vmem>>, vector<8x1xf32>
    %c0_129 = arith.constant 0 : index
    %c0_130 = arith.constant 0 : index
    %297 = vector.load %arg17[%c0_129, %c0_130] : memref<8x4xbf16, #tpu.memory_space<vmem>>, vector<8x4xbf16>
    %298 = arith.truncf %295 : vector<4x128xf32> to vector<4x128xbf16>
    %cst_131 = arith.constant dense<0.000000e+00> : vector<8x128xf32>
    %299 = tpu.matmul %297, %298, %cst_131 {dimension_numbers = #tpu.dot_dimension_numbers<[1], [0], [0], [1], [0, 0, 1, 1], [], []>} : vector<8x4xbf16>, vector<4x128xbf16>, vector<8x128xf32> -> vector<8x128xf32>
    %300 = vector.broadcast %296 : vector<8x1xf32> to vector<8x128xf32>
    %301 = arith.addf %300, %299 : vector<8x128xf32>
    %c0_132 = arith.constant 0 : index
    %c0_133 = arith.constant 0 : index
    %302 = vector.load %arg14[%c0_132, %c0_133] : memref<8x1xf32, #tpu.memory_space<vmem>>, vector<8x1xf32>
    %c0_134 = arith.constant 0 : index
    %c0_135 = arith.constant 0 : index
    %303 = vector.load %arg13[%c0_134, %c0_135] : memref<8x12xbf16, #tpu.memory_space<vmem>>, vector<8x12xbf16>
    %304 = arith.truncf %295 : vector<4x128xf32> to vector<4x128xbf16>
    %305 = tpu.iota {dimensions = array<i32: 1>} : vector<4x128xi32>
    %c1_i32_136 = arith.constant 1 : i32
    %306 = tpu.dynamic_rotate %295 by %c1_i32_136 dim 1 : vector<4x128xf32>, i32 -> vector<4x128xf32>
    %c1_i32_137 = arith.constant 1 : i32
    %307 = vector.broadcast %c1_i32_137 : i32 to vector<4x128xi32>
    %308 = arith.cmpi sge, %305, %307 : vector<4x128xi32>
    %cst_138 = arith.constant 0.000000e+00 : f32
    %309 = vector.broadcast %cst_138 : f32 to vector<4x128xf32>
    %310 = arith.select %308, %306, %309 : vector<4x128xi1>, vector<4x128xf32>
    %311 = arith.truncf %310 : vector<4x128xf32> to vector<4x128xbf16>
    %c127_i32_139 = arith.constant 127 : i32
    %312 = tpu.dynamic_rotate %295 by %c127_i32_139 dim 1 : vector<4x128xf32>, i32 -> vector<4x128xf32>
    %c127_i32_140 = arith.constant 127 : i32
    %313 = vector.broadcast %c127_i32_140 : i32 to vector<4x128xi32>
    %314 = arith.cmpi slt, %305, %313 : vector<4x128xi32>
    %cst_141 = arith.constant 0.000000e+00 : f32
    %315 = vector.broadcast %cst_141 : f32 to vector<4x128xf32>
    %316 = arith.select %314, %312, %315 : vector<4x128xi1>, vector<4x128xf32>
    %317 = arith.truncf %316 : vector<4x128xf32> to vector<4x128xbf16>
    %318 = tpu.concatenate %311, %304, %317 in 0 : vector<4x128xbf16>, vector<4x128xbf16>, vector<4x128xbf16> -> vector<12x128xbf16>
    %cst_142 = arith.constant dense<0.000000e+00> : vector<8x128xf32>
    %319 = tpu.matmul %303, %318, %cst_142 {dimension_numbers = #tpu.dot_dimension_numbers<[1], [0], [0], [1], [0, 0, 1, 1], [], []>} : vector<8x12xbf16>, vector<12x128xbf16>, vector<8x128xf32> -> vector<8x128xf32>
    %320 = vector.broadcast %302 : vector<8x1xf32> to vector<8x128xf32>
    %321 = arith.addf %320, %319 : vector<8x128xf32>
    %322 = arith.addf %301, %321 : vector<8x128xf32>
    %cst_143 = arith.constant 2.000000e-01 : f32
    %323 = vector.broadcast %cst_143 : f32 to vector<8x128xf32>
    %324 = arith.mulf %323, %321 : vector<8x128xf32>
    %325 = arith.maximumf %321, %324 : vector<8x128xf32>
    %c0_144 = arith.constant 0 : index
    %c0_145 = arith.constant 0 : index
    %c0_146 = arith.constant 0 : index
    %326 = vector.load %arg15[%c0_144, %c0_145, %c0_146] : memref<10x8x24xbf16, #tpu.memory_space<vmem>>, vector<1x8x24xbf16>
    %327 = vector.shape_cast %326 : vector<1x8x24xbf16> to vector<8x24xbf16>
    %328 = arith.truncf %325 : vector<8x128xf32> to vector<8x128xbf16>
    %329 = tpu.iota {dimensions = array<i32: 1>} : vector<8x128xi32>
    %c2_i32_147 = arith.constant 2 : i32
    %330 = tpu.dynamic_rotate %325 by %c2_i32_147 dim 1 : vector<8x128xf32>, i32 -> vector<8x128xf32>
    %c2_i32_148 = arith.constant 2 : i32
    %331 = vector.broadcast %c2_i32_148 : i32 to vector<8x128xi32>
    %332 = arith.cmpi sge, %329, %331 : vector<8x128xi32>
    %cst_149 = arith.constant 0.000000e+00 : f32
    %333 = vector.broadcast %cst_149 : f32 to vector<8x128xf32>
    %334 = arith.select %332, %330, %333 : vector<8x128xi1>, vector<8x128xf32>
    %335 = arith.truncf %334 : vector<8x128xf32> to vector<8x128xbf16>
    %c126_i32_150 = arith.constant 126 : i32
    %336 = tpu.dynamic_rotate %325 by %c126_i32_150 dim 1 : vector<8x128xf32>, i32 -> vector<8x128xf32>
    %c126_i32_151 = arith.constant 126 : i32
    %337 = vector.broadcast %c126_i32_151 : i32 to vector<8x128xi32>
    %338 = arith.cmpi slt, %329, %337 : vector<8x128xi32>
    %cst_152 = arith.constant 0.000000e+00 : f32
    %339 = vector.broadcast %cst_152 : f32 to vector<8x128xf32>
    %340 = arith.select %338, %336, %339 : vector<8x128xi1>, vector<8x128xf32>
    %341 = arith.truncf %340 : vector<8x128xf32> to vector<8x128xbf16>
    %342 = tpu.concatenate %335, %328, %341 in 0 : vector<8x128xbf16>, vector<8x128xbf16>, vector<8x128xbf16> -> vector<24x128xbf16>
    %cst_153 = arith.constant dense<0.000000e+00> : vector<8x128xf32>
    %343 = tpu.matmul %327, %342, %cst_153 {dimension_numbers = #tpu.dot_dimension_numbers<[1], [0], [0], [1], [0, 0, 1, 1], [], []>} : vector<8x24xbf16>, vector<24x128xbf16>, vector<8x128xf32> -> vector<8x128xf32>
    %c0_154 = arith.constant 0 : index
    %c0_155 = arith.constant 0 : index
    %c0_156 = arith.constant 0 : index
    %344 = vector.load %arg16[%c0_154, %c0_155, %c0_156] : memref<10x8x1xf32, #tpu.memory_space<vmem>>, vector<1x8x1xf32>
    %345 = vector.shape_cast %344 : vector<1x8x1xf32> to vector<8x1xf32>
    %346 = vector.broadcast %345 : vector<8x1xf32> to vector<8x128xf32>
    %347 = arith.addf %343, %346 : vector<8x128xf32>
    %348 = arith.addf %322, %347 : vector<8x128xf32>
    %cst_157 = arith.constant 2.000000e-01 : f32
    %349 = vector.broadcast %cst_157 : f32 to vector<8x128xf32>
    %350 = arith.mulf %349, %347 : vector<8x128xf32>
    %351 = arith.maximumf %347, %350 : vector<8x128xf32>
    %c1_158 = arith.constant 1 : index
    %c0_159 = arith.constant 0 : index
    %c0_160 = arith.constant 0 : index
    %352 = vector.load %arg15[%c1_158, %c0_159, %c0_160] : memref<10x8x24xbf16, #tpu.memory_space<vmem>>, vector<1x8x24xbf16>
    %353 = vector.shape_cast %352 : vector<1x8x24xbf16> to vector<8x24xbf16>
    %354 = arith.truncf %351 : vector<8x128xf32> to vector<8x128xbf16>
    %355 = tpu.iota {dimensions = array<i32: 1>} : vector<8x128xi32>
    %c4_i32_161 = arith.constant 4 : i32
    %356 = tpu.dynamic_rotate %351 by %c4_i32_161 dim 1 : vector<8x128xf32>, i32 -> vector<8x128xf32>
    %c4_i32_162 = arith.constant 4 : i32
    %357 = vector.broadcast %c4_i32_162 : i32 to vector<8x128xi32>
    %358 = arith.cmpi sge, %355, %357 : vector<8x128xi32>
    %cst_163 = arith.constant 0.000000e+00 : f32
    %359 = vector.broadcast %cst_163 : f32 to vector<8x128xf32>
    %360 = arith.select %358, %356, %359 : vector<8x128xi1>, vector<8x128xf32>
    %361 = arith.truncf %360 : vector<8x128xf32> to vector<8x128xbf16>
    %c124_i32_164 = arith.constant 124 : i32
    %362 = tpu.dynamic_rotate %351 by %c124_i32_164 dim 1 : vector<8x128xf32>, i32 -> vector<8x128xf32>
    %c124_i32_165 = arith.constant 124 : i32
    %363 = vector.broadcast %c124_i32_165 : i32 to vector<8x128xi32>
    %364 = arith.cmpi slt, %355, %363 : vector<8x128xi32>
    %cst_166 = arith.constant 0.000000e+00 : f32
    %365 = vector.broadcast %cst_166 : f32 to vector<8x128xf32>
    %366 = arith.select %364, %362, %365 : vector<8x128xi1>, vector<8x128xf32>
    %367 = arith.truncf %366 : vector<8x128xf32> to vector<8x128xbf16>
    %368 = tpu.concatenate %361, %354, %367 in 0 : vector<8x128xbf16>, vector<8x128xbf16>, vector<8x128xbf16> -> vector<24x128xbf16>
    %cst_167 = arith.constant dense<0.000000e+00> : vector<8x128xf32>
    %369 = tpu.matmul %353, %368, %cst_167 {dimension_numbers = #tpu.dot_dimension_numbers<[1], [0], [0], [1], [0, 0, 1, 1], [], []>} : vector<8x24xbf16>, vector<24x128xbf16>, vector<8x128xf32> -> vector<8x128xf32>
    %c1_168 = arith.constant 1 : index
    %c0_169 = arith.constant 0 : index
    %c0_170 = arith.constant 0 : index
    %370 = vector.load %arg16[%c1_168, %c0_169, %c0_170] : memref<10x8x1xf32, #tpu.memory_space<vmem>>, vector<1x8x1xf32>
    %371 = vector.shape_cast %370 : vector<1x8x1xf32> to vector<8x1xf32>
    %372 = vector.broadcast %371 : vector<8x1xf32> to vector<8x128xf32>
    %373 = arith.addf %369, %372 : vector<8x128xf32>
    %374 = arith.addf %348, %373 : vector<8x128xf32>
    %cst_171 = arith.constant 2.000000e-01 : f32
    %375 = vector.broadcast %cst_171 : f32 to vector<8x128xf32>
    %376 = arith.mulf %375, %373 : vector<8x128xf32>
    %377 = arith.maximumf %373, %376 : vector<8x128xf32>
    %c2_172 = arith.constant 2 : index
    %c0_173 = arith.constant 0 : index
    %c0_174 = arith.constant 0 : index
    %378 = vector.load %arg15[%c2_172, %c0_173, %c0_174] : memref<10x8x24xbf16, #tpu.memory_space<vmem>>, vector<1x8x24xbf16>
    %379 = vector.shape_cast %378 : vector<1x8x24xbf16> to vector<8x24xbf16>
    %380 = arith.truncf %377 : vector<8x128xf32> to vector<8x128xbf16>
    %381 = tpu.iota {dimensions = array<i32: 1>} : vector<8x128xi32>
    %c8_i32_175 = arith.constant 8 : i32
    %382 = tpu.dynamic_rotate %377 by %c8_i32_175 dim 1 : vector<8x128xf32>, i32 -> vector<8x128xf32>
    %c8_i32_176 = arith.constant 8 : i32
    %383 = vector.broadcast %c8_i32_176 : i32 to vector<8x128xi32>
    %384 = arith.cmpi sge, %381, %383 : vector<8x128xi32>
    %cst_177 = arith.constant 0.000000e+00 : f32
    %385 = vector.broadcast %cst_177 : f32 to vector<8x128xf32>
    %386 = arith.select %384, %382, %385 : vector<8x128xi1>, vector<8x128xf32>
    %387 = arith.truncf %386 : vector<8x128xf32> to vector<8x128xbf16>
    %c120_i32_178 = arith.constant 120 : i32
    %388 = tpu.dynamic_rotate %377 by %c120_i32_178 dim 1 : vector<8x128xf32>, i32 -> vector<8x128xf32>
    %c120_i32_179 = arith.constant 120 : i32
    %389 = vector.broadcast %c120_i32_179 : i32 to vector<8x128xi32>
    %390 = arith.cmpi slt, %381, %389 : vector<8x128xi32>
    %cst_180 = arith.constant 0.000000e+00 : f32
    %391 = vector.broadcast %cst_180 : f32 to vector<8x128xf32>
    %392 = arith.select %390, %388, %391 : vector<8x128xi1>, vector<8x128xf32>
    %393 = arith.truncf %392 : vector<8x128xf32> to vector<8x128xbf16>
    %394 = tpu.concatenate %387, %380, %393 in 0 : vector<8x128xbf16>, vector<8x128xbf16>, vector<8x128xbf16> -> vector<24x128xbf16>
    %cst_181 = arith.constant dense<0.000000e+00> : vector<8x128xf32>
    %395 = tpu.matmul %379, %394, %cst_181 {dimension_numbers = #tpu.dot_dimension_numbers<[1], [0], [0], [1], [0, 0, 1, 1], [], []>} : vector<8x24xbf16>, vector<24x128xbf16>, vector<8x128xf32> -> vector<8x128xf32>
    %c2_182 = arith.constant 2 : index
    %c0_183 = arith.constant 0 : index
    %c0_184 = arith.constant 0 : index
    %396 = vector.load %arg16[%c2_182, %c0_183, %c0_184] : memref<10x8x1xf32, #tpu.memory_space<vmem>>, vector<1x8x1xf32>
    %397 = vector.shape_cast %396 : vector<1x8x1xf32> to vector<8x1xf32>
    %398 = vector.broadcast %397 : vector<8x1xf32> to vector<8x128xf32>
    %399 = arith.addf %395, %398 : vector<8x128xf32>
    %400 = arith.addf %374, %399 : vector<8x128xf32>
    %cst_185 = arith.constant 2.000000e-01 : f32
    %401 = vector.broadcast %cst_185 : f32 to vector<8x128xf32>
    %402 = arith.mulf %401, %399 : vector<8x128xf32>
    %403 = arith.maximumf %399, %402 : vector<8x128xf32>
    %c3_186 = arith.constant 3 : index
    %c0_187 = arith.constant 0 : index
    %c0_188 = arith.constant 0 : index
    %404 = vector.load %arg15[%c3_186, %c0_187, %c0_188] : memref<10x8x24xbf16, #tpu.memory_space<vmem>>, vector<1x8x24xbf16>
    %405 = vector.shape_cast %404 : vector<1x8x24xbf16> to vector<8x24xbf16>
    %406 = arith.truncf %403 : vector<8x128xf32> to vector<8x128xbf16>
    %407 = tpu.iota {dimensions = array<i32: 1>} : vector<8x128xi32>
    %c16_i32_189 = arith.constant 16 : i32
    %408 = tpu.dynamic_rotate %403 by %c16_i32_189 dim 1 : vector<8x128xf32>, i32 -> vector<8x128xf32>
    %c16_i32_190 = arith.constant 16 : i32
    %409 = vector.broadcast %c16_i32_190 : i32 to vector<8x128xi32>
    %410 = arith.cmpi sge, %407, %409 : vector<8x128xi32>
    %cst_191 = arith.constant 0.000000e+00 : f32
    %411 = vector.broadcast %cst_191 : f32 to vector<8x128xf32>
    %412 = arith.select %410, %408, %411 : vector<8x128xi1>, vector<8x128xf32>
    %413 = arith.truncf %412 : vector<8x128xf32> to vector<8x128xbf16>
    %c112_i32_192 = arith.constant 112 : i32
    %414 = tpu.dynamic_rotate %403 by %c112_i32_192 dim 1 : vector<8x128xf32>, i32 -> vector<8x128xf32>
    %c112_i32_193 = arith.constant 112 : i32
    %415 = vector.broadcast %c112_i32_193 : i32 to vector<8x128xi32>
    %416 = arith.cmpi slt, %407, %415 : vector<8x128xi32>
    %cst_194 = arith.constant 0.000000e+00 : f32
    %417 = vector.broadcast %cst_194 : f32 to vector<8x128xf32>
    %418 = arith.select %416, %414, %417 : vector<8x128xi1>, vector<8x128xf32>
    %419 = arith.truncf %418 : vector<8x128xf32> to vector<8x128xbf16>
    %420 = tpu.concatenate %413, %406, %419 in 0 : vector<8x128xbf16>, vector<8x128xbf16>, vector<8x128xbf16> -> vector<24x128xbf16>
    %cst_195 = arith.constant dense<0.000000e+00> : vector<8x128xf32>
    %421 = tpu.matmul %405, %420, %cst_195 {dimension_numbers = #tpu.dot_dimension_numbers<[1], [0], [0], [1], [0, 0, 1, 1], [], []>} : vector<8x24xbf16>, vector<24x128xbf16>, vector<8x128xf32> -> vector<8x128xf32>
    %c3_196 = arith.constant 3 : index
    %c0_197 = arith.constant 0 : index
    %c0_198 = arith.constant 0 : index
    %422 = vector.load %arg16[%c3_196, %c0_197, %c0_198] : memref<10x8x1xf32, #tpu.memory_space<vmem>>, vector<1x8x1xf32>
    %423 = vector.shape_cast %422 : vector<1x8x1xf32> to vector<8x1xf32>
    %424 = vector.broadcast %423 : vector<8x1xf32> to vector<8x128xf32>
    %425 = arith.addf %421, %424 : vector<8x128xf32>
    %426 = arith.addf %400, %425 : vector<8x128xf32>
    %cst_199 = arith.constant 2.000000e-01 : f32
    %427 = vector.broadcast %cst_199 : f32 to vector<8x128xf32>
    %428 = arith.mulf %427, %425 : vector<8x128xf32>
    %429 = arith.maximumf %425, %428 : vector<8x128xf32>
    %c4_200 = arith.constant 4 : index
    %c0_201 = arith.constant 0 : index
    %c0_202 = arith.constant 0 : index
    %430 = vector.load %arg15[%c4_200, %c0_201, %c0_202] : memref<10x8x24xbf16, #tpu.memory_space<vmem>>, vector<1x8x24xbf16>
    %431 = vector.shape_cast %430 : vector<1x8x24xbf16> to vector<8x24xbf16>
    %432 = arith.truncf %429 : vector<8x128xf32> to vector<8x128xbf16>
    %433 = tpu.iota {dimensions = array<i32: 1>} : vector<8x128xi32>
    %c32_i32_203 = arith.constant 32 : i32
    %434 = tpu.dynamic_rotate %429 by %c32_i32_203 dim 1 : vector<8x128xf32>, i32 -> vector<8x128xf32>
    %c32_i32_204 = arith.constant 32 : i32
    %435 = vector.broadcast %c32_i32_204 : i32 to vector<8x128xi32>
    %436 = arith.cmpi sge, %433, %435 : vector<8x128xi32>
    %cst_205 = arith.constant 0.000000e+00 : f32
    %437 = vector.broadcast %cst_205 : f32 to vector<8x128xf32>
    %438 = arith.select %436, %434, %437 : vector<8x128xi1>, vector<8x128xf32>
    %439 = arith.truncf %438 : vector<8x128xf32> to vector<8x128xbf16>
    %c96_i32_206 = arith.constant 96 : i32
    %440 = tpu.dynamic_rotate %429 by %c96_i32_206 dim 1 : vector<8x128xf32>, i32 -> vector<8x128xf32>
    %c96_i32_207 = arith.constant 96 : i32
    %441 = vector.broadcast %c96_i32_207 : i32 to vector<8x128xi32>
    %442 = arith.cmpi slt, %433, %441 : vector<8x128xi32>
    %cst_208 = arith.constant 0.000000e+00 : f32
    %443 = vector.broadcast %cst_208 : f32 to vector<8x128xf32>
    %444 = arith.select %442, %440, %443 : vector<8x128xi1>, vector<8x128xf32>
    %445 = arith.truncf %444 : vector<8x128xf32> to vector<8x128xbf16>
    %446 = tpu.concatenate %439, %432, %445 in 0 : vector<8x128xbf16>, vector<8x128xbf16>, vector<8x128xbf16> -> vector<24x128xbf16>
    %cst_209 = arith.constant dense<0.000000e+00> : vector<8x128xf32>
    %447 = tpu.matmul %431, %446, %cst_209 {dimension_numbers = #tpu.dot_dimension_numbers<[1], [0], [0], [1], [0, 0, 1, 1], [], []>} : vector<8x24xbf16>, vector<24x128xbf16>, vector<8x128xf32> -> vector<8x128xf32>
    %c4_210 = arith.constant 4 : index
    %c0_211 = arith.constant 0 : index
    %c0_212 = arith.constant 0 : index
    %448 = vector.load %arg16[%c4_210, %c0_211, %c0_212] : memref<10x8x1xf32, #tpu.memory_space<vmem>>, vector<1x8x1xf32>
    %449 = vector.shape_cast %448 : vector<1x8x1xf32> to vector<8x1xf32>
    %450 = vector.broadcast %449 : vector<8x1xf32> to vector<8x128xf32>
    %451 = arith.addf %447, %450 : vector<8x128xf32>
    %452 = arith.addf %426, %451 : vector<8x128xf32>
    %cst_213 = arith.constant 2.000000e-01 : f32
    %453 = vector.broadcast %cst_213 : f32 to vector<8x128xf32>
    %454 = arith.mulf %453, %451 : vector<8x128xf32>
    %455 = arith.maximumf %451, %454 : vector<8x128xf32>
    %c5_214 = arith.constant 5 : index
    %c0_215 = arith.constant 0 : index
    %c0_216 = arith.constant 0 : index
    %456 = vector.load %arg15[%c5_214, %c0_215, %c0_216] : memref<10x8x24xbf16, #tpu.memory_space<vmem>>, vector<1x8x24xbf16>
    %457 = vector.shape_cast %456 : vector<1x8x24xbf16> to vector<8x24xbf16>
    %458 = arith.truncf %455 : vector<8x128xf32> to vector<8x128xbf16>
    %459 = tpu.iota {dimensions = array<i32: 1>} : vector<8x128xi32>
    %c64_i32_217 = arith.constant 64 : i32
    %460 = tpu.dynamic_rotate %455 by %c64_i32_217 dim 1 : vector<8x128xf32>, i32 -> vector<8x128xf32>
    %c64_i32_218 = arith.constant 64 : i32
    %461 = vector.broadcast %c64_i32_218 : i32 to vector<8x128xi32>
    %462 = arith.cmpi sge, %459, %461 : vector<8x128xi32>
    %cst_219 = arith.constant 0.000000e+00 : f32
    %463 = vector.broadcast %cst_219 : f32 to vector<8x128xf32>
    %464 = arith.select %462, %460, %463 : vector<8x128xi1>, vector<8x128xf32>
    %465 = arith.truncf %464 : vector<8x128xf32> to vector<8x128xbf16>
    %c64_i32_220 = arith.constant 64 : i32
    %466 = tpu.dynamic_rotate %455 by %c64_i32_220 dim 1 : vector<8x128xf32>, i32 -> vector<8x128xf32>
    %c64_i32_221 = arith.constant 64 : i32
    %467 = vector.broadcast %c64_i32_221 : i32 to vector<8x128xi32>
    %468 = arith.cmpi slt, %459, %467 : vector<8x128xi32>
    %cst_222 = arith.constant 0.000000e+00 : f32
    %469 = vector.broadcast %cst_222 : f32 to vector<8x128xf32>
    %470 = arith.select %468, %466, %469 : vector<8x128xi1>, vector<8x128xf32>
    %471 = arith.truncf %470 : vector<8x128xf32> to vector<8x128xbf16>
    %472 = tpu.concatenate %465, %458, %471 in 0 : vector<8x128xbf16>, vector<8x128xbf16>, vector<8x128xbf16> -> vector<24x128xbf16>
    %cst_223 = arith.constant dense<0.000000e+00> : vector<8x128xf32>
    %473 = tpu.matmul %457, %472, %cst_223 {dimension_numbers = #tpu.dot_dimension_numbers<[1], [0], [0], [1], [0, 0, 1, 1], [], []>} : vector<8x24xbf16>, vector<24x128xbf16>, vector<8x128xf32> -> vector<8x128xf32>
    %c5_224 = arith.constant 5 : index
    %c0_225 = arith.constant 0 : index
    %c0_226 = arith.constant 0 : index
    %474 = vector.load %arg16[%c5_224, %c0_225, %c0_226] : memref<10x8x1xf32, #tpu.memory_space<vmem>>, vector<1x8x1xf32>
    %475 = vector.shape_cast %474 : vector<1x8x1xf32> to vector<8x1xf32>
    %476 = vector.broadcast %475 : vector<8x1xf32> to vector<8x128xf32>
    %477 = arith.addf %473, %476 : vector<8x128xf32>
    %478 = arith.addf %452, %477 : vector<8x128xf32>
    %cst_227 = arith.constant 2.000000e-01 : f32
    %479 = vector.broadcast %cst_227 : f32 to vector<8x128xf32>
    %480 = arith.mulf %479, %477 : vector<8x128xf32>
    %481 = arith.maximumf %477, %480 : vector<8x128xf32>
    %c6_228 = arith.constant 6 : index
    %c0_229 = arith.constant 0 : index
    %c0_230 = arith.constant 0 : index
    %482 = vector.load %arg15[%c6_228, %c0_229, %c0_230] : memref<10x8x24xbf16, #tpu.memory_space<vmem>>, vector<1x8x24xbf16>
    %483 = vector.shape_cast %482 : vector<1x8x24xbf16> to vector<8x24xbf16>
    %484 = arith.truncf %481 : vector<8x128xf32> to vector<8x128xbf16>
    %485 = vector.extract_strided_slice %483 {offsets = [0, 8], sizes = [8, 8], strides = [1, 1]} : vector<8x24xbf16> to vector<8x8xbf16>
    %cst_231 = arith.constant dense<0.000000e+00> : vector<8x128xf32>
    %486 = tpu.matmul %485, %484, %cst_231 {dimension_numbers = #tpu.dot_dimension_numbers<[1], [0], [0], [1], [0, 0, 1, 1], [], []>} : vector<8x8xbf16>, vector<8x128xbf16>, vector<8x128xf32> -> vector<8x128xf32>
    %c6_232 = arith.constant 6 : index
    %c0_233 = arith.constant 0 : index
    %c0_234 = arith.constant 0 : index
    %487 = vector.load %arg16[%c6_232, %c0_233, %c0_234] : memref<10x8x1xf32, #tpu.memory_space<vmem>>, vector<1x8x1xf32>
    %488 = vector.shape_cast %487 : vector<1x8x1xf32> to vector<8x1xf32>
    %489 = vector.broadcast %488 : vector<8x1xf32> to vector<8x128xf32>
    %490 = arith.addf %486, %489 : vector<8x128xf32>
    %491 = arith.addf %478, %490 : vector<8x128xf32>
    %cst_235 = arith.constant 2.000000e-01 : f32
    %492 = vector.broadcast %cst_235 : f32 to vector<8x128xf32>
    %493 = arith.mulf %492, %490 : vector<8x128xf32>
    %494 = arith.maximumf %490, %493 : vector<8x128xf32>
    %c7_236 = arith.constant 7 : index
    %c0_237 = arith.constant 0 : index
    %c0_238 = arith.constant 0 : index
    %495 = vector.load %arg15[%c7_236, %c0_237, %c0_238] : memref<10x8x24xbf16, #tpu.memory_space<vmem>>, vector<1x8x24xbf16>
    %496 = vector.shape_cast %495 : vector<1x8x24xbf16> to vector<8x24xbf16>
    %497 = arith.truncf %494 : vector<8x128xf32> to vector<8x128xbf16>
    %498 = vector.extract_strided_slice %496 {offsets = [0, 8], sizes = [8, 8], strides = [1, 1]} : vector<8x24xbf16> to vector<8x8xbf16>
    %cst_239 = arith.constant dense<0.000000e+00> : vector<8x128xf32>
    %499 = tpu.matmul %498, %497, %cst_239 {dimension_numbers = #tpu.dot_dimension_numbers<[1], [0], [0], [1], [0, 0, 1, 1], [], []>} : vector<8x8xbf16>, vector<8x128xbf16>, vector<8x128xf32> -> vector<8x128xf32>
    %c7_240 = arith.constant 7 : index
    %c0_241 = arith.constant 0 : index
    %c0_242 = arith.constant 0 : index
    %500 = vector.load %arg16[%c7_240, %c0_241, %c0_242] : memref<10x8x1xf32, #tpu.memory_space<vmem>>, vector<1x8x1xf32>
    %501 = vector.shape_cast %500 : vector<1x8x1xf32> to vector<8x1xf32>
    %502 = vector.broadcast %501 : vector<8x1xf32> to vector<8x128xf32>
    %503 = arith.addf %499, %502 : vector<8x128xf32>
    %504 = arith.addf %491, %503 : vector<8x128xf32>
    %cst_243 = arith.constant 2.000000e-01 : f32
    %505 = vector.broadcast %cst_243 : f32 to vector<8x128xf32>
    %506 = arith.mulf %505, %503 : vector<8x128xf32>
    %507 = arith.maximumf %503, %506 : vector<8x128xf32>
    %c8_244 = arith.constant 8 : index
    %c0_245 = arith.constant 0 : index
    %c0_246 = arith.constant 0 : index
    %508 = vector.load %arg15[%c8_244, %c0_245, %c0_246] : memref<10x8x24xbf16, #tpu.memory_space<vmem>>, vector<1x8x24xbf16>
    %509 = vector.shape_cast %508 : vector<1x8x24xbf16> to vector<8x24xbf16>
    %510 = arith.truncf %507 : vector<8x128xf32> to vector<8x128xbf16>
    %511 = vector.extract_strided_slice %509 {offsets = [0, 8], sizes = [8, 8], strides = [1, 1]} : vector<8x24xbf16> to vector<8x8xbf16>
    %cst_247 = arith.constant dense<0.000000e+00> : vector<8x128xf32>
    %512 = tpu.matmul %511, %510, %cst_247 {dimension_numbers = #tpu.dot_dimension_numbers<[1], [0], [0], [1], [0, 0, 1, 1], [], []>} : vector<8x8xbf16>, vector<8x128xbf16>, vector<8x128xf32> -> vector<8x128xf32>
    %c8_248 = arith.constant 8 : index
    %c0_249 = arith.constant 0 : index
    %c0_250 = arith.constant 0 : index
    %513 = vector.load %arg16[%c8_248, %c0_249, %c0_250] : memref<10x8x1xf32, #tpu.memory_space<vmem>>, vector<1x8x1xf32>
    %514 = vector.shape_cast %513 : vector<1x8x1xf32> to vector<8x1xf32>
    %515 = vector.broadcast %514 : vector<8x1xf32> to vector<8x128xf32>
    %516 = arith.addf %512, %515 : vector<8x128xf32>
    %517 = arith.addf %504, %516 : vector<8x128xf32>
    %cst_251 = arith.constant 2.000000e-01 : f32
    %518 = vector.broadcast %cst_251 : f32 to vector<8x128xf32>
    %519 = arith.mulf %518, %516 : vector<8x128xf32>
    %520 = arith.maximumf %516, %519 : vector<8x128xf32>
    %c9_252 = arith.constant 9 : index
    %c0_253 = arith.constant 0 : index
    %c0_254 = arith.constant 0 : index
    %521 = vector.load %arg15[%c9_252, %c0_253, %c0_254] : memref<10x8x24xbf16, #tpu.memory_space<vmem>>, vector<1x8x24xbf16>
    %522 = vector.shape_cast %521 : vector<1x8x24xbf16> to vector<8x24xbf16>
    %523 = arith.truncf %520 : vector<8x128xf32> to vector<8x128xbf16>
    %524 = vector.extract_strided_slice %522 {offsets = [0, 8], sizes = [8, 8], strides = [1, 1]} : vector<8x24xbf16> to vector<8x8xbf16>
    %cst_255 = arith.constant dense<0.000000e+00> : vector<8x128xf32>
    %525 = tpu.matmul %524, %523, %cst_255 {dimension_numbers = #tpu.dot_dimension_numbers<[1], [0], [0], [1], [0, 0, 1, 1], [], []>} : vector<8x8xbf16>, vector<8x128xbf16>, vector<8x128xf32> -> vector<8x128xf32>
    %c9_256 = arith.constant 9 : index
    %c0_257 = arith.constant 0 : index
    %c0_258 = arith.constant 0 : index
    %526 = vector.load %arg16[%c9_256, %c0_257, %c0_258] : memref<10x8x1xf32, #tpu.memory_space<vmem>>, vector<1x8x1xf32>
    %527 = vector.shape_cast %526 : vector<1x8x1xf32> to vector<8x1xf32>
    %528 = vector.broadcast %527 : vector<8x1xf32> to vector<8x128xf32>
    %529 = arith.addf %525, %528 : vector<8x128xf32>
    %530 = arith.addf %517, %529 : vector<8x128xf32>
    %cst_259 = arith.constant 2.000000e-01 : f32
    %531 = vector.broadcast %cst_259 : f32 to vector<8x128xf32>
    %532 = arith.mulf %531, %530 : vector<8x128xf32>
    %533 = arith.maximumf %530, %532 : vector<8x128xf32>
    %c0_260 = arith.constant 0 : index
    %c0_261 = arith.constant 0 : index
    %534 = vector.load %arg26[%c0_260, %c0_261] : memref<24x1xf32, #tpu.memory_space<vmem>>, vector<24x1xf32>
    %c0_262 = arith.constant 0 : index
    %c0_263 = arith.constant 0 : index
    %535 = vector.load %arg24[%c0_262, %c0_263] : memref<24x8xbf16, #tpu.memory_space<vmem>>, vector<24x8xbf16>
    %536 = arith.truncf %533 : vector<8x128xf32> to vector<8x128xbf16>
    %cst_264 = arith.constant dense<0.000000e+00> : vector<24x128xf32>
    %537 = tpu.matmul %535, %536, %cst_264 {dimension_numbers = #tpu.dot_dimension_numbers<[1], [0], [0], [1], [0, 0, 1, 1], [], []>} : vector<24x8xbf16>, vector<8x128xbf16>, vector<24x128xf32> -> vector<24x128xf32>
    %538 = vector.broadcast %534 : vector<24x1xf32> to vector<24x128xf32>
    %539 = arith.addf %538, %537 : vector<24x128xf32>
    %c0_265 = arith.constant 0 : index
    %c0_266 = arith.constant 0 : index
    %540 = vector.load %arg25[%c0_265, %c0_266] : memref<24x8xbf16, #tpu.memory_space<vmem>>, vector<24x8xbf16>
    %541 = arith.truncf %268 : vector<8x128xf32> to vector<8x128xbf16>
    %cst_267 = arith.constant dense<0.000000e+00> : vector<24x128xf32>
    %542 = tpu.matmul %540, %541, %cst_267 {dimension_numbers = #tpu.dot_dimension_numbers<[1], [0], [0], [1], [0, 0, 1, 1], [], []>} : vector<24x8xbf16>, vector<8x128xbf16>, vector<24x128xf32> -> vector<24x128xf32>
    %543 = arith.addf %539, %542 : vector<24x128xf32>
    %c0_268 = arith.constant 0 : index
    %c0_269 = arith.constant 0 : index
    %544 = vector.load %arg21[%c0_268, %c0_269] : memref<24x1xf32, #tpu.memory_space<vmem>>, vector<24x1xf32>
    %c0_270 = arith.constant 0 : index
    %c0_271 = arith.constant 0 : index
    %545 = vector.load %arg19[%c0_270, %c0_271] : memref<24x24xbf16, #tpu.memory_space<vmem>>, vector<24x24xbf16>
    %546 = arith.truncf %533 : vector<8x128xf32> to vector<8x128xbf16>
    %547 = tpu.iota {dimensions = array<i32: 1>} : vector<8x128xi32>
    %c1_i32_272 = arith.constant 1 : i32
    %548 = tpu.dynamic_rotate %533 by %c1_i32_272 dim 1 : vector<8x128xf32>, i32 -> vector<8x128xf32>
    %c1_i32_273 = arith.constant 1 : i32
    %549 = vector.broadcast %c1_i32_273 : i32 to vector<8x128xi32>
    %550 = arith.cmpi sge, %547, %549 : vector<8x128xi32>
    %cst_274 = arith.constant 0.000000e+00 : f32
    %551 = vector.broadcast %cst_274 : f32 to vector<8x128xf32>
    %552 = arith.select %550, %548, %551 : vector<8x128xi1>, vector<8x128xf32>
    %553 = arith.truncf %552 : vector<8x128xf32> to vector<8x128xbf16>
    %c127_i32_275 = arith.constant 127 : i32
    %554 = tpu.dynamic_rotate %533 by %c127_i32_275 dim 1 : vector<8x128xf32>, i32 -> vector<8x128xf32>
    %c127_i32_276 = arith.constant 127 : i32
    %555 = vector.broadcast %c127_i32_276 : i32 to vector<8x128xi32>
    %556 = arith.cmpi slt, %547, %555 : vector<8x128xi32>
    %cst_277 = arith.constant 0.000000e+00 : f32
    %557 = vector.broadcast %cst_277 : f32 to vector<8x128xf32>
    %558 = arith.select %556, %554, %557 : vector<8x128xi1>, vector<8x128xf32>
    %559 = arith.truncf %558 : vector<8x128xf32> to vector<8x128xbf16>
    %560 = tpu.concatenate %553, %546, %559 in 0 : vector<8x128xbf16>, vector<8x128xbf16>, vector<8x128xbf16> -> vector<24x128xbf16>
    %cst_278 = arith.constant dense<0.000000e+00> : vector<24x128xf32>
    %561 = tpu.matmul %545, %560, %cst_278 {dimension_numbers = #tpu.dot_dimension_numbers<[1], [0], [0], [1], [0, 0, 1, 1], [], []>} : vector<24x24xbf16>, vector<24x128xbf16>, vector<24x128xf32> -> vector<24x128xf32>
    %562 = vector.broadcast %544 : vector<24x1xf32> to vector<24x128xf32>
    %563 = arith.addf %562, %561 : vector<24x128xf32>
    %c0_279 = arith.constant 0 : index
    %c0_280 = arith.constant 0 : index
    %564 = vector.load %arg20[%c0_279, %c0_280] : memref<24x24xbf16, #tpu.memory_space<vmem>>, vector<24x24xbf16>
    %565 = arith.truncf %268 : vector<8x128xf32> to vector<8x128xbf16>
    %566 = tpu.iota {dimensions = array<i32: 1>} : vector<8x128xi32>
    %c1_i32_281 = arith.constant 1 : i32
    %567 = tpu.dynamic_rotate %268 by %c1_i32_281 dim 1 : vector<8x128xf32>, i32 -> vector<8x128xf32>
    %c1_i32_282 = arith.constant 1 : i32
    %568 = vector.broadcast %c1_i32_282 : i32 to vector<8x128xi32>
    %569 = arith.cmpi sge, %566, %568 : vector<8x128xi32>
    %cst_283 = arith.constant 0.000000e+00 : f32
    %570 = vector.broadcast %cst_283 : f32 to vector<8x128xf32>
    %571 = arith.select %569, %567, %570 : vector<8x128xi1>, vector<8x128xf32>
    %572 = arith.truncf %571 : vector<8x128xf32> to vector<8x128xbf16>
    %c127_i32_284 = arith.constant 127 : i32
    %573 = tpu.dynamic_rotate %268 by %c127_i32_284 dim 1 : vector<8x128xf32>, i32 -> vector<8x128xf32>
    %c127_i32_285 = arith.constant 127 : i32
    %574 = vector.broadcast %c127_i32_285 : i32 to vector<8x128xi32>
    %575 = arith.cmpi slt, %566, %574 : vector<8x128xi32>
    %cst_286 = arith.constant 0.000000e+00 : f32
    %576 = vector.broadcast %cst_286 : f32 to vector<8x128xf32>
    %577 = arith.select %575, %573, %576 : vector<8x128xi1>, vector<8x128xf32>
    %578 = arith.truncf %577 : vector<8x128xf32> to vector<8x128xbf16>
    %579 = tpu.concatenate %572, %565, %578 in 0 : vector<8x128xbf16>, vector<8x128xbf16>, vector<8x128xbf16> -> vector<24x128xbf16>
    %cst_287 = arith.constant dense<0.000000e+00> : vector<24x128xf32>
    %580 = tpu.matmul %564, %579, %cst_287 {dimension_numbers = #tpu.dot_dimension_numbers<[1], [0], [0], [1], [0, 0, 1, 1], [], []>} : vector<24x24xbf16>, vector<24x128xbf16>, vector<24x128xf32> -> vector<24x128xf32>
    %581 = arith.addf %563, %580 : vector<24x128xf32>
    %582 = arith.addf %543, %581 : vector<24x128xf32>
    %cst_288 = arith.constant 2.000000e-01 : f32
    %583 = vector.broadcast %cst_288 : f32 to vector<24x128xf32>
    %584 = arith.mulf %583, %581 : vector<24x128xf32>
    %585 = arith.maximumf %581, %584 : vector<24x128xf32>
    %c0_289 = arith.constant 0 : index
    %c0_290 = arith.constant 0 : index
    %c0_291 = arith.constant 0 : index
    %586 = vector.load %arg22[%c0_289, %c0_290, %c0_291] : memref<10x24x72xbf16, #tpu.memory_space<vmem>>, vector<1x24x72xbf16>
    %587 = vector.shape_cast %586 : vector<1x24x72xbf16> to vector<24x72xbf16>
    %588 = arith.truncf %585 : vector<24x128xf32> to vector<24x128xbf16>
    %589 = tpu.iota {dimensions = array<i32: 1>} : vector<24x128xi32>
    %c2_i32_292 = arith.constant 2 : i32
    %590 = tpu.dynamic_rotate %585 by %c2_i32_292 dim 1 : vector<24x128xf32>, i32 -> vector<24x128xf32>
    %c2_i32_293 = arith.constant 2 : i32
    %591 = vector.broadcast %c2_i32_293 : i32 to vector<24x128xi32>
    %592 = arith.cmpi sge, %589, %591 : vector<24x128xi32>
    %cst_294 = arith.constant 0.000000e+00 : f32
    %593 = vector.broadcast %cst_294 : f32 to vector<24x128xf32>
    %594 = arith.select %592, %590, %593 : vector<24x128xi1>, vector<24x128xf32>
    %595 = arith.truncf %594 : vector<24x128xf32> to vector<24x128xbf16>
    %c126_i32_295 = arith.constant 126 : i32
    %596 = tpu.dynamic_rotate %585 by %c126_i32_295 dim 1 : vector<24x128xf32>, i32 -> vector<24x128xf32>
    %c126_i32_296 = arith.constant 126 : i32
    %597 = vector.broadcast %c126_i32_296 : i32 to vector<24x128xi32>
    %598 = arith.cmpi slt, %589, %597 : vector<24x128xi32>
    %cst_297 = arith.constant 0.000000e+00 : f32
    %599 = vector.broadcast %cst_297 : f32 to vector<24x128xf32>
    %600 = arith.select %598, %596, %599 : vector<24x128xi1>, vector<24x128xf32>
    %601 = arith.truncf %600 : vector<24x128xf32> to vector<24x128xbf16>
    %602 = tpu.concatenate %595, %588, %601 in 0 : vector<24x128xbf16>, vector<24x128xbf16>, vector<24x128xbf16> -> vector<72x128xbf16>
    %cst_298 = arith.constant dense<0.000000e+00> : vector<24x128xf32>
    %603 = tpu.matmul %587, %602, %cst_298 {dimension_numbers = #tpu.dot_dimension_numbers<[1], [0], [0], [1], [0, 0, 1, 1], [], []>} : vector<24x72xbf16>, vector<72x128xbf16>, vector<24x128xf32> -> vector<24x128xf32>
    %c0_299 = arith.constant 0 : index
    %c0_300 = arith.constant 0 : index
    %c0_301 = arith.constant 0 : index
    %604 = vector.load %arg23[%c0_299, %c0_300, %c0_301] : memref<10x24x1xf32, #tpu.memory_space<vmem>>, vector<1x24x1xf32>
    %605 = vector.shape_cast %604 : vector<1x24x1xf32> to vector<24x1xf32>
    %606 = vector.broadcast %605 : vector<24x1xf32> to vector<24x128xf32>
    %607 = arith.addf %603, %606 : vector<24x128xf32>
    %608 = arith.addf %582, %607 : vector<24x128xf32>
    %cst_302 = arith.constant 2.000000e-01 : f32
    %609 = vector.broadcast %cst_302 : f32 to vector<24x128xf32>
    %610 = arith.mulf %609, %607 : vector<24x128xf32>
    %611 = arith.maximumf %607, %610 : vector<24x128xf32>
    %c1_303 = arith.constant 1 : index
    %c0_304 = arith.constant 0 : index
    %c0_305 = arith.constant 0 : index
    %612 = vector.load %arg22[%c1_303, %c0_304, %c0_305] : memref<10x24x72xbf16, #tpu.memory_space<vmem>>, vector<1x24x72xbf16>
    %613 = vector.shape_cast %612 : vector<1x24x72xbf16> to vector<24x72xbf16>
    %614 = arith.truncf %611 : vector<24x128xf32> to vector<24x128xbf16>
    %615 = tpu.iota {dimensions = array<i32: 1>} : vector<24x128xi32>
    %c4_i32_306 = arith.constant 4 : i32
    %616 = tpu.dynamic_rotate %611 by %c4_i32_306 dim 1 : vector<24x128xf32>, i32 -> vector<24x128xf32>
    %c4_i32_307 = arith.constant 4 : i32
    %617 = vector.broadcast %c4_i32_307 : i32 to vector<24x128xi32>
    %618 = arith.cmpi sge, %615, %617 : vector<24x128xi32>
    %cst_308 = arith.constant 0.000000e+00 : f32
    %619 = vector.broadcast %cst_308 : f32 to vector<24x128xf32>
    %620 = arith.select %618, %616, %619 : vector<24x128xi1>, vector<24x128xf32>
    %621 = arith.truncf %620 : vector<24x128xf32> to vector<24x128xbf16>
    %c124_i32_309 = arith.constant 124 : i32
    %622 = tpu.dynamic_rotate %611 by %c124_i32_309 dim 1 : vector<24x128xf32>, i32 -> vector<24x128xf32>
    %c124_i32_310 = arith.constant 124 : i32
    %623 = vector.broadcast %c124_i32_310 : i32 to vector<24x128xi32>
    %624 = arith.cmpi slt, %615, %623 : vector<24x128xi32>
    %cst_311 = arith.constant 0.000000e+00 : f32
    %625 = vector.broadcast %cst_311 : f32 to vector<24x128xf32>
    %626 = arith.select %624, %622, %625 : vector<24x128xi1>, vector<24x128xf32>
    %627 = arith.truncf %626 : vector<24x128xf32> to vector<24x128xbf16>
    %628 = tpu.concatenate %621, %614, %627 in 0 : vector<24x128xbf16>, vector<24x128xbf16>, vector<24x128xbf16> -> vector<72x128xbf16>
    %cst_312 = arith.constant dense<0.000000e+00> : vector<24x128xf32>
    %629 = tpu.matmul %613, %628, %cst_312 {dimension_numbers = #tpu.dot_dimension_numbers<[1], [0], [0], [1], [0, 0, 1, 1], [], []>} : vector<24x72xbf16>, vector<72x128xbf16>, vector<24x128xf32> -> vector<24x128xf32>
    %c1_313 = arith.constant 1 : index
    %c0_314 = arith.constant 0 : index
    %c0_315 = arith.constant 0 : index
    %630 = vector.load %arg23[%c1_313, %c0_314, %c0_315] : memref<10x24x1xf32, #tpu.memory_space<vmem>>, vector<1x24x1xf32>
    %631 = vector.shape_cast %630 : vector<1x24x1xf32> to vector<24x1xf32>
    %632 = vector.broadcast %631 : vector<24x1xf32> to vector<24x128xf32>
    %633 = arith.addf %629, %632 : vector<24x128xf32>
    %634 = arith.addf %608, %633 : vector<24x128xf32>
    %cst_316 = arith.constant 2.000000e-01 : f32
    %635 = vector.broadcast %cst_316 : f32 to vector<24x128xf32>
    %636 = arith.mulf %635, %633 : vector<24x128xf32>
    %637 = arith.maximumf %633, %636 : vector<24x128xf32>
    %c2_317 = arith.constant 2 : index
    %c0_318 = arith.constant 0 : index
    %c0_319 = arith.constant 0 : index
    %638 = vector.load %arg22[%c2_317, %c0_318, %c0_319] : memref<10x24x72xbf16, #tpu.memory_space<vmem>>, vector<1x24x72xbf16>
    %639 = vector.shape_cast %638 : vector<1x24x72xbf16> to vector<24x72xbf16>
    %640 = arith.truncf %637 : vector<24x128xf32> to vector<24x128xbf16>
    %641 = tpu.iota {dimensions = array<i32: 1>} : vector<24x128xi32>
    %c8_i32_320 = arith.constant 8 : i32
    %642 = tpu.dynamic_rotate %637 by %c8_i32_320 dim 1 : vector<24x128xf32>, i32 -> vector<24x128xf32>
    %c8_i32_321 = arith.constant 8 : i32
    %643 = vector.broadcast %c8_i32_321 : i32 to vector<24x128xi32>
    %644 = arith.cmpi sge, %641, %643 : vector<24x128xi32>
    %cst_322 = arith.constant 0.000000e+00 : f32
    %645 = vector.broadcast %cst_322 : f32 to vector<24x128xf32>
    %646 = arith.select %644, %642, %645 : vector<24x128xi1>, vector<24x128xf32>
    %647 = arith.truncf %646 : vector<24x128xf32> to vector<24x128xbf16>
    %c120_i32_323 = arith.constant 120 : i32
    %648 = tpu.dynamic_rotate %637 by %c120_i32_323 dim 1 : vector<24x128xf32>, i32 -> vector<24x128xf32>
    %c120_i32_324 = arith.constant 120 : i32
    %649 = vector.broadcast %c120_i32_324 : i32 to vector<24x128xi32>
    %650 = arith.cmpi slt, %641, %649 : vector<24x128xi32>
    %cst_325 = arith.constant 0.000000e+00 : f32
    %651 = vector.broadcast %cst_325 : f32 to vector<24x128xf32>
    %652 = arith.select %650, %648, %651 : vector<24x128xi1>, vector<24x128xf32>
    %653 = arith.truncf %652 : vector<24x128xf32> to vector<24x128xbf16>
    %654 = tpu.concatenate %647, %640, %653 in 0 : vector<24x128xbf16>, vector<24x128xbf16>, vector<24x128xbf16> -> vector<72x128xbf16>
    %cst_326 = arith.constant dense<0.000000e+00> : vector<24x128xf32>
    %655 = tpu.matmul %639, %654, %cst_326 {dimension_numbers = #tpu.dot_dimension_numbers<[1], [0], [0], [1], [0, 0, 1, 1], [], []>} : vector<24x72xbf16>, vector<72x128xbf16>, vector<24x128xf32> -> vector<24x128xf32>
    %c2_327 = arith.constant 2 : index
    %c0_328 = arith.constant 0 : index
    %c0_329 = arith.constant 0 : index
    %656 = vector.load %arg23[%c2_327, %c0_328, %c0_329] : memref<10x24x1xf32, #tpu.memory_space<vmem>>, vector<1x24x1xf32>
    %657 = vector.shape_cast %656 : vector<1x24x1xf32> to vector<24x1xf32>
    %658 = vector.broadcast %657 : vector<24x1xf32> to vector<24x128xf32>
    %659 = arith.addf %655, %658 : vector<24x128xf32>
    %660 = arith.addf %634, %659 : vector<24x128xf32>
    %cst_330 = arith.constant 2.000000e-01 : f32
    %661 = vector.broadcast %cst_330 : f32 to vector<24x128xf32>
    %662 = arith.mulf %661, %659 : vector<24x128xf32>
    %663 = arith.maximumf %659, %662 : vector<24x128xf32>
    %c3_331 = arith.constant 3 : index
    %c0_332 = arith.constant 0 : index
    %c0_333 = arith.constant 0 : index
    %664 = vector.load %arg22[%c3_331, %c0_332, %c0_333] : memref<10x24x72xbf16, #tpu.memory_space<vmem>>, vector<1x24x72xbf16>
    %665 = vector.shape_cast %664 : vector<1x24x72xbf16> to vector<24x72xbf16>
    %666 = arith.truncf %663 : vector<24x128xf32> to vector<24x128xbf16>
    %667 = tpu.iota {dimensions = array<i32: 1>} : vector<24x128xi32>
    %c16_i32_334 = arith.constant 16 : i32
    %668 = tpu.dynamic_rotate %663 by %c16_i32_334 dim 1 : vector<24x128xf32>, i32 -> vector<24x128xf32>
    %c16_i32_335 = arith.constant 16 : i32
    %669 = vector.broadcast %c16_i32_335 : i32 to vector<24x128xi32>
    %670 = arith.cmpi sge, %667, %669 : vector<24x128xi32>
    %cst_336 = arith.constant 0.000000e+00 : f32
    %671 = vector.broadcast %cst_336 : f32 to vector<24x128xf32>
    %672 = arith.select %670, %668, %671 : vector<24x128xi1>, vector<24x128xf32>
    %673 = arith.truncf %672 : vector<24x128xf32> to vector<24x128xbf16>
    %c112_i32_337 = arith.constant 112 : i32
    %674 = tpu.dynamic_rotate %663 by %c112_i32_337 dim 1 : vector<24x128xf32>, i32 -> vector<24x128xf32>
    %c112_i32_338 = arith.constant 112 : i32
    %675 = vector.broadcast %c112_i32_338 : i32 to vector<24x128xi32>
    %676 = arith.cmpi slt, %667, %675 : vector<24x128xi32>
    %cst_339 = arith.constant 0.000000e+00 : f32
    %677 = vector.broadcast %cst_339 : f32 to vector<24x128xf32>
    %678 = arith.select %676, %674, %677 : vector<24x128xi1>, vector<24x128xf32>
    %679 = arith.truncf %678 : vector<24x128xf32> to vector<24x128xbf16>
    %680 = tpu.concatenate %673, %666, %679 in 0 : vector<24x128xbf16>, vector<24x128xbf16>, vector<24x128xbf16> -> vector<72x128xbf16>
    %cst_340 = arith.constant dense<0.000000e+00> : vector<24x128xf32>
    %681 = tpu.matmul %665, %680, %cst_340 {dimension_numbers = #tpu.dot_dimension_numbers<[1], [0], [0], [1], [0, 0, 1, 1], [], []>} : vector<24x72xbf16>, vector<72x128xbf16>, vector<24x128xf32> -> vector<24x128xf32>
    %c3_341 = arith.constant 3 : index
    %c0_342 = arith.constant 0 : index
    %c0_343 = arith.constant 0 : index
    %682 = vector.load %arg23[%c3_341, %c0_342, %c0_343] : memref<10x24x1xf32, #tpu.memory_space<vmem>>, vector<1x24x1xf32>
    %683 = vector.shape_cast %682 : vector<1x24x1xf32> to vector<24x1xf32>
    %684 = vector.broadcast %683 : vector<24x1xf32> to vector<24x128xf32>
    %685 = arith.addf %681, %684 : vector<24x128xf32>
    %686 = arith.addf %660, %685 : vector<24x128xf32>
    %cst_344 = arith.constant 2.000000e-01 : f32
    %687 = vector.broadcast %cst_344 : f32 to vector<24x128xf32>
    %688 = arith.mulf %687, %685 : vector<24x128xf32>
    %689 = arith.maximumf %685, %688 : vector<24x128xf32>
    %c4_345 = arith.constant 4 : index
    %c0_346 = arith.constant 0 : index
    %c0_347 = arith.constant 0 : index
    %690 = vector.load %arg22[%c4_345, %c0_346, %c0_347] : memref<10x24x72xbf16, #tpu.memory_space<vmem>>, vector<1x24x72xbf16>
    %691 = vector.shape_cast %690 : vector<1x24x72xbf16> to vector<24x72xbf16>
    %692 = arith.truncf %689 : vector<24x128xf32> to vector<24x128xbf16>
    %693 = tpu.iota {dimensions = array<i32: 1>} : vector<24x128xi32>
    %c32_i32_348 = arith.constant 32 : i32
    %694 = tpu.dynamic_rotate %689 by %c32_i32_348 dim 1 : vector<24x128xf32>, i32 -> vector<24x128xf32>
    %c32_i32_349 = arith.constant 32 : i32
    %695 = vector.broadcast %c32_i32_349 : i32 to vector<24x128xi32>
    %696 = arith.cmpi sge, %693, %695 : vector<24x128xi32>
    %cst_350 = arith.constant 0.000000e+00 : f32
    %697 = vector.broadcast %cst_350 : f32 to vector<24x128xf32>
    %698 = arith.select %696, %694, %697 : vector<24x128xi1>, vector<24x128xf32>
    %699 = arith.truncf %698 : vector<24x128xf32> to vector<24x128xbf16>
    %c96_i32_351 = arith.constant 96 : i32
    %700 = tpu.dynamic_rotate %689 by %c96_i32_351 dim 1 : vector<24x128xf32>, i32 -> vector<24x128xf32>
    %c96_i32_352 = arith.constant 96 : i32
    %701 = vector.broadcast %c96_i32_352 : i32 to vector<24x128xi32>
    %702 = arith.cmpi slt, %693, %701 : vector<24x128xi32>
    %cst_353 = arith.constant 0.000000e+00 : f32
    %703 = vector.broadcast %cst_353 : f32 to vector<24x128xf32>
    %704 = arith.select %702, %700, %703 : vector<24x128xi1>, vector<24x128xf32>
    %705 = arith.truncf %704 : vector<24x128xf32> to vector<24x128xbf16>
    %706 = tpu.concatenate %699, %692, %705 in 0 : vector<24x128xbf16>, vector<24x128xbf16>, vector<24x128xbf16> -> vector<72x128xbf16>
    %cst_354 = arith.constant dense<0.000000e+00> : vector<24x128xf32>
    %707 = tpu.matmul %691, %706, %cst_354 {dimension_numbers = #tpu.dot_dimension_numbers<[1], [0], [0], [1], [0, 0, 1, 1], [], []>} : vector<24x72xbf16>, vector<72x128xbf16>, vector<24x128xf32> -> vector<24x128xf32>
    %c4_355 = arith.constant 4 : index
    %c0_356 = arith.constant 0 : index
    %c0_357 = arith.constant 0 : index
    %708 = vector.load %arg23[%c4_355, %c0_356, %c0_357] : memref<10x24x1xf32, #tpu.memory_space<vmem>>, vector<1x24x1xf32>
    %709 = vector.shape_cast %708 : vector<1x24x1xf32> to vector<24x1xf32>
    %710 = vector.broadcast %709 : vector<24x1xf32> to vector<24x128xf32>
    %711 = arith.addf %707, %710 : vector<24x128xf32>
    %712 = arith.addf %686, %711 : vector<24x128xf32>
    %cst_358 = arith.constant 2.000000e-01 : f32
    %713 = vector.broadcast %cst_358 : f32 to vector<24x128xf32>
    %714 = arith.mulf %713, %711 : vector<24x128xf32>
    %715 = arith.maximumf %711, %714 : vector<24x128xf32>
    %c5_359 = arith.constant 5 : index
    %c0_360 = arith.constant 0 : index
    %c0_361 = arith.constant 0 : index
    %716 = vector.load %arg22[%c5_359, %c0_360, %c0_361] : memref<10x24x72xbf16, #tpu.memory_space<vmem>>, vector<1x24x72xbf16>
    %717 = vector.shape_cast %716 : vector<1x24x72xbf16> to vector<24x72xbf16>
    %718 = arith.truncf %715 : vector<24x128xf32> to vector<24x128xbf16>
    %719 = tpu.iota {dimensions = array<i32: 1>} : vector<24x128xi32>
    %c64_i32_362 = arith.constant 64 : i32
    %720 = tpu.dynamic_rotate %715 by %c64_i32_362 dim 1 : vector<24x128xf32>, i32 -> vector<24x128xf32>
    %c64_i32_363 = arith.constant 64 : i32
    %721 = vector.broadcast %c64_i32_363 : i32 to vector<24x128xi32>
    %722 = arith.cmpi sge, %719, %721 : vector<24x128xi32>
    %cst_364 = arith.constant 0.000000e+00 : f32
    %723 = vector.broadcast %cst_364 : f32 to vector<24x128xf32>
    %724 = arith.select %722, %720, %723 : vector<24x128xi1>, vector<24x128xf32>
    %725 = arith.truncf %724 : vector<24x128xf32> to vector<24x128xbf16>
    %c64_i32_365 = arith.constant 64 : i32
    %726 = tpu.dynamic_rotate %715 by %c64_i32_365 dim 1 : vector<24x128xf32>, i32 -> vector<24x128xf32>
    %c64_i32_366 = arith.constant 64 : i32
    %727 = vector.broadcast %c64_i32_366 : i32 to vector<24x128xi32>
    %728 = arith.cmpi slt, %719, %727 : vector<24x128xi32>
    %cst_367 = arith.constant 0.000000e+00 : f32
    %729 = vector.broadcast %cst_367 : f32 to vector<24x128xf32>
    %730 = arith.select %728, %726, %729 : vector<24x128xi1>, vector<24x128xf32>
    %731 = arith.truncf %730 : vector<24x128xf32> to vector<24x128xbf16>
    %732 = tpu.concatenate %725, %718, %731 in 0 : vector<24x128xbf16>, vector<24x128xbf16>, vector<24x128xbf16> -> vector<72x128xbf16>
    %cst_368 = arith.constant dense<0.000000e+00> : vector<24x128xf32>
    %733 = tpu.matmul %717, %732, %cst_368 {dimension_numbers = #tpu.dot_dimension_numbers<[1], [0], [0], [1], [0, 0, 1, 1], [], []>} : vector<24x72xbf16>, vector<72x128xbf16>, vector<24x128xf32> -> vector<24x128xf32>
    %c5_369 = arith.constant 5 : index
    %c0_370 = arith.constant 0 : index
    %c0_371 = arith.constant 0 : index
    %734 = vector.load %arg23[%c5_369, %c0_370, %c0_371] : memref<10x24x1xf32, #tpu.memory_space<vmem>>, vector<1x24x1xf32>
    %735 = vector.shape_cast %734 : vector<1x24x1xf32> to vector<24x1xf32>
    %736 = vector.broadcast %735 : vector<24x1xf32> to vector<24x128xf32>
    %737 = arith.addf %733, %736 : vector<24x128xf32>
    %738 = arith.addf %712, %737 : vector<24x128xf32>
    %cst_372 = arith.constant 2.000000e-01 : f32
    %739 = vector.broadcast %cst_372 : f32 to vector<24x128xf32>
    %740 = arith.mulf %739, %737 : vector<24x128xf32>
    %741 = arith.maximumf %737, %740 : vector<24x128xf32>
    %c6_373 = arith.constant 6 : index
    %c0_374 = arith.constant 0 : index
    %c0_375 = arith.constant 0 : index
    %742 = vector.load %arg22[%c6_373, %c0_374, %c0_375] : memref<10x24x72xbf16, #tpu.memory_space<vmem>>, vector<1x24x72xbf16>
    %743 = vector.shape_cast %742 : vector<1x24x72xbf16> to vector<24x72xbf16>
    %744 = arith.truncf %741 : vector<24x128xf32> to vector<24x128xbf16>
    %745 = vector.extract_strided_slice %743 {offsets = [0, 24], sizes = [24, 24], strides = [1, 1]} : vector<24x72xbf16> to vector<24x24xbf16>
    %cst_376 = arith.constant dense<0.000000e+00> : vector<24x128xf32>
    %746 = tpu.matmul %745, %744, %cst_376 {dimension_numbers = #tpu.dot_dimension_numbers<[1], [0], [0], [1], [0, 0, 1, 1], [], []>} : vector<24x24xbf16>, vector<24x128xbf16>, vector<24x128xf32> -> vector<24x128xf32>
    %c6_377 = arith.constant 6 : index
    %c0_378 = arith.constant 0 : index
    %c0_379 = arith.constant 0 : index
    %747 = vector.load %arg23[%c6_377, %c0_378, %c0_379] : memref<10x24x1xf32, #tpu.memory_space<vmem>>, vector<1x24x1xf32>
    %748 = vector.shape_cast %747 : vector<1x24x1xf32> to vector<24x1xf32>
    %749 = vector.broadcast %748 : vector<24x1xf32> to vector<24x128xf32>
    %750 = arith.addf %746, %749 : vector<24x128xf32>
    %751 = arith.addf %738, %750 : vector<24x128xf32>
    %cst_380 = arith.constant 2.000000e-01 : f32
    %752 = vector.broadcast %cst_380 : f32 to vector<24x128xf32>
    %753 = arith.mulf %752, %750 : vector<24x128xf32>
    %754 = arith.maximumf %750, %753 : vector<24x128xf32>
    %c7_381 = arith.constant 7 : index
    %c0_382 = arith.constant 0 : index
    %c0_383 = arith.constant 0 : index
    %755 = vector.load %arg22[%c7_381, %c0_382, %c0_383] : memref<10x24x72xbf16, #tpu.memory_space<vmem>>, vector<1x24x72xbf16>
    %756 = vector.shape_cast %755 : vector<1x24x72xbf16> to vector<24x72xbf16>
    %757 = arith.truncf %754 : vector<24x128xf32> to vector<24x128xbf16>
    %758 = vector.extract_strided_slice %756 {offsets = [0, 24], sizes = [24, 24], strides = [1, 1]} : vector<24x72xbf16> to vector<24x24xbf16>
    %cst_384 = arith.constant dense<0.000000e+00> : vector<24x128xf32>
    %759 = tpu.matmul %758, %757, %cst_384 {dimension_numbers = #tpu.dot_dimension_numbers<[1], [0], [0], [1], [0, 0, 1, 1], [], []>} : vector<24x24xbf16>, vector<24x128xbf16>, vector<24x128xf32> -> vector<24x128xf32>
    %c7_385 = arith.constant 7 : index
    %c0_386 = arith.constant 0 : index
    %c0_387 = arith.constant 0 : index
    %760 = vector.load %arg23[%c7_385, %c0_386, %c0_387] : memref<10x24x1xf32, #tpu.memory_space<vmem>>, vector<1x24x1xf32>
    %761 = vector.shape_cast %760 : vector<1x24x1xf32> to vector<24x1xf32>
    %762 = vector.broadcast %761 : vector<24x1xf32> to vector<24x128xf32>
    %763 = arith.addf %759, %762 : vector<24x128xf32>
    %764 = arith.addf %751, %763 : vector<24x128xf32>
    %cst_388 = arith.constant 2.000000e-01 : f32
    %765 = vector.broadcast %cst_388 : f32 to vector<24x128xf32>
    %766 = arith.mulf %765, %763 : vector<24x128xf32>
    %767 = arith.maximumf %763, %766 : vector<24x128xf32>
    %c8_389 = arith.constant 8 : index
    %c0_390 = arith.constant 0 : index
    %c0_391 = arith.constant 0 : index
    %768 = vector.load %arg22[%c8_389, %c0_390, %c0_391] : memref<10x24x72xbf16, #tpu.memory_space<vmem>>, vector<1x24x72xbf16>
    %769 = vector.shape_cast %768 : vector<1x24x72xbf16> to vector<24x72xbf16>
    %770 = arith.truncf %767 : vector<24x128xf32> to vector<24x128xbf16>
    %771 = vector.extract_strided_slice %769 {offsets = [0, 24], sizes = [24, 24], strides = [1, 1]} : vector<24x72xbf16> to vector<24x24xbf16>
    %cst_392 = arith.constant dense<0.000000e+00> : vector<24x128xf32>
    %772 = tpu.matmul %771, %770, %cst_392 {dimension_numbers = #tpu.dot_dimension_numbers<[1], [0], [0], [1], [0, 0, 1, 1], [], []>} : vector<24x24xbf16>, vector<24x128xbf16>, vector<24x128xf32> -> vector<24x128xf32>
    %c8_393 = arith.constant 8 : index
    %c0_394 = arith.constant 0 : index
    %c0_395 = arith.constant 0 : index
    %773 = vector.load %arg23[%c8_393, %c0_394, %c0_395] : memref<10x24x1xf32, #tpu.memory_space<vmem>>, vector<1x24x1xf32>
    %774 = vector.shape_cast %773 : vector<1x24x1xf32> to vector<24x1xf32>
    %775 = vector.broadcast %774 : vector<24x1xf32> to vector<24x128xf32>
    %776 = arith.addf %772, %775 : vector<24x128xf32>
    %777 = arith.addf %764, %776 : vector<24x128xf32>
    %cst_396 = arith.constant 2.000000e-01 : f32
    %778 = vector.broadcast %cst_396 : f32 to vector<24x128xf32>
    %779 = arith.mulf %778, %776 : vector<24x128xf32>
    %780 = arith.maximumf %776, %779 : vector<24x128xf32>
    %c9_397 = arith.constant 9 : index
    %c0_398 = arith.constant 0 : index
    %c0_399 = arith.constant 0 : index
    %781 = vector.load %arg22[%c9_397, %c0_398, %c0_399] : memref<10x24x72xbf16, #tpu.memory_space<vmem>>, vector<1x24x72xbf16>
    %782 = vector.shape_cast %781 : vector<1x24x72xbf16> to vector<24x72xbf16>
    %783 = arith.truncf %780 : vector<24x128xf32> to vector<24x128xbf16>
    %784 = vector.extract_strided_slice %782 {offsets = [0, 24], sizes = [24, 24], strides = [1, 1]} : vector<24x72xbf16> to vector<24x24xbf16>
    %cst_400 = arith.constant dense<0.000000e+00> : vector<24x128xf32>
    %785 = tpu.matmul %784, %783, %cst_400 {dimension_numbers = #tpu.dot_dimension_numbers<[1], [0], [0], [1], [0, 0, 1, 1], [], []>} : vector<24x24xbf16>, vector<24x128xbf16>, vector<24x128xf32> -> vector<24x128xf32>
    %c9_401 = arith.constant 9 : index
    %c0_402 = arith.constant 0 : index
    %c0_403 = arith.constant 0 : index
    %786 = vector.load %arg23[%c9_401, %c0_402, %c0_403] : memref<10x24x1xf32, #tpu.memory_space<vmem>>, vector<1x24x1xf32>
    %787 = vector.shape_cast %786 : vector<1x24x1xf32> to vector<24x1xf32>
    %788 = vector.broadcast %787 : vector<24x1xf32> to vector<24x128xf32>
    %789 = arith.addf %785, %788 : vector<24x128xf32>
    %790 = arith.addf %777, %789 : vector<24x128xf32>
    %cst_404 = arith.constant 2.000000e-01 : f32
    %791 = vector.broadcast %cst_404 : f32 to vector<24x128xf32>
    %792 = arith.mulf %791, %790 : vector<24x128xf32>
    %793 = arith.maximumf %790, %792 : vector<24x128xf32>
    %c0_405 = arith.constant 0 : index
    %c0_406 = arith.constant 0 : index
    %794 = vector.load %arg27[%c0_405, %c0_406] : memref<24x128xf32, #tpu.memory_space<vmem>>, vector<24x128xf32>
    %795 = arith.mulf %793, %794 : vector<24x128xf32>
    %cst_407 = arith.constant dense<0.000000e+00> : vector<24xf32>
    %796 = vector.multi_reduction <add>, %795, %cst_407 [1] : vector<24x128xf32> to vector<24xf32>
    %797 = vector.shape_cast %796 : vector<24xf32> to vector<24x1xf32>
    %cst_408 = arith.constant dense<0.000000e+00> : vector<1xf32>
    %798 = vector.multi_reduction <add>, %797, %cst_408 [0] : vector<24x1xf32> to vector<1xf32>
    %799 = vector.shape_cast %798 : vector<1xf32> to vector<1x1xf32>
    %c0_409 = arith.constant 0 : index
    %c0_410 = arith.constant 0 : index
    %800 = vector.load %arg28[%c0_409, %c0_410] : memref<1x1xf32, #tpu.memory_space<vmem>>, vector<1x1xf32>
    %801 = arith.addf %799, %800 : vector<1x1xf32>
    %802 = vector.shape_cast %801 : vector<1x1xf32> to vector<1x1x1xf32>
    %c0_411 = arith.constant 0 : index
    %c0_412 = arith.constant 0 : index
    %c0_413 = arith.constant 0 : index
    %803 = vector.load %arg29[%c0_411, %c0_412, %c0_413] : memref<1x1x1xf32, #tpu.memory_space<vmem>>, vector<1x1x1xf32>
    tpu.vector_store %arg29[%c0_411, %c0_412, %c0_413], %802 {strides = array<i32>} : memref<1x1x1xf32, #tpu.memory_space<vmem>>, vector<1x1x1xf32>,
    return
  }
  func.func @transform_0(%arg0: i32) -> (i32, i32, i32) {
    %c0_i32 = arith.constant 0 : i32
    %c0_i32_0 = arith.constant 0 : i32
    %c0_i32_1 = arith.constant 0 : i32
    return %arg0, %c0_i32, %c0_i32_0 : i32, i32, i32
  }
  func.func @transform_1(%arg0: i32) -> (i32, i32, i32) {
    %c0_i32 = arith.constant 0 : i32
    %c0_i32_0 = arith.constant 0 : i32
    %c0_i32_1 = arith.constant 0 : i32
    return %arg0, %c0_i32, %c0_i32_0 : i32, i32, i32
  }
  func.func @transform_2(%arg0: i32) -> (i32, i32) {
    %c0_i32 = arith.constant 0 : i32
    %c0_i32_0 = arith.constant 0 : i32
    %c0_i32_1 = arith.constant 0 : i32
    return %c0_i32, %c0_i32_0 : i32, i32
  }
  func.func @transform_3(%arg0: i32) -> (i32, i32) {
    %c0_i32 = arith.constant 0 : i32
    %c0_i32_0 = arith.constant 0 : i32
    %c0_i32_1 = arith.constant 0 : i32
    return %c0_i32, %c0_i32_0 : i32, i32
  }
  func.func @transform_4(%arg0: i32) -> (i32, i32) {
    %c0_i32 = arith.constant 0 : i32
    %c0_i32_0 = arith.constant 0 : i32
    %c0_i32_1 = arith.constant 0 : i32
    return %c0_i32, %c0_i32_0 : i32, i32
  }
  func.func @transform_5(%arg0: i32) -> (i32, i32) {
    %c0_i32 = arith.constant 0 : i32
    %c0_i32_0 = arith.constant 0 : i32
    %c0_i32_1 = arith.constant 0 : i32
    return %c0_i32, %c0_i32_0 : i32, i32
  }
  func.func @transform_6(%arg0: i32) -> (i32, i32) {
    %c0_i32 = arith.constant 0 : i32
    %c0_i32_0 = arith.constant 0 : i32
    %c0_i32_1 = arith.constant 0 : i32
    return %c0_i32, %c0_i32_0 : i32, i32
  }
  func.func @transform_7(%arg0: i32) -> (i32, i32) {
    %c0_i32 = arith.constant 0 : i32
    %c0_i32_0 = arith.constant 0 : i32
    %c0_i32_1 = arith.constant 0 : i32
    return %c0_i32, %c0_i32_0 : i32, i32
  }
  func.func @transform_8(%arg0: i32) -> (i32, i32, i32) {
    %c0_i32 = arith.constant 0 : i32
    %c0_i32_0 = arith.constant 0 : i32
    %c0_i32_1 = arith.constant 0 : i32
    %c0_i32_2 = arith.constant 0 : i32
    return %c0_i32, %c0_i32_0, %c0_i32_1 : i32, i32, i32
  }
  func.func @transform_9(%arg0: i32) -> (i32, i32, i32) {
    %c0_i32 = arith.constant 0 : i32
    %c0_i32_0 = arith.constant 0 : i32
    %c0_i32_1 = arith.constant 0 : i32
    %c0_i32_2 = arith.constant 0 : i32
    return %c0_i32, %c0_i32_0, %c0_i32_1 : i32, i32, i32
  }
  func.func @transform_10(%arg0: i32) -> (i32, i32) {
    %c0_i32 = arith.constant 0 : i32
    %c0_i32_0 = arith.constant 0 : i32
    %c0_i32_1 = arith.constant 0 : i32
    return %c0_i32, %c0_i32_0 : i32, i32
  }
  func.func @transform_11(%arg0: i32) -> (i32, i32) {
    %c0_i32 = arith.constant 0 : i32
    %c0_i32_0 = arith.constant 0 : i32
    %c0_i32_1 = arith.constant 0 : i32
    return %c0_i32, %c0_i32_0 : i32, i32
  }
  func.func @transform_12(%arg0: i32) -> (i32, i32) {
    %c0_i32 = arith.constant 0 : i32
    %c0_i32_0 = arith.constant 0 : i32
    %c0_i32_1 = arith.constant 0 : i32
    return %c0_i32, %c0_i32_0 : i32, i32
  }
  func.func @transform_13(%arg0: i32) -> (i32, i32) {
    %c0_i32 = arith.constant 0 : i32
    %c0_i32_0 = arith.constant 0 : i32
    %c0_i32_1 = arith.constant 0 : i32
    return %c0_i32, %c0_i32_0 : i32, i32
  }
  func.func @transform_14(%arg0: i32) -> (i32, i32, i32) {
    %c0_i32 = arith.constant 0 : i32
    %c0_i32_0 = arith.constant 0 : i32
    %c0_i32_1 = arith.constant 0 : i32
    %c0_i32_2 = arith.constant 0 : i32
    return %c0_i32, %c0_i32_0, %c0_i32_1 : i32, i32, i32
  }
  func.func @transform_15(%arg0: i32) -> (i32, i32, i32) {
    %c0_i32 = arith.constant 0 : i32
    %c0_i32_0 = arith.constant 0 : i32
    %c0_i32_1 = arith.constant 0 : i32
    %c0_i32_2 = arith.constant 0 : i32
    return %c0_i32, %c0_i32_0, %c0_i32_1 : i32, i32, i32
  }
  func.func @transform_16(%arg0: i32) -> (i32, i32) {
    %c0_i32 = arith.constant 0 : i32
    %c0_i32_0 = arith.constant 0 : i32
    %c0_i32_1 = arith.constant 0 : i32
    return %c0_i32, %c0_i32_0 : i32, i32
  }
  func.func @transform_17(%arg0: i32) -> (i32, i32) {
    %c0_i32 = arith.constant 0 : i32
    %c0_i32_0 = arith.constant 0 : i32
    %c0_i32_1 = arith.constant 0 : i32
    return %c0_i32, %c0_i32_0 : i32, i32
  }
  func.func @transform_18(%arg0: i32) -> (i32, i32) {
    %c0_i32 = arith.constant 0 : i32
    %c0_i32_0 = arith.constant 0 : i32
    %c0_i32_1 = arith.constant 0 : i32
    return %c0_i32, %c0_i32_0 : i32, i32
  }
  func.func @transform_19(%arg0: i32) -> (i32, i32) {
    %c0_i32 = arith.constant 0 : i32
    %c0_i32_0 = arith.constant 0 : i32
    %c0_i32_1 = arith.constant 0 : i32
    return %c0_i32, %c0_i32_0 : i32, i32
  }
  func.func @transform_20(%arg0: i32) -> (i32, i32) {
    %c0_i32 = arith.constant 0 : i32
    %c0_i32_0 = arith.constant 0 : i32
    %c0_i32_1 = arith.constant 0 : i32
    return %c0_i32, %c0_i32_0 : i32, i32
  }
  func.func @transform_21(%arg0: i32) -> (i32, i32, i32) {
    %c0_i32 = arith.constant 0 : i32
    %c0_i32_0 = arith.constant 0 : i32
    %c0_i32_1 = arith.constant 0 : i32
    %c0_i32_2 = arith.constant 0 : i32
    return %c0_i32, %c0_i32_0, %c0_i32_1 : i32, i32, i32
  }
  func.func @transform_22(%arg0: i32) -> (i32, i32, i32) {
    %c0_i32 = arith.constant 0 : i32
    %c0_i32_0 = arith.constant 0 : i32
    %c0_i32_1 = arith.constant 0 : i32
    %c0_i32_2 = arith.constant 0 : i32
    return %c0_i32, %c0_i32_0, %c0_i32_1 : i32, i32, i32
  }
  func.func @transform_23(%arg0: i32) -> (i32, i32) {
    %c0_i32 = arith.constant 0 : i32
    %c0_i32_0 = arith.constant 0 : i32
    %c0_i32_1 = arith.constant 0 : i32
    return %c0_i32, %c0_i32_0 : i32, i32
  }
  func.func @transform_24(%arg0: i32) -> (i32, i32) {
    %c0_i32 = arith.constant 0 : i32
    %c0_i32_0 = arith.constant 0 : i32
    %c0_i32_1 = arith.constant 0 : i32
    return %c0_i32, %c0_i32_0 : i32, i32
  }
  func.func @transform_25(%arg0: i32) -> (i32, i32) {
    %c0_i32 = arith.constant 0 : i32
    %c0_i32_0 = arith.constant 0 : i32
    %c0_i32_1 = arith.constant 0 : i32
    return %c0_i32, %c0_i32_0 : i32, i32
  }
  func.func @transform_26(%arg0: i32) -> (i32, i32) {
    %c0_i32 = arith.constant 0 : i32
    %c0_i32_0 = arith.constant 0 : i32
    %c0_i32_1 = arith.constant 0 : i32
    return %c0_i32, %c0_i32_0 : i32, i32
  }
  func.func @transform_27(%arg0: i32) -> (i32, i32) {
    %c0_i32 = arith.constant 0 : i32
    %c0_i32_0 = arith.constant 0 : i32
    %c0_i32_1 = arith.constant 0 : i32
    return %c0_i32, %c0_i32_0 : i32, i32
  }
  func.func @transform_28(%arg0: i32) -> (i32, i32, i32) {
    %c0_i32 = arith.constant 0 : i32
    %c0_i32_0 = arith.constant 0 : i32
    %c0_i32_1 = arith.constant 0 : i32
    return %arg0, %c0_i32, %c0_i32_0 : i32, i32, i32
  }
}

module attributes {stable_mosaic.version = 11 : i64} {
  func.func @disc_kernel(%arg0: i32, %arg1: memref<1x3x128xf32, #tpu.memory_space<vmem>>, %arg2: memref<1x2x128xf32, #tpu.memory_space<vmem>>, %arg3: memref<4x34xbf16, #tpu.memory_space<vmem>>, %arg4: memref<4x1xf32, #tpu.memory_space<vmem>>, %arg5: memref<4x51xbf16, #tpu.memory_space<vmem>>, %arg6: memref<4x1xf32, #tpu.memory_space<vmem>>, %arg7: memref<8x12xbf16, #tpu.memory_space<vmem>>, %arg8: memref<8x1xf32, #tpu.memory_space<vmem>>, %arg9: memref<10x8x24xbf16, #tpu.memory_space<vmem>>, %arg10: memref<10x8x1xf32, #tpu.memory_space<vmem>>, %arg11: memref<8x4xbf16, #tpu.memory_space<vmem>>, %arg12: memref<8x1xf32, #tpu.memory_space<vmem>>, %arg13: memref<8x12xbf16, #tpu.memory_space<vmem>>, %arg14: memref<8x1xf32, #tpu.memory_space<vmem>>, %arg15: memref<10x8x24xbf16, #tpu.memory_space<vmem>>, %arg16: memref<10x8x1xf32, #tpu.memory_space<vmem>>, %arg17: memref<8x4xbf16, #tpu.memory_space<vmem>>, %arg18: memref<8x1xf32, #tpu.memory_space<vmem>>, %arg19: memref<24x24xbf16, #tpu.memory_space<vmem>>, %arg20: memref<24x24xbf16, #tpu.memory_space<vmem>>, %arg21: memref<24x1xf32, #tpu.memory_space<vmem>>, %arg22: memref<10x24x72xbf16, #tpu.memory_space<vmem>>, %arg23: memref<10x24x1xf32, #tpu.memory_space<vmem>>, %arg24: memref<24x8xbf16, #tpu.memory_space<vmem>>, %arg25: memref<24x8xbf16, #tpu.memory_space<vmem>>, %arg26: memref<24x1xf32, #tpu.memory_space<vmem>>, %arg27: memref<24x128xf32, #tpu.memory_space<vmem>>, %arg28: memref<1x1xf32, #tpu.memory_space<vmem>>, %arg29: memref<1x1x1xf32, #tpu.memory_space<vmem>>) attributes {dimension_semantics = [#tpu.dimension_semantics<parallel>], iteration_bounds = array<i64: 2>, scalar_prefetch = 0 : i64, scratch_operands = 0 : i64, tpu.core_type = #tpu.core_type<tc>, window_params = [{transform_indices = @transform_0, window_bounds = array<i64: 1, 3, 128>}, {transform_indices = @transform_1, window_bounds = array<i64: 1, 2, 128>}, {pipeline_mode = #tpu.pipeline_mode<synchronous>, transform_indices = @transform_2, window_bounds = array<i64: 4, 34>}, {pipeline_mode = #tpu.pipeline_mode<synchronous>, transform_indices = @transform_3, window_bounds = array<i64: 4, 1>}, {pipeline_mode = #tpu.pipeline_mode<synchronous>, transform_indices = @transform_4, window_bounds = array<i64: 4, 51>}, {pipeline_mode = #tpu.pipeline_mode<synchronous>, transform_indices = @transform_5, window_bounds = array<i64: 4, 1>}, {pipeline_mode = #tpu.pipeline_mode<synchronous>, transform_indices = @transform_6, window_bounds = array<i64: 8, 12>}, {pipeline_mode = #tpu.pipeline_mode<synchronous>, transform_indices = @transform_7, window_bounds = array<i64: 8, 1>}, {pipeline_mode = #tpu.pipeline_mode<synchronous>, transform_indices = @transform_8, window_bounds = array<i64: 10, 8, 24>}, {pipeline_mode = #tpu.pipeline_mode<synchronous>, transform_indices = @transform_9, window_bounds = array<i64: 10, 8, 1>}, {pipeline_mode = #tpu.pipeline_mode<synchronous>, transform_indices = @transform_10, window_bounds = array<i64: 8, 4>}, {pipeline_mode = #tpu.pipeline_mode<synchronous>, transform_indices = @transform_11, window_bounds = array<i64: 8, 1>}, {pipeline_mode = #tpu.pipeline_mode<synchronous>, transform_indices = @transform_12, window_bounds = array<i64: 8, 12>}, {pipeline_mode = #tpu.pipeline_mode<synchronous>, transform_indices = @transform_13, window_bounds = array<i64: 8, 1>}, {pipeline_mode = #tpu.pipeline_mode<synchronous>, transform_indices = @transform_14, window_bounds = array<i64: 10, 8, 24>}, {pipeline_mode = #tpu.pipeline_mode<synchronous>, transform_indices = @transform_15, window_bounds = array<i64: 10, 8, 1>}, {pipeline_mode = #tpu.pipeline_mode<synchronous>, transform_indices = @transform_16, window_bounds = array<i64: 8, 4>}, {pipeline_mode = #tpu.pipeline_mode<synchronous>, transform_indices = @transform_17, window_bounds = array<i64: 8, 1>}, {pipeline_mode = #tpu.pipeline_mode<synchronous>, transform_indices = @transform_18, window_bounds = array<i64: 24, 24>}, {pipeline_mode = #tpu.pipeline_mode<synchronous>, transform_indices = @transform_19, window_bounds = array<i64: 24, 24>}, {pipeline_mode = #tpu.pipeline_mode<synchronous>, transform_indices = @transform_20, window_bounds = array<i64: 24, 1>}, {pipeline_mode = #tpu.pipeline_mode<synchronous>, transform_indices = @transform_21, window_bounds = array<i64: 10, 24, 72>}, {pipeline_mode = #tpu.pipeline_mode<synchronous>, transform_indices = @transform_22, window_bounds = array<i64: 10, 24, 1>}, {pipeline_mode = #tpu.pipeline_mode<synchronous>, transform_indices = @transform_23, window_bounds = array<i64: 24, 8>}, {pipeline_mode = #tpu.pipeline_mode<synchronous>, transform_indices = @transform_24, window_bounds = array<i64: 24, 8>}, {pipeline_mode = #tpu.pipeline_mode<synchronous>, transform_indices = @transform_25, window_bounds = array<i64: 24, 1>}, {pipeline_mode = #tpu.pipeline_mode<synchronous>, transform_indices = @transform_26, window_bounds = array<i64: 24, 128>}, {pipeline_mode = #tpu.pipeline_mode<synchronous>, transform_indices = @transform_27, window_bounds = array<i64: 1, 1>}, {transform_indices = @transform_28, window_bounds = array<i64: 1, 1, 1>}]} {
    %c0 = arith.constant 0 : index
    %c0_0 = arith.constant 0 : index
    %c0_1 = arith.constant 0 : index
    %0 = vector.load %arg1[%c0, %c0_0, %c0_1] : memref<1x3x128xf32, #tpu.memory_space<vmem>>, vector<1x3x128xf32>
    %1 = vector.shape_cast %0 : vector<1x3x128xf32> to vector<3x128xf32>
    %c0_2 = arith.constant 0 : index
    %c0_3 = arith.constant 0 : index
    %c0_4 = arith.constant 0 : index
    %2 = vector.load %arg2[%c0_2, %c0_3, %c0_4] : memref<1x2x128xf32, #tpu.memory_space<vmem>>, vector<1x2x128xf32>
    %3 = vector.shape_cast %2 : vector<1x2x128xf32> to vector<2x128xf32>
    %c0_5 = arith.constant 0 : index
    %c0_6 = arith.constant 0 : index
    %4 = vector.load %arg3[%c0_5, %c0_6] : memref<4x34xbf16, #tpu.memory_space<vmem>>, vector<4x34xbf16>
    %5 = arith.truncf %3 : vector<2x128xf32> to vector<2x128xbf16>
    %cst = arith.constant 0.000000e+00 : bf16
    %6 = vector.broadcast %cst : bf16 to vector<2x8xbf16>
    %7 = tpu.concatenate %6, %5, %6 in 1 : vector<2x8xbf16>, vector<2x128xbf16>, vector<2x8xbf16> -> vector<2x144xbf16>
    %8 = vector.extract_strided_slice %7 {offsets = [0, 0], sizes = [2, 128], strides = [1, 1]} : vector<2x144xbf16> to vector<2x128xbf16>
    %9 = vector.extract_strided_slice %7 {offsets = [0, 1], sizes = [2, 128], strides = [1, 1]} : vector<2x144xbf16> to vector<2x128xbf16>
    %10 = vector.extract_strided_slice %7 {offsets = [0, 2], sizes = [2, 128], strides = [1, 1]} : vector<2x144xbf16> to vector<2x128xbf16>
    %11 = vector.extract_strided_slice %7 {offsets = [0, 3], sizes = [2, 128], strides = [1, 1]} : vector<2x144xbf16> to vector<2x128xbf16>
    %12 = vector.extract_strided_slice %7 {offsets = [0, 4], sizes = [2, 128], strides = [1, 1]} : vector<2x144xbf16> to vector<2x128xbf16>
    %13 = vector.extract_strided_slice %7 {offsets = [0, 5], sizes = [2, 128], strides = [1, 1]} : vector<2x144xbf16> to vector<2x128xbf16>
    %14 = vector.extract_strided_slice %7 {offsets = [0, 6], sizes = [2, 128], strides = [1, 1]} : vector<2x144xbf16> to vector<2x128xbf16>
    %15 = vector.extract_strided_slice %7 {offsets = [0, 7], sizes = [2, 128], strides = [1, 1]} : vector<2x144xbf16> to vector<2x128xbf16>
    %16 = vector.extract_strided_slice %7 {offsets = [0, 8], sizes = [2, 128], strides = [1, 1]} : vector<2x144xbf16> to vector<2x128xbf16>
    %17 = vector.extract_strided_slice %7 {offsets = [0, 9], sizes = [2, 128], strides = [1, 1]} : vector<2x144xbf16> to vector<2x128xbf16>
    %18 = vector.extract_strided_slice %7 {offsets = [0, 10], sizes = [2, 128], strides = [1, 1]} : vector<2x144xbf16> to vector<2x128xbf16>
    %19 = vector.extract_strided_slice %7 {offsets = [0, 11], sizes = [2, 128], strides = [1, 1]} : vector<2x144xbf16> to vector<2x128xbf16>
    %20 = vector.extract_strided_slice %7 {offsets = [0, 12], sizes = [2, 128], strides = [1, 1]} : vector<2x144xbf16> to vector<2x128xbf16>
    %21 = vector.extract_strided_slice %7 {offsets = [0, 13], sizes = [2, 128], strides = [1, 1]} : vector<2x144xbf16> to vector<2x128xbf16>
    %22 = vector.extract_strided_slice %7 {offsets = [0, 14], sizes = [2, 128], strides = [1, 1]} : vector<2x144xbf16> to vector<2x128xbf16>
    %23 = vector.extract_strided_slice %7 {offsets = [0, 15], sizes = [2, 128], strides = [1, 1]} : vector<2x144xbf16> to vector<2x128xbf16>
    %24 = vector.extract_strided_slice %7 {offsets = [0, 16], sizes = [2, 128], strides = [1, 1]} : vector<2x144xbf16> to vector<2x128xbf16>
    %25 = tpu.concatenate %8, %9, %10, %11, %12, %13, %14, %15, %16, %17, %18, %19, %20, %21, %22, %23 in 0 : vector<2x128xbf16>, vector<2x128xbf16>, vector<2x128xbf16>, vector<2x128xbf16>, vector<2x128xbf16>, vector<2x128xbf16>, vector<2x128xbf16>, vector<2x128xbf16>, vector<2x128xbf16>, vector<2x128xbf16>, vector<2x128xbf16>, vector<2x128xbf16>, vector<2x128xbf16>, vector<2x128xbf16>, vector<2x128xbf16>, vector<2x128xbf16> -> vector<32x128xbf16>
    %26 = tpu.concatenate %25, %24 in 0 : vector<32x128xbf16>, vector<2x128xbf16> -> vector<34x128xbf16>
    %cst_7 = arith.constant dense<0.000000e+00> : vector<4x128xf32>
    %27 = tpu.matmul %4, %26, %cst_7 {dimension_numbers = #tpu.dot_dimension_numbers<[1], [0], [0], [1], [0, 0, 1, 1], [], []>} : vector<4x34xbf16>, vector<34x128xbf16>, vector<4x128xf32> -> vector<4x128xf32>
    %c0_8 = arith.constant 0 : index
    %c0_9 = arith.constant 0 : index
    %28 = vector.load %arg4[%c0_8, %c0_9] : memref<4x1xf32, #tpu.memory_space<vmem>>, vector<4x1xf32>
    %29 = vector.broadcast %28 : vector<4x1xf32> to vector<4x128xf32>
    %30 = arith.addf %27, %29 : vector<4x128xf32>
    %c0_10 = arith.constant 0 : index
    %c0_11 = arith.constant 0 : index
    %31 = vector.load %arg12[%c0_10, %c0_11] : memref<8x1xf32, #tpu.memory_space<vmem>>, vector<8x1xf32>
    %c0_12 = arith.constant 0 : index
    %c0_13 = arith.constant 0 : index
    %32 = vector.load %arg11[%c0_12, %c0_13] : memref<8x4xbf16, #tpu.memory_space<vmem>>, vector<8x4xbf16>
    %33 = arith.truncf %30 : vector<4x128xf32> to vector<4x128xbf16>
    %cst_14 = arith.constant dense<0.000000e+00> : vector<8x128xf32>
    %34 = tpu.matmul %32, %33, %cst_14 {dimension_numbers = #tpu.dot_dimension_numbers<[1], [0], [0], [1], [0, 0, 1, 1], [], []>} : vector<8x4xbf16>, vector<4x128xbf16>, vector<8x128xf32> -> vector<8x128xf32>
    %35 = vector.broadcast %31 : vector<8x1xf32> to vector<8x128xf32>
    %36 = arith.addf %35, %34 : vector<8x128xf32>
    %c0_15 = arith.constant 0 : index
    %c0_16 = arith.constant 0 : index
    %37 = vector.load %arg8[%c0_15, %c0_16] : memref<8x1xf32, #tpu.memory_space<vmem>>, vector<8x1xf32>
    %c0_17 = arith.constant 0 : index
    %c0_18 = arith.constant 0 : index
    %38 = vector.load %arg7[%c0_17, %c0_18] : memref<8x12xbf16, #tpu.memory_space<vmem>>, vector<8x12xbf16>
    %39 = arith.truncf %30 : vector<4x128xf32> to vector<4x128xbf16>
    %40 = tpu.iota {dimensions = array<i32: 1>} : vector<4x128xi32>
    %c1_i32 = arith.constant 1 : i32
    %41 = tpu.dynamic_rotate %30 by %c1_i32 dim 1 : vector<4x128xf32>, i32 -> vector<4x128xf32>
    %c1_i32_19 = arith.constant 1 : i32
    %42 = vector.broadcast %c1_i32_19 : i32 to vector<4x128xi32>
    %43 = arith.cmpi sge, %40, %42 : vector<4x128xi32>
    %cst_20 = arith.constant 0.000000e+00 : f32
    %44 = vector.broadcast %cst_20 : f32 to vector<4x128xf32>
    %45 = arith.select %43, %41, %44 : vector<4x128xi1>, vector<4x128xf32>
    %46 = arith.truncf %45 : vector<4x128xf32> to vector<4x128xbf16>
    %c127_i32 = arith.constant 127 : i32
    %47 = tpu.dynamic_rotate %30 by %c127_i32 dim 1 : vector<4x128xf32>, i32 -> vector<4x128xf32>
    %c127_i32_21 = arith.constant 127 : i32
    %48 = vector.broadcast %c127_i32_21 : i32 to vector<4x128xi32>
    %49 = arith.cmpi slt, %40, %48 : vector<4x128xi32>
    %cst_22 = arith.constant 0.000000e+00 : f32
    %50 = vector.broadcast %cst_22 : f32 to vector<4x128xf32>
    %51 = arith.select %49, %47, %50 : vector<4x128xi1>, vector<4x128xf32>
    %52 = arith.truncf %51 : vector<4x128xf32> to vector<4x128xbf16>
    %53 = tpu.concatenate %46, %39, %52 in 0 : vector<4x128xbf16>, vector<4x128xbf16>, vector<4x128xbf16> -> vector<12x128xbf16>
    %cst_23 = arith.constant dense<0.000000e+00> : vector<8x128xf32>
    %54 = tpu.matmul %38, %53, %cst_23 {dimension_numbers = #tpu.dot_dimension_numbers<[1], [0], [0], [1], [0, 0, 1, 1], [], []>} : vector<8x12xbf16>, vector<12x128xbf16>, vector<8x128xf32> -> vector<8x128xf32>
    %55 = vector.broadcast %37 : vector<8x1xf32> to vector<8x128xf32>
    %56 = arith.addf %55, %54 : vector<8x128xf32>
    %57 = arith.addf %36, %56 : vector<8x128xf32>
    %cst_24 = arith.constant 2.000000e-01 : f32
    %58 = vector.broadcast %cst_24 : f32 to vector<8x128xf32>
    %59 = arith.mulf %58, %56 : vector<8x128xf32>
    %60 = arith.maximumf %56, %59 : vector<8x128xf32>
    %c0_25 = arith.constant 0 : index
    %c0_26 = arith.constant 0 : index
    %c0_27 = arith.constant 0 : index
    %61 = vector.load %arg9[%c0_25, %c0_26, %c0_27] : memref<10x8x24xbf16, #tpu.memory_space<vmem>>, vector<1x8x24xbf16>
    %62 = vector.shape_cast %61 : vector<1x8x24xbf16> to vector<8x24xbf16>
    %63 = arith.truncf %60 : vector<8x128xf32> to vector<8x128xbf16>
    %64 = tpu.iota {dimensions = array<i32: 1>} : vector<8x128xi32>
    %c2_i32 = arith.constant 2 : i32
    %65 = tpu.dynamic_rotate %60 by %c2_i32 dim 1 : vector<8x128xf32>, i32 -> vector<8x128xf32>
    %c2_i32_28 = arith.constant 2 : i32
    %66 = vector.broadcast %c2_i32_28 : i32 to vector<8x128xi32>
    %67 = arith.cmpi sge, %64, %66 : vector<8x128xi32>
    %cst_29 = arith.constant 0.000000e+00 : f32
    %68 = vector.broadcast %cst_29 : f32 to vector<8x128xf32>
    %69 = arith.select %67, %65, %68 : vector<8x128xi1>, vector<8x128xf32>
    %70 = arith.truncf %69 : vector<8x128xf32> to vector<8x128xbf16>
    %c126_i32 = arith.constant 126 : i32
    %71 = tpu.dynamic_rotate %60 by %c126_i32 dim 1 : vector<8x128xf32>, i32 -> vector<8x128xf32>
    %c126_i32_30 = arith.constant 126 : i32
    %72 = vector.broadcast %c126_i32_30 : i32 to vector<8x128xi32>
    %73 = arith.cmpi slt, %64, %72 : vector<8x128xi32>
    %cst_31 = arith.constant 0.000000e+00 : f32
    %74 = vector.broadcast %cst_31 : f32 to vector<8x128xf32>
    %75 = arith.select %73, %71, %74 : vector<8x128xi1>, vector<8x128xf32>
    %76 = arith.truncf %75 : vector<8x128xf32> to vector<8x128xbf16>
    %77 = tpu.concatenate %70, %63, %76 in 0 : vector<8x128xbf16>, vector<8x128xbf16>, vector<8x128xbf16> -> vector<24x128xbf16>
    %cst_32 = arith.constant dense<0.000000e+00> : vector<8x128xf32>
    %78 = tpu.matmul %62, %77, %cst_32 {dimension_numbers = #tpu.dot_dimension_numbers<[1], [0], [0], [1], [0, 0, 1, 1], [], []>} : vector<8x24xbf16>, vector<24x128xbf16>, vector<8x128xf32> -> vector<8x128xf32>
    %c0_33 = arith.constant 0 : index
    %c0_34 = arith.constant 0 : index
    %c0_35 = arith.constant 0 : index
    %79 = vector.load %arg10[%c0_33, %c0_34, %c0_35] : memref<10x8x1xf32, #tpu.memory_space<vmem>>, vector<1x8x1xf32>
    %80 = vector.shape_cast %79 : vector<1x8x1xf32> to vector<8x1xf32>
    %81 = vector.broadcast %80 : vector<8x1xf32> to vector<8x128xf32>
    %82 = arith.addf %78, %81 : vector<8x128xf32>
    %83 = arith.addf %57, %82 : vector<8x128xf32>
    %cst_36 = arith.constant 2.000000e-01 : f32
    %84 = vector.broadcast %cst_36 : f32 to vector<8x128xf32>
    %85 = arith.mulf %84, %82 : vector<8x128xf32>
    %86 = arith.maximumf %82, %85 : vector<8x128xf32>
    %c1 = arith.constant 1 : index
    %c0_37 = arith.constant 0 : index
    %c0_38 = arith.constant 0 : index
    %87 = vector.load %arg9[%c1, %c0_37, %c0_38] : memref<10x8x24xbf16, #tpu.memory_space<vmem>>, vector<1x8x24xbf16>
    %88 = vector.shape_cast %87 : vector<1x8x24xbf16> to vector<8x24xbf16>
    %89 = arith.truncf %86 : vector<8x128xf32> to vector<8x128xbf16>
    %90 = tpu.iota {dimensions = array<i32: 1>} : vector<8x128xi32>
    %c4_i32 = arith.constant 4 : i32
    %91 = tpu.dynamic_rotate %86 by %c4_i32 dim 1 : vector<8x128xf32>, i32 -> vector<8x128xf32>
    %c4_i32_39 = arith.constant 4 : i32
    %92 = vector.broadcast %c4_i32_39 : i32 to vector<8x128xi32>
    %93 = arith.cmpi sge, %90, %92 : vector<8x128xi32>
    %cst_40 = arith.constant 0.000000e+00 : f32
    %94 = vector.broadcast %cst_40 : f32 to vector<8x128xf32>
    %95 = arith.select %93, %91, %94 : vector<8x128xi1>, vector<8x128xf32>
    %96 = arith.truncf %95 : vector<8x128xf32> to vector<8x128xbf16>
    %c124_i32 = arith.constant 124 : i32
    %97 = tpu.dynamic_rotate %86 by %c124_i32 dim 1 : vector<8x128xf32>, i32 -> vector<8x128xf32>
    %c124_i32_41 = arith.constant 124 : i32
    %98 = vector.broadcast %c124_i32_41 : i32 to vector<8x128xi32>
    %99 = arith.cmpi slt, %90, %98 : vector<8x128xi32>
    %cst_42 = arith.constant 0.000000e+00 : f32
    %100 = vector.broadcast %cst_42 : f32 to vector<8x128xf32>
    %101 = arith.select %99, %97, %100 : vector<8x128xi1>, vector<8x128xf32>
    %102 = arith.truncf %101 : vector<8x128xf32> to vector<8x128xbf16>
    %103 = tpu.concatenate %96, %89, %102 in 0 : vector<8x128xbf16>, vector<8x128xbf16>, vector<8x128xbf16> -> vector<24x128xbf16>
    %cst_43 = arith.constant dense<0.000000e+00> : vector<8x128xf32>
    %104 = tpu.matmul %88, %103, %cst_43 {dimension_numbers = #tpu.dot_dimension_numbers<[1], [0], [0], [1], [0, 0, 1, 1], [], []>} : vector<8x24xbf16>, vector<24x128xbf16>, vector<8x128xf32> -> vector<8x128xf32>
    %c1_44 = arith.constant 1 : index
    %c0_45 = arith.constant 0 : index
    %c0_46 = arith.constant 0 : index
    %105 = vector.load %arg10[%c1_44, %c0_45, %c0_46] : memref<10x8x1xf32, #tpu.memory_space<vmem>>, vector<1x8x1xf32>
    %106 = vector.shape_cast %105 : vector<1x8x1xf32> to vector<8x1xf32>
    %107 = vector.broadcast %106 : vector<8x1xf32> to vector<8x128xf32>
    %108 = arith.addf %104, %107 : vector<8x128xf32>
    %109 = arith.addf %83, %108 : vector<8x128xf32>
    %cst_47 = arith.constant 2.000000e-01 : f32
    %110 = vector.broadcast %cst_47 : f32 to vector<8x128xf32>
    %111 = arith.mulf %110, %108 : vector<8x128xf32>
    %112 = arith.maximumf %108, %111 : vector<8x128xf32>
    %c2 = arith.constant 2 : index
    %c0_48 = arith.constant 0 : index
    %c0_49 = arith.constant 0 : index
    %113 = vector.load %arg9[%c2, %c0_48, %c0_49] : memref<10x8x24xbf16, #tpu.memory_space<vmem>>, vector<1x8x24xbf16>
    %114 = vector.shape_cast %113 : vector<1x8x24xbf16> to vector<8x24xbf16>
    %115 = arith.truncf %112 : vector<8x128xf32> to vector<8x128xbf16>
    %116 = tpu.iota {dimensions = array<i32: 1>} : vector<8x128xi32>
    %c8_i32 = arith.constant 8 : i32
    %117 = tpu.dynamic_rotate %112 by %c8_i32 dim 1 : vector<8x128xf32>, i32 -> vector<8x128xf32>
    %c8_i32_50 = arith.constant 8 : i32
    %118 = vector.broadcast %c8_i32_50 : i32 to vector<8x128xi32>
    %119 = arith.cmpi sge, %116, %118 : vector<8x128xi32>
    %cst_51 = arith.constant 0.000000e+00 : f32
    %120 = vector.broadcast %cst_51 : f32 to vector<8x128xf32>
    %121 = arith.select %119, %117, %120 : vector<8x128xi1>, vector<8x128xf32>
    %122 = arith.truncf %121 : vector<8x128xf32> to vector<8x128xbf16>
    %c120_i32 = arith.constant 120 : i32
    %123 = tpu.dynamic_rotate %112 by %c120_i32 dim 1 : vector<8x128xf32>, i32 -> vector<8x128xf32>
    %c120_i32_52 = arith.constant 120 : i32
    %124 = vector.broadcast %c120_i32_52 : i32 to vector<8x128xi32>
    %125 = arith.cmpi slt, %116, %124 : vector<8x128xi32>
    %cst_53 = arith.constant 0.000000e+00 : f32
    %126 = vector.broadcast %cst_53 : f32 to vector<8x128xf32>
    %127 = arith.select %125, %123, %126 : vector<8x128xi1>, vector<8x128xf32>
    %128 = arith.truncf %127 : vector<8x128xf32> to vector<8x128xbf16>
    %129 = tpu.concatenate %122, %115, %128 in 0 : vector<8x128xbf16>, vector<8x128xbf16>, vector<8x128xbf16> -> vector<24x128xbf16>
    %cst_54 = arith.constant dense<0.000000e+00> : vector<8x128xf32>
    %130 = tpu.matmul %114, %129, %cst_54 {dimension_numbers = #tpu.dot_dimension_numbers<[1], [0], [0], [1], [0, 0, 1, 1], [], []>} : vector<8x24xbf16>, vector<24x128xbf16>, vector<8x128xf32> -> vector<8x128xf32>
    %c2_55 = arith.constant 2 : index
    %c0_56 = arith.constant 0 : index
    %c0_57 = arith.constant 0 : index
    %131 = vector.load %arg10[%c2_55, %c0_56, %c0_57] : memref<10x8x1xf32, #tpu.memory_space<vmem>>, vector<1x8x1xf32>
    %132 = vector.shape_cast %131 : vector<1x8x1xf32> to vector<8x1xf32>
    %133 = vector.broadcast %132 : vector<8x1xf32> to vector<8x128xf32>
    %134 = arith.addf %130, %133 : vector<8x128xf32>
    %135 = arith.addf %109, %134 : vector<8x128xf32>
    %cst_58 = arith.constant 2.000000e-01 : f32
    %136 = vector.broadcast %cst_58 : f32 to vector<8x128xf32>
    %137 = arith.mulf %136, %134 : vector<8x128xf32>
    %138 = arith.maximumf %134, %137 : vector<8x128xf32>
    %c3 = arith.constant 3 : index
    %c0_59 = arith.constant 0 : index
    %c0_60 = arith.constant 0 : index
    %139 = vector.load %arg9[%c3, %c0_59, %c0_60] : memref<10x8x24xbf16, #tpu.memory_space<vmem>>, vector<1x8x24xbf16>
    %140 = vector.shape_cast %139 : vector<1x8x24xbf16> to vector<8x24xbf16>
    %141 = arith.truncf %138 : vector<8x128xf32> to vector<8x128xbf16>
    %142 = tpu.iota {dimensions = array<i32: 1>} : vector<8x128xi32>
    %c16_i32 = arith.constant 16 : i32
    %143 = tpu.dynamic_rotate %138 by %c16_i32 dim 1 : vector<8x128xf32>, i32 -> vector<8x128xf32>
    %c16_i32_61 = arith.constant 16 : i32
    %144 = vector.broadcast %c16_i32_61 : i32 to vector<8x128xi32>
    %145 = arith.cmpi sge, %142, %144 : vector<8x128xi32>
    %cst_62 = arith.constant 0.000000e+00 : f32
    %146 = vector.broadcast %cst_62 : f32 to vector<8x128xf32>
    %147 = arith.select %145, %143, %146 : vector<8x128xi1>, vector<8x128xf32>
    %148 = arith.truncf %147 : vector<8x128xf32> to vector<8x128xbf16>
    %c112_i32 = arith.constant 112 : i32
    %149 = tpu.dynamic_rotate %138 by %c112_i32 dim 1 : vector<8x128xf32>, i32 -> vector<8x128xf32>
    %c112_i32_63 = arith.constant 112 : i32
    %150 = vector.broadcast %c112_i32_63 : i32 to vector<8x128xi32>
    %151 = arith.cmpi slt, %142, %150 : vector<8x128xi32>
    %cst_64 = arith.constant 0.000000e+00 : f32
    %152 = vector.broadcast %cst_64 : f32 to vector<8x128xf32>
    %153 = arith.select %151, %149, %152 : vector<8x128xi1>, vector<8x128xf32>
    %154 = arith.truncf %153 : vector<8x128xf32> to vector<8x128xbf16>
    %155 = tpu.concatenate %148, %141, %154 in 0 : vector<8x128xbf16>, vector<8x128xbf16>, vector<8x128xbf16> -> vector<24x128xbf16>
    %cst_65 = arith.constant dense<0.000000e+00> : vector<8x128xf32>
    %156 = tpu.matmul %140, %155, %cst_65 {dimension_numbers = #tpu.dot_dimension_numbers<[1], [0], [0], [1], [0, 0, 1, 1], [], []>} : vector<8x24xbf16>, vector<24x128xbf16>, vector<8x128xf32> -> vector<8x128xf32>
    %c3_66 = arith.constant 3 : index
    %c0_67 = arith.constant 0 : index
    %c0_68 = arith.constant 0 : index
    %157 = vector.load %arg10[%c3_66, %c0_67, %c0_68] : memref<10x8x1xf32, #tpu.memory_space<vmem>>, vector<1x8x1xf32>
    %158 = vector.shape_cast %157 : vector<1x8x1xf32> to vector<8x1xf32>
    %159 = vector.broadcast %158 : vector<8x1xf32> to vector<8x128xf32>
    %160 = arith.addf %156, %159 : vector<8x128xf32>
    %161 = arith.addf %135, %160 : vector<8x128xf32>
    %cst_69 = arith.constant 2.000000e-01 : f32
    %162 = vector.broadcast %cst_69 : f32 to vector<8x128xf32>
    %163 = arith.mulf %162, %160 : vector<8x128xf32>
    %164 = arith.maximumf %160, %163 : vector<8x128xf32>
    %c4 = arith.constant 4 : index
    %c0_70 = arith.constant 0 : index
    %c0_71 = arith.constant 0 : index
    %165 = vector.load %arg9[%c4, %c0_70, %c0_71] : memref<10x8x24xbf16, #tpu.memory_space<vmem>>, vector<1x8x24xbf16>
    %166 = vector.shape_cast %165 : vector<1x8x24xbf16> to vector<8x24xbf16>
    %167 = arith.truncf %164 : vector<8x128xf32> to vector<8x128xbf16>
    %168 = tpu.iota {dimensions = array<i32: 1>} : vector<8x128xi32>
    %c32_i32 = arith.constant 32 : i32
    %169 = tpu.dynamic_rotate %164 by %c32_i32 dim 1 : vector<8x128xf32>, i32 -> vector<8x128xf32>
    %c32_i32_72 = arith.constant 32 : i32
    %170 = vector.broadcast %c32_i32_72 : i32 to vector<8x128xi32>
    %171 = arith.cmpi sge, %168, %170 : vector<8x128xi32>
    %cst_73 = arith.constant 0.000000e+00 : f32
    %172 = vector.broadcast %cst_73 : f32 to vector<8x128xf32>
    %173 = arith.select %171, %169, %172 : vector<8x128xi1>, vector<8x128xf32>
    %174 = arith.truncf %173 : vector<8x128xf32> to vector<8x128xbf16>
    %c96_i32 = arith.constant 96 : i32
    %175 = tpu.dynamic_rotate %164 by %c96_i32 dim 1 : vector<8x128xf32>, i32 -> vector<8x128xf32>
    %c96_i32_74 = arith.constant 96 : i32
    %176 = vector.broadcast %c96_i32_74 : i32 to vector<8x128xi32>
    %177 = arith.cmpi slt, %168, %176 : vector<8x128xi32>
    %cst_75 = arith.constant 0.000000e+00 : f32
    %178 = vector.broadcast %cst_75 : f32 to vector<8x128xf32>
    %179 = arith.select %177, %175, %178 : vector<8x128xi1>, vector<8x128xf32>
    %180 = arith.truncf %179 : vector<8x128xf32> to vector<8x128xbf16>
    %181 = tpu.concatenate %174, %167, %180 in 0 : vector<8x128xbf16>, vector<8x128xbf16>, vector<8x128xbf16> -> vector<24x128xbf16>
    %cst_76 = arith.constant dense<0.000000e+00> : vector<8x128xf32>
    %182 = tpu.matmul %166, %181, %cst_76 {dimension_numbers = #tpu.dot_dimension_numbers<[1], [0], [0], [1], [0, 0, 1, 1], [], []>} : vector<8x24xbf16>, vector<24x128xbf16>, vector<8x128xf32> -> vector<8x128xf32>
    %c4_77 = arith.constant 4 : index
    %c0_78 = arith.constant 0 : index
    %c0_79 = arith.constant 0 : index
    %183 = vector.load %arg10[%c4_77, %c0_78, %c0_79] : memref<10x8x1xf32, #tpu.memory_space<vmem>>, vector<1x8x1xf32>
    %184 = vector.shape_cast %183 : vector<1x8x1xf32> to vector<8x1xf32>
    %185 = vector.broadcast %184 : vector<8x1xf32> to vector<8x128xf32>
    %186 = arith.addf %182, %185 : vector<8x128xf32>
    %187 = arith.addf %161, %186 : vector<8x128xf32>
    %cst_80 = arith.constant 2.000000e-01 : f32
    %188 = vector.broadcast %cst_80 : f32 to vector<8x128xf32>
    %189 = arith.mulf %188, %186 : vector<8x128xf32>
    %190 = arith.maximumf %186, %189 : vector<8x128xf32>
    %c5 = arith.constant 5 : index
    %c0_81 = arith.constant 0 : index
    %c0_82 = arith.constant 0 : index
    %191 = vector.load %arg9[%c5, %c0_81, %c0_82] : memref<10x8x24xbf16, #tpu.memory_space<vmem>>, vector<1x8x24xbf16>
    %192 = vector.shape_cast %191 : vector<1x8x24xbf16> to vector<8x24xbf16>
    %193 = arith.truncf %190 : vector<8x128xf32> to vector<8x128xbf16>
    %194 = tpu.iota {dimensions = array<i32: 1>} : vector<8x128xi32>
    %c64_i32 = arith.constant 64 : i32
    %195 = tpu.dynamic_rotate %190 by %c64_i32 dim 1 : vector<8x128xf32>, i32 -> vector<8x128xf32>
    %c64_i32_83 = arith.constant 64 : i32
    %196 = vector.broadcast %c64_i32_83 : i32 to vector<8x128xi32>
    %197 = arith.cmpi sge, %194, %196 : vector<8x128xi32>
    %cst_84 = arith.constant 0.000000e+00 : f32
    %198 = vector.broadcast %cst_84 : f32 to vector<8x128xf32>
    %199 = arith.select %197, %195, %198 : vector<8x128xi1>, vector<8x128xf32>
    %200 = arith.truncf %199 : vector<8x128xf32> to vector<8x128xbf16>
    %c64_i32_85 = arith.constant 64 : i32
    %201 = tpu.dynamic_rotate %190 by %c64_i32_85 dim 1 : vector<8x128xf32>, i32 -> vector<8x128xf32>
    %c64_i32_86 = arith.constant 64 : i32
    %202 = vector.broadcast %c64_i32_86 : i32 to vector<8x128xi32>
    %203 = arith.cmpi slt, %194, %202 : vector<8x128xi32>
    %cst_87 = arith.constant 0.000000e+00 : f32
    %204 = vector.broadcast %cst_87 : f32 to vector<8x128xf32>
    %205 = arith.select %203, %201, %204 : vector<8x128xi1>, vector<8x128xf32>
    %206 = arith.truncf %205 : vector<8x128xf32> to vector<8x128xbf16>
    %207 = tpu.concatenate %200, %193, %206 in 0 : vector<8x128xbf16>, vector<8x128xbf16>, vector<8x128xbf16> -> vector<24x128xbf16>
    %cst_88 = arith.constant dense<0.000000e+00> : vector<8x128xf32>
    %208 = tpu.matmul %192, %207, %cst_88 {dimension_numbers = #tpu.dot_dimension_numbers<[1], [0], [0], [1], [0, 0, 1, 1], [], []>} : vector<8x24xbf16>, vector<24x128xbf16>, vector<8x128xf32> -> vector<8x128xf32>
    %c5_89 = arith.constant 5 : index
    %c0_90 = arith.constant 0 : index
    %c0_91 = arith.constant 0 : index
    %209 = vector.load %arg10[%c5_89, %c0_90, %c0_91] : memref<10x8x1xf32, #tpu.memory_space<vmem>>, vector<1x8x1xf32>
    %210 = vector.shape_cast %209 : vector<1x8x1xf32> to vector<8x1xf32>
    %211 = vector.broadcast %210 : vector<8x1xf32> to vector<8x128xf32>
    %212 = arith.addf %208, %211 : vector<8x128xf32>
    %213 = arith.addf %187, %212 : vector<8x128xf32>
    %cst_92 = arith.constant 2.000000e-01 : f32
    %214 = vector.broadcast %cst_92 : f32 to vector<8x128xf32>
    %215 = arith.mulf %214, %212 : vector<8x128xf32>
    %216 = arith.maximumf %212, %215 : vector<8x128xf32>
    %c6 = arith.constant 6 : index
    %c0_93 = arith.constant 0 : index
    %c0_94 = arith.constant 0 : index
    %217 = vector.load %arg9[%c6, %c0_93, %c0_94] : memref<10x8x24xbf16, #tpu.memory_space<vmem>>, vector<1x8x24xbf16>
    %218 = vector.shape_cast %217 : vector<1x8x24xbf16> to vector<8x24xbf16>
    %219 = arith.truncf %216 : vector<8x128xf32> to vector<8x128xbf16>
    %220 = vector.extract_strided_slice %218 {offsets = [0, 8], sizes = [8, 8], strides = [1, 1]} : vector<8x24xbf16> to vector<8x8xbf16>
    %cst_95 = arith.constant dense<0.000000e+00> : vector<8x128xf32>
    %221 = tpu.matmul %220, %219, %cst_95 {dimension_numbers = #tpu.dot_dimension_numbers<[1], [0], [0], [1], [0, 0, 1, 1], [], []>} : vector<8x8xbf16>, vector<8x128xbf16>, vector<8x128xf32> -> vector<8x128xf32>
    %c6_96 = arith.constant 6 : index
    %c0_97 = arith.constant 0 : index
    %c0_98 = arith.constant 0 : index
    %222 = vector.load %arg10[%c6_96, %c0_97, %c0_98] : memref<10x8x1xf32, #tpu.memory_space<vmem>>, vector<1x8x1xf32>
    %223 = vector.shape_cast %222 : vector<1x8x1xf32> to vector<8x1xf32>
    %224 = vector.broadcast %223 : vector<8x1xf32> to vector<8x128xf32>
    %225 = arith.addf %221, %224 : vector<8x128xf32>
    %226 = arith.addf %213, %225 : vector<8x128xf32>
    %cst_99 = arith.constant 2.000000e-01 : f32
    %227 = vector.broadcast %cst_99 : f32 to vector<8x128xf32>
    %228 = arith.mulf %227, %225 : vector<8x128xf32>
    %229 = arith.maximumf %225, %228 : vector<8x128xf32>
    %c7 = arith.constant 7 : index
    %c0_100 = arith.constant 0 : index
    %c0_101 = arith.constant 0 : index
    %230 = vector.load %arg9[%c7, %c0_100, %c0_101] : memref<10x8x24xbf16, #tpu.memory_space<vmem>>, vector<1x8x24xbf16>
    %231 = vector.shape_cast %230 : vector<1x8x24xbf16> to vector<8x24xbf16>
    %232 = arith.truncf %229 : vector<8x128xf32> to vector<8x128xbf16>
    %233 = vector.extract_strided_slice %231 {offsets = [0, 8], sizes = [8, 8], strides = [1, 1]} : vector<8x24xbf16> to vector<8x8xbf16>
    %cst_102 = arith.constant dense<0.000000e+00> : vector<8x128xf32>
    %234 = tpu.matmul %233, %232, %cst_102 {dimension_numbers = #tpu.dot_dimension_numbers<[1], [0], [0], [1], [0, 0, 1, 1], [], []>} : vector<8x8xbf16>, vector<8x128xbf16>, vector<8x128xf32> -> vector<8x128xf32>
    %c7_103 = arith.constant 7 : index
    %c0_104 = arith.constant 0 : index
    %c0_105 = arith.constant 0 : index
    %235 = vector.load %arg10[%c7_103, %c0_104, %c0_105] : memref<10x8x1xf32, #tpu.memory_space<vmem>>, vector<1x8x1xf32>
    %236 = vector.shape_cast %235 : vector<1x8x1xf32> to vector<8x1xf32>
    %237 = vector.broadcast %236 : vector<8x1xf32> to vector<8x128xf32>
    %238 = arith.addf %234, %237 : vector<8x128xf32>
    %239 = arith.addf %226, %238 : vector<8x128xf32>
    %cst_106 = arith.constant 2.000000e-01 : f32
    %240 = vector.broadcast %cst_106 : f32 to vector<8x128xf32>
    %241 = arith.mulf %240, %238 : vector<8x128xf32>
    %242 = arith.maximumf %238, %241 : vector<8x128xf32>
    %c8 = arith.constant 8 : index
    %c0_107 = arith.constant 0 : index
    %c0_108 = arith.constant 0 : index
    %243 = vector.load %arg9[%c8, %c0_107, %c0_108] : memref<10x8x24xbf16, #tpu.memory_space<vmem>>, vector<1x8x24xbf16>
    %244 = vector.shape_cast %243 : vector<1x8x24xbf16> to vector<8x24xbf16>
    %245 = arith.truncf %242 : vector<8x128xf32> to vector<8x128xbf16>
    %246 = vector.extract_strided_slice %244 {offsets = [0, 8], sizes = [8, 8], strides = [1, 1]} : vector<8x24xbf16> to vector<8x8xbf16>
    %cst_109 = arith.constant dense<0.000000e+00> : vector<8x128xf32>
    %247 = tpu.matmul %246, %245, %cst_109 {dimension_numbers = #tpu.dot_dimension_numbers<[1], [0], [0], [1], [0, 0, 1, 1], [], []>} : vector<8x8xbf16>, vector<8x128xbf16>, vector<8x128xf32> -> vector<8x128xf32>
    %c8_110 = arith.constant 8 : index
    %c0_111 = arith.constant 0 : index
    %c0_112 = arith.constant 0 : index
    %248 = vector.load %arg10[%c8_110, %c0_111, %c0_112] : memref<10x8x1xf32, #tpu.memory_space<vmem>>, vector<1x8x1xf32>
    %249 = vector.shape_cast %248 : vector<1x8x1xf32> to vector<8x1xf32>
    %250 = vector.broadcast %249 : vector<8x1xf32> to vector<8x128xf32>
    %251 = arith.addf %247, %250 : vector<8x128xf32>
    %252 = arith.addf %239, %251 : vector<8x128xf32>
    %cst_113 = arith.constant 2.000000e-01 : f32
    %253 = vector.broadcast %cst_113 : f32 to vector<8x128xf32>
    %254 = arith.mulf %253, %251 : vector<8x128xf32>
    %255 = arith.maximumf %251, %254 : vector<8x128xf32>
    %c9 = arith.constant 9 : index
    %c0_114 = arith.constant 0 : index
    %c0_115 = arith.constant 0 : index
    %256 = vector.load %arg9[%c9, %c0_114, %c0_115] : memref<10x8x24xbf16, #tpu.memory_space<vmem>>, vector<1x8x24xbf16>
    %257 = vector.shape_cast %256 : vector<1x8x24xbf16> to vector<8x24xbf16>
    %258 = arith.truncf %255 : vector<8x128xf32> to vector<8x128xbf16>
    %259 = vector.extract_strided_slice %257 {offsets = [0, 8], sizes = [8, 8], strides = [1, 1]} : vector<8x24xbf16> to vector<8x8xbf16>
    %cst_116 = arith.constant dense<0.000000e+00> : vector<8x128xf32>
    %260 = tpu.matmul %259, %258, %cst_116 {dimension_numbers = #tpu.dot_dimension_numbers<[1], [0], [0], [1], [0, 0, 1, 1], [], []>} : vector<8x8xbf16>, vector<8x128xbf16>, vector<8x128xf32> -> vector<8x128xf32>
    %c9_117 = arith.constant 9 : index
    %c0_118 = arith.constant 0 : index
    %c0_119 = arith.constant 0 : index
    %261 = vector.load %arg10[%c9_117, %c0_118, %c0_119] : memref<10x8x1xf32, #tpu.memory_space<vmem>>, vector<1x8x1xf32>
    %262 = vector.shape_cast %261 : vector<1x8x1xf32> to vector<8x1xf32>
    %263 = vector.broadcast %262 : vector<8x1xf32> to vector<8x128xf32>
    %264 = arith.addf %260, %263 : vector<8x128xf32>
    %265 = arith.addf %252, %264 : vector<8x128xf32>
    %cst_120 = arith.constant 2.000000e-01 : f32
    %266 = vector.broadcast %cst_120 : f32 to vector<8x128xf32>
    %267 = arith.mulf %266, %265 : vector<8x128xf32>
    %268 = arith.maximumf %265, %267 : vector<8x128xf32>
    %c0_121 = arith.constant 0 : index
    %c0_122 = arith.constant 0 : index
    %269 = vector.load %arg5[%c0_121, %c0_122] : memref<4x51xbf16, #tpu.memory_space<vmem>>, vector<4x51xbf16>
    %270 = arith.truncf %1 : vector<3x128xf32> to vector<3x128xbf16>
    %cst_123 = arith.constant 0.000000e+00 : bf16
    %271 = vector.broadcast %cst_123 : bf16 to vector<3x8xbf16>
    %272 = tpu.concatenate %271, %270, %271 in 1 : vector<3x8xbf16>, vector<3x128xbf16>, vector<3x8xbf16> -> vector<3x144xbf16>
    %273 = vector.extract_strided_slice %272 {offsets = [0, 0], sizes = [3, 128], strides = [1, 1]} : vector<3x144xbf16> to vector<3x128xbf16>
    %274 = vector.extract_strided_slice %272 {offsets = [0, 1], sizes = [3, 128], strides = [1, 1]} : vector<3x144xbf16> to vector<3x128xbf16>
    %275 = vector.extract_strided_slice %272 {offsets = [0, 2], sizes = [3, 128], strides = [1, 1]} : vector<3x144xbf16> to vector<3x128xbf16>
    %276 = vector.extract_strided_slice %272 {offsets = [0, 3], sizes = [3, 128], strides = [1, 1]} : vector<3x144xbf16> to vector<3x128xbf16>
    %277 = vector.extract_strided_slice %272 {offsets = [0, 4], sizes = [3, 128], strides = [1, 1]} : vector<3x144xbf16> to vector<3x128xbf16>
    %278 = vector.extract_strided_slice %272 {offsets = [0, 5], sizes = [3, 128], strides = [1, 1]} : vector<3x144xbf16> to vector<3x128xbf16>
    %279 = vector.extract_strided_slice %272 {offsets = [0, 6], sizes = [3, 128], strides = [1, 1]} : vector<3x144xbf16> to vector<3x128xbf16>
    %280 = vector.extract_strided_slice %272 {offsets = [0, 7], sizes = [3, 128], strides = [1, 1]} : vector<3x144xbf16> to vector<3x128xbf16>
    %281 = vector.extract_strided_slice %272 {offsets = [0, 8], sizes = [3, 128], strides = [1, 1]} : vector<3x144xbf16> to vector<3x128xbf16>
    %282 = vector.extract_strided_slice %272 {offsets = [0, 9], sizes = [3, 128], strides = [1, 1]} : vector<3x144xbf16> to vector<3x128xbf16>
    %283 = vector.extract_strided_slice %272 {offsets = [0, 10], sizes = [3, 128], strides = [1, 1]} : vector<3x144xbf16> to vector<3x128xbf16>
    %284 = vector.extract_strided_slice %272 {offsets = [0, 11], sizes = [3, 128], strides = [1, 1]} : vector<3x144xbf16> to vector<3x128xbf16>
    %285 = vector.extract_strided_slice %272 {offsets = [0, 12], sizes = [3, 128], strides = [1, 1]} : vector<3x144xbf16> to vector<3x128xbf16>
    %286 = vector.extract_strided_slice %272 {offsets = [0, 13], sizes = [3, 128], strides = [1, 1]} : vector<3x144xbf16> to vector<3x128xbf16>
    %287 = vector.extract_strided_slice %272 {offsets = [0, 14], sizes = [3, 128], strides = [1, 1]} : vector<3x144xbf16> to vector<3x128xbf16>
    %288 = vector.extract_strided_slice %272 {offsets = [0, 15], sizes = [3, 128], strides = [1, 1]} : vector<3x144xbf16> to vector<3x128xbf16>
    %289 = vector.extract_strided_slice %272 {offsets = [0, 16], sizes = [3, 128], strides = [1, 1]} : vector<3x144xbf16> to vector<3x128xbf16>
    %290 = tpu.concatenate %273, %274, %275, %276, %277, %278, %279, %280, %281, %282, %283, %284, %285, %286, %287, %288 in 0 : vector<3x128xbf16>, vector<3x128xbf16>, vector<3x128xbf16>, vector<3x128xbf16>, vector<3x128xbf16>, vector<3x128xbf16>, vector<3x128xbf16>, vector<3x128xbf16>, vector<3x128xbf16>, vector<3x128xbf16>, vector<3x128xbf16>, vector<3x128xbf16>, vector<3x128xbf16>, vector<3x128xbf16>, vector<3x128xbf16>, vector<3x128xbf16> -> vector<48x128xbf16>
    %291 = tpu.concatenate %290, %289 in 0 : vector<48x128xbf16>, vector<3x128xbf16> -> vector<51x128xbf16>
    %cst_124 = arith.constant dense<0.000000e+00> : vector<4x128xf32>
    %292 = tpu.matmul %269, %291, %cst_124 {dimension_numbers = #tpu.dot_dimension_numbers<[1], [0], [0], [1], [0, 0, 1, 1], [], []>} : vector<4x51xbf16>, vector<51x128xbf16>, vector<4x128xf32> -> vector<4x128xf32>
    %c0_125 = arith.constant 0 : index
    %c0_126 = arith.constant 0 : index
    %293 = vector.load %arg6[%c0_125, %c0_126] : memref<4x1xf32, #tpu.memory_space<vmem>>, vector<4x1xf32>
    %294 = vector.broadcast %293 : vector<4x1xf32> to vector<4x128xf32>
    %295 = arith.addf %292, %294 : vector<4x128xf32>
    %c0_127 = arith.constant 0 : index
    %c0_128 = arith.constant 0 : index
    %296 = vector.load %arg18[%c0_127, %c0_128] : memref<8x1xf32, #tpu.memory_space<vmem>>, vector<8x1xf32>
    %c0_129 = arith.constant 0 : index
    %c0_130 = arith.constant 0 : index
    %297 = vector.load %arg17[%c0_129, %c0_130] : memref<8x4xbf16, #tpu.memory_space<vmem>>, vector<8x4xbf16>
    %298 = arith.truncf %295 : vector<4x128xf32> to vector<4x128xbf16>
    %cst_131 = arith.constant dense<0.000000e+00> : vector<8x128xf32>
    %299 = tpu.matmul %297, %298, %cst_131 {dimension_numbers = #tpu.dot_dimension_numbers<[1], [0], [0], [1], [0, 0, 1, 1], [], []>} : vector<8x4xbf16>, vector<4x128xbf16>, vector<8x128xf32> -> vector<8x128xf32>
    %300 = vector.broadcast %296 : vector<8x1xf32> to vector<8x128xf32>
    %301 = arith.addf %300, %299 : vector<8x128xf32>
    %c0_132 = arith.constant 0 : index
    %c0_133 = arith.constant 0 : index
    %302 = vector.load %arg14[%c0_132, %c0_133] : memref<8x1xf32, #tpu.memory_space<vmem>>, vector<8x1xf32>
    %c0_134 = arith.constant 0 : index
    %c0_135 = arith.constant 0 : index
    %303 = vector.load %arg13[%c0_134, %c0_135] : memref<8x12xbf16, #tpu.memory_space<vmem>>, vector<8x12xbf16>
    %304 = arith.truncf %295 : vector<4x128xf32> to vector<4x128xbf16>
    %305 = tpu.iota {dimensions = array<i32: 1>} : vector<4x128xi32>
    %c1_i32_136 = arith.constant 1 : i32
    %306 = tpu.dynamic_rotate %295 by %c1_i32_136 dim 1 : vector<4x128xf32>, i32 -> vector<4x128xf32>
    %c1_i32_137 = arith.constant 1 : i32
    %307 = vector.broadcast %c1_i32_137 : i32 to vector<4x128xi32>
    %308 = arith.cmpi sge, %305, %307 : vector<4x128xi32>
    %cst_138 = arith.constant 0.000000e+00 : f32
    %309 = vector.broadcast %cst_138 : f32 to vector<4x128xf32>
    %310 = arith.select %308, %306, %309 : vector<4x128xi1>, vector<4x128xf32>
    %311 = arith.truncf %310 : vector<4x128xf32> to vector<4x128xbf16>
    %c127_i32_139 = arith.constant 127 : i32
    %312 = tpu.dynamic_rotate %295 by %c127_i32_139 dim 1 : vector<4x128xf32>, i32 -> vector<4x128xf32>
    %c127_i32_140 = arith.constant 127 : i32
    %313 = vector.broadcast %c127_i32_140 : i32 to vector<4x128xi32>
    %314 = arith.cmpi slt, %305, %313 : vector<4x128xi32>
    %cst_141 = arith.constant 0.000000e+00 : f32
    %315 = vector.broadcast %cst_141 : f32 to vector<4x128xf32>
    %316 = arith.select %314, %312, %315 : vector<4x128xi1>, vector<4x128xf32>
    %317 = arith.truncf %316 : vector<4x128xf32> to vector<4x128xbf16>
    %318 = tpu.concatenate %311, %304, %317 in 0 : vector<4x128xbf16>, vector<4x128xbf16>, vector<4x128xbf16> -> vector<12x128xbf16>
    %cst_142 = arith.constant dense<0.000000e+00> : vector<8x128xf32>
    %319 = tpu.matmul %303, %318, %cst_142 {dimension_numbers = #tpu.dot_dimension_numbers<[1], [0], [0], [1], [0, 0, 1, 1], [], []>} : vector<8x12xbf16>, vector<12x128xbf16>, vector<8x128xf32> -> vector<8x128xf32>
    %320 = vector.broadcast %302 : vector<8x1xf32> to vector<8x128xf32>
    %321 = arith.addf %320, %319 : vector<8x128xf32>
    %322 = arith.addf %301, %321 : vector<8x128xf32>
    %cst_143 = arith.constant 2.000000e-01 : f32
    %323 = vector.broadcast %cst_143 : f32 to vector<8x128xf32>
    %324 = arith.mulf %323, %321 : vector<8x128xf32>
    %325 = arith.maximumf %321, %324 : vector<8x128xf32>
    %c0_144 = arith.constant 0 : index
    %c0_145 = arith.constant 0 : index
    %c0_146 = arith.constant 0 : index
    %326 = vector.load %arg15[%c0_144, %c0_145, %c0_146] : memref<10x8x24xbf16, #tpu.memory_space<vmem>>, vector<1x8x24xbf16>
    %327 = vector.shape_cast %326 : vector<1x8x24xbf16> to vector<8x24xbf16>
    %328 = arith.truncf %325 : vector<8x128xf32> to vector<8x128xbf16>
    %329 = tpu.iota {dimensions = array<i32: 1>} : vector<8x128xi32>
    %c2_i32_147 = arith.constant 2 : i32
    %330 = tpu.dynamic_rotate %325 by %c2_i32_147 dim 1 : vector<8x128xf32>, i32 -> vector<8x128xf32>
    %c2_i32_148 = arith.constant 2 : i32
    %331 = vector.broadcast %c2_i32_148 : i32 to vector<8x128xi32>
    %332 = arith.cmpi sge, %329, %331 : vector<8x128xi32>
    %cst_149 = arith.constant 0.000000e+00 : f32
    %333 = vector.broadcast %cst_149 : f32 to vector<8x128xf32>
    %334 = arith.select %332, %330, %333 : vector<8x128xi1>, vector<8x128xf32>
    %335 = arith.truncf %334 : vector<8x128xf32> to vector<8x128xbf16>
    %c126_i32_150 = arith.constant 126 : i32
    %336 = tpu.dynamic_rotate %325 by %c126_i32_150 dim 1 : vector<8x128xf32>, i32 -> vector<8x128xf32>
    %c126_i32_151 = arith.constant 126 : i32
    %337 = vector.broadcast %c126_i32_151 : i32 to vector<8x128xi32>
    %338 = arith.cmpi slt, %329, %337 : vector<8x128xi32>
    %cst_152 = arith.constant 0.000000e+00 : f32
    %339 = vector.broadcast %cst_152 : f32 to vector<8x128xf32>
    %340 = arith.select %338, %336, %339 : vector<8x128xi1>, vector<8x128xf32>
    %341 = arith.truncf %340 : vector<8x128xf32> to vector<8x128xbf16>
    %342 = tpu.concatenate %335, %328, %341 in 0 : vector<8x128xbf16>, vector<8x128xbf16>, vector<8x128xbf16> -> vector<24x128xbf16>
    %cst_153 = arith.constant dense<0.000000e+00> : vector<8x128xf32>
    %343 = tpu.matmul %327, %342, %cst_153 {dimension_numbers = #tpu.dot_dimension_numbers<[1], [0], [0], [1], [0, 0, 1, 1], [], []>} : vector<8x24xbf16>, vector<24x128xbf16>, vector<8x128xf32> -> vector<8x128xf32>
    %c0_154 = arith.constant 0 : index
    %c0_155 = arith.constant 0 : index
    %c0_156 = arith.constant 0 : index
    %344 = vector.load %arg16[%c0_154, %c0_155, %c0_156] : memref<10x8x1xf32, #tpu.memory_space<vmem>>, vector<1x8x1xf32>
    %345 = vector.shape_cast %344 : vector<1x8x1xf32> to vector<8x1xf32>
    %346 = vector.broadcast %345 : vector<8x1xf32> to vector<8x128xf32>
    %347 = arith.addf %343, %346 : vector<8x128xf32>
    %348 = arith.addf %322, %347 : vector<8x128xf32>
    %cst_157 = arith.constant 2.000000e-01 : f32
    %349 = vector.broadcast %cst_157 : f32 to vector<8x128xf32>
    %350 = arith.mulf %349, %347 : vector<8x128xf32>
    %351 = arith.maximumf %347, %350 : vector<8x128xf32>
    %c1_158 = arith.constant 1 : index
    %c0_159 = arith.constant 0 : index
    %c0_160 = arith.constant 0 : index
    %352 = vector.load %arg15[%c1_158, %c0_159, %c0_160] : memref<10x8x24xbf16, #tpu.memory_space<vmem>>, vector<1x8x24xbf16>
    %353 = vector.shape_cast %352 : vector<1x8x24xbf16> to vector<8x24xbf16>
    %354 = arith.truncf %351 : vector<8x128xf32> to vector<8x128xbf16>
    %355 = tpu.iota {dimensions = array<i32: 1>} : vector<8x128xi32>
    %c4_i32_161 = arith.constant 4 : i32
    %356 = tpu.dynamic_rotate %351 by %c4_i32_161 dim 1 : vector<8x128xf32>, i32 -> vector<8x128xf32>
    %c4_i32_162 = arith.constant 4 : i32
    %357 = vector.broadcast %c4_i32_162 : i32 to vector<8x128xi32>
    %358 = arith.cmpi sge, %355, %357 : vector<8x128xi32>
    %cst_163 = arith.constant 0.000000e+00 : f32
    %359 = vector.broadcast %cst_163 : f32 to vector<8x128xf32>
    %360 = arith.select %358, %356, %359 : vector<8x128xi1>, vector<8x128xf32>
    %361 = arith.truncf %360 : vector<8x128xf32> to vector<8x128xbf16>
    %c124_i32_164 = arith.constant 124 : i32
    %362 = tpu.dynamic_rotate %351 by %c124_i32_164 dim 1 : vector<8x128xf32>, i32 -> vector<8x128xf32>
    %c124_i32_165 = arith.constant 124 : i32
    %363 = vector.broadcast %c124_i32_165 : i32 to vector<8x128xi32>
    %364 = arith.cmpi slt, %355, %363 : vector<8x128xi32>
    %cst_166 = arith.constant 0.000000e+00 : f32
    %365 = vector.broadcast %cst_166 : f32 to vector<8x128xf32>
    %366 = arith.select %364, %362, %365 : vector<8x128xi1>, vector<8x128xf32>
    %367 = arith.truncf %366 : vector<8x128xf32> to vector<8x128xbf16>
    %368 = tpu.concatenate %361, %354, %367 in 0 : vector<8x128xbf16>, vector<8x128xbf16>, vector<8x128xbf16> -> vector<24x128xbf16>
    %cst_167 = arith.constant dense<0.000000e+00> : vector<8x128xf32>
    %369 = tpu.matmul %353, %368, %cst_167 {dimension_numbers = #tpu.dot_dimension_numbers<[1], [0], [0], [1], [0, 0, 1, 1], [], []>} : vector<8x24xbf16>, vector<24x128xbf16>, vector<8x128xf32> -> vector<8x128xf32>
    %c1_168 = arith.constant 1 : index
    %c0_169 = arith.constant 0 : index
    %c0_170 = arith.constant 0 : index
    %370 = vector.load %arg16[%c1_168, %c0_169, %c0_170] : memref<10x8x1xf32, #tpu.memory_space<vmem>>, vector<1x8x1xf32>
    %371 = vector.shape_cast %370 : vector<1x8x1xf32> to vector<8x1xf32>
    %372 = vector.broadcast %371 : vector<8x1xf32> to vector<8x128xf32>
    %373 = arith.addf %369, %372 : vector<8x128xf32>
    %374 = arith.addf %348, %373 : vector<8x128xf32>
    %cst_171 = arith.constant 2.000000e-01 : f32
    %375 = vector.broadcast %cst_171 : f32 to vector<8x128xf32>
    %376 = arith.mulf %375, %373 : vector<8x128xf32>
    %377 = arith.maximumf %373, %376 : vector<8x128xf32>
    %c2_172 = arith.constant 2 : index
    %c0_173 = arith.constant 0 : index
    %c0_174 = arith.constant 0 : index
    %378 = vector.load %arg15[%c2_172, %c0_173, %c0_174] : memref<10x8x24xbf16, #tpu.memory_space<vmem>>, vector<1x8x24xbf16>
    %379 = vector.shape_cast %378 : vector<1x8x24xbf16> to vector<8x24xbf16>
    %380 = arith.truncf %377 : vector<8x128xf32> to vector<8x128xbf16>
    %381 = tpu.iota {dimensions = array<i32: 1>} : vector<8x128xi32>
    %c8_i32_175 = arith.constant 8 : i32
    %382 = tpu.dynamic_rotate %377 by %c8_i32_175 dim 1 : vector<8x128xf32>, i32 -> vector<8x128xf32>
    %c8_i32_176 = arith.constant 8 : i32
    %383 = vector.broadcast %c8_i32_176 : i32 to vector<8x128xi32>
    %384 = arith.cmpi sge, %381, %383 : vector<8x128xi32>
    %cst_177 = arith.constant 0.000000e+00 : f32
    %385 = vector.broadcast %cst_177 : f32 to vector<8x128xf32>
    %386 = arith.select %384, %382, %385 : vector<8x128xi1>, vector<8x128xf32>
    %387 = arith.truncf %386 : vector<8x128xf32> to vector<8x128xbf16>
    %c120_i32_178 = arith.constant 120 : i32
    %388 = tpu.dynamic_rotate %377 by %c120_i32_178 dim 1 : vector<8x128xf32>, i32 -> vector<8x128xf32>
    %c120_i32_179 = arith.constant 120 : i32
    %389 = vector.broadcast %c120_i32_179 : i32 to vector<8x128xi32>
    %390 = arith.cmpi slt, %381, %389 : vector<8x128xi32>
    %cst_180 = arith.constant 0.000000e+00 : f32
    %391 = vector.broadcast %cst_180 : f32 to vector<8x128xf32>
    %392 = arith.select %390, %388, %391 : vector<8x128xi1>, vector<8x128xf32>
    %393 = arith.truncf %392 : vector<8x128xf32> to vector<8x128xbf16>
    %394 = tpu.concatenate %387, %380, %393 in 0 : vector<8x128xbf16>, vector<8x128xbf16>, vector<8x128xbf16> -> vector<24x128xbf16>
    %cst_181 = arith.constant dense<0.000000e+00> : vector<8x128xf32>
    %395 = tpu.matmul %379, %394, %cst_181 {dimension_numbers = #tpu.dot_dimension_numbers<[1], [0], [0], [1], [0, 0, 1, 1], [], []>} : vector<8x24xbf16>, vector<24x128xbf16>, vector<8x128xf32> -> vector<8x128xf32>
    %c2_182 = arith.constant 2 : index
    %c0_183 = arith.constant 0 : index
    %c0_184 = arith.constant 0 : index
    %396 = vector.load %arg16[%c2_182, %c0_183, %c0_184] : memref<10x8x1xf32, #tpu.memory_space<vmem>>, vector<1x8x1xf32>
    %397 = vector.shape_cast %396 : vector<1x8x1xf32> to vector<8x1xf32>
    %398 = vector.broadcast %397 : vector<8x1xf32> to vector<8x128xf32>
    %399 = arith.addf %395, %398 : vector<8x128xf32>
    %400 = arith.addf %374, %399 : vector<8x128xf32>
    %cst_185 = arith.constant 2.000000e-01 : f32
    %401 = vector.broadcast %cst_185 : f32 to vector<8x128xf32>
    %402 = arith.mulf %401, %399 : vector<8x128xf32>
    %403 = arith.maximumf %399, %402 : vector<8x128xf32>
    %c3_186 = arith.constant 3 : index
    %c0_187 = arith.constant 0 : index
    %c0_188 = arith.constant 0 : index
    %404 = vector.load %arg15[%c3_186, %c0_187, %c0_188] : memref<10x8x24xbf16, #tpu.memory_space<vmem>>, vector<1x8x24xbf16>
    %405 = vector.shape_cast %404 : vector<1x8x24xbf16> to vector<8x24xbf16>
    %406 = arith.truncf %403 : vector<8x128xf32> to vector<8x128xbf16>
    %407 = tpu.iota {dimensions = array<i32: 1>} : vector<8x128xi32>
    %c16_i32_189 = arith.constant 16 : i32
    %408 = tpu.dynamic_rotate %403 by %c16_i32_189 dim 1 : vector<8x128xf32>, i32 -> vector<8x128xf32>
    %c16_i32_190 = arith.constant 16 : i32
    %409 = vector.broadcast %c16_i32_190 : i32 to vector<8x128xi32>
    %410 = arith.cmpi sge, %407, %409 : vector<8x128xi32>
    %cst_191 = arith.constant 0.000000e+00 : f32
    %411 = vector.broadcast %cst_191 : f32 to vector<8x128xf32>
    %412 = arith.select %410, %408, %411 : vector<8x128xi1>, vector<8x128xf32>
    %413 = arith.truncf %412 : vector<8x128xf32> to vector<8x128xbf16>
    %c112_i32_192 = arith.constant 112 : i32
    %414 = tpu.dynamic_rotate %403 by %c112_i32_192 dim 1 : vector<8x128xf32>, i32 -> vector<8x128xf32>
    %c112_i32_193 = arith.constant 112 : i32
    %415 = vector.broadcast %c112_i32_193 : i32 to vector<8x128xi32>
    %416 = arith.cmpi slt, %407, %415 : vector<8x128xi32>
    %cst_194 = arith.constant 0.000000e+00 : f32
    %417 = vector.broadcast %cst_194 : f32 to vector<8x128xf32>
    %418 = arith.select %416, %414, %417 : vector<8x128xi1>, vector<8x128xf32>
    %419 = arith.truncf %418 : vector<8x128xf32> to vector<8x128xbf16>
    %420 = tpu.concatenate %413, %406, %419 in 0 : vector<8x128xbf16>, vector<8x128xbf16>, vector<8x128xbf16> -> vector<24x128xbf16>
    %cst_195 = arith.constant dense<0.000000e+00> : vector<8x128xf32>
    %421 = tpu.matmul %405, %420, %cst_195 {dimension_numbers = #tpu.dot_dimension_numbers<[1], [0], [0], [1], [0, 0, 1, 1], [], []>} : vector<8x24xbf16>, vector<24x128xbf16>, vector<8x128xf32> -> vector<8x128xf32>
    %c3_196 = arith.constant 3 : index
    %c0_197 = arith.constant 0 : index
    %c0_198 = arith.constant 0 : index
    %422 = vector.load %arg16[%c3_196, %c0_197, %c0_198] : memref<10x8x1xf32, #tpu.memory_space<vmem>>, vector<1x8x1xf32>
    %423 = vector.shape_cast %422 : vector<1x8x1xf32> to vector<8x1xf32>
    %424 = vector.broadcast %423 : vector<8x1xf32> to vector<8x128xf32>
    %425 = arith.addf %421, %424 : vector<8x128xf32>
    %426 = arith.addf %400, %425 : vector<8x128xf32>
    %cst_199 = arith.constant 2.000000e-01 : f32
    %427 = vector.broadcast %cst_199 : f32 to vector<8x128xf32>
    %428 = arith.mulf %427, %425 : vector<8x128xf32>
    %429 = arith.maximumf %425, %428 : vector<8x128xf32>
    %c4_200 = arith.constant 4 : index
    %c0_201 = arith.constant 0 : index
    %c0_202 = arith.constant 0 : index
    %430 = vector.load %arg15[%c4_200, %c0_201, %c0_202] : memref<10x8x24xbf16, #tpu.memory_space<vmem>>, vector<1x8x24xbf16>
    %431 = vector.shape_cast %430 : vector<1x8x24xbf16> to vector<8x24xbf16>
    %432 = arith.truncf %429 : vector<8x128xf32> to vector<8x128xbf16>
    %433 = tpu.iota {dimensions = array<i32: 1>} : vector<8x128xi32>
    %c32_i32_203 = arith.constant 32 : i32
    %434 = tpu.dynamic_rotate %429 by %c32_i32_203 dim 1 : vector<8x128xf32>, i32 -> vector<8x128xf32>
    %c32_i32_204 = arith.constant 32 : i32
    %435 = vector.broadcast %c32_i32_204 : i32 to vector<8x128xi32>
    %436 = arith.cmpi sge, %433, %435 : vector<8x128xi32>
    %cst_205 = arith.constant 0.000000e+00 : f32
    %437 = vector.broadcast %cst_205 : f32 to vector<8x128xf32>
    %438 = arith.select %436, %434, %437 : vector<8x128xi1>, vector<8x128xf32>
    %439 = arith.truncf %438 : vector<8x128xf32> to vector<8x128xbf16>
    %c96_i32_206 = arith.constant 96 : i32
    %440 = tpu.dynamic_rotate %429 by %c96_i32_206 dim 1 : vector<8x128xf32>, i32 -> vector<8x128xf32>
    %c96_i32_207 = arith.constant 96 : i32
    %441 = vector.broadcast %c96_i32_207 : i32 to vector<8x128xi32>
    %442 = arith.cmpi slt, %433, %441 : vector<8x128xi32>
    %cst_208 = arith.constant 0.000000e+00 : f32
    %443 = vector.broadcast %cst_208 : f32 to vector<8x128xf32>
    %444 = arith.select %442, %440, %443 : vector<8x128xi1>, vector<8x128xf32>
    %445 = arith.truncf %444 : vector<8x128xf32> to vector<8x128xbf16>
    %446 = tpu.concatenate %439, %432, %445 in 0 : vector<8x128xbf16>, vector<8x128xbf16>, vector<8x128xbf16> -> vector<24x128xbf16>
    %cst_209 = arith.constant dense<0.000000e+00> : vector<8x128xf32>
    %447 = tpu.matmul %431, %446, %cst_209 {dimension_numbers = #tpu.dot_dimension_numbers<[1], [0], [0], [1], [0, 0, 1, 1], [], []>} : vector<8x24xbf16>, vector<24x128xbf16>, vector<8x128xf32> -> vector<8x128xf32>
    %c4_210 = arith.constant 4 : index
    %c0_211 = arith.constant 0 : index
    %c0_212 = arith.constant 0 : index
    %448 = vector.load %arg16[%c4_210, %c0_211, %c0_212] : memref<10x8x1xf32, #tpu.memory_space<vmem>>, vector<1x8x1xf32>
    %449 = vector.shape_cast %448 : vector<1x8x1xf32> to vector<8x1xf32>
    %450 = vector.broadcast %449 : vector<8x1xf32> to vector<8x128xf32>
    %451 = arith.addf %447, %450 : vector<8x128xf32>
    %452 = arith.addf %426, %451 : vector<8x128xf32>
    %cst_213 = arith.constant 2.000000e-01 : f32
    %453 = vector.broadcast %cst_213 : f32 to vector<8x128xf32>
    %454 = arith.mulf %453, %451 : vector<8x128xf32>
    %455 = arith.maximumf %451, %454 : vector<8x128xf32>
    %c5_214 = arith.constant 5 : index
    %c0_215 = arith.constant 0 : index
    %c0_216 = arith.constant 0 : index
    %456 = vector.load %arg15[%c5_214, %c0_215, %c0_216] : memref<10x8x24xbf16, #tpu.memory_space<vmem>>, vector<1x8x24xbf16>
    %457 = vector.shape_cast %456 : vector<1x8x24xbf16> to vector<8x24xbf16>
    %458 = arith.truncf %455 : vector<8x128xf32> to vector<8x128xbf16>
    %459 = tpu.iota {dimensions = array<i32: 1>} : vector<8x128xi32>
    %c64_i32_217 = arith.constant 64 : i32
    %460 = tpu.dynamic_rotate %455 by %c64_i32_217 dim 1 : vector<8x128xf32>, i32 -> vector<8x128xf32>
    %c64_i32_218 = arith.constant 64 : i32
    %461 = vector.broadcast %c64_i32_218 : i32 to vector<8x128xi32>
    %462 = arith.cmpi sge, %459, %461 : vector<8x128xi32>
    %cst_219 = arith.constant 0.000000e+00 : f32
    %463 = vector.broadcast %cst_219 : f32 to vector<8x128xf32>
    %464 = arith.select %462, %460, %463 : vector<8x128xi1>, vector<8x128xf32>
    %465 = arith.truncf %464 : vector<8x128xf32> to vector<8x128xbf16>
    %c64_i32_220 = arith.constant 64 : i32
    %466 = tpu.dynamic_rotate %455 by %c64_i32_220 dim 1 : vector<8x128xf32>, i32 -> vector<8x128xf32>
    %c64_i32_221 = arith.constant 64 : i32
    %467 = vector.broadcast %c64_i32_221 : i32 to vector<8x128xi32>
    %468 = arith.cmpi slt, %459, %467 : vector<8x128xi32>
    %cst_222 = arith.constant 0.000000e+00 : f32
    %469 = vector.broadcast %cst_222 : f32 to vector<8x128xf32>
    %470 = arith.select %468, %466, %469 : vector<8x128xi1>, vector<8x128xf32>
    %471 = arith.truncf %470 : vector<8x128xf32> to vector<8x128xbf16>
    %472 = tpu.concatenate %465, %458, %471 in 0 : vector<8x128xbf16>, vector<8x128xbf16>, vector<8x128xbf16> -> vector<24x128xbf16>
    %cst_223 = arith.constant dense<0.000000e+00> : vector<8x128xf32>
    %473 = tpu.matmul %457, %472, %cst_223 {dimension_numbers = #tpu.dot_dimension_numbers<[1], [0], [0], [1], [0, 0, 1, 1], [], []>} : vector<8x24xbf16>, vector<24x128xbf16>, vector<8x128xf32> -> vector<8x128xf32>
    %c5_224 = arith.constant 5 : index
    %c0_225 = arith.constant 0 : index
    %c0_226 = arith.constant 0 : index
    %474 = vector.load %arg16[%c5_224, %c0_225, %c0_226] : memref<10x8x1xf32, #tpu.memory_space<vmem>>, vector<1x8x1xf32>
    %475 = vector.shape_cast %474 : vector<1x8x1xf32> to vector<8x1xf32>
    %476 = vector.broadcast %475 : vector<8x1xf32> to vector<8x128xf32>
    %477 = arith.addf %473, %476 : vector<8x128xf32>
    %478 = arith.addf %452, %477 : vector<8x128xf32>
    %cst_227 = arith.constant 2.000000e-01 : f32
    %479 = vector.broadcast %cst_227 : f32 to vector<8x128xf32>
    %480 = arith.mulf %479, %477 : vector<8x128xf32>
    %481 = arith.maximumf %477, %480 : vector<8x128xf32>
    %c6_228 = arith.constant 6 : index
    %c0_229 = arith.constant 0 : index
    %c0_230 = arith.constant 0 : index
    %482 = vector.load %arg15[%c6_228, %c0_229, %c0_230] : memref<10x8x24xbf16, #tpu.memory_space<vmem>>, vector<1x8x24xbf16>
    %483 = vector.shape_cast %482 : vector<1x8x24xbf16> to vector<8x24xbf16>
    %484 = arith.truncf %481 : vector<8x128xf32> to vector<8x128xbf16>
    %485 = vector.extract_strided_slice %483 {offsets = [0, 8], sizes = [8, 8], strides = [1, 1]} : vector<8x24xbf16> to vector<8x8xbf16>
    %cst_231 = arith.constant dense<0.000000e+00> : vector<8x128xf32>
    %486 = tpu.matmul %485, %484, %cst_231 {dimension_numbers = #tpu.dot_dimension_numbers<[1], [0], [0], [1], [0, 0, 1, 1], [], []>} : vector<8x8xbf16>, vector<8x128xbf16>, vector<8x128xf32> -> vector<8x128xf32>
    %c6_232 = arith.constant 6 : index
    %c0_233 = arith.constant 0 : index
    %c0_234 = arith.constant 0 : index
    %487 = vector.load %arg16[%c6_232, %c0_233, %c0_234] : memref<10x8x1xf32, #tpu.memory_space<vmem>>, vector<1x8x1xf32>
    %488 = vector.shape_cast %487 : vector<1x8x1xf32> to vector<8x1xf32>
    %489 = vector.broadcast %488 : vector<8x1xf32> to vector<8x128xf32>
    %490 = arith.addf %486, %489 : vector<8x128xf32>
    %491 = arith.addf %478, %490 : vector<8x128xf32>
    %cst_235 = arith.constant 2.000000e-01 : f32
    %492 = vector.broadcast %cst_235 : f32 to vector<8x128xf32>
    %493 = arith.mulf %492, %490 : vector<8x128xf32>
    %494 = arith.maximumf %490, %493 : vector<8x128xf32>
    %c7_236 = arith.constant 7 : index
    %c0_237 = arith.constant 0 : index
    %c0_238 = arith.constant 0 : index
    %495 = vector.load %arg15[%c7_236, %c0_237, %c0_238] : memref<10x8x24xbf16, #tpu.memory_space<vmem>>, vector<1x8x24xbf16>
    %496 = vector.shape_cast %495 : vector<1x8x24xbf16> to vector<8x24xbf16>
    %497 = arith.truncf %494 : vector<8x128xf32> to vector<8x128xbf16>
    %498 = vector.extract_strided_slice %496 {offsets = [0, 8], sizes = [8, 8], strides = [1, 1]} : vector<8x24xbf16> to vector<8x8xbf16>
    %cst_239 = arith.constant dense<0.000000e+00> : vector<8x128xf32>
    %499 = tpu.matmul %498, %497, %cst_239 {dimension_numbers = #tpu.dot_dimension_numbers<[1], [0], [0], [1], [0, 0, 1, 1], [], []>} : vector<8x8xbf16>, vector<8x128xbf16>, vector<8x128xf32> -> vector<8x128xf32>
    %c7_240 = arith.constant 7 : index
    %c0_241 = arith.constant 0 : index
    %c0_242 = arith.constant 0 : index
    %500 = vector.load %arg16[%c7_240, %c0_241, %c0_242] : memref<10x8x1xf32, #tpu.memory_space<vmem>>, vector<1x8x1xf32>
    %501 = vector.shape_cast %500 : vector<1x8x1xf32> to vector<8x1xf32>
    %502 = vector.broadcast %501 : vector<8x1xf32> to vector<8x128xf32>
    %503 = arith.addf %499, %502 : vector<8x128xf32>
    %504 = arith.addf %491, %503 : vector<8x128xf32>
    %cst_243 = arith.constant 2.000000e-01 : f32
    %505 = vector.broadcast %cst_243 : f32 to vector<8x128xf32>
    %506 = arith.mulf %505, %503 : vector<8x128xf32>
    %507 = arith.maximumf %503, %506 : vector<8x128xf32>
    %c8_244 = arith.constant 8 : index
    %c0_245 = arith.constant 0 : index
    %c0_246 = arith.constant 0 : index
    %508 = vector.load %arg15[%c8_244, %c0_245, %c0_246] : memref<10x8x24xbf16, #tpu.memory_space<vmem>>, vector<1x8x24xbf16>
    %509 = vector.shape_cast %508 : vector<1x8x24xbf16> to vector<8x24xbf16>
    %510 = arith.truncf %507 : vector<8x128xf32> to vector<8x128xbf16>
    %511 = vector.extract_strided_slice %509 {offsets = [0, 8], sizes = [8, 8], strides = [1, 1]} : vector<8x24xbf16> to vector<8x8xbf16>
    %cst_247 = arith.constant dense<0.000000e+00> : vector<8x128xf32>
    %512 = tpu.matmul %511, %510, %cst_247 {dimension_numbers = #tpu.dot_dimension_numbers<[1], [0], [0], [1], [0, 0, 1, 1], [], []>} : vector<8x8xbf16>, vector<8x128xbf16>, vector<8x128xf32> -> vector<8x128xf32>
    %c8_248 = arith.constant 8 : index
    %c0_249 = arith.constant 0 : index
    %c0_250 = arith.constant 0 : index
    %513 = vector.load %arg16[%c8_248, %c0_249, %c0_250] : memref<10x8x1xf32, #tpu.memory_space<vmem>>, vector<1x8x1xf32>
    %514 = vector.shape_cast %513 : vector<1x8x1xf32> to vector<8x1xf32>
    %515 = vector.broadcast %514 : vector<8x1xf32> to vector<8x128xf32>
    %516 = arith.addf %512, %515 : vector<8x128xf32>
    %517 = arith.addf %504, %516 : vector<8x128xf32>
    %cst_251 = arith.constant 2.000000e-01 : f32
    %518 = vector.broadcast %cst_251 : f32 to vector<8x128xf32>
    %519 = arith.mulf %518, %516 : vector<8x128xf32>
    %520 = arith.maximumf %516, %519 : vector<8x128xf32>
    %c9_252 = arith.constant 9 : index
    %c0_253 = arith.constant 0 : index
    %c0_254 = arith.constant 0 : index
    %521 = vector.load %arg15[%c9_252, %c0_253, %c0_254] : memref<10x8x24xbf16, #tpu.memory_space<vmem>>, vector<1x8x24xbf16>
    %522 = vector.shape_cast %521 : vector<1x8x24xbf16> to vector<8x24xbf16>
    %523 = arith.truncf %520 : vector<8x128xf32> to vector<8x128xbf16>
    %524 = vector.extract_strided_slice %522 {offsets = [0, 8], sizes = [8, 8], strides = [1, 1]} : vector<8x24xbf16> to vector<8x8xbf16>
    %cst_255 = arith.constant dense<0.000000e+00> : vector<8x128xf32>
    %525 = tpu.matmul %524, %523, %cst_255 {dimension_numbers = #tpu.dot_dimension_numbers<[1], [0], [0], [1], [0, 0, 1, 1], [], []>} : vector<8x8xbf16>, vector<8x128xbf16>, vector<8x128xf32> -> vector<8x128xf32>
    %c9_256 = arith.constant 9 : index
    %c0_257 = arith.constant 0 : index
    %c0_258 = arith.constant 0 : index
    %526 = vector.load %arg16[%c9_256, %c0_257, %c0_258] : memref<10x8x1xf32, #tpu.memory_space<vmem>>, vector<1x8x1xf32>
    %527 = vector.shape_cast %526 : vector<1x8x1xf32> to vector<8x1xf32>
    %528 = vector.broadcast %527 : vector<8x1xf32> to vector<8x128xf32>
    %529 = arith.addf %525, %528 : vector<8x128xf32>
    %530 = arith.addf %517, %529 : vector<8x128xf32>
    %cst_259 = arith.constant 2.000000e-01 : f32
    %531 = vector.broadcast %cst_259 : f32 to vector<8x128xf32>
    %532 = arith.mulf %531, %530 : vector<8x128xf32>
    %533 = arith.maximumf %530, %532 : vector<8x128xf32>
    %c0_260 = arith.constant 0 : index
    %c0_261 = arith.constant 0 : index
    %534 = vector.load %arg26[%c0_260, %c0_261] : memref<24x1xf32, #tpu.memory_space<vmem>>, vector<24x1xf32>
    %c0_262 = arith.constant 0 : index
    %c0_263 = arith.constant 0 : index
    %535 = vector.load %arg24[%c0_262, %c0_263] : memref<24x8xbf16, #tpu.memory_space<vmem>>, vector<24x8xbf16>
    %536 = arith.truncf %533 : vector<8x128xf32> to vector<8x128xbf16>
    %cst_264 = arith.constant dense<0.000000e+00> : vector<24x128xf32>
    %537 = tpu.matmul %535, %536, %cst_264 {dimension_numbers = #tpu.dot_dimension_numbers<[1], [0], [0], [1], [0, 0, 1, 1], [], []>} : vector<24x8xbf16>, vector<8x128xbf16>, vector<24x128xf32> -> vector<24x128xf32>
    %538 = vector.broadcast %534 : vector<24x1xf32> to vector<24x128xf32>
    %539 = arith.addf %538, %537 : vector<24x128xf32>
    %c0_265 = arith.constant 0 : index
    %c0_266 = arith.constant 0 : index
    %540 = vector.load %arg25[%c0_265, %c0_266] : memref<24x8xbf16, #tpu.memory_space<vmem>>, vector<24x8xbf16>
    %541 = arith.truncf %268 : vector<8x128xf32> to vector<8x128xbf16>
    %cst_267 = arith.constant dense<0.000000e+00> : vector<24x128xf32>
    %542 = tpu.matmul %540, %541, %cst_267 {dimension_numbers = #tpu.dot_dimension_numbers<[1], [0], [0], [1], [0, 0, 1, 1], [], []>} : vector<24x8xbf16>, vector<8x128xbf16>, vector<24x128xf32> -> vector<24x128xf32>
    %543 = arith.addf %539, %542 : vector<24x128xf32>
    %c0_268 = arith.constant 0 : index
    %c0_269 = arith.constant 0 : index
    %544 = vector.load %arg21[%c0_268, %c0_269] : memref<24x1xf32, #tpu.memory_space<vmem>>, vector<24x1xf32>
    %c0_270 = arith.constant 0 : index
    %c0_271 = arith.constant 0 : index
    %545 = vector.load %arg19[%c0_270, %c0_271] : memref<24x24xbf16, #tpu.memory_space<vmem>>, vector<24x24xbf16>
    %546 = arith.truncf %533 : vector<8x128xf32> to vector<8x128xbf16>
    %547 = tpu.iota {dimensions = array<i32: 1>} : vector<8x128xi32>
    %c1_i32_272 = arith.constant 1 : i32
    %548 = tpu.dynamic_rotate %533 by %c1_i32_272 dim 1 : vector<8x128xf32>, i32 -> vector<8x128xf32>
    %c1_i32_273 = arith.constant 1 : i32
    %549 = vector.broadcast %c1_i32_273 : i32 to vector<8x128xi32>
    %550 = arith.cmpi sge, %547, %549 : vector<8x128xi32>
    %cst_274 = arith.constant 0.000000e+00 : f32
    %551 = vector.broadcast %cst_274 : f32 to vector<8x128xf32>
    %552 = arith.select %550, %548, %551 : vector<8x128xi1>, vector<8x128xf32>
    %553 = arith.truncf %552 : vector<8x128xf32> to vector<8x128xbf16>
    %c127_i32_275 = arith.constant 127 : i32
    %554 = tpu.dynamic_rotate %533 by %c127_i32_275 dim 1 : vector<8x128xf32>, i32 -> vector<8x128xf32>
    %c127_i32_276 = arith.constant 127 : i32
    %555 = vector.broadcast %c127_i32_276 : i32 to vector<8x128xi32>
    %556 = arith.cmpi slt, %547, %555 : vector<8x128xi32>
    %cst_277 = arith.constant 0.000000e+00 : f32
    %557 = vector.broadcast %cst_277 : f32 to vector<8x128xf32>
    %558 = arith.select %556, %554, %557 : vector<8x128xi1>, vector<8x128xf32>
    %559 = arith.truncf %558 : vector<8x128xf32> to vector<8x128xbf16>
    %560 = tpu.concatenate %553, %546, %559 in 0 : vector<8x128xbf16>, vector<8x128xbf16>, vector<8x128xbf16> -> vector<24x128xbf16>
    %cst_278 = arith.constant dense<0.000000e+00> : vector<24x128xf32>
    %561 = tpu.matmul %545, %560, %cst_278 {dimension_numbers = #tpu.dot_dimension_numbers<[1], [0], [0], [1], [0, 0, 1, 1], [], []>} : vector<24x24xbf16>, vector<24x128xbf16>, vector<24x128xf32> -> vector<24x128xf32>
    %562 = vector.broadcast %544 : vector<24x1xf32> to vector<24x128xf32>
    %563 = arith.addf %562, %561 : vector<24x128xf32>
    %c0_279 = arith.constant 0 : index
    %c0_280 = arith.constant 0 : index
    %564 = vector.load %arg20[%c0_279, %c0_280] : memref<24x24xbf16, #tpu.memory_space<vmem>>, vector<24x24xbf16>
    %565 = arith.truncf %268 : vector<8x128xf32> to vector<8x128xbf16>
    %566 = tpu.iota {dimensions = array<i32: 1>} : vector<8x128xi32>
    %c1_i32_281 = arith.constant 1 : i32
    %567 = tpu.dynamic_rotate %268 by %c1_i32_281 dim 1 : vector<8x128xf32>, i32 -> vector<8x128xf32>
    %c1_i32_282 = arith.constant 1 : i32
    %568 = vector.broadcast %c1_i32_282 : i32 to vector<8x128xi32>
    %569 = arith.cmpi sge, %566, %568 : vector<8x128xi32>
    %cst_283 = arith.constant 0.000000e+00 : f32
    %570 = vector.broadcast %cst_283 : f32 to vector<8x128xf32>
    %571 = arith.select %569, %567, %570 : vector<8x128xi1>, vector<8x128xf32>
    %572 = arith.truncf %571 : vector<8x128xf32> to vector<8x128xbf16>
    %c127_i32_284 = arith.constant 127 : i32
    %573 = tpu.dynamic_rotate %268 by %c127_i32_284 dim 1 : vector<8x128xf32>, i32 -> vector<8x128xf32>
    %c127_i32_285 = arith.constant 127 : i32
    %574 = vector.broadcast %c127_i32_285 : i32 to vector<8x128xi32>
    %575 = arith.cmpi slt, %566, %574 : vector<8x128xi32>
    %cst_286 = arith.constant 0.000000e+00 : f32
    %576 = vector.broadcast %cst_286 : f32 to vector<8x128xf32>
    %577 = arith.select %575, %573, %576 : vector<8x128xi1>, vector<8x128xf32>
    %578 = arith.truncf %577 : vector<8x128xf32> to vector<8x128xbf16>
    %579 = tpu.concatenate %572, %565, %578 in 0 : vector<8x128xbf16>, vector<8x128xbf16>, vector<8x128xbf16> -> vector<24x128xbf16>
    %cst_287 = arith.constant dense<0.000000e+00> : vector<24x128xf32>
    %580 = tpu.matmul %564, %579, %cst_287 {dimension_numbers = #tpu.dot_dimension_numbers<[1], [0], [0], [1], [0, 0, 1, 1], [], []>} : vector<24x24xbf16>, vector<24x128xbf16>, vector<24x128xf32> -> vector<24x128xf32>
    %581 = arith.addf %563, %580 : vector<24x128xf32>
    %582 = arith.addf %543, %581 : vector<24x128xf32>
    %cst_288 = arith.constant 2.000000e-01 : f32
    %583 = vector.broadcast %cst_288 : f32 to vector<24x128xf32>
    %584 = arith.mulf %583, %581 : vector<24x128xf32>
    %585 = arith.maximumf %581, %584 : vector<24x128xf32>
    %c0_289 = arith.constant 0 : index
    %c0_290 = arith.constant 0 : index
    %c0_291 = arith.constant 0 : index
    %586 = vector.load %arg22[%c0_289, %c0_290, %c0_291] : memref<10x24x72xbf16, #tpu.memory_space<vmem>>, vector<1x24x72xbf16>
    %587 = vector.shape_cast %586 : vector<1x24x72xbf16> to vector<24x72xbf16>
    %588 = arith.truncf %585 : vector<24x128xf32> to vector<24x128xbf16>
    %589 = tpu.iota {dimensions = array<i32: 1>} : vector<24x128xi32>
    %c2_i32_292 = arith.constant 2 : i32
    %590 = tpu.dynamic_rotate %585 by %c2_i32_292 dim 1 : vector<24x128xf32>, i32 -> vector<24x128xf32>
    %c2_i32_293 = arith.constant 2 : i32
    %591 = vector.broadcast %c2_i32_293 : i32 to vector<24x128xi32>
    %592 = arith.cmpi sge, %589, %591 : vector<24x128xi32>
    %cst_294 = arith.constant 0.000000e+00 : f32
    %593 = vector.broadcast %cst_294 : f32 to vector<24x128xf32>
    %594 = arith.select %592, %590, %593 : vector<24x128xi1>, vector<24x128xf32>
    %595 = arith.truncf %594 : vector<24x128xf32> to vector<24x128xbf16>
    %c126_i32_295 = arith.constant 126 : i32
    %596 = tpu.dynamic_rotate %585 by %c126_i32_295 dim 1 : vector<24x128xf32>, i32 -> vector<24x128xf32>
    %c126_i32_296 = arith.constant 126 : i32
    %597 = vector.broadcast %c126_i32_296 : i32 to vector<24x128xi32>
    %598 = arith.cmpi slt, %589, %597 : vector<24x128xi32>
    %cst_297 = arith.constant 0.000000e+00 : f32
    %599 = vector.broadcast %cst_297 : f32 to vector<24x128xf32>
    %600 = arith.select %598, %596, %599 : vector<24x128xi1>, vector<24x128xf32>
    %601 = arith.truncf %600 : vector<24x128xf32> to vector<24x128xbf16>
    %602 = tpu.concatenate %595, %588, %601 in 0 : vector<24x128xbf16>, vector<24x128xbf16>, vector<24x128xbf16> -> vector<72x128xbf16>
    %cst_298 = arith.constant dense<0.000000e+00> : vector<24x128xf32>
    %603 = tpu.matmul %587, %602, %cst_298 {dimension_numbers = #tpu.dot_dimension_numbers<[1], [0], [0], [1], [0, 0, 1, 1], [], []>} : vector<24x72xbf16>, vector<72x128xbf16>, vector<24x128xf32> -> vector<24x128xf32>
    %c0_299 = arith.constant 0 : index
    %c0_300 = arith.constant 0 : index
    %c0_301 = arith.constant 0 : index
    %604 = vector.load %arg23[%c0_299, %c0_300, %c0_301] : memref<10x24x1xf32, #tpu.memory_space<vmem>>, vector<1x24x1xf32>
    %605 = vector.shape_cast %604 : vector<1x24x1xf32> to vector<24x1xf32>
    %606 = vector.broadcast %605 : vector<24x1xf32> to vector<24x128xf32>
    %607 = arith.addf %603, %606 : vector<24x128xf32>
    %608 = arith.addf %582, %607 : vector<24x128xf32>
    %cst_302 = arith.constant 2.000000e-01 : f32
    %609 = vector.broadcast %cst_302 : f32 to vector<24x128xf32>
    %610 = arith.mulf %609, %607 : vector<24x128xf32>
    %611 = arith.maximumf %607, %610 : vector<24x128xf32>
    %c1_303 = arith.constant 1 : index
    %c0_304 = arith.constant 0 : index
    %c0_305 = arith.constant 0 : index
    %612 = vector.load %arg22[%c1_303, %c0_304, %c0_305] : memref<10x24x72xbf16, #tpu.memory_space<vmem>>, vector<1x24x72xbf16>
    %613 = vector.shape_cast %612 : vector<1x24x72xbf16> to vector<24x72xbf16>
    %614 = arith.truncf %611 : vector<24x128xf32> to vector<24x128xbf16>
    %615 = tpu.iota {dimensions = array<i32: 1>} : vector<24x128xi32>
    %c4_i32_306 = arith.constant 4 : i32
    %616 = tpu.dynamic_rotate %611 by %c4_i32_306 dim 1 : vector<24x128xf32>, i32 -> vector<24x128xf32>
    %c4_i32_307 = arith.constant 4 : i32
    %617 = vector.broadcast %c4_i32_307 : i32 to vector<24x128xi32>
    %618 = arith.cmpi sge, %615, %617 : vector<24x128xi32>
    %cst_308 = arith.constant 0.000000e+00 : f32
    %619 = vector.broadcast %cst_308 : f32 to vector<24x128xf32>
    %620 = arith.select %618, %616, %619 : vector<24x128xi1>, vector<24x128xf32>
    %621 = arith.truncf %620 : vector<24x128xf32> to vector<24x128xbf16>
    %c124_i32_309 = arith.constant 124 : i32
    %622 = tpu.dynamic_rotate %611 by %c124_i32_309 dim 1 : vector<24x128xf32>, i32 -> vector<24x128xf32>
    %c124_i32_310 = arith.constant 124 : i32
    %623 = vector.broadcast %c124_i32_310 : i32 to vector<24x128xi32>
    %624 = arith.cmpi slt, %615, %623 : vector<24x128xi32>
    %cst_311 = arith.constant 0.000000e+00 : f32
    %625 = vector.broadcast %cst_311 : f32 to vector<24x128xf32>
    %626 = arith.select %624, %622, %625 : vector<24x128xi1>, vector<24x128xf32>
    %627 = arith.truncf %626 : vector<24x128xf32> to vector<24x128xbf16>
    %628 = tpu.concatenate %621, %614, %627 in 0 : vector<24x128xbf16>, vector<24x128xbf16>, vector<24x128xbf16> -> vector<72x128xbf16>
    %cst_312 = arith.constant dense<0.000000e+00> : vector<24x128xf32>
    %629 = tpu.matmul %613, %628, %cst_312 {dimension_numbers = #tpu.dot_dimension_numbers<[1], [0], [0], [1], [0, 0, 1, 1], [], []>} : vector<24x72xbf16>, vector<72x128xbf16>, vector<24x128xf32> -> vector<24x128xf32>
    %c1_313 = arith.constant 1 : index
    %c0_314 = arith.constant 0 : index
    %c0_315 = arith.constant 0 : index
    %630 = vector.load %arg23[%c1_313, %c0_314, %c0_315] : memref<10x24x1xf32, #tpu.memory_space<vmem>>, vector<1x24x1xf32>
    %631 = vector.shape_cast %630 : vector<1x24x1xf32> to vector<24x1xf32>
    %632 = vector.broadcast %631 : vector<24x1xf32> to vector<24x128xf32>
    %633 = arith.addf %629, %632 : vector<24x128xf32>
    %634 = arith.addf %608, %633 : vector<24x128xf32>
    %cst_316 = arith.constant 2.000000e-01 : f32
    %635 = vector.broadcast %cst_316 : f32 to vector<24x128xf32>
    %636 = arith.mulf %635, %633 : vector<24x128xf32>
    %637 = arith.maximumf %633, %636 : vector<24x128xf32>
    %c2_317 = arith.constant 2 : index
    %c0_318 = arith.constant 0 : index
    %c0_319 = arith.constant 0 : index
    %638 = vector.load %arg22[%c2_317, %c0_318, %c0_319] : memref<10x24x72xbf16, #tpu.memory_space<vmem>>, vector<1x24x72xbf16>
    %639 = vector.shape_cast %638 : vector<1x24x72xbf16> to vector<24x72xbf16>
    %640 = arith.truncf %637 : vector<24x128xf32> to vector<24x128xbf16>
    %641 = tpu.iota {dimensions = array<i32: 1>} : vector<24x128xi32>
    %c8_i32_320 = arith.constant 8 : i32
    %642 = tpu.dynamic_rotate %637 by %c8_i32_320 dim 1 : vector<24x128xf32>, i32 -> vector<24x128xf32>
    %c8_i32_321 = arith.constant 8 : i32
    %643 = vector.broadcast %c8_i32_321 : i32 to vector<24x128xi32>
    %644 = arith.cmpi sge, %641, %643 : vector<24x128xi32>
    %cst_322 = arith.constant 0.000000e+00 : f32
    %645 = vector.broadcast %cst_322 : f32 to vector<24x128xf32>
    %646 = arith.select %644, %642, %645 : vector<24x128xi1>, vector<24x128xf32>
    %647 = arith.truncf %646 : vector<24x128xf32> to vector<24x128xbf16>
    %c120_i32_323 = arith.constant 120 : i32
    %648 = tpu.dynamic_rotate %637 by %c120_i32_323 dim 1 : vector<24x128xf32>, i32 -> vector<24x128xf32>
    %c120_i32_324 = arith.constant 120 : i32
    %649 = vector.broadcast %c120_i32_324 : i32 to vector<24x128xi32>
    %650 = arith.cmpi slt, %641, %649 : vector<24x128xi32>
    %cst_325 = arith.constant 0.000000e+00 : f32
    %651 = vector.broadcast %cst_325 : f32 to vector<24x128xf32>
    %652 = arith.select %650, %648, %651 : vector<24x128xi1>, vector<24x128xf32>
    %653 = arith.truncf %652 : vector<24x128xf32> to vector<24x128xbf16>
    %654 = tpu.concatenate %647, %640, %653 in 0 : vector<24x128xbf16>, vector<24x128xbf16>, vector<24x128xbf16> -> vector<72x128xbf16>
    %cst_326 = arith.constant dense<0.000000e+00> : vector<24x128xf32>
    %655 = tpu.matmul %639, %654, %cst_326 {dimension_numbers = #tpu.dot_dimension_numbers<[1], [0], [0], [1], [0, 0, 1, 1], [], []>} : vector<24x72xbf16>, vector<72x128xbf16>, vector<24x128xf32> -> vector<24x128xf32>
    %c2_327 = arith.constant 2 : index
    %c0_328 = arith.constant 0 : index
    %c0_329 = arith.constant 0 : index
    %656 = vector.load %arg23[%c2_327, %c0_328, %c0_329] : memref<10x24x1xf32, #tpu.memory_space<vmem>>, vector<1x24x1xf32>
    %657 = vector.shape_cast %656 : vector<1x24x1xf32> to vector<24x1xf32>
    %658 = vector.broadcast %657 : vector<24x1xf32> to vector<24x128xf32>
    %659 = arith.addf %655, %658 : vector<24x128xf32>
    %660 = arith.addf %634, %659 : vector<24x128xf32>
    %cst_330 = arith.constant 2.000000e-01 : f32
    %661 = vector.broadcast %cst_330 : f32 to vector<24x128xf32>
    %662 = arith.mulf %661, %659 : vector<24x128xf32>
    %663 = arith.maximumf %659, %662 : vector<24x128xf32>
    %c3_331 = arith.constant 3 : index
    %c0_332 = arith.constant 0 : index
    %c0_333 = arith.constant 0 : index
    %664 = vector.load %arg22[%c3_331, %c0_332, %c0_333] : memref<10x24x72xbf16, #tpu.memory_space<vmem>>, vector<1x24x72xbf16>
    %665 = vector.shape_cast %664 : vector<1x24x72xbf16> to vector<24x72xbf16>
    %666 = arith.truncf %663 : vector<24x128xf32> to vector<24x128xbf16>
    %667 = tpu.iota {dimensions = array<i32: 1>} : vector<24x128xi32>
    %c16_i32_334 = arith.constant 16 : i32
    %668 = tpu.dynamic_rotate %663 by %c16_i32_334 dim 1 : vector<24x128xf32>, i32 -> vector<24x128xf32>
    %c16_i32_335 = arith.constant 16 : i32
    %669 = vector.broadcast %c16_i32_335 : i32 to vector<24x128xi32>
    %670 = arith.cmpi sge, %667, %669 : vector<24x128xi32>
    %cst_336 = arith.constant 0.000000e+00 : f32
    %671 = vector.broadcast %cst_336 : f32 to vector<24x128xf32>
    %672 = arith.select %670, %668, %671 : vector<24x128xi1>, vector<24x128xf32>
    %673 = arith.truncf %672 : vector<24x128xf32> to vector<24x128xbf16>
    %c112_i32_337 = arith.constant 112 : i32
    %674 = tpu.dynamic_rotate %663 by %c112_i32_337 dim 1 : vector<24x128xf32>, i32 -> vector<24x128xf32>
    %c112_i32_338 = arith.constant 112 : i32
    %675 = vector.broadcast %c112_i32_338 : i32 to vector<24x128xi32>
    %676 = arith.cmpi slt, %667, %675 : vector<24x128xi32>
    %cst_339 = arith.constant 0.000000e+00 : f32
    %677 = vector.broadcast %cst_339 : f32 to vector<24x128xf32>
    %678 = arith.select %676, %674, %677 : vector<24x128xi1>, vector<24x128xf32>
    %679 = arith.truncf %678 : vector<24x128xf32> to vector<24x128xbf16>
    %680 = tpu.concatenate %673, %666, %679 in 0 : vector<24x128xbf16>, vector<24x128xbf16>, vector<24x128xbf16> -> vector<72x128xbf16>
    %cst_340 = arith.constant dense<0.000000e+00> : vector<24x128xf32>
    %681 = tpu.matmul %665, %680, %cst_340 {dimension_numbers = #tpu.dot_dimension_numbers<[1], [0], [0], [1], [0, 0, 1, 1], [], []>} : vector<24x72xbf16>, vector<72x128xbf16>, vector<24x128xf32> -> vector<24x128xf32>
    %c3_341 = arith.constant 3 : index
    %c0_342 = arith.constant 0 : index
    %c0_343 = arith.constant 0 : index
    %682 = vector.load %arg23[%c3_341, %c0_342, %c0_343] : memref<10x24x1xf32, #tpu.memory_space<vmem>>, vector<1x24x1xf32>
    %683 = vector.shape_cast %682 : vector<1x24x1xf32> to vector<24x1xf32>
    %684 = vector.broadcast %683 : vector<24x1xf32> to vector<24x128xf32>
    %685 = arith.addf %681, %684 : vector<24x128xf32>
    %686 = arith.addf %660, %685 : vector<24x128xf32>
    %cst_344 = arith.constant 2.000000e-01 : f32
    %687 = vector.broadcast %cst_344 : f32 to vector<24x128xf32>
    %688 = arith.mulf %687, %685 : vector<24x128xf32>
    %689 = arith.maximumf %685, %688 : vector<24x128xf32>
    %c4_345 = arith.constant 4 : index
    %c0_346 = arith.constant 0 : index
    %c0_347 = arith.constant 0 : index
    %690 = vector.load %arg22[%c4_345, %c0_346, %c0_347] : memref<10x24x72xbf16, #tpu.memory_space<vmem>>, vector<1x24x72xbf16>
    %691 = vector.shape_cast %690 : vector<1x24x72xbf16> to vector<24x72xbf16>
    %692 = arith.truncf %689 : vector<24x128xf32> to vector<24x128xbf16>
    %693 = tpu.iota {dimensions = array<i32: 1>} : vector<24x128xi32>
    %c32_i32_348 = arith.constant 32 : i32
    %694 = tpu.dynamic_rotate %689 by %c32_i32_348 dim 1 : vector<24x128xf32>, i32 -> vector<24x128xf32>
    %c32_i32_349 = arith.constant 32 : i32
    %695 = vector.broadcast %c32_i32_349 : i32 to vector<24x128xi32>
    %696 = arith.cmpi sge, %693, %695 : vector<24x128xi32>
    %cst_350 = arith.constant 0.000000e+00 : f32
    %697 = vector.broadcast %cst_350 : f32 to vector<24x128xf32>
    %698 = arith.select %696, %694, %697 : vector<24x128xi1>, vector<24x128xf32>
    %699 = arith.truncf %698 : vector<24x128xf32> to vector<24x128xbf16>
    %c96_i32_351 = arith.constant 96 : i32
    %700 = tpu.dynamic_rotate %689 by %c96_i32_351 dim 1 : vector<24x128xf32>, i32 -> vector<24x128xf32>
    %c96_i32_352 = arith.constant 96 : i32
    %701 = vector.broadcast %c96_i32_352 : i32 to vector<24x128xi32>
    %702 = arith.cmpi slt, %693, %701 : vector<24x128xi32>
    %cst_353 = arith.constant 0.000000e+00 : f32
    %703 = vector.broadcast %cst_353 : f32 to vector<24x128xf32>
    %704 = arith.select %702, %700, %703 : vector<24x128xi1>, vector<24x128xf32>
    %705 = arith.truncf %704 : vector<24x128xf32> to vector<24x128xbf16>
    %706 = tpu.concatenate %699, %692, %705 in 0 : vector<24x128xbf16>, vector<24x128xbf16>, vector<24x128xbf16> -> vector<72x128xbf16>
    %cst_354 = arith.constant dense<0.000000e+00> : vector<24x128xf32>
    %707 = tpu.matmul %691, %706, %cst_354 {dimension_numbers = #tpu.dot_dimension_numbers<[1], [0], [0], [1], [0, 0, 1, 1], [], []>} : vector<24x72xbf16>, vector<72x128xbf16>, vector<24x128xf32> -> vector<24x128xf32>
    %c4_355 = arith.constant 4 : index
    %c0_356 = arith.constant 0 : index
    %c0_357 = arith.constant 0 : index
    %708 = vector.load %arg23[%c4_355, %c0_356, %c0_357] : memref<10x24x1xf32, #tpu.memory_space<vmem>>, vector<1x24x1xf32>
    %709 = vector.shape_cast %708 : vector<1x24x1xf32> to vector<24x1xf32>
    %710 = vector.broadcast %709 : vector<24x1xf32> to vector<24x128xf32>
    %711 = arith.addf %707, %710 : vector<24x128xf32>
    %712 = arith.addf %686, %711 : vector<24x128xf32>
    %cst_358 = arith.constant 2.000000e-01 : f32
    %713 = vector.broadcast %cst_358 : f32 to vector<24x128xf32>
    %714 = arith.mulf %713, %711 : vector<24x128xf32>
    %715 = arith.maximumf %711, %714 : vector<24x128xf32>
    %c5_359 = arith.constant 5 : index
    %c0_360 = arith.constant 0 : index
    %c0_361 = arith.constant 0 : index
    %716 = vector.load %arg22[%c5_359, %c0_360, %c0_361] : memref<10x24x72xbf16, #tpu.memory_space<vmem>>, vector<1x24x72xbf16>
    %717 = vector.shape_cast %716 : vector<1x24x72xbf16> to vector<24x72xbf16>
    %718 = arith.truncf %715 : vector<24x128xf32> to vector<24x128xbf16>
    %719 = tpu.iota {dimensions = array<i32: 1>} : vector<24x128xi32>
    %c64_i32_362 = arith.constant 64 : i32
    %720 = tpu.dynamic_rotate %715 by %c64_i32_362 dim 1 : vector<24x128xf32>, i32 -> vector<24x128xf32>
    %c64_i32_363 = arith.constant 64 : i32
    %721 = vector.broadcast %c64_i32_363 : i32 to vector<24x128xi32>
    %722 = arith.cmpi sge, %719, %721 : vector<24x128xi32>
    %cst_364 = arith.constant 0.000000e+00 : f32
    %723 = vector.broadcast %cst_364 : f32 to vector<24x128xf32>
    %724 = arith.select %722, %720, %723 : vector<24x128xi1>, vector<24x128xf32>
    %725 = arith.truncf %724 : vector<24x128xf32> to vector<24x128xbf16>
    %c64_i32_365 = arith.constant 64 : i32
    %726 = tpu.dynamic_rotate %715 by %c64_i32_365 dim 1 : vector<24x128xf32>, i32 -> vector<24x128xf32>
    %c64_i32_366 = arith.constant 64 : i32
    %727 = vector.broadcast %c64_i32_366 : i32 to vector<24x128xi32>
    %728 = arith.cmpi slt, %719, %727 : vector<24x128xi32>
    %cst_367 = arith.constant 0.000000e+00 : f32
    %729 = vector.broadcast %cst_367 : f32 to vector<24x128xf32>
    %730 = arith.select %728, %726, %729 : vector<24x128xi1>, vector<24x128xf32>
    %731 = arith.truncf %730 : vector<24x128xf32> to vector<24x128xbf16>
    %732 = tpu.concatenate %725, %718, %731 in 0 : vector<24x128xbf16>, vector<24x128xbf16>, vector<24x128xbf16> -> vector<72x128xbf16>
    %cst_368 = arith.constant dense<0.000000e+00> : vector<24x128xf32>
    %733 = tpu.matmul %717, %732, %cst_368 {dimension_numbers = #tpu.dot_dimension_numbers<[1], [0], [0], [1], [0, 0, 1, 1], [], []>} : vector<24x72xbf16>, vector<72x128xbf16>, vector<24x128xf32> -> vector<24x128xf32>
    %c5_369 = arith.constant 5 : index
    %c0_370 = arith.constant 0 : index
    %c0_371 = arith.constant 0 : index
    %734 = vector.load %arg23[%c5_369, %c0_370, %c0_371] : memref<10x24x1xf32, #tpu.memory_space<vmem>>, vector<1x24x1xf32>
    %735 = vector.shape_cast %734 : vector<1x24x1xf32> to vector<24x1xf32>
    %736 = vector.broadcast %735 : vector<24x1xf32> to vector<24x128xf32>
    %737 = arith.addf %733, %736 : vector<24x128xf32>
    %738 = arith.addf %712, %737 : vector<24x128xf32>
    %cst_372 = arith.constant 2.000000e-01 : f32
    %739 = vector.broadcast %cst_372 : f32 to vector<24x128xf32>
    %740 = arith.mulf %739, %737 : vector<24x128xf32>
    %741 = arith.maximumf %737, %740 : vector<24x128xf32>
    %c6_373 = arith.constant 6 : index
    %c0_374 = arith.constant 0 : index
    %c0_375 = arith.constant 0 : index
    %742 = vector.load %arg22[%c6_373, %c0_374, %c0_375] : memref<10x24x72xbf16, #tpu.memory_space<vmem>>, vector<1x24x72xbf16>
    %743 = vector.shape_cast %742 : vector<1x24x72xbf16> to vector<24x72xbf16>
    %744 = arith.truncf %741 : vector<24x128xf32> to vector<24x128xbf16>
    %745 = vector.extract_strided_slice %743 {offsets = [0, 24], sizes = [24, 24], strides = [1, 1]} : vector<24x72xbf16> to vector<24x24xbf16>
    %cst_376 = arith.constant dense<0.000000e+00> : vector<24x128xf32>
    %746 = tpu.matmul %745, %744, %cst_376 {dimension_numbers = #tpu.dot_dimension_numbers<[1], [0], [0], [1], [0, 0, 1, 1], [], []>} : vector<24x24xbf16>, vector<24x128xbf16>, vector<24x128xf32> -> vector<24x128xf32>
    %c6_377 = arith.constant 6 : index
    %c0_378 = arith.constant 0 : index
    %c0_379 = arith.constant 0 : index
    %747 = vector.load %arg23[%c6_377, %c0_378, %c0_379] : memref<10x24x1xf32, #tpu.memory_space<vmem>>, vector<1x24x1xf32>
    %748 = vector.shape_cast %747 : vector<1x24x1xf32> to vector<24x1xf32>
    %749 = vector.broadcast %748 : vector<24x1xf32> to vector<24x128xf32>
    %750 = arith.addf %746, %749 : vector<24x128xf32>
    %751 = arith.addf %738, %750 : vector<24x128xf32>
    %cst_380 = arith.constant 2.000000e-01 : f32
    %752 = vector.broadcast %cst_380 : f32 to vector<24x128xf32>
    %753 = arith.mulf %752, %750 : vector<24x128xf32>
    %754 = arith.maximumf %750, %753 : vector<24x128xf32>
    %c7_381 = arith.constant 7 : index
    %c0_382 = arith.constant 0 : index
    %c0_383 = arith.constant 0 : index
    %755 = vector.load %arg22[%c7_381, %c0_382, %c0_383] : memref<10x24x72xbf16, #tpu.memory_space<vmem>>, vector<1x24x72xbf16>
    %756 = vector.shape_cast %755 : vector<1x24x72xbf16> to vector<24x72xbf16>
    %757 = arith.truncf %754 : vector<24x128xf32> to vector<24x128xbf16>
    %758 = vector.extract_strided_slice %756 {offsets = [0, 24], sizes = [24, 24], strides = [1, 1]} : vector<24x72xbf16> to vector<24x24xbf16>
    %cst_384 = arith.constant dense<0.000000e+00> : vector<24x128xf32>
    %759 = tpu.matmul %758, %757, %cst_384 {dimension_numbers = #tpu.dot_dimension_numbers<[1], [0], [0], [1], [0, 0, 1, 1], [], []>} : vector<24x24xbf16>, vector<24x128xbf16>, vector<24x128xf32> -> vector<24x128xf32>
    %c7_385 = arith.constant 7 : index
    %c0_386 = arith.constant 0 : index
    %c0_387 = arith.constant 0 : index
    %760 = vector.load %arg23[%c7_385, %c0_386, %c0_387] : memref<10x24x1xf32, #tpu.memory_space<vmem>>, vector<1x24x1xf32>
    %761 = vector.shape_cast %760 : vector<1x24x1xf32> to vector<24x1xf32>
    %762 = vector.broadcast %761 : vector<24x1xf32> to vector<24x128xf32>
    %763 = arith.addf %759, %762 : vector<24x128xf32>
    %764 = arith.addf %751, %763 : vector<24x128xf32>
    %cst_388 = arith.constant 2.000000e-01 : f32
    %765 = vector.broadcast %cst_388 : f32 to vector<24x128xf32>
    %766 = arith.mulf %765, %763 : vector<24x128xf32>
    %767 = arith.maximumf %763, %766 : vector<24x128xf32>
    %c8_389 = arith.constant 8 : index
    %c0_390 = arith.constant 0 : index
    %c0_391 = arith.constant 0 : index
    %768 = vector.load %arg22[%c8_389, %c0_390, %c0_391] : memref<10x24x72xbf16, #tpu.memory_space<vmem>>, vector<1x24x72xbf16>
    %769 = vector.shape_cast %768 : vector<1x24x72xbf16> to vector<24x72xbf16>
    %770 = arith.truncf %767 : vector<24x128xf32> to vector<24x128xbf16>
    %771 = vector.extract_strided_slice %769 {offsets = [0, 24], sizes = [24, 24], strides = [1, 1]} : vector<24x72xbf16> to vector<24x24xbf16>
    %cst_392 = arith.constant dense<0.000000e+00> : vector<24x128xf32>
    %772 = tpu.matmul %771, %770, %cst_392 {dimension_numbers = #tpu.dot_dimension_numbers<[1], [0], [0], [1], [0, 0, 1, 1], [], []>} : vector<24x24xbf16>, vector<24x128xbf16>, vector<24x128xf32> -> vector<24x128xf32>
    %c8_393 = arith.constant 8 : index
    %c0_394 = arith.constant 0 : index
    %c0_395 = arith.constant 0 : index
    %773 = vector.load %arg23[%c8_393, %c0_394, %c0_395] : memref<10x24x1xf32, #tpu.memory_space<vmem>>, vector<1x24x1xf32>
    %774 = vector.shape_cast %773 : vector<1x24x1xf32> to vector<24x1xf32>
    %775 = vector.broadcast %774 : vector<24x1xf32> to vector<24x128xf32>
    %776 = arith.addf %772, %775 : vector<24x128xf32>
    %777 = arith.addf %764, %776 : vector<24x128xf32>
    %cst_396 = arith.constant 2.000000e-01 : f32
    %778 = vector.broadcast %cst_396 : f32 to vector<24x128xf32>
    %779 = arith.mulf %778, %776 : vector<24x128xf32>
    %780 = arith.maximumf %776, %779 : vector<24x128xf32>
    %c9_397 = arith.constant 9 : index
    %c0_398 = arith.constant 0 : index
    %c0_399 = arith.constant 0 : index
    %781 = vector.load %arg22[%c9_397, %c0_398, %c0_399] : memref<10x24x72xbf16, #tpu.memory_space<vmem>>, vector<1x24x72xbf16>
    %782 = vector.shape_cast %781 : vector<1x24x72xbf16> to vector<24x72xbf16>
    %783 = arith.truncf %780 : vector<24x128xf32> to vector<24x128xbf16>
    %784 = vector.extract_strided_slice %782 {offsets = [0, 24], sizes = [24, 24], strides = [1, 1]} : vector<24x72xbf16> to vector<24x24xbf16>
    %cst_400 = arith.constant dense<0.000000e+00> : vector<24x128xf32>
    %785 = tpu.matmul %784, %783, %cst_400 {dimension_numbers = #tpu.dot_dimension_numbers<[1], [0], [0], [1], [0, 0, 1, 1], [], []>} : vector<24x24xbf16>, vector<24x128xbf16>, vector<24x128xf32> -> vector<24x128xf32>
    %c9_401 = arith.constant 9 : index
    %c0_402 = arith.constant 0 : index
    %c0_403 = arith.constant 0 : index
    %786 = vector.load %arg23[%c9_401, %c0_402, %c0_403] : memref<10x24x1xf32, #tpu.memory_space<vmem>>, vector<1x24x1xf32>
    %787 = vector.shape_cast %786 : vector<1x24x1xf32> to vector<24x1xf32>
    %788 = vector.broadcast %787 : vector<24x1xf32> to vector<24x128xf32>
    %789 = arith.addf %785, %788 : vector<24x128xf32>
    %790 = arith.addf %777, %789 : vector<24x128xf32>
    %cst_404 = arith.constant 2.000000e-01 : f32
    %791 = vector.broadcast %cst_404 : f32 to vector<24x128xf32>
    %792 = arith.mulf %791, %790 : vector<24x128xf32>
    %793 = arith.maximumf %790, %792 : vector<24x128xf32>
    %c0_405 = arith.constant 0 : index
    %c0_406 = arith.constant 0 : index
    %794 = vector.load %arg27[%c0_405, %c0_406] : memref<24x128xf32, #tpu.memory_space<vmem>>, vector<24x128xf32>
    %795 = arith.mulf %793, %794 : vector<24x128xf32>
    %cst_407 = arith.constant dense<0.000000e+00> : vector<24xf32>
    %796 = vector.multi_reduction <add>, %795, %cst_407 [1] : vector<24x128xf32> to vector<24xf32>
    %797 = vector.shape_cast %796 : vector<24xf32> to vector<24x1xf32>
    %cst_408 = arith.constant dense<0.000000e+00> : vector<1xf32>
    %798 = vector.multi_reduction <add>, %797, %cst_408 [0] : vector<24x1xf32> to vector<1xf32>
    %799 = vector.shape_cast %798 : vector<1xf32> to vector<1x1xf32>
    %c0_409 = arith.constant 0 : index
    %c0_410 = arith.constant 0 : index
    %800 = vector.load %arg28[%c0_409, %c0_410] : memref<1x1xf32, #tpu.memory_space<vmem>>, vector<1x1xf32>
    %801 = arith.addf %799, %800 : vector<1x1xf32>
    %802 = vector.shape_cast %801 : vector<1x1xf32> to vector<1x1x1xf32>
    %c0_411 = arith.constant 0 : index
    %c0_412 = arith.constant 0 : index
    %c0_413 = arith.constant 0 : index
    %803 = vector.load %arg29[%c0_411, %c0_412, %c0_413] : memref<1x1x1xf32, #tpu.memory_space<vmem>>, vector<1x1x1xf32>
    tpu.vector_store %arg29[%c0_411, %c0_412, %c0_413], %802 {strides = array<i32>} : memref<1x1x1xf32, #tpu.memory_space<vmem>>, vector<1x1x1xf32>,
    return
  }
  func.func @transform_0(%arg0: i32) -> (i32, i32, i32) {
    %c0_i32 = arith.constant 0 : i32
    %c0_i32_0 = arith.constant 0 : i32
    %c0_i32_1 = arith.constant 0 : i32
    return %arg0, %c0_i32, %c0_i32_0 : i32, i32, i32
  }
  func.func @transform_1(%arg0: i32) -> (i32, i32, i32) {
    %c0_i32 = arith.constant 0 : i32
    %c0_i32_0 = arith.constant 0 : i32
    %c0_i32_1 = arith.constant 0 : i32
    return %arg0, %c0_i32, %c0_i32_0 : i32, i32, i32
  }
  func.func @transform_2(%arg0: i32) -> (i32, i32) {
    %c0_i32 = arith.constant 0 : i32
    %c0_i32_0 = arith.constant 0 : i32
    %c0_i32_1 = arith.constant 0 : i32
    return %c0_i32, %c0_i32_0 : i32, i32
  }
  func.func @transform_3(%arg0: i32) -> (i32, i32) {
    %c0_i32 = arith.constant 0 : i32
    %c0_i32_0 = arith.constant 0 : i32
    %c0_i32_1 = arith.constant 0 : i32
    return %c0_i32, %c0_i32_0 : i32, i32
  }
  func.func @transform_4(%arg0: i32) -> (i32, i32) {
    %c0_i32 = arith.constant 0 : i32
    %c0_i32_0 = arith.constant 0 : i32
    %c0_i32_1 = arith.constant 0 : i32
    return %c0_i32, %c0_i32_0 : i32, i32
  }
  func.func @transform_5(%arg0: i32) -> (i32, i32) {
    %c0_i32 = arith.constant 0 : i32
    %c0_i32_0 = arith.constant 0 : i32
    %c0_i32_1 = arith.constant 0 : i32
    return %c0_i32, %c0_i32_0 : i32, i32
  }
  func.func @transform_6(%arg0: i32) -> (i32, i32) {
    %c0_i32 = arith.constant 0 : i32
    %c0_i32_0 = arith.constant 0 : i32
    %c0_i32_1 = arith.constant 0 : i32
    return %c0_i32, %c0_i32_0 : i32, i32
  }
  func.func @transform_7(%arg0: i32) -> (i32, i32) {
    %c0_i32 = arith.constant 0 : i32
    %c0_i32_0 = arith.constant 0 : i32
    %c0_i32_1 = arith.constant 0 : i32
    return %c0_i32, %c0_i32_0 : i32, i32
  }
  func.func @transform_8(%arg0: i32) -> (i32, i32, i32) {
    %c0_i32 = arith.constant 0 : i32
    %c0_i32_0 = arith.constant 0 : i32
    %c0_i32_1 = arith.constant 0 : i32
    %c0_i32_2 = arith.constant 0 : i32
    return %c0_i32, %c0_i32_0, %c0_i32_1 : i32, i32, i32
  }
  func.func @transform_9(%arg0: i32) -> (i32, i32, i32) {
    %c0_i32 = arith.constant 0 : i32
    %c0_i32_0 = arith.constant 0 : i32
    %c0_i32_1 = arith.constant 0 : i32
    %c0_i32_2 = arith.constant 0 : i32
    return %c0_i32, %c0_i32_0, %c0_i32_1 : i32, i32, i32
  }
  func.func @transform_10(%arg0: i32) -> (i32, i32) {
    %c0_i32 = arith.constant 0 : i32
    %c0_i32_0 = arith.constant 0 : i32
    %c0_i32_1 = arith.constant 0 : i32
    return %c0_i32, %c0_i32_0 : i32, i32
  }
  func.func @transform_11(%arg0: i32) -> (i32, i32) {
    %c0_i32 = arith.constant 0 : i32
    %c0_i32_0 = arith.constant 0 : i32
    %c0_i32_1 = arith.constant 0 : i32
    return %c0_i32, %c0_i32_0 : i32, i32
  }
  func.func @transform_12(%arg0: i32) -> (i32, i32) {
    %c0_i32 = arith.constant 0 : i32
    %c0_i32_0 = arith.constant 0 : i32
    %c0_i32_1 = arith.constant 0 : i32
    return %c0_i32, %c0_i32_0 : i32, i32
  }
  func.func @transform_13(%arg0: i32) -> (i32, i32) {
    %c0_i32 = arith.constant 0 : i32
    %c0_i32_0 = arith.constant 0 : i32
    %c0_i32_1 = arith.constant 0 : i32
    return %c0_i32, %c0_i32_0 : i32, i32
  }
  func.func @transform_14(%arg0: i32) -> (i32, i32, i32) {
    %c0_i32 = arith.constant 0 : i32
    %c0_i32_0 = arith.constant 0 : i32
    %c0_i32_1 = arith.constant 0 : i32
    %c0_i32_2 = arith.constant 0 : i32
    return %c0_i32, %c0_i32_0, %c0_i32_1 : i32, i32, i32
  }
  func.func @transform_15(%arg0: i32) -> (i32, i32, i32) {
    %c0_i32 = arith.constant 0 : i32
    %c0_i32_0 = arith.constant 0 : i32
    %c0_i32_1 = arith.constant 0 : i32
    %c0_i32_2 = arith.constant 0 : i32
    return %c0_i32, %c0_i32_0, %c0_i32_1 : i32, i32, i32
  }
  func.func @transform_16(%arg0: i32) -> (i32, i32) {
    %c0_i32 = arith.constant 0 : i32
    %c0_i32_0 = arith.constant 0 : i32
    %c0_i32_1 = arith.constant 0 : i32
    return %c0_i32, %c0_i32_0 : i32, i32
  }
  func.func @transform_17(%arg0: i32) -> (i32, i32) {
    %c0_i32 = arith.constant 0 : i32
    %c0_i32_0 = arith.constant 0 : i32
    %c0_i32_1 = arith.constant 0 : i32
    return %c0_i32, %c0_i32_0 : i32, i32
  }
  func.func @transform_18(%arg0: i32) -> (i32, i32) {
    %c0_i32 = arith.constant 0 : i32
    %c0_i32_0 = arith.constant 0 : i32
    %c0_i32_1 = arith.constant 0 : i32
    return %c0_i32, %c0_i32_0 : i32, i32
  }
  func.func @transform_19(%arg0: i32) -> (i32, i32) {
    %c0_i32 = arith.constant 0 : i32
    %c0_i32_0 = arith.constant 0 : i32
    %c0_i32_1 = arith.constant 0 : i32
    return %c0_i32, %c0_i32_0 : i32, i32
  }
  func.func @transform_20(%arg0: i32) -> (i32, i32) {
    %c0_i32 = arith.constant 0 : i32
    %c0_i32_0 = arith.constant 0 : i32
    %c0_i32_1 = arith.constant 0 : i32
    return %c0_i32, %c0_i32_0 : i32, i32
  }
  func.func @transform_21(%arg0: i32) -> (i32, i32, i32) {
    %c0_i32 = arith.constant 0 : i32
    %c0_i32_0 = arith.constant 0 : i32
    %c0_i32_1 = arith.constant 0 : i32
    %c0_i32_2 = arith.constant 0 : i32
    return %c0_i32, %c0_i32_0, %c0_i32_1 : i32, i32, i32
  }
  func.func @transform_22(%arg0: i32) -> (i32, i32, i32) {
    %c0_i32 = arith.constant 0 : i32
    %c0_i32_0 = arith.constant 0 : i32
    %c0_i32_1 = arith.constant 0 : i32
    %c0_i32_2 = arith.constant 0 : i32
    return %c0_i32, %c0_i32_0, %c0_i32_1 : i32, i32, i32
  }
  func.func @transform_23(%arg0: i32) -> (i32, i32) {
    %c0_i32 = arith.constant 0 : i32
    %c0_i32_0 = arith.constant 0 : i32
    %c0_i32_1 = arith.constant 0 : i32
    return %c0_i32, %c0_i32_0 : i32, i32
  }
  func.func @transform_24(%arg0: i32) -> (i32, i32) {
    %c0_i32 = arith.constant 0 : i32
    %c0_i32_0 = arith.constant 0 : i32
    %c0_i32_1 = arith.constant 0 : i32
    return %c0_i32, %c0_i32_0 : i32, i32
  }
  func.func @transform_25(%arg0: i32) -> (i32, i32) {
    %c0_i32 = arith.constant 0 : i32
    %c0_i32_0 = arith.constant 0 : i32
    %c0_i32_1 = arith.constant 0 : i32
    return %c0_i32, %c0_i32_0 : i32, i32
  }
  func.func @transform_26(%arg0: i32) -> (i32, i32) {
    %c0_i32 = arith.constant 0 : i32
    %c0_i32_0 = arith.constant 0 : i32
    %c0_i32_1 = arith.constant 0 : i32
    return %c0_i32, %c0_i32_0 : i32, i32
  }
  func.func @transform_27(%arg0: i32) -> (i32, i32) {
    %c0_i32 = arith.constant 0 : i32
    %c0_i32_0 = arith.constant 0 : i32
    %c0_i32_1 = arith.constant 0 : i32
    return %c0_i32, %c0_i32_0 : i32, i32
  }
  func.func @transform_28(%arg0: i32) -> (i32, i32, i32) {
    %c0_i32 = arith.constant 0 : i32
    %c0_i32_0 = arith.constant 0 : i32
    %c0_i32_1 = arith.constant 0 : i32
    return %arg0, %c0_i32, %c0_i32_0 : i32, i32, i32
  }
}

</mosaic_0001>

<llo_original>
// kernel: tpu_custom_call.1
$region0: #{tpu_custom_call.1}
  #allocation0 [shape = 'u32[]', space=smem, size = 0x4, offset = 0x4, fixed_abs, tag = 'smem constant byte address 0x4 - core index']
  #allocation1 [shape = 'u32[72,128]{1,0:T(1,128)}', space=vmem, size = 0x9000, scoped, tag = 'internal scratch']
  #allocation2 [shape = 'f32[1,1]{1,0:T(1,128)S(1)}', space=vmem, size = 0x200, scoped, tag = 'scoped memory for tpu_custom_call.1']
  %s0 = inlined_call_operand.vmem [shape: f32[2,3,128], index: 0, kind: input, shape index: {}]
  %s1 = inlined_call_operand.vmem [shape: f32[2,2,128], index: 1, kind: input, shape index: {}]
  %s2 = inlined_call_operand.vmem [shape: bf16[4,34], index: 2, kind: input, shape index: {}]
  %s3 = inlined_call_operand.vmem [shape: f32[4,1], index: 3, kind: input, shape index: {}]
  %s4 = inlined_call_operand.vmem [shape: bf16[4,51], index: 4, kind: input, shape index: {}]
  %s5 = inlined_call_operand.vmem [shape: f32[4,1], index: 5, kind: input, shape index: {}]
  %s6 = inlined_call_operand.vmem [shape: bf16[8,12], index: 6, kind: input, shape index: {}]
  %s7 = inlined_call_operand.vmem [shape: f32[8,1], index: 7, kind: input, shape index: {}]
  %s8 = inlined_call_operand.vmem [shape: bf16[10,8,24], index: 8, kind: input, shape index: {}]
  %s9 = inlined_call_operand.vmem [shape: f32[10,8,1], index: 9, kind: input, shape index: {}]
  %s10 = inlined_call_operand.vmem [shape: bf16[8,4], index: 10, kind: input, shape index: {}]
  %s11 = inlined_call_operand.vmem [shape: f32[8,1], index: 11, kind: input, shape index: {}]
  %s12 = inlined_call_operand.vmem [shape: bf16[8,12], index: 12, kind: input, shape index: {}]
  %s13 = inlined_call_operand.vmem [shape: f32[8,1], index: 13, kind: input, shape index: {}]
  %s14 = inlined_call_operand.vmem [shape: bf16[10,8,24], index: 14, kind: input, shape index: {}]
  %s15 = inlined_call_operand.vmem [shape: f32[10,8,1], index: 15, kind: input, shape index: {}]
  %s16 = inlined_call_operand.vmem [shape: bf16[8,4], index: 16, kind: input, shape index: {}]
  %s17 = inlined_call_operand.vmem [shape: f32[8,1], index: 17, kind: input, shape index: {}]
  %s18 = inlined_call_operand.vmem [shape: bf16[24,24], index: 18, kind: input, shape index: {}]
  %s19 = inlined_call_operand.vmem [shape: bf16[24,24], index: 19, kind: input, shape index: {}]
  %s20 = inlined_call_operand.vmem [shape: f32[24,1], index: 20, kind: input, shape index: {}]
  %s21 = inlined_call_operand.vmem [shape: bf16[10,24,72], index: 21, kind: input, shape index: {}]
  %s22 = inlined_call_operand.vmem [shape: f32[10,24,1], index: 22, kind: input, shape index: {}]
  %s23 = inlined_call_operand.vmem [shape: bf16[24,8], index: 23, kind: input, shape index: {}]
  %s24 = inlined_call_operand.vmem [shape: bf16[24,8], index: 24, kind: input, shape index: {}]
  %s25 = inlined_call_operand.vmem [shape: f32[24,1], index: 25, kind: input, shape index: {}]
  %s26 = inlined_call_operand.vmem [shape: f32[24,128], index: 26, kind: input, shape index: {}]
  %s27 = inlined_call_operand.<no memory space> [shape: f32[1,1], index: 27, kind: input, shape index: {}]
  %s28 = inlined_call_operand.vmem [shape: f32[2,1,1], index: 28, kind: output, shape index: {}]
  %s29 = sld [smem:[#allocation0]]
  $region145: #{tpu_custom_call.1} parent=0
    _
  %s31 = ssub.s32 1, %s29
  %s32 = scalar_select 0, %s31, %s29
  %v33 = vstv %s27
  %34 = vst [vmem:[#allocation2] sm:$0x1] %v33
  loop: start=0, step=1, limit=4
  $region2: #{tpu_custom_call.1} parent=0 // loop_pre_header
    _
  $region3: #{tpu_custom_call.1} parent=0 // loop_header
    %s36 = sphi 0, %s40
    %p37 = scmp.ge.s32.totalorder %s36, 4
    %s46 = sphi 0, %s48
    %s49 = sphi 0, %s46
    %s50 = sphi 0, %s49
    %s66 = sphi 0, %s50
    %s72 = sphi 0, %s74
    %s75 = sphi 0, %s72
    %s76 = sphi 0, %s75
    %s92 = sphi 0, %s76
    %s96 = sphi 0, %s96
    %s98 = sphi 0, %s96
    %s99 = sphi 0, %s98
    %s113 = sphi 0, %s99
    %s117 = sphi 0, %s117
    %s119 = sphi 0, %s117
    %s120 = sphi 0, %s119
    %s134 = sphi 0, %s120
    %s138 = sphi 0, %s138
    %s140 = sphi 0, %s138
    %s141 = sphi 0, %s140
    %s155 = sphi 0, %s141
    %s159 = sphi 0, %s159
    %s161 = sphi 0, %s159
    %s162 = sphi 0, %s161
    %s176 = sphi 0, %s162
    %s180 = sphi 0, %s180
    %s182 = sphi 0, %s180
    %s183 = sphi 0, %s182
    %s197 = sphi 0, %s183
    %s201 = sphi 0, %s201
    %s203 = sphi 0, %s201
    %s204 = sphi 0, %s203
    %s218 = sphi 0, %s204
    %s222 = sphi 0, %s222
    %s224 = sphi 0, %s222
    %s225 = sphi 0, %s224
    %s239 = sphi 0, %s225
    %s243 = sphi 0, %s243
    %s245 = sphi 0, %s243
    %s246 = sphi 0, %s245
    %s260 = sphi 0, %s246
    %s264 = sphi 0, %s264
    %s266 = sphi 0, %s264
    %s267 = sphi 0, %s266
    %s281 = sphi 0, %s267
    %s285 = sphi 0, %s285
    %s287 = sphi 0, %s285
    %s288 = sphi 0, %s287
    %s302 = sphi 0, %s288
    %s306 = sphi 0, %s306
    %s308 = sphi 0, %s306
    %s309 = sphi 0, %s308
    %s323 = sphi 0, %s309
    %s327 = sphi 0, %s327
    %s329 = sphi 0, %s327
    %s330 = sphi 0, %s329
    %s344 = sphi 0, %s330
    %s348 = sphi 0, %s348
    %s350 = sphi 0, %s348
    %s351 = sphi 0, %s350
    %s365 = sphi 0, %s351
    %s369 = sphi 0, %s369
    %s371 = sphi 0, %s369
    %s372 = sphi 0, %s371
    %s386 = sphi 0, %s372
    %s390 = sphi 0, %s390
    %s392 = sphi 0, %s390
    %s393 = sphi 0, %s392
    %s407 = sphi 0, %s393
    %s411 = sphi 0, %s411
    %s413 = sphi 0, %s411
    %s414 = sphi 0, %s413
    %s428 = sphi 0, %s414
    %s432 = sphi 0, %s432
    %s434 = sphi 0, %s432
    %s435 = sphi 0, %s434
    %s449 = sphi 0, %s435
    %s453 = sphi 0, %s453
    %s455 = sphi 0, %s453
    %s456 = sphi 0, %s455
    %s470 = sphi 0, %s456
    %s474 = sphi 0, %s474
    %s476 = sphi 0, %s474
    %s477 = sphi 0, %s476
    %s491 = sphi 0, %s477
    %s495 = sphi 0, %s495
    %s497 = sphi 0, %s495
    %s498 = sphi 0, %s497
    %s512 = sphi 0, %s498
    %s516 = sphi 0, %s516
    %s518 = sphi 0, %s516
    %s519 = sphi 0, %s518
    %s533 = sphi 0, %s519
    %s537 = sphi 0, %s537
    %s539 = sphi 0, %s537
    %s540 = sphi 0, %s539
    %s554 = sphi 0, %s540
    %s558 = sphi 0, %s558
    %s560 = sphi 0, %s558
    %s561 = sphi 0, %s560
    %s575 = sphi 0, %s561
    %s579 = sphi 0, %s579
    %s581 = sphi 0, %s579
    %s582 = sphi 0, %s581
    %s596 = sphi 0, %s582
    %s600 = sphi 0, %s600
    %s602 = sphi 0, %s600
    %s603 = sphi 0, %s602
    %s617 = sphi 0, %s603
    %s621 = sphi 0, %s621
    %s623 = sphi 0, %s621
    %s624 = sphi 0, %s623
    %s638 = sphi 0, %s624
    %s644 = sphi 0, %s646
    %s647 = sphi 0, %s644
    %s648 = sphi 0, %s647
    %s664 = sphi 0, %s648
  $region4: #{tpu_custom_call.1} parent=0 // loop_header_branch
    %39 = sbr.rel (%p37) target = $region8
  $region5: #{tpu_custom_call.1} parent=0 // loop_body
    %s41 = ssub.s32 %s36, 1
    %s42 = ssub.s32 %s36, 2
    %s43 = sadd.s32 %s36, 1
    %s44 = ssub.s32 %s36, %s43
    %p45 = scmp.eq.s32.totalorder %s44, 0
    %s47 = sadd.s32 %s46, 1
    %s48 = scalar_select %p45, %s46, %s47
    %p51 = pneg %p45
    %p52 = scmp.eq.s32.totalorder %s36, 1
    %p53 = por %p51, %p52
    %p54 = scmp.ne.s32.totalorder %s46, %s49
    %p55 = scmp.eq.s32.totalorder %s36, 0
    %p56 = por %p54, %p55
    %p57 = scmp.ne.s32.totalorder %s46, %s49
    %p58 = scmp.eq.s32.totalorder %s41, 1
    %p59 = por %p57, %p58
    %p60 = scmp.ne.s32.totalorder %s49, %s50
    %p61 = scmp.eq.s32.totalorder %s41, 0
    %p62 = por %p60, %p61
    %p63 = scmp.ne.s32.totalorder %s49, %s50
    %p64 = scmp.eq.s32.totalorder %s42, 1
    %p65 = por %p63, %p64
    %p67 = scmp.ne.s32.totalorder %s50, %s66
    %p68 = scmp.eq.s32.totalorder %s42, 0
    %p69 = por %p67, %p68
    %s70 = ssub.s32 %s36, %s43
    %p71 = scmp.eq.s32.totalorder %s70, 0
    %s73 = sadd.s32 %s72, 1
    %s74 = scalar_select %p71, %s72, %s73
    %p77 = pneg %p71
    %p78 = scmp.eq.s32.totalorder %s36, 1
    %p79 = por %p77, %p78
    %p80 = scmp.ne.s32.totalorder %s72, %s75
    %p81 = scmp.eq.s32.totalorder %s36, 0
    %p82 = por %p80, %p81
    %p83 = scmp.ne.s32.totalorder %s72, %s75
    %p84 = scmp.eq.s32.totalorder %s41, 1
    %p85 = por %p83, %p84
    %p86 = scmp.ne.s32.totalorder %s75, %s76
    %p87 = scmp.eq.s32.totalorder %s41, 0
    %p88 = por %p86, %p87
    %p89 = scmp.ne.s32.totalorder %s75, %s76
    %p90 = scmp.eq.s32.totalorder %s42, 1
    %p91 = por %p89, %p90
    %p93 = scmp.ne.s32.totalorder %s76, %s92
    %p94 = scmp.eq.s32.totalorder %s42, 0
    %p95 = por %p93, %p94
    %s97 = sadd.s32 %s96, 1
    %p100 = scmp.eq.s32.totalorder %s36, 1
    %p101 = scmp.ne.s32.totalorder %s96, %s98
    %p102 = scmp.eq.s32.totalorder %s36, 0
    %p103 = por %p101, %p102
    %p104 = scmp.ne.s32.totalorder %s96, %s98
    %p105 = scmp.eq.s32.totalorder %s41, 1
    %p106 = por %p104, %p105
    %p107 = scmp.ne.s32.totalorder %s98, %s99
    %p108 = scmp.eq.s32.totalorder %s41, 0
    %p109 = por %p107, %p108
    %p110 = scmp.ne.s32.totalorder %s98, %s99
    %p111 = scmp.eq.s32.totalorder %s42, 1
    %p112 = por %p110, %p111
    %p114 = scmp.ne.s32.totalorder %s99, %s113
    %p115 = scmp.eq.s32.totalorder %s42, 0
    %p116 = por %p114, %p115
    %s118 = sadd.s32 %s117, 1
    %p121 = scmp.eq.s32.totalorder %s36, 1
    %p122 = scmp.ne.s32.totalorder %s117, %s119
    %p123 = scmp.eq.s32.totalorder %s36, 0
    %p124 = por %p122, %p123
    %p125 = scmp.ne.s32.totalorder %s117, %s119
    %p126 = scmp.eq.s32.totalorder %s41, 1
    %p127 = por %p125, %p126
    %p128 = scmp.ne.s32.totalorder %s119, %s120
    %p129 = scmp.eq.s32.totalorder %s41, 0
    %p130 = por %p128, %p129
    %p131 = scmp.ne.s32.totalorder %s119, %s120
    %p132 = scmp.eq.s32.totalorder %s42, 1
    %p133 = por %p131, %p132
    %p135 = scmp.ne.s32.totalorder %s120, %s134
    %p136 = scmp.eq.s32.totalorder %s42, 0
    %p137 = por %p135, %p136
    %s139 = sadd.s32 %s138, 1
    %p142 = scmp.eq.s32.totalorder %s36, 1
    %p143 = scmp.ne.s32.totalorder %s138, %s140
    %p144 = scmp.eq.s32.totalorder %s36, 0
    %p145 = por %p143, %p144
    %p146 = scmp.ne.s32.totalorder %s138, %s140
    %p147 = scmp.eq.s32.totalorder %s41, 1
    %p148 = por %p146, %p147
    %p149 = scmp.ne.s32.totalorder %s140, %s141
    %p150 = scmp.eq.s32.totalorder %s41, 0
    %p151 = por %p149, %p150
    %p152 = scmp.ne.s32.totalorder %s140, %s141
    %p153 = scmp.eq.s32.totalorder %s42, 1
    %p154 = por %p152, %p153
    %p156 = scmp.ne.s32.totalorder %s141, %s155
    %p157 = scmp.eq.s32.totalorder %s42, 0
    %p158 = por %p156, %p157
    %s160 = sadd.s32 %s159, 1
    %p163 = scmp.eq.s32.totalorder %s36, 1
    %p164 = scmp.ne.s32.totalorder %s159, %s161
    %p165 = scmp.eq.s32.totalorder %s36, 0
    %p166 = por %p164, %p165
    %p167 = scmp.ne.s32.totalorder %s159, %s161
    %p168 = scmp.eq.s32.totalorder %s41, 1
    %p169 = por %p167, %p168
    %p170 = scmp.ne.s32.totalorder %s161, %s162
    %p171 = scmp.eq.s32.totalorder %s41, 0
    %p172 = por %p170, %p171
    %p173 = scmp.ne.s32.totalorder %s161, %s162
    %p174 = scmp.eq.s32.totalorder %s42, 1
    %p175 = por %p173, %p174
    %p177 = scmp.ne.s32.totalorder %s162, %s176
    %p178 = scmp.eq.s32.totalorder %s42, 0
    %p179 = por %p177, %p178
    %s181 = sadd.s32 %s180, 1
    %p184 = scmp.eq.s32.totalorder %s36, 1
    %p185 = scmp.ne.s32.totalorder %s180, %s182
    %p186 = scmp.eq.s32.totalorder %s36, 0
    %p187 = por %p185, %p186
    %p188 = scmp.ne.s32.totalorder %s180, %s182
    %p189 = scmp.eq.s32.totalorder %s41, 1
    %p190 = por %p188, %p189
    %p191 = scmp.ne.s32.totalorder %s182, %s183
    %p192 = scmp.eq.s32.totalorder %s41, 0
    %p193 = por %p191, %p192
    %p194 = scmp.ne.s32.totalorder %s182, %s183
    %p195 = scmp.eq.s32.totalorder %s42, 1
    %p196 = por %p194, %p195
    %p198 = scmp.ne.s32.totalorder %s183, %s197
    %p199 = scmp.eq.s32.totalorder %s42, 0
    %p200 = por %p198, %p199
    %s202 = sadd.s32 %s201, 1
    %p205 = scmp.eq.s32.totalorder %s36, 1
    %p206 = scmp.ne.s32.totalorder %s201, %s203
    %p207 = scmp.eq.s32.totalorder %s36, 0
    %p208 = por %p206, %p207
    %p209 = scmp.ne.s32.totalorder %s201, %s203
    %p210 = scmp.eq.s32.totalorder %s41, 1
    %p211 = por %p209, %p210
    %p212 = scmp.ne.s32.totalorder %s203, %s204
    %p213 = scmp.eq.s32.totalorder %s41, 0
    %p214 = por %p212, %p213
    %p215 = scmp.ne.s32.totalorder %s203, %s204
    %p216 = scmp.eq.s32.totalorder %s42, 1
    %p217 = por %p215, %p216
    %p219 = scmp.ne.s32.totalorder %s204, %s218
    %p220 = scmp.eq.s32.totalorder %s42, 0
    %p221 = por %p219, %p220
    %s223 = sadd.s32 %s222, 1
    %p226 = scmp.eq.s32.totalorder %s36, 1
    %p227 = scmp.ne.s32.totalorder %s222, %s224
    %p228 = scmp.eq.s32.totalorder %s36, 0
    %p229 = por %p227, %p228
    %p230 = scmp.ne.s32.totalorder %s222, %s224
    %p231 = scmp.eq.s32.totalorder %s41, 1
    %p232 = por %p230, %p231
    %p233 = scmp.ne.s32.totalorder %s224, %s225
    %p234 = scmp.eq.s32.totalorder %s41, 0
    %p235 = por %p233, %p234
    %p236 = scmp.ne.s32.totalorder %s224, %s225
    %p237 = scmp.eq.s32.totalorder %s42, 1
    %p238 = por %p236, %p237
    %p240 = scmp.ne.s32.totalorder %s225, %s239
    %p241 = scmp.eq.s32.totalorder %s42, 0
    %p242 = por %p240, %p241
    %s244 = sadd.s32 %s243, 1
    %p247 = scmp.eq.s32.totalorder %s36, 1
    %p248 = scmp.ne.s32.totalorder %s243, %s245
    %p249 = scmp.eq.s32.totalorder %s36, 0
    %p250 = por %p248, %p249
    %p251 = scmp.ne.s32.totalorder %s243, %s245
    %p252 = scmp.eq.s32.totalorder %s41, 1
    %p253 = por %p251, %p252
    %p254 = scmp.ne.s32.totalorder %s245, %s246
    %p255 = scmp.eq.s32.totalorder %s41, 0
    %p256 = por %p254, %p255
    %p257 = scmp.ne.s32.totalorder %s245, %s246
    %p258 = scmp.eq.s32.totalorder %s42, 1
    %p259 = por %p257, %p258
    %p261 = scmp.ne.s32.totalorder %s246, %s260
    %p262 = scmp.eq.s32.totalorder %s42, 0
    %p263 = por %p261, %p262
    %s265 = sadd.s32 %s264, 1
    %p268 = scmp.eq.s32.totalorder %s36, 1
    %p269 = scmp.ne.s32.totalorder %s264, %s266
    %p270 = scmp.eq.s32.totalorder %s36, 0
    %p271 = por %p269, %p270
    %p272 = scmp.ne.s32.totalorder %s264, %s266
    %p273 = scmp.eq.s32.totalorder %s41, 1
    %p274 = por %p272, %p273
    %p275 = scmp.ne.s32.totalorder %s266, %s267
    %p276 = scmp.eq.s32.totalorder %s41, 0
    %p277 = por %p275, %p276
    %p278 = scmp.ne.s32.totalorder %s266, %s267
    %p279 = scmp.eq.s32.totalorder %s42, 1
    %p280 = por %p278, %p279
    %p282 = scmp.ne.s32.totalorder %s267, %s281
    %p283 = scmp.eq.s32.totalorder %s42, 0
    %p284 = por %p282, %p283
    %s286 = sadd.s32 %s285, 1
    %p289 = scmp.eq.s32.totalorder %s36, 1
    %p290 = scmp.ne.s32.totalorder %s285, %s287
    %p291 = scmp.eq.s32.totalorder %s36, 0
    %p292 = por %p290, %p291
    %p293 = scmp.ne.s32.totalorder %s285, %s287
    %p294 = scmp.eq.s32.totalorder %s41, 1
    %p295 = por %p293, %p294
    %p296 = scmp.ne.s32.totalorder %s287, %s288
    %p297 = scmp.eq.s32.totalorder %s41, 0
    %p298 = por %p296, %p297
    %p299 = scmp.ne.s32.totalorder %s287, %s288
    %p300 = scmp.eq.s32.totalorder %s42, 1
    %p301 = por %p299, %p300
    %p303 = scmp.ne.s32.totalorder %s288, %s302
    %p304 = scmp.eq.s32.totalorder %s42, 0
    %p305 = por %p303, %p304
    %s307 = sadd.s32 %s306, 1
    %p310 = scmp.eq.s32.totalorder %s36, 1
    %p311 = scmp.ne.s32.totalorder %s306, %s308
    %p312 = scmp.eq.s32.totalorder %s36, 0
    %p313 = por %p311, %p312
    %p314 = scmp.ne.s32.totalorder %s306, %s308
    %p315 = scmp.eq.s32.totalorder %s41, 1
    %p316 = por %p314, %p315
    %p317 = scmp.ne.s32.totalorder %s308, %s309
    %p318 = scmp.eq.s32.totalorder %s41, 0
    %p319 = por %p317, %p318
    %p320 = scmp.ne.s32.totalorder %s308, %s309
    %p321 = scmp.eq.s32.totalorder %s42, 1
    %p322 = por %p320, %p321
    %p324 = scmp.ne.s32.totalorder %s309, %s323
    %p325 = scmp.eq.s32.totalorder %s42, 0
    %p326 = por %p324, %p325
    %s328 = sadd.s32 %s327, 1
    %p331 = scmp.eq.s32.totalorder %s36, 1
    %p332 = scmp.ne.s32.totalorder %s327, %s329
    %p333 = scmp.eq.s32.totalorder %s36, 0
    %p334 = por %p332, %p333
    %p335 = scmp.ne.s32.totalorder %s327, %s329
    %p336 = scmp.eq.s32.totalorder %s41, 1
    %p337 = por %p335, %p336
    %p338 = scmp.ne.s32.totalorder %s329, %s330
    %p339 = scmp.eq.s32.totalorder %s41, 0
    %p340 = por %p338, %p339
    %p341 = scmp.ne.s32.totalorder %s329, %s330
    %p342 = scmp.eq.s32.totalorder %s42, 1
    %p343 = por %p341, %p342
    %p345 = scmp.ne.s32.totalorder %s330, %s344
    %p346 = scmp.eq.s32.totalorder %s42, 0
    %p347 = por %p345, %p346
    %s349 = sadd.s32 %s348, 1
    %p352 = scmp.eq.s32.totalorder %s36, 1
    %p353 = scmp.ne.s32.totalorder %s348, %s350
    %p354 = scmp.eq.s32.totalorder %s36, 0
    %p355 = por %p353, %p354
    %p356 = scmp.ne.s32.totalorder %s348, %s350
    %p357 = scmp.eq.s32.totalorder %s41, 1
    %p358 = por %p356, %p357
    %p359 = scmp.ne.s32.totalorder %s350, %s351
    %p360 = scmp.eq.s32.totalorder %s41, 0
    %p361 = por %p359, %p360
    %p362 = scmp.ne.s32.totalorder %s350, %s351
    %p363 = scmp.eq.s32.totalorder %s42, 1
    %p364 = por %p362, %p363
    %p366 = scmp.ne.s32.totalorder %s351, %s365
    %p367 = scmp.eq.s32.totalorder %s42, 0
    %p368 = por %p366, %p367
    %s370 = sadd.s32 %s369, 1
    %p373 = scmp.eq.s32.totalorder %s36, 1
    %p374 = scmp.ne.s32.totalorder %s369, %s371
    %p375 = scmp.eq.s32.totalorder %s36, 0
    %p376 = por %p374, %p375
    %p377 = scmp.ne.s32.totalorder %s369, %s371
    %p378 = scmp.eq.s32.totalorder %s41, 1
    %p379 = por %p377, %p378
    %p380 = scmp.ne.s32.totalorder %s371, %s372
    %p381 = scmp.eq.s32.totalorder %s41, 0
    %p382 = por %p380, %p381
    %p383 = scmp.ne.s32.totalorder %s371, %s372
    %p384 = scmp.eq.s32.totalorder %s42, 1
    %p385 = por %p383, %p384
    %p387 = scmp.ne.s32.totalorder %s372, %s386
    %p388 = scmp.eq.s32.totalorder %s42, 0
    %p389 = por %p387, %p388
    %s391 = sadd.s32 %s390, 1
    %p394 = scmp.eq.s32.totalorder %s36, 1
    %p395 = scmp.ne.s32.totalorder %s390, %s392
    %p396 = scmp.eq.s32.totalorder %s36, 0
    %p397 = por %p395, %p396
    %p398 = scmp.ne.s32.totalorder %s390, %s392
    %p399 = scmp.eq.s32.totalorder %s41, 1
    %p400 = por %p398, %p399
    %p401 = scmp.ne.s32.totalorder %s392, %s393
    %p402 = scmp.eq.s32.totalorder %s41, 0
    %p403 = por %p401, %p402
    %p404 = scmp.ne.s32.totalorder %s392, %s393
    %p405 = scmp.eq.s32.totalorder %s42, 1
    %p406 = por %p404, %p405
    %p408 = scmp.ne.s32.totalorder %s393, %s407
    %p409 = scmp.eq.s32.totalorder %s42, 0
    %p410 = por %p408, %p409
    %s412 = sadd.s32 %s411, 1
    %p415 = scmp.eq.s32.totalorder %s36, 1
    %p416 = scmp.ne.s32.totalorder %s411, %s413
    %p417 = scmp.eq.s32.totalorder %s36, 0
    %p418 = por %p416, %p417
    %p419 = scmp.ne.s32.totalorder %s411, %s413
    %p420 = scmp.eq.s32.totalorder %s41, 1
    %p421 = por %p419, %p420
    %p422 = scmp.ne.s32.totalorder %s413, %s414
    %p423 = scmp.eq.s32.totalorder %s41, 0
    %p424 = por %p422, %p423
    %p425 = scmp.ne.s32.totalorder %s413, %s414
    %p426 = scmp.eq.s32.totalorder %s42, 1
    %p427 = por %p425, %p426
    %p429 = scmp.ne.s32.totalorder %s414, %s428
    %p430 = scmp.eq.s32.totalorder %s42, 0
    %p431 = por %p429, %p430
    %s433 = sadd.s32 %s432, 1
    %p436 = scmp.eq.s32.totalorder %s36, 1
    %p437 = scmp.ne.s32.totalorder %s432, %s434
    %p438 = scmp.eq.s32.totalorder %s36, 0
    %p439 = por %p437, %p438
    %p440 = scmp.ne.s32.totalorder %s432, %s434
    %p441 = scmp.eq.s32.totalorder %s41, 1
    %p442 = por %p440, %p441
    %p443 = scmp.ne.s32.totalorder %s434, %s435
    %p444 = scmp.eq.s32.totalorder %s41, 0
    %p445 = por %p443, %p444
    %p446 = scmp.ne.s32.totalorder %s434, %s435
    %p447 = scmp.eq.s32.totalorder %s42, 1
    %p448 = por %p446, %p447
    %p450 = scmp.ne.s32.totalorder %s435, %s449
    %p451 = scmp.eq.s32.totalorder %s42, 0
    %p452 = por %p450, %p451
    %s454 = sadd.s32 %s453, 1
    %p457 = scmp.eq.s32.totalorder %s36, 1
    %p458 = scmp.ne.s32.totalorder %s453, %s455
    %p459 = scmp.eq.s32.totalorder %s36, 0
    %p460 = por %p458, %p459
    %p461 = scmp.ne.s32.totalorder %s453, %s455
    %p462 = scmp.eq.s32.totalorder %s41, 1
    %p463 = por %p461, %p462
    %p464 = scmp.ne.s32.totalorder %s455, %s456
    %p465 = scmp.eq.s32.totalorder %s41, 0
    %p466 = por %p464, %p465
    %p467 = scmp.ne.s32.totalorder %s455, %s456
    %p468 = scmp.eq.s32.totalorder %s42, 1
    %p469 = por %p467, %p468
    %p471 = scmp.ne.s32.totalorder %s456, %s470
    %p472 = scmp.eq.s32.totalorder %s42, 0
    %p473 = por %p471, %p472
    %s475 = sadd.s32 %s474, 1
    %p478 = scmp.eq.s32.totalorder %s36, 1
    %p479 = scmp.ne.s32.totalorder %s474, %s476
    %p480 = scmp.eq.s32.totalorder %s36, 0
    %p481 = por %p479, %p480
    %p482 = scmp.ne.s32.totalorder %s474, %s476
    %p483 = scmp.eq.s32.totalorder %s41, 1
    %p484 = por %p482, %p483
    %p485 = scmp.ne.s32.totalorder %s476, %s477
    %p486 = scmp.eq.s32.totalorder %s41, 0
    %p487 = por %p485, %p486
    %p488 = scmp.ne.s32.totalorder %s476, %s477
    %p489 = scmp.eq.s32.totalorder %s42, 1
    %p490 = por %p488, %p489
    %p492 = scmp.ne.s32.totalorder %s477, %s491
    %p493 = scmp.eq.s32.totalorder %s42, 0
    %p494 = por %p492, %p493
    %s496 = sadd.s32 %s495, 1
    %p499 = scmp.eq.s32.totalorder %s36, 1
    %p500 = scmp.ne.s32.totalorder %s495, %s497
    %p501 = scmp.eq.s32.totalorder %s36, 0
    %p502 = por %p500, %p501
    %p503 = scmp.ne.s32.totalorder %s495, %s497
    %p504 = scmp.eq.s32.totalorder %s41, 1
    %p505 = por %p503, %p504
    %p506 = scmp.ne.s32.totalorder %s497, %s498
    %p507 = scmp.eq.s32.totalorder %s41, 0
    %p508 = por %p506, %p507
    %p509 = scmp.ne.s32.totalorder %s497, %s498
    %p510 = scmp.eq.s32.totalorder %s42, 1
    %p511 = por %p509, %p510
    %p513 = scmp.ne.s32.totalorder %s498, %s512
    %p514 = scmp.eq.s32.totalorder %s42, 0
    %p515 = por %p513, %p514
    %s517 = sadd.s32 %s516, 1
    %p520 = scmp.eq.s32.totalorder %s36, 1
    %p521 = scmp.ne.s32.totalorder %s516, %s518
    %p522 = scmp.eq.s32.totalorder %s36, 0
    %p523 = por %p521, %p522
    %p524 = scmp.ne.s32.totalorder %s516, %s518
    %p525 = scmp.eq.s32.totalorder %s41, 1
    %p526 = por %p524, %p525
    %p527 = scmp.ne.s32.totalorder %s518, %s519
    %p528 = scmp.eq.s32.totalorder %s41, 0
    %p529 = por %p527, %p528
    %p530 = scmp.ne.s32.totalorder %s518, %s519
    %p531 = scmp.eq.s32.totalorder %s42, 1
    %p532 = por %p530, %p531
    %p534 = scmp.ne.s32.totalorder %s519, %s533
    %p535 = scmp.eq.s32.totalorder %s42, 0
    %p536 = por %p534, %p535
    %s538 = sadd.s32 %s537, 1
    %p541 = scmp.eq.s32.totalorder %s36, 1
    %p542 = scmp.ne.s32.totalorder %s537, %s539
    %p543 = scmp.eq.s32.totalorder %s36, 0
    %p544 = por %p542, %p543
    %p545 = scmp.ne.s32.totalorder %s537, %s539
    %p546 = scmp.eq.s32.totalorder %s41, 1
    %p547 = por %p545, %p546
    %p548 = scmp.ne.s32.totalorder %s539, %s540
    %p549 = scmp.eq.s32.totalorder %s41, 0
    %p550 = por %p548, %p549
    %p551 = scmp.ne.s32.totalorder %s539, %s540
    %p552 = scmp.eq.s32.totalorder %s42, 1
    %p553 = por %p551, %p552
    %p555 = scmp.ne.s32.totalorder %s540, %s554
    %p556 = scmp.eq.s32.totalorder %s42, 0
    %p557 = por %p555, %p556
    %s559 = sadd.s32 %s558, 1
    %p562 = scmp.eq.s32.totalorder %s36, 1
    %p563 = scmp.ne.s32.totalorder %s558, %s560
    %p564 = scmp.eq.s32.totalorder %s36, 0
    %p565 = por %p563, %p564
    %p566 = scmp.ne.s32.totalorder %s558, %s560
    %p567 = scmp.eq.s32.totalorder %s41, 1
    %p568 = por %p566, %p567
    %p569 = scmp.ne.s32.totalorder %s560, %s561
    %p570 = scmp.eq.s32.totalorder %s41, 0
    %p571 = por %p569, %p570
    %p572 = scmp.ne.s32.totalorder %s560, %s561
    %p573 = scmp.eq.s32.totalorder %s42, 1
    %p574 = por %p572, %p573
    %p576 = scmp.ne.s32.totalorder %s561, %s575
    %p577 = scmp.eq.s32.totalorder %s42, 0
    %p578 = por %p576, %p577
    %s580 = sadd.s32 %s579, 1
    %p583 = scmp.eq.s32.totalorder %s36, 1
    %p584 = scmp.ne.s32.totalorder %s579, %s581
    %p585 = scmp.eq.s32.totalorder %s36, 0
    %p586 = por %p584, %p585
    %p587 = scmp.ne.s32.totalorder %s579, %s581
    %p588 = scmp.eq.s32.totalorder %s41, 1
    %p589 = por %p587, %p588
    %p590 = scmp.ne.s32.totalorder %s581, %s582
    %p591 = scmp.eq.s32.totalorder %s41, 0
    %p592 = por %p590, %p591
    %p593 = scmp.ne.s32.totalorder %s581, %s582
    %p594 = scmp.eq.s32.totalorder %s42, 1
    %p595 = por %p593, %p594
    %p597 = scmp.ne.s32.totalorder %s582, %s596
    %p598 = scmp.eq.s32.totalorder %s42, 0
    %p599 = por %p597, %p598
    %s601 = sadd.s32 %s600, 1
    %p604 = scmp.eq.s32.totalorder %s36, 1
    %p605 = scmp.ne.s32.totalorder %s600, %s602
    %p606 = scmp.eq.s32.totalorder %s36, 0
    %p607 = por %p605, %p606
    %p608 = scmp.ne.s32.totalorder %s600, %s602
    %p609 = scmp.eq.s32.totalorder %s41, 1
    %p610 = por %p608, %p609
    %p611 = scmp.ne.s32.totalorder %s602, %s603
    %p612 = scmp.eq.s32.totalorder %s41, 0
    %p613 = por %p611, %p612
    %p614 = scmp.ne.s32.totalorder %s602, %s603
    %p615 = scmp.eq.s32.totalorder %s42, 1
    %p616 = por %p614, %p615
    %p618 = scmp.ne.s32.totalorder %s603, %s617
    %p619 = scmp.eq.s32.totalorder %s42, 0
    %p620 = por %p618, %p619
    %s622 = sadd.s32 %s621, 1
    %p625 = scmp.eq.s32.totalorder %s36, 1
    %p626 = scmp.ne.s32.totalorder %s621, %s623
    %p627 = scmp.eq.s32.totalorder %s36, 0
    %p628 = por %p626, %p627
    %p629 = scmp.ne.s32.totalorder %s621, %s623
    %p630 = scmp.eq.s32.totalorder %s41, 1
    %p631 = por %p629, %p630
    %p632 = scmp.ne.s32.totalorder %s623, %s624
    %p633 = scmp.eq.s32.totalorder %s41, 0
    %p634 = por %p632, %p633
    %p635 = scmp.ne.s32.totalorder %s623, %s624
    %p636 = scmp.eq.s32.totalorder %s42, 1
    %p637 = por %p635, %p636
    %p639 = scmp.ne.s32.totalorder %s624, %s638
    %p640 = scmp.eq.s32.totalorder %s42, 0
    %p641 = por %p639, %p640
    %s642 = ssub.s32 %s36, %s43
    %p643 = scmp.eq.s32.totalorder %s642, 0
    %s645 = sadd.s32 %s644, 1
    %s646 = scalar_select %p643, %s644, %s645
    %p649 = pneg %p643
    %p650 = scmp.eq.s32.totalorder %s36, 1
    %p651 = por %p649, %p650
    %p652 = scmp.ne.s32.totalorder %s644, %s647
    %p653 = scmp.eq.s32.totalorder %s36, 0
    %p654 = por %p652, %p653
    %p655 = scmp.ne.s32.totalorder %s644, %s647
    %p656 = scmp.eq.s32.totalorder %s41, 1
    %p657 = por %p655, %p656
    %p658 = scmp.ne.s32.totalorder %s647, %s648
    %p659 = scmp.eq.s32.totalorder %s41, 0
    %p660 = por %p658, %p659
    %p661 = scmp.ne.s32.totalorder %s647, %s648
    %p662 = scmp.eq.s32.totalorder %s42, 1
    %p663 = por %p661, %p662
    %p665 = scmp.ne.s32.totalorder %s648, %s664
    %p666 = scmp.eq.s32.totalorder %s42, 0
    %p667 = por %p665, %p666
    %p668 = scmp.le.s32.totalorder 1, %s36
    %p669 = scmp.lt.s32.totalorder %s36, 3
    %p670 = pnand %p668, %p669
    %p671 = pneg %p670
    // Predicated region
    $region9: #{tpu_custom_call.1} parent=5 // pred_check
      _
    $region10: #{tpu_custom_call.1} parent=5 // pred_check_branch
      %673 = sbr.rel (%p670) target = $region12
    $region11: #{tpu_custom_call.1} parent=5 // pred_region
      %s674 = ssub.s32 %s36, 1
      // Predicated region
      $region13: #{tpu_custom_call.1} parent=11 // pred_check
        %p675 = pneg %p109
      $region14: #{tpu_custom_call.1} parent=11 // pred_check_branch
        %677 = sbr.rel (%p675) target = $region16
      $region15: #{tpu_custom_call.1} parent=11 // pred_region
        _
      $region16: #{tpu_custom_call.1} parent=11 // pred_fallthru
        _
      // Predicated region
      $region17: #{tpu_custom_call.1} parent=11 // pred_check
        %p678 = pneg %p130
      $region18: #{tpu_custom_call.1} parent=11 // pred_check_branch
        %680 = sbr.rel (%p678) target = $region20
      $region19: #{tpu_custom_call.1} parent=11 // pred_region
        _
      $region20: #{tpu_custom_call.1} parent=11 // pred_fallthru
        _
      // Predicated region
      $region21: #{tpu_custom_call.1} parent=11 // pred_check
        %p681 = pneg %p151
      $region22: #{tpu_custom_call.1} parent=11 // pred_check_branch
        %683 = sbr.rel (%p681) target = $region24
      $region23: #{tpu_custom_call.1} parent=11 // pred_region
        _
      $region24: #{tpu_custom_call.1} parent=11 // pred_fallthru
        _
      // Predicated region
      $region25: #{tpu_custom_call.1} parent=11 // pred_check
        %p684 = pneg %p172
      $region26: #{tpu_custom_call.1} parent=11 // pred_check_branch
        %686 = sbr.rel (%p684) target = $region28
      $region27: #{tpu_custom_call.1} parent=11 // pred_region
        _
      $region28: #{tpu_custom_call.1} parent=11 // pred_fallthru
        _
      // Predicated region
      $region29: #{tpu_custom_call.1} parent=11 // pred_check
        %p687 = pneg %p193
      $region30: #{tpu_custom_call.1} parent=11 // pred_check_branch
        %689 = sbr.rel (%p687) target = $region32
      $region31: #{tpu_custom_call.1} parent=11 // pred_region
        _
      $region32: #{tpu_custom_call.1} parent=11 // pred_fallthru
        _
      // Predicated region
      $region33: #{tpu_custom_call.1} parent=11 // pred_check
        %p690 = pneg %p214
      $region34: #{tpu_custom_call.1} parent=11 // pred_check_branch
        %692 = sbr.rel (%p690) target = $region36
      $region35: #{tpu_custom_call.1} parent=11 // pred_region
        _
      $region36: #{tpu_custom_call.1} parent=11 // pred_fallthru
        _
      // Predicated region
      $region37: #{tpu_custom_call.1} parent=11 // pred_check
        %p693 = pneg %p235
      $region38: #{tpu_custom_call.1} parent=11 // pred_check_branch
        %695 = sbr.rel (%p693) target = $region40
      $region39: #{tpu_custom_call.1} parent=11 // pred_region
        _
      $region40: #{tpu_custom_call.1} parent=11 // pred_fallthru
        _
      // Predicated region
      $region41: #{tpu_custom_call.1} parent=11 // pred_check
        %p696 = pneg %p256
      $region42: #{tpu_custom_call.1} parent=11 // pred_check_branch
        %698 = sbr.rel (%p696) target = $region44
      $region43: #{tpu_custom_call.1} parent=11 // pred_region
        _
      $region44: #{tpu_custom_call.1} parent=11 // pred_fallthru
        _
      // Predicated region
      $region45: #{tpu_custom_call.1} parent=11 // pred_check
        %p699 = pneg %p277
      $region46: #{tpu_custom_call.1} parent=11 // pred_check_branch
        %701 = sbr.rel (%p699) target = $region48
      $region47: #{tpu_custom_call.1} parent=11 // pred_region
        _
      $region48: #{tpu_custom_call.1} parent=11 // pred_fallthru
        _
      // Predicated region
      $region49: #{tpu_custom_call.1} parent=11 // pred_check
        %p702 = pneg %p298
      $region50: #{tpu_custom_call.1} parent=11 // pred_check_branch
        %704 = sbr.rel (%p702) target = $region52
      $region51: #{tpu_custom_call.1} parent=11 // pred_region
        _
      $region52: #{tpu_custom_call.1} parent=11 // pred_fallthru
        _
      // Predicated region
      $region53: #{tpu_custom_call.1} parent=11 // pred_check
        %p705 = pneg %p319
      $region54: #{tpu_custom_call.1} parent=11 // pred_check_branch
        %707 = sbr.rel (%p705) target = $region56
      $region55: #{tpu_custom_call.1} parent=11 // pred_region
        _
      $region56: #{tpu_custom_call.1} parent=11 // pred_fallthru
        _
      // Predicated region
      $region57: #{tpu_custom_call.1} parent=11 // pred_check
        %p708 = pneg %p340
      $region58: #{tpu_custom_call.1} parent=11 // pred_check_branch
        %710 = sbr.rel (%p708) target = $region60
      $region59: #{tpu_custom_call.1} parent=11 // pred_region
        _
      $region60: #{tpu_custom_call.1} parent=11 // pred_fallthru
        _
      // Predicated region
      $region61: #{tpu_custom_call.1} parent=11 // pred_check
        %p711 = pneg %p361
      $region62: #{tpu_custom_call.1} parent=11 // pred_check_branch
        %713 = sbr.rel (%p711) target = $region64
      $region63: #{tpu_custom_call.1} parent=11 // pred_region
        _
      $region64: #{tpu_custom_call.1} parent=11 // pred_fallthru
        _
      // Predicated region
      $region65: #{tpu_custom_call.1} parent=11 // pred_check
        %p714 = pneg %p382
      $region66: #{tpu_custom_call.1} parent=11 // pred_check_branch
        %716 = sbr.rel (%p714) target = $region68
      $region67: #{tpu_custom_call.1} parent=11 // pred_region
        _
      $region68: #{tpu_custom_call.1} parent=11 // pred_fallthru
        _
      // Predicated region
      $region69: #{tpu_custom_call.1} parent=11 // pred_check
        %p717 = pneg %p403
      $region70: #{tpu_custom_call.1} parent=11 // pred_check_branch
        %719 = sbr.rel (%p717) target = $region72
      $region71: #{tpu_custom_call.1} parent=11 // pred_region
        _
      $region72: #{tpu_custom_call.1} parent=11 // pred_fallthru
        _
      // Predicated region
      $region73: #{tpu_custom_call.1} parent=11 // pred_check
        %p720 = pneg %p424
      $region74: #{tpu_custom_call.1} parent=11 // pred_check_branch
        %722 = sbr.rel (%p720) target = $region76
      $region75: #{tpu_custom_call.1} parent=11 // pred_region
        _
      $region76: #{tpu_custom_call.1} parent=11 // pred_fallthru
        _
      // Predicated region
      $region77: #{tpu_custom_call.1} parent=11 // pred_check
        %p723 = pneg %p445
      $region78: #{tpu_custom_call.1} parent=11 // pred_check_branch
        %725 = sbr.rel (%p723) target = $region80
      $region79: #{tpu_custom_call.1} parent=11 // pred_region
        _
      $region80: #{tpu_custom_call.1} parent=11 // pred_fallthru
        _
      // Predicated region
      $region81: #{tpu_custom_call.1} parent=11 // pred_check
        %p726 = pneg %p466
      $region82: #{tpu_custom_call.1} parent=11 // pred_check_branch
        %728 = sbr.rel (%p726) target = $region84
      $region83: #{tpu_custom_call.1} parent=11 // pred_region
        _
      $region84: #{tpu_custom_call.1} parent=11 // pred_fallthru
        _
      // Predicated region
      $region85: #{tpu_custom_call.1} parent=11 // pred_check
        %p729 = pneg %p487
      $region86: #{tpu_custom_call.1} parent=11 // pred_check_branch
        %731 = sbr.rel (%p729) target = $region88
      $region87: #{tpu_custom_call.1} parent=11 // pred_region
        _
      $region88: #{tpu_custom_call.1} parent=11 // pred_fallthru
        _
      // Predicated region
      $region89: #{tpu_custom_call.1} parent=11 // pred_check
        %p732 = pneg %p508
      $region90: #{tpu_custom_call.1} parent=11 // pred_check_branch
        %734 = sbr.rel (%p732) target = $region92
      $region91: #{tpu_custom_call.1} parent=11 // pred_region
        _
      $region92: #{tpu_custom_call.1} parent=11 // pred_fallthru
        _
      // Predicated region
      $region93: #{tpu_custom_call.1} parent=11 // pred_check
        %p735 = pneg %p529
      $region94: #{tpu_custom_call.1} parent=11 // pred_check_branch
        %737 = sbr.rel (%p735) target = $region96
      $region95: #{tpu_custom_call.1} parent=11 // pred_region
        _
      $region96: #{tpu_custom_call.1} parent=11 // pred_fallthru
        _
      // Predicated region
      $region97: #{tpu_custom_call.1} parent=11 // pred_check
        %p738 = pneg %p550
      $region98: #{tpu_custom_call.1} parent=11 // pred_check_branch
        %740 = sbr.rel (%p738) target = $region100
      $region99: #{tpu_custom_call.1} parent=11 // pred_region
        _
      $region100: #{tpu_custom_call.1} parent=11 // pred_fallthru
        _
      // Predicated region
      $region101: #{tpu_custom_call.1} parent=11 // pred_check
        %p741 = pneg %p571
      $region102: #{tpu_custom_call.1} parent=11 // pred_check_branch
        %743 = sbr.rel (%p741) target = $region104
      $region103: #{tpu_custom_call.1} parent=11 // pred_region
        _
      $region104: #{tpu_custom_call.1} parent=11 // pred_fallthru
        _
      // Predicated region
      $region105: #{tpu_custom_call.1} parent=11 // pred_check
        %p744 = pneg %p592
      $region106: #{tpu_custom_call.1} parent=11 // pred_check_branch
        %746 = sbr.rel (%p744) target = $region108
      $region107: #{tpu_custom_call.1} parent=11 // pred_region
        _
      $region108: #{tpu_custom_call.1} parent=11 // pred_fallthru
        _
      // Predicated region
      $region109: #{tpu_custom_call.1} parent=11 // pred_check
        %p747 = pneg %p613
      $region110: #{tpu_custom_call.1} parent=11 // pred_check_branch
        %749 = sbr.rel (%p747) target = $region112
      $region111: #{tpu_custom_call.1} parent=11 // pred_region
        _
      $region112: #{tpu_custom_call.1} parent=11 // pred_fallthru
        _
      // Predicated region
      $region113: #{tpu_custom_call.1} parent=11 // pred_check
        %p750 = pneg %p634
      $region114: #{tpu_custom_call.1} parent=11 // pred_check_branch
        %752 = sbr.rel (%p750) target = $region116
      $region115: #{tpu_custom_call.1} parent=11 // pred_region
        _
      $region116: #{tpu_custom_call.1} parent=11 // pred_fallthru
        _
    $region12: #{tpu_custom_call.1} parent=5 // pred_fallthru
      _
    %p753 = scmp.lt.s32.totalorder %s36, 2
    // Predicated region
    $region117: #{tpu_custom_call.1} parent=5 // pred_check
      %p754 = pneg %p753
    $region118: #{tpu_custom_call.1} parent=5 // pred_check_branch
      %756 = sbr.rel (%p754) target = $region120
    $region119: #{tpu_custom_call.1} parent=5 // pred_region
      // Predicated region
      $region121: #{tpu_custom_call.1} parent=119 // pred_check
        %p757 = pneg %p56
      $region122: #{tpu_custom_call.1} parent=119 // pred_check_branch
        %759 = sbr.rel (%p757) target = $region124
      $region123: #{tpu_custom_call.1} parent=119 // pred_region
        %p760 = scmp.lt.s32.totalorder %s36, 1
        %s761 = scalar_select %p760, %s36, 1
        %s762 = smul.addr %s761, 4
        %s763 = scalar_lea.vmem %s0, %s762
      $region124: #{tpu_custom_call.1} parent=119 // pred_fallthru
        _
      // Predicated region
      $region125: #{tpu_custom_call.1} parent=119 // pred_check
        %p764 = pneg %p82
      $region126: #{tpu_custom_call.1} parent=119 // pred_check_branch
        %766 = sbr.rel (%p764) target = $region128
      $region127: #{tpu_custom_call.1} parent=119 // pred_region
        %p767 = scmp.lt.s32.totalorder %s36, 1
        %s768 = scalar_select %p767, %s36, 1
        %s769 = smul.addr %s768, 2
        %s770 = scalar_lea.vmem %s1, %s769
      $region128: #{tpu_custom_call.1} parent=119 // pred_fallthru
        _
    $region120: #{tpu_custom_call.1} parent=5 // pred_fallthru
      _
    %p771 = scmp.le.s32.totalorder 1, %s36
    %p772 = scmp.lt.s32.totalorder %s36, 3
    %p773 = pnand %p771, %p772
    %p774 = pneg %p773
    // Predicated region
    $region129: #{tpu_custom_call.1} parent=5 // pred_check
      _
    $region130: #{tpu_custom_call.1} parent=5 // pred_check_branch
      %776 = sbr.rel (%p773) target = $region132
    $region131: #{tpu_custom_call.1} parent=5 // pred_region
      %s777 = ssub.s32 %s36, 1
      %p778 = scmp.lt.s32.totalorder %s41, 1
      %s779 = scalar_select %p778, %s41, 1
      %s780 = smul.addr %s779, 4
      %s781 = scalar_lea.vmem %s0, %s780
      %p782 = pneg %p62
      %p783 = pneg %p59
      %p784 = scmp.lt.s32.totalorder %s41, 1
      %s785 = scalar_select %p784, %s41, 1
      %s786 = smul.addr %s785, 2
      %s787 = scalar_lea.vmem %s1, %s786
      %p788 = pneg %p88
      %p789 = pneg %p85
      %p790 = pneg %p109
      %p791 = pneg %p106
      %p792 = pneg %p130
      %p793 = pneg %p127
      %p794 = pneg %p151
      %p795 = pneg %p148
      %p796 = pneg %p172
      %p797 = pneg %p169
      %p798 = pneg %p193
      %p799 = pneg %p190
      %p800 = pneg %p214
      %p801 = pneg %p211
      %p802 = pneg %p235
      %p803 = pneg %p232
      %p804 = pneg %p256
      %p805 = pneg %p253
      %p806 = pneg %p277
      %p807 = pneg %p274
      %p808 = pneg %p298
      %p809 = pneg %p295
      %p810 = pneg %p319
      %p811 = pneg %p316
      %p812 = pneg %p340
      %p813 = pneg %p337
      %p814 = pneg %p361
      %p815 = pneg %p358
      %p816 = pneg %p382
      %p817 = pneg %p379
      %p818 = pneg %p403
      %p819 = pneg %p400
      %p820 = pneg %p424
      %p821 = pneg %p421
      %p822 = pneg %p445
      %p823 = pneg %p442
      %p824 = pneg %p466
      %p825 = pneg %p463
      %p826 = pneg %p487
      %p827 = pneg %p484
      %p828 = pneg %p508
      %p829 = pneg %p505
      %p830 = pneg %p529
      %p831 = pneg %p526
      %p832 = pneg %p550
      %p833 = pneg %p547
      %p834 = pneg %p571
      %p835 = pneg %p568
      %p836 = pneg %p592
      %p837 = pneg %p589
      %p838 = pneg %p613
      %p839 = pneg %p610
      %p840 = pneg %p634
      %p841 = pneg %p631
      %p842 = pneg %p660
      %p843 = pneg %p657
      %p844 = scmp.lt.s32.totalorder %s41, 1
      %s845 = scalar_select %p844, %s41, 1
      %s846 = scalar_lea.vmem %s28, %s845
      %p847 = scmp.lt.s32.totalorder %s41, 1
      %s848 = scalar_select %p847, %s41, 1
      %s849 = smul.addr %s848, 4
      %s850 = scalar_lea.vmem %s0, %s849
      %p851 = scmp.lt.s32.totalorder %s41, 1
      %s852 = scalar_select %p851, %s41, 1
      %s853 = smul.addr %s852, 2
      %s854 = scalar_lea.vmem %s1, %s853
      %p855 = scmp.lt.s32.totalorder %s41, 1
      %s856 = scalar_select %p855, %s41, 1
      %s857 = scalar_lea.vmem %s28, %s856
      %v859 = vld [vmem:[%s850] sm:$0x7]
      %v860 = vld [vmem:[%s854] sm:$0x3]
      %v861 = vld [vmem:[%s2] sm:$0x3]
      %v862 = vpack.c.bf16 %v860, %v860
      %v864 = vunpack.c.l.b16 %v862
      %v865 = vpack.c.b16 %v864, %v864
      %866 = vrot.lane.b32.xlu0 %v865, 8
      %v867 = vpop.permute.xlu0 %866
      %vm868 = vcmask 64512
      %v871 = vsel %vm868, 0, %v867
      %v872 = vsel %vm868, %v867, 0
      %v875 = vrot.slane %v871, 7
      %v876 = vrot.slane %v872, 7
      %877 = vrot.lane.b32.xlu0 %v875, 127
      %v878 = vpop.permute.xlu0 %877
      %879 = vrot.lane.b32.xlu0 %v876, 127
      %v880 = vpop.permute.xlu0 %879
      %vm881 = vcmask 1039360
      %v882 = vsel %vm881, %v878, %v880
      %v883 = vrot.slane %v871, 6
      %v884 = vrot.slane %v872, 6
      %885 = vrot.lane.b32.xlu0 %v883, 126
      %v886 = vpop.permute.xlu0 %885
      %887 = vrot.lane.b32.xlu0 %v884, 126
      %v888 = vpop.permute.xlu0 %887
      %vm889 = vcmask 1031168
      %v890 = vsel %vm889, %v886, %v888
      %v891 = vrot.slane %v871, 5
      %v892 = vrot.slane %v872, 5
      %893 = vrot.lane.b32.xlu0 %v891, 125
      %v894 = vpop.permute.xlu0 %893
      %895 = vrot.lane.b32.xlu0 %v892, 125
      %v896 = vpop.permute.xlu0 %895
      %vm897 = vcmask 1022976
      %v898 = vsel %vm897, %v894, %v896
      %v899 = vrot.slane %v871, 4
      %v900 = vrot.slane %v872, 4
      %901 = vrot.lane.b32.xlu0 %v899, 124
      %v902 = vpop.permute.xlu0 %901
      %903 = vrot.lane.b32.xlu0 %v900, 124
      %v904 = vpop.permute.xlu0 %903
      %vm905 = vcmask 1014784
      %v906 = vsel %vm905, %v902, %v904
      %v907 = vrot.slane %v871, 3
      %v908 = vrot.slane %v872, 3
      %909 = vrot.lane.b32.xlu0 %v907, 123
      %v910 = vpop.permute.xlu0 %909
      %911 = vrot.lane.b32.xlu0 %v908, 123
      %v912 = vpop.permute.xlu0 %911
      %vm913 = vcmask 1006592
      %v914 = vsel %vm913, %v910, %v912
      %v915 = vrot.slane %v871, 2
      %v916 = vrot.slane %v872, 2
      %917 = vrot.lane.b32.xlu0 %v915, 122
      %v918 = vpop.permute.xlu0 %917
      %919 = vrot.lane.b32.xlu0 %v916, 122
      %v920 = vpop.permute.xlu0 %919
      %vm921 = vcmask 998400
      %v922 = vsel %vm921, %v918, %v920
      %v923 = vrot.slane %v871, 1
      %v924 = vrot.slane %v872, 1
      %925 = vrot.lane.b32.xlu0 %v923, 121
      %v926 = vpop.permute.xlu0 %925
      %927 = vrot.lane.b32.xlu0 %v924, 121
      %v928 = vpop.permute.xlu0 %927
      %vm929 = vcmask 990208
      %v930 = vsel %vm929, %v926, %v928
      %931 = vrot.lane.b32.xlu0 %v871, 120
      %v932 = vpop.permute.xlu0 %931
      %933 = vrot.lane.b32.xlu0 %v872, 120
      %v934 = vpop.permute.xlu0 %933
      %vm935 = vcmask 982016
      %v936 = vsel %vm935, %v932, %v934
      %937 = vrot.lane.b32.xlu0 %v875, 119
      %v938 = vpop.permute.xlu0 %937
      %939 = vrot.lane.b32.xlu0 %v876, 119
      %v940 = vpop.permute.xlu0 %939
      %vm941 = vcmask 973824
      %v942 = vsel %vm941, %v938, %v940
      %943 = vrot.lane.b32.xlu0 %v883, 118
      %v944 = vpop.permute.xlu0 %943
      %945 = vrot.lane.b32.xlu0 %v884, 118
      %v946 = vpop.permute.xlu0 %945
      %vm947 = vcmask 965632
      %v948 = vsel %vm947, %v944, %v946
      %949 = vrot.lane.b32.xlu0 %v891, 117
      %v950 = vpop.permute.xlu0 %949
      %951 = vrot.lane.b32.xlu0 %v892, 117
      %v952 = vpop.permute.xlu0 %951
      %vm953 = vcmask 957440
      %v954 = vsel %vm953, %v950, %v952
      %955 = vrot.lane.b32.xlu0 %v899, 116
      %v956 = vpop.permute.xlu0 %955
      %957 = vrot.lane.b32.xlu0 %v900, 116
      %v958 = vpop.permute.xlu0 %957
      %vm959 = vcmask 949248
      %v960 = vsel %vm959, %v956, %v958
      %961 = vrot.lane.b32.xlu0 %v907, 115
      %v962 = vpop.permute.xlu0 %961
      %963 = vrot.lane.b32.xlu0 %v908, 115
      %v964 = vpop.permute.xlu0 %963
      %vm965 = vcmask 941056
      %v966 = vsel %vm965, %v962, %v964
      %967 = vrot.lane.b32.xlu0 %v915, 114
      %v968 = vpop.permute.xlu0 %967
      %969 = vrot.lane.b32.xlu0 %v916, 114
      %v970 = vpop.permute.xlu0 %969
      %vm971 = vcmask 932864
      %v972 = vsel %vm971, %v968, %v970
      %973 = vrot.lane.b32.xlu0 %v923, 113
      %v974 = vpop.permute.xlu0 %973
      %975 = vrot.lane.b32.xlu0 %v924, 113
      %v976 = vpop.permute.xlu0 %975
      %vm977 = vcmask 924672
      %v978 = vsel %vm977, %v974, %v976
      %vm979 = vcmask 1040384
      %v981 = vsel %vm979, %v871, %v882
      %vm982 = vcmask 1041408
      %v984 = vsel %vm982, %v981, %v890
      %vm985 = vcmask 1042432
      %v987 = vsel %vm985, %v984, %v898
      %vm988 = vcmask 1043456
      %v990 = vsel %vm988, %v987, %v906
      %vm991 = vcmask 1044480
      %v993 = vsel %vm991, %v990, %v914
      %vm994 = vcmask 1045504
      %v996 = vsel %vm994, %v993, %v922
      %vm997 = vcmask 1046528
      %v999 = vsel %vm997, %v996, %v930
      %v1003 = vsel %vm979, %v936, %v942
      %v1005 = vsel %vm982, %v1003, %v948
      %v1007 = vsel %vm985, %v1005, %v954
      %v1009 = vsel %vm988, %v1007, %v960
      %v1011 = vsel %vm991, %v1009, %v966
      %v1013 = vsel %vm994, %v1011, %v972
      %v1015 = vsel %vm997, %v1013, %v978
      %1017 = vrot.lane.b32.xlu0 %v871, 112
      %v1018 = vpop.permute.xlu0 %1017
      %1019 = vrot.lane.b32.xlu0 %v872, 112
      %v1020 = vpop.permute.xlu0 %1019
      %vm1021 = vcmask 916480
      %v1022 = vsel %vm1021, %v1018, %v1020
      %v1023 = vld [vmem:[%s3] sm:$0xf]
      %1025 = vset.pattern.permute.xlu0 0
      %1026 = vperm.xlu0 %1025, %v1023
      %v1027 = vpop.permute.xlu0 %1026
      %vm1029 = vcmask 277504
      %v1031 = vsel %vm1029, %v861, 0
      %v1034 = vsel %vm979, %v1022, 0
      %1036 = vmatpush.bf16.msra.mxu0 0
      %1037 = vmatpush.bf16.msra.mxu0 0
      %1038 = vmatpush.bf16.msra.mxu0 0
      %1039 = vmatpush.bf16.msra.mxu0 0
      %1040 = vmatpush.bf16.msra.mxu0 0
      %1041 = vmatpush.bf16.msra.mxu0 %v1034
      %1042 = vmatpush.bf16.msra.mxu0 %v1015
      %1043 = vmatpush.bf16.msra.mxu0 %v999
      %1044 = vmatmul.bf16.gmra.mxu0 %v1031
      %v1045 = vpop.f32.mrf.mxu0
      %v1046 = vadd.f32 %v1027, %v1045
      %v1047 = vpop.f32.mrf.mxu0
      %1048 = vdwg.mxu0
      %v1049 = vld [vmem:[%s11] sm:$0xff]
      %v1050 = vld [vmem:[%s10] sm:$0xf]
      %v1051 = vpack.c.bf16 %v1046, %v1046
      %vm1052 = vcmask 31744
      %v1054 = vsel %vm1052, %v1050, 0
      %v1057 = vsel %vm982, %v1051, 0
      %1059 = vmatpush.bf16.msra.mxu0 0
      %1060 = vmatpush.bf16.msra.mxu0 0
      %1061 = vmatpush.bf16.msra.mxu0 0
      %1062 = vmatpush.bf16.msra.mxu0 0
      %1063 = vmatpush.bf16.msra.mxu0 0
      %1064 = vmatpush.bf16.msra.mxu0 0
      %1065 = vmatpush.bf16.msra.mxu0 0
      %1066 = vmatpush.bf16.msra.mxu0 %v1057
      %1067 = vmatmul.bf16.gmra.mxu0 %v1054
      %v1068 = vpop.f32.mrf.mxu0
      %v1069 = vadd.f32 0.0, %v1068
      %v1070 = vpop.f32.mrf.mxu0
      %1071 = vdwg.mxu0
      %1073 = vset.pattern.permute.xlu0 0
      %1074 = vperm.xlu0 %1073, %v1049
      %v1075 = vpop.permute.xlu0 %1074
      %v1077 = vadd.f32 %v1075, %v1069
      %v1078 = vld [vmem:[%s7] sm:$0xff]
      %v1079 = vld [vmem:[%s6] sm:$0xf]
      %v1080 = vlaneseq
      %v1081 = vand.u32 %v1080, 127
      %1082 = vrot.lane.b32.xlu0 %v1046, 1
      %v1083 = vpop.permute.xlu0 %1082
      %vm1084 = vcmp.ge.s32.totalorder %v1081, 1
      %v1085 = vsel %vm1084, %v1083, 0.0
      %v1086 = vpack.c.bf16 %v1085, %v1085
      %1087 = vrot.lane.b32.xlu0 %v1046, 127
      %v1088 = vpop.permute.xlu0 %1087
      %vm1089 = vcmp.lt.s32.totalorder %v1081, 127
      %v1090 = vsel %vm1089, %v1088, 0.0
      %v1091 = vpack.c.bf16 %v1090, %v1090
      %v1093 = vunpack.c.l.b16 %v1051
      %v1094 = vpack.c.b16 %v1093, %v1093
      %v1095 = vrot.slane %v1094, 6
      %v1097 = vunpack.c.l.b16 %v1091
      %v1098 = vpack.c.b16 %v1097, %v1097
      %v1101 = vsel %vm982, %v1086, %v1095
      %v1103 = vsel %vm988, %v1101, %v1098
      %vm1104 = vcmask 97280
      %v1106 = vsel %vm1104, %v1079, 0
      %v1108 = vsel %vm994, %v1103, 0
      %1110 = vmatpush.bf16.msra.mxu0 0
      %1111 = vmatpush.bf16.msra.mxu0 0
      %1112 = vmatpush.bf16.msra.mxu0 0
      %1113 = vmatpush.bf16.msra.mxu0 0
      %1114 = vmatpush.bf16.msra.mxu0 0
      %1115 = vmatpush.bf16.msra.mxu0 0
      %1116 = vmatpush.bf16.msra.mxu0 0
      %1117 = vmatpush.bf16.msra.mxu0 %v1108
      %1118 = vmatmul.bf16.gmra.mxu0 %v1106
      %v1119 = vpop.f32.mrf.mxu0
      %v1120 = vadd.f32 0.0, %v1119
      %v1121 = vpop.f32.mrf.mxu0
      %1122 = vdwg.mxu0
      %1124 = vset.pattern.permute.xlu0 0
      %1125 = vperm.xlu0 %1124, %v1078
      %v1126 = vpop.permute.xlu0 %1125
      %v1128 = vadd.f32 %v1126, %v1120
      %v1129 = vadd.f32 %v1077, %v1128
      %v1130 = vmul.f32 %v1128, 0.2
      %v1131 = vmax.f32 %v1128, %v1130
      %v1132 = vld [vmem:[%s8] sm:$0xf]
      %v1133 = vpack.c.bf16 %v1131, %v1131
      %1134 = vrot.lane.b32.xlu0 %v1131, 2
      %v1135 = vpop.permute.xlu0 %1134
      %vm1136 = vcmp.ge.s32.totalorder %v1081, 2
      %v1137 = vsel %vm1136, %v1135, 0.0
      %v1138 = vpack.c.bf16 %v1137, %v1137
      %1139 = vrot.lane.b32.xlu0 %v1131, 126
      %v1140 = vpop.permute.xlu0 %1139
      %vm1141 = vcmp.lt.s32.totalorder %v1081, 126
      %v1142 = vsel %vm1141, %v1140, 0.0
      %v1143 = vpack.c.bf16 %v1142, %v1142
      %v1145 = vunpack.c.l.b16 %v1133
      %v1146 = vpack.c.b16 %v1145, %v1145
      %v1149 = vsel %vm988, %v1138, %v1146
      %v1151 = vld [vmem:[%s9] sm:$0xff]
      %1153 = vset.pattern.permute.xlu0 0
      %1154 = vperm.xlu0 %1153, %v1151
      %v1155 = vpop.permute.xlu0 %1154
      %vm1157 = vcmask 195584
      %v1159 = vsel %vm1157, %v1132, 0
      %v1162 = vsel %vm988, %v1143, 0
      %1164 = vmatpush.bf16.msra.mxu0 0
      %1165 = vmatpush.bf16.msra.mxu0 0
      %1166 = vmatpush.bf16.msra.mxu0 0
      %1167 = vmatpush.bf16.msra.mxu0 0
      %1168 = vmatpush.bf16.msra.mxu0 0
      %1169 = vmatpush.bf16.msra.mxu0 0
      %1170 = vmatpush.bf16.msra.mxu0 %v1162
      %1171 = vmatpush.bf16.msra.mxu0 %v1149
      %1172 = vmatmul.bf16.gmra.mxu0 %v1159
      %v1173 = vpop.f32.mrf.mxu0
      %v1174 = vadd.f32 %v1155, %v1173
      %v1175 = vpop.f32.mrf.mxu0
      %1176 = vdwg.mxu0
      %v1177 = vadd.f32 %v1129, %v1174
      %v1178 = vmul.f32 %v1174, 0.2
      %v1179 = vmax.f32 %v1174, %v1178
      %s1180 = scalar_lea.vmem %s8, 4
      %v1181 = vld [vmem:[%s1180] sm:$0xf]
      %v1182 = vpack.c.bf16 %v1179, %v1179
      %1183 = vrot.lane.b32.xlu0 %v1179, 4
      %v1184 = vpop.permute.xlu0 %1183
      %vm1185 = vcmp.ge.s32.totalorder %v1081, 4
      %v1186 = vsel %vm1185, %v1184, 0.0
      %v1187 = vpack.c.bf16 %v1186, %v1186
      %1188 = vrot.lane.b32.xlu0 %v1179, 124
      %v1189 = vpop.permute.xlu0 %1188
      %vm1190 = vcmp.lt.s32.totalorder %v1081, 124
      %v1191 = vsel %vm1190, %v1189, 0.0
      %v1192 = vpack.c.bf16 %v1191, %v1191
      %v1194 = vunpack.c.l.b16 %v1182
      %v1195 = vpack.c.b16 %v1194, %v1194
      %v1198 = vsel %vm988, %v1187, %v1195
      %s1200 = scalar_lea.vmem %s9, 8
      %v1201 = vld [vmem:[%s1200] sm:$0xff]
      %1203 = vset.pattern.permute.xlu0 0
      %1204 = vperm.xlu0 %1203, %v1201
      %v1205 = vpop.permute.xlu0 %1204
      %v1208 = vsel %vm1157, %v1181, 0
      %v1211 = vsel %vm988, %v1192, 0
      %1213 = vmatpush.bf16.msra.mxu0 0
      %1214 = vmatpush.bf16.msra.mxu0 0
      %1215 = vmatpush.bf16.msra.mxu0 0
      %1216 = vmatpush.bf16.msra.mxu0 0
      %1217 = vmatpush.bf16.msra.mxu0 0
      %1218 = vmatpush.bf16.msra.mxu0 0
      %1219 = vmatpush.bf16.msra.mxu0 %v1211
      %1220 = vmatpush.bf16.msra.mxu0 %v1198
      %1221 = vmatmul.bf16.gmra.mxu0 %v1208
      %v1222 = vpop.f32.mrf.mxu0
      %v1223 = vadd.f32 %v1205, %v1222
      %v1224 = vpop.f32.mrf.mxu0
      %1225 = vdwg.mxu0
      %v1226 = vadd.f32 %v1177, %v1223
      %v1227 = vmul.f32 %v1223, 0.2
      %v1228 = vmax.f32 %v1223, %v1227
      %s1229 = scalar_lea.vmem %s8, 8
      %v1230 = vld [vmem:[%s1229] sm:$0xf]
      %v1231 = vpack.c.bf16 %v1228, %v1228
      %1232 = vrot.lane.b32.xlu0 %v1228, 8
      %v1233 = vpop.permute.xlu0 %1232
      %vm1234 = vcmp.ge.s32.totalorder %v1081, 8
      %v1235 = vsel %vm1234, %v1233, 0.0
      %v1236 = vpack.c.bf16 %v1235, %v1235
      %1237 = vrot.lane.b32.xlu0 %v1228, 120
      %v1238 = vpop.permute.xlu0 %1237
      %vm1239 = vcmp.lt.s32.totalorder %v1081, 120
      %v1240 = vsel %vm1239, %v1238, 0.0
      %v1241 = vpack.c.bf16 %v1240, %v1240
      %v1243 = vunpack.c.l.b16 %v1231
      %v1244 = vpack.c.b16 %v1243, %v1243
      %v1247 = vsel %vm988, %v1236, %v1244
      %s1249 = scalar_lea.vmem %s9, 16
      %v1250 = vld [vmem:[%s1249] sm:$0xff]
      %1252 = vset.pattern.permute.xlu0 0
      %1253 = vperm.xlu0 %1252, %v1250
      %v1254 = vpop.permute.xlu0 %1253
      %v1257 = vsel %vm1157, %v1230, 0
      %v1260 = vsel %vm988, %v1241, 0
      %1262 = vmatpush.bf16.msra.mxu0 0
      %1263 = vmatpush.bf16.msra.mxu0 0
      %1264 = vmatpush.bf16.msra.mxu0 0
      %1265 = vmatpush.bf16.msra.mxu0 0
      %1266 = vmatpush.bf16.msra.mxu0 0
      %1267 = vmatpush.bf16.msra.mxu0 0
      %1268 = vmatpush.bf16.msra.mxu0 %v1260
      %1269 = vmatpush.bf16.msra.mxu0 %v1247
      %1270 = vmatmul.bf16.gmra.mxu0 %v1257
      %v1271 = vpop.f32.mrf.mxu0
      %v1272 = vadd.f32 %v1254, %v1271
      %v1273 = vpop.f32.mrf.mxu0
      %1274 = vdwg.mxu0
      %v1275 = vadd.f32 %v1226, %v1272
      %v1276 = vmul.f32 %v1272, 0.2
      %v1277 = vmax.f32 %v1272, %v1276
      %s1278 = scalar_lea.vmem %s8, 12
      %v1279 = vld [vmem:[%s1278] sm:$0xf]
      %v1280 = vpack.c.bf16 %v1277, %v1277
      %1281 = vrot.lane.b32.xlu0 %v1277, 16
      %v1282 = vpop.permute.xlu0 %1281
      %vm1283 = vcmp.ge.s32.totalorder %v1081, 16
      %v1284 = vsel %vm1283, %v1282, 0.0
      %v1285 = vpack.c.bf16 %v1284, %v1284
      %1286 = vrot.lane.b32.xlu0 %v1277, 112
      %v1287 = vpop.permute.xlu0 %1286
      %vm1288 = vcmp.lt.s32.totalorder %v1081, 112
      %v1289 = vsel %vm1288, %v1287, 0.0
      %v1290 = vpack.c.bf16 %v1289, %v1289
      %v1292 = vunpack.c.l.b16 %v1280
      %v1293 = vpack.c.b16 %v1292, %v1292
      %v1296 = vsel %vm988, %v1285, %v1293
      %s1298 = scalar_lea.vmem %s9, 24
      %v1299 = vld [vmem:[%s1298] sm:$0xff]
      %1301 = vset.pattern.permute.xlu0 0
      %1302 = vperm.xlu0 %1301, %v1299
      %v1303 = vpop.permute.xlu0 %1302
      %v1306 = vsel %vm1157, %v1279, 0
      %v1309 = vsel %vm988, %v1290, 0
      %1311 = vmatpush.bf16.msra.mxu0 0
      %1312 = vmatpush.bf16.msra.mxu0 0
      %1313 = vmatpush.bf16.msra.mxu0 0
      %1314 = vmatpush.bf16.msra.mxu0 0
      %1315 = vmatpush.bf16.msra.mxu0 0
      %1316 = vmatpush.bf16.msra.mxu0 0
      %1317 = vmatpush.bf16.msra.mxu0 %v1309
      %1318 = vmatpush.bf16.msra.mxu0 %v1296
      %1319 = vmatmul.bf16.gmra.mxu0 %v1306
      %v1320 = vpop.f32.mrf.mxu0
      %v1321 = vadd.f32 %v1303, %v1320
      %v1322 = vpop.f32.mrf.mxu0
      %1323 = vdwg.mxu0
      %v1324 = vadd.f32 %v1275, %v1321
      %v1325 = vmul.f32 %v1321, 0.2
      %v1326 = vmax.f32 %v1321, %v1325
      %s1327 = scalar_lea.vmem %s8, 16
      %v1328 = vld [vmem:[%s1327] sm:$0xf]
      %v1329 = vpack.c.bf16 %v1326, %v1326
      %1330 = vrot.lane.b32.xlu0 %v1326, 32
      %v1331 = vpop.permute.xlu0 %1330
      %vm1332 = vcmp.ge.s32.totalorder %v1081, 32
      %v1333 = vsel %vm1332, %v1331, 0.0
      %v1334 = vpack.c.bf16 %v1333, %v1333
      %1335 = vrot.lane.b32.xlu0 %v1326, 96
      %v1336 = vpop.permute.xlu0 %1335
      %vm1337 = vcmp.lt.s32.totalorder %v1081, 96
      %v1338 = vsel %vm1337, %v1336, 0.0
      %v1339 = vpack.c.bf16 %v1338, %v1338
      %v1341 = vunpack.c.l.b16 %v1329
      %v1342 = vpack.c.b16 %v1341, %v1341
      %v1345 = vsel %vm988, %v1334, %v1342
      %s1347 = scalar_lea.vmem %s9, 32
      %v1348 = vld [vmem:[%s1347] sm:$0xff]
      %1350 = vset.pattern.permute.xlu0 0
      %1351 = vperm.xlu0 %1350, %v1348
      %v1352 = vpop.permute.xlu0 %1351
      %v1355 = vsel %vm1157, %v1328, 0
      %v1358 = vsel %vm988, %v1339, 0
      %1360 = vmatpush.bf16.msra.mxu0 0
      %1361 = vmatpush.bf16.msra.mxu0 0
      %1362 = vmatpush.bf16.msra.mxu0 0
      %1363 = vmatpush.bf16.msra.mxu0 0
      %1364 = vmatpush.bf16.msra.mxu0 0
      %1365 = vmatpush.bf16.msra.mxu0 0
      %1366 = vmatpush.bf16.msra.mxu0 %v1358
      %1367 = vmatpush.bf16.msra.mxu0 %v1345
      %1368 = vmatmul.bf16.gmra.mxu0 %v1355
      %v1369 = vpop.f32.mrf.mxu0
      %v1370 = vadd.f32 %v1352, %v1369
      %v1371 = vpop.f32.mrf.mxu0
      %1372 = vdwg.mxu0
      %v1373 = vadd.f32 %v1324, %v1370
      %v1374 = vmul.f32 %v1370, 0.2
      %v1375 = vmax.f32 %v1370, %v1374
      %s1376 = scalar_lea.vmem %s8, 20
      %v1377 = vld [vmem:[%s1376] sm:$0xf]
      %v1378 = vpack.c.bf16 %v1375, %v1375
      %1379 = vrot.lane.b32.xlu0 %v1375, 64
      %v1380 = vpop.permute.xlu0 %1379
      %vm1381 = vcmp.ge.s32.totalorder %v1081, 64
      %v1382 = vsel %vm1381, %v1380, 0.0
      %v1383 = vpack.c.bf16 %v1382, %v1382
      %vm1384 = vcmp.lt.s32.totalorder %v1081, 64
      %v1385 = vsel %vm1384, %v1380, 0.0
      %v1386 = vpack.c.bf16 %v1385, %v1385
      %v1388 = vunpack.c.l.b16 %v1378
      %v1389 = vpack.c.b16 %v1388, %v1388
      %v1392 = vsel %vm988, %v1383, %v1389
      %s1394 = scalar_lea.vmem %s9, 40
      %v1395 = vld [vmem:[%s1394] sm:$0xff]
      %1397 = vset.pattern.permute.xlu0 0
      %1398 = vperm.xlu0 %1397, %v1395
      %v1399 = vpop.permute.xlu0 %1398
      %v1402 = vsel %vm1157, %v1377, 0
      %v1405 = vsel %vm988, %v1386, 0
      %1407 = vmatpush.bf16.msra.mxu0 0
      %1408 = vmatpush.bf16.msra.mxu0 0
      %1409 = vmatpush.bf16.msra.mxu0 0
      %1410 = vmatpush.bf16.msra.mxu0 0
      %1411 = vmatpush.bf16.msra.mxu0 0
      %1412 = vmatpush.bf16.msra.mxu0 0
      %1413 = vmatpush.bf16.msra.mxu0 %v1405
      %1414 = vmatpush.bf16.msra.mxu0 %v1392
      %1415 = vmatmul.bf16.gmra.mxu0 %v1402
      %v1416 = vpop.f32.mrf.mxu0
      %v1417 = vadd.f32 %v1399, %v1416
      %v1418 = vpop.f32.mrf.mxu0
      %1419 = vdwg.mxu0
      %v1420 = vadd.f32 %v1373, %v1417
      %v1421 = vmul.f32 %v1417, 0.2
      %v1422 = vmax.f32 %v1417, %v1421
      %s1423 = scalar_lea.vmem %s8, 24
      %v1424 = vld [vmem:[%s1423] sm:$0xf]
      %v1425 = vpack.c.bf16 %v1422, %v1422
      %s1426 = scalar_lea.vmem %s9, 48
      %v1427 = vld [vmem:[%s1426] sm:$0xff]
      %1429 = vset.pattern.permute.xlu0 0
      %1430 = vperm.xlu0 %1429, %v1427
      %v1431 = vpop.permute.xlu0 %1430
      %v1434 = vunpack.c.l.b16 %v1424
      %v1435 = vpack.c.b16 %v1434, %v1434
      %1436 = vrot.lane.b32.xlu0 %v1435, 120
      %v1437 = vpop.permute.xlu0 %1436
      %v1439 = vsel %vm868, %v1437, 0
      %v1442 = vsel %vm988, %v1425, 0
      %1444 = vmatpush.bf16.msra.mxu0 0
      %1445 = vmatpush.bf16.msra.mxu0 0
      %1446 = vmatpush.bf16.msra.mxu0 0
      %1447 = vmatpush.bf16.msra.mxu0 0
      %1448 = vmatpush.bf16.msra.mxu0 0
      %1449 = vmatpush.bf16.msra.mxu0 0
      %1450 = vmatpush.bf16.msra.mxu0 0
      %1451 = vmatpush.bf16.msra.mxu0 %v1442
      %1452 = vmatmul.bf16.gmra.mxu0 %v1439
      %v1453 = vpop.f32.mrf.mxu0
      %v1454 = vadd.f32 %v1431, %v1453
      %v1455 = vpop.f32.mrf.mxu0
      %1456 = vdwg.mxu0
      %v1457 = vadd.f32 %v1420, %v1454
      %v1458 = vmul.f32 %v1454, 0.2
      %v1459 = vmax.f32 %v1454, %v1458
      %s1460 = scalar_lea.vmem %s8, 28
      %v1461 = vld [vmem:[%s1460] sm:$0xf]
      %v1462 = vpack.c.bf16 %v1459, %v1459
      %s1463 = scalar_lea.vmem %s9, 56
      %v1464 = vld [vmem:[%s1463] sm:$0xff]
      %1466 = vset.pattern.permute.xlu0 0
      %1467 = vperm.xlu0 %1466, %v1464
      %v1468 = vpop.permute.xlu0 %1467
      %v1471 = vunpack.c.l.b16 %v1461
      %v1472 = vpack.c.b16 %v1471, %v1471
      %1473 = vrot.lane.b32.xlu0 %v1472, 120
      %v1474 = vpop.permute.xlu0 %1473
      %v1476 = vsel %vm868, %v1474, 0
      %v1479 = vsel %vm988, %v1462, 0
      %1481 = vmatpush.bf16.msra.mxu0 0
      %1482 = vmatpush.bf16.msra.mxu0 0
      %1483 = vmatpush.bf16.msra.mxu0 0
      %1484 = vmatpush.bf16.msra.mxu0 0
      %1485 = vmatpush.bf16.msra.mxu0 0
      %1486 = vmatpush.bf16.msra.mxu0 0
      %1487 = vmatpush.bf16.msra.mxu0 0
      %1488 = vmatpush.bf16.msra.mxu0 %v1479
      %1489 = vmatmul.bf16.gmra.mxu0 %v1476
      %v1490 = vpop.f32.mrf.mxu0
      %v1491 = vadd.f32 %v1468, %v1490
      %v1492 = vpop.f32.mrf.mxu0
      %1493 = vdwg.mxu0
      %v1494 = vadd.f32 %v1457, %v1491
      %v1495 = vmul.f32 %v1491, 0.2
      %v1496 = vmax.f32 %v1491, %v1495
      %s1497 = scalar_lea.vmem %s8, 32
      %v1498 = vld [vmem:[%s1497] sm:$0xf]
      %v1499 = vpack.c.bf16 %v1496, %v1496
      %s1500 = scalar_lea.vmem %s9, 64
      %v1501 = vld [vmem:[%s1500] sm:$0xff]
      %1503 = vset.pattern.permute.xlu0 0
      %1504 = vperm.xlu0 %1503, %v1501
      %v1505 = vpop.permute.xlu0 %1504
      %v1508 = vunpack.c.l.b16 %v1498
      %v1509 = vpack.c.b16 %v1508, %v1508
      %1510 = vrot.lane.b32.xlu0 %v1509, 120
      %v1511 = vpop.permute.xlu0 %1510
      %v1513 = vsel %vm868, %v1511, 0
      %v1516 = vsel %vm988, %v1499, 0
      %1518 = vmatpush.bf16.msra.mxu0 0
      %1519 = vmatpush.bf16.msra.mxu0 0
      %1520 = vmatpush.bf16.msra.mxu0 0
      %1521 = vmatpush.bf16.msra.mxu0 0
      %1522 = vmatpush.bf16.msra.mxu0 0
      %1523 = vmatpush.bf16.msra.mxu0 0
      %1524 = vmatpush.bf16.msra.mxu0 0
      %1525 = vmatpush.bf16.msra.mxu0 %v1516
      %1526 = vmatmul.bf16.gmra.mxu0 %v1513
      %v1527 = vpop.f32.mrf.mxu0
      %v1528 = vadd.f32 %v1505, %v1527
      %v1529 = vpop.f32.mrf.mxu0
      %1530 = vdwg.mxu0
      %v1531 = vadd.f32 %v1494, %v1528
      %v1532 = vmul.f32 %v1528, 0.2
      %v1533 = vmax.f32 %v1528, %v1532
      %s1534 = scalar_lea.vmem %s8, 36
      %v1535 = vld [vmem:[%s1534] sm:$0xf]
      %v1536 = vpack.c.bf16 %v1533, %v1533
      %s1537 = scalar_lea.vmem %s9, 72
      %v1538 = vld [vmem:[%s1537] sm:$0xff]
      %1540 = vset.pattern.permute.xlu0 0
      %1541 = vperm.xlu0 %1540, %v1538
      %v1542 = vpop.permute.xlu0 %1541
      %v1545 = vunpack.c.l.b16 %v1535
      %v1546 = vpack.c.b16 %v1545, %v1545
      %1547 = vrot.lane.b32.xlu0 %v1546, 120
      %v1548 = vpop.permute.xlu0 %1547
      %v1550 = vsel %vm868, %v1548, 0
      %v1553 = vsel %vm988, %v1536, 0
      %1555 = vmatpush.bf16.msra.mxu0 0
      %1556 = vmatpush.bf16.msra.mxu0 0
      %1557 = vmatpush.bf16.msra.mxu0 0
      %1558 = vmatpush.bf16.msra.mxu0 0
      %1559 = vmatpush.bf16.msra.mxu0 0
      %1560 = vmatpush.bf16.msra.mxu0 0
      %1561 = vmatpush.bf16.msra.mxu0 0
      %1562 = vmatpush.bf16.msra.mxu0 %v1553
      %1563 = vmatmul.bf16.gmra.mxu0 %v1550
      %v1564 = vpop.f32.mrf.mxu0
      %v1565 = vadd.f32 %v1542, %v1564
      %v1566 = vpop.f32.mrf.mxu0
      %1567 = vdwg.mxu0
      %v1568 = vadd.f32 %v1531, %v1565
      %v1569 = vmul.f32 %v1568, 0.2
      %v1570 = vmax.f32 %v1568, %v1569
      %v1571 = vld [vmem:[%s4] sm:$0x3]
      %v1572 = vpack.c.bf16 %v859, %v859
      %v1574 = vunpack.c.l.b16 %v1572
      %v1575 = vpack.c.b16 %v1574, %v1574
      %1576 = vrot.lane.b32.xlu0 %v1575, 8
      %v1577 = vpop.permute.xlu0 %1576
      %v1579 = vsel %vm868, 0, %v1577
      %v1581 = vsel %vm868, %v1577, 0
      %v1582 = vshrl.u32 %v1579, 16
      %v1584 = vrot.slane %v1582, 6
      %v1585 = vshll.u32 %v1579, 16
      %v1587 = vrot.slane %v1585, 7
      %v1588 = vor.u32 %v1584, %v1587
      %v1589 = vshrl.u32 %v1581, 16
      %v1591 = vrot.slane %v1589, 6
      %v1592 = vshll.u32 %v1581, 16
      %v1594 = vrot.slane %v1592, 7
      %v1595 = vor.u32 %v1591, %v1594
      %1596 = vrot.lane.b32.xlu0 %v1588, 127
      %v1597 = vpop.permute.xlu0 %1596
      %1598 = vrot.lane.b32.xlu0 %v1595, 127
      %v1599 = vpop.permute.xlu0 %1598
      %v1600 = vsel %vm881, %v1597, %v1599
      %v1604 = vrot.slane %v1579, 5
      %v1605 = vrot.slane %v1581, 5
      %1606 = vrot.lane.b32.xlu0 %v1604, 126
      %v1607 = vpop.permute.xlu0 %1606
      %1608 = vrot.lane.b32.xlu0 %v1605, 126
      %v1609 = vpop.permute.xlu0 %1608
      %v1610 = vsel %vm889, %v1607, %v1609
      %v1611 = vrot.slane %v1582, 3
      %v1612 = vrot.slane %v1585, 4
      %v1613 = vor.u32 %v1611, %v1612
      %v1614 = vrot.slane %v1589, 3
      %v1615 = vrot.slane %v1592, 4
      %v1616 = vor.u32 %v1614, %v1615
      %1617 = vrot.lane.b32.xlu0 %v1613, 125
      %v1618 = vpop.permute.xlu0 %1617
      %1619 = vrot.lane.b32.xlu0 %v1616, 125
      %v1620 = vpop.permute.xlu0 %1619
      %v1621 = vsel %vm897, %v1618, %v1620
      %v1623 = vrot.slane %v1579, 2
      %v1624 = vrot.slane %v1581, 2
      %1625 = vrot.lane.b32.xlu0 %v1623, 124
      %v1626 = vpop.permute.xlu0 %1625
      %1627 = vrot.lane.b32.xlu0 %v1624, 124
      %v1628 = vpop.permute.xlu0 %1627
      %v1629 = vsel %vm905, %v1626, %v1628
      %v1630 = vrot.slane %v1585, 1
      %v1631 = vrot.slane %v1592, 1
      %v1632 = vor.u32 %v1582, %v1630
      %v1633 = vor.u32 %v1589, %v1631
      %1634 = vrot.lane.b32.xlu0 %v1630, 123
      %v1635 = vpop.permute.xlu0 %1634
      %1636 = vrot.lane.b32.xlu0 %v1631, 123
      %v1637 = vpop.permute.xlu0 %1636
      %1638 = vrot.lane.b32.xlu0 %v1632, 123
      %v1639 = vpop.permute.xlu0 %1638
      %1640 = vrot.lane.b32.xlu0 %v1633, 123
      %v1641 = vpop.permute.xlu0 %1640
      %v1642 = vsel %vm913, %v1635, %v1637
      %v1643 = vsel %vm913, %v1639, %v1641
      %v1645 = vrot.slane %v1579, 7
      %v1646 = vrot.slane %v1581, 7
      %1647 = vrot.lane.b32.xlu0 %v1645, 122
      %v1648 = vpop.permute.xlu0 %1647
      %1649 = vrot.lane.b32.xlu0 %v1646, 122
      %v1650 = vpop.permute.xlu0 %1649
      %v1651 = vsel %vm921, %v1648, %v1650
      %v1652 = vrot.slane %v1582, 5
      %v1653 = vrot.slane %v1585, 6
      %v1654 = vor.u32 %v1652, %v1653
      %v1655 = vrot.slane %v1589, 5
      %v1656 = vrot.slane %v1592, 6
      %v1657 = vor.u32 %v1655, %v1656
      %1658 = vrot.lane.b32.xlu0 %v1654, 121
      %v1659 = vpop.permute.xlu0 %1658
      %1660 = vrot.lane.b32.xlu0 %v1657, 121
      %v1661 = vpop.permute.xlu0 %1660
      %v1662 = vsel %vm929, %v1659, %v1661
      %v1664 = vrot.slane %v1579, 4
      %v1665 = vrot.slane %v1581, 4
      %1666 = vrot.lane.b32.xlu0 %v1664, 120
      %v1667 = vpop.permute.xlu0 %1666
      %1668 = vrot.lane.b32.xlu0 %v1665, 120
      %v1669 = vpop.permute.xlu0 %1668
      %v1670 = vsel %vm935, %v1667, %v1669
      %v1671 = vrot.slane %v1582, 2
      %v1672 = vrot.slane %v1585, 3
      %v1673 = vor.u32 %v1671, %v1672
      %v1674 = vrot.slane %v1589, 2
      %v1675 = vrot.slane %v1592, 3
      %v1676 = vor.u32 %v1674, %v1675
      %1677 = vrot.lane.b32.xlu0 %v1673, 119
      %v1678 = vpop.permute.xlu0 %1677
      %1679 = vrot.lane.b32.xlu0 %v1676, 119
      %v1680 = vpop.permute.xlu0 %1679
      %v1681 = vsel %vm941, %v1678, %v1680
      %v1683 = vrot.slane %v1579, 1
      %v1684 = vrot.slane %v1581, 1
      %1685 = vrot.lane.b32.xlu0 %v1683, 118
      %v1686 = vpop.permute.xlu0 %1685
      %1687 = vrot.lane.b32.xlu0 %v1684, 118
      %v1688 = vpop.permute.xlu0 %1687
      %v1689 = vsel %vm947, %v1686, %v1688
      %v1691 = vrot.slane %v1582, 7
      %v1692 = vor.u32 %v1691, %v1585
      %v1693 = vrot.slane %v1589, 7
      %v1694 = vor.u32 %v1693, %v1592
      %1695 = vrot.lane.b32.xlu0 %v1692, 117
      %v1696 = vpop.permute.xlu0 %1695
      %1697 = vrot.lane.b32.xlu0 %v1694, 117
      %v1698 = vpop.permute.xlu0 %1697
      %v1699 = vsel %vm953, %v1696, %v1698
      %v1701 = vrot.slane %v1579, 6
      %v1702 = vrot.slane %v1581, 6
      %1703 = vrot.lane.b32.xlu0 %v1701, 116
      %v1704 = vpop.permute.xlu0 %1703
      %1705 = vrot.lane.b32.xlu0 %v1702, 116
      %v1706 = vpop.permute.xlu0 %1705
      %v1707 = vsel %vm959, %v1704, %v1706
      %v1708 = vrot.slane %v1582, 4
      %v1709 = vrot.slane %v1585, 5
      %v1710 = vor.u32 %v1708, %v1709
      %v1711 = vrot.slane %v1589, 4
      %v1712 = vrot.slane %v1592, 5
      %v1713 = vor.u32 %v1711, %v1712
      %1714 = vrot.lane.b32.xlu0 %v1710, 115
      %v1715 = vpop.permute.xlu0 %1714
      %1716 = vrot.lane.b32.xlu0 %v1713, 115
      %v1717 = vpop.permute.xlu0 %1716
      %v1718 = vsel %vm965, %v1715, %v1717
      %v1720 = vrot.slane %v1579, 3
      %v1721 = vrot.slane %v1581, 3
      %1722 = vrot.lane.b32.xlu0 %v1720, 114
      %v1723 = vpop.permute.xlu0 %1722
      %1724 = vrot.lane.b32.xlu0 %v1721, 114
      %v1725 = vpop.permute.xlu0 %1724
      %v1726 = vsel %vm971, %v1723, %v1725
      %v1727 = vrot.slane %v1582, 1
      %v1728 = vrot.slane %v1585, 2
      %v1729 = vor.u32 %v1727, %v1728
      %v1730 = vrot.slane %v1589, 1
      %v1731 = vrot.slane %v1592, 2
      %v1732 = vor.u32 %v1730, %v1731
      %1733 = vrot.lane.b32.xlu0 %v1729, 113
      %v1734 = vpop.permute.xlu0 %1733
      %1735 = vrot.lane.b32.xlu0 %v1732, 113
      %v1736 = vpop.permute.xlu0 %1735
      %v1737 = vsel %vm977, %v1734, %v1736
      %vm1739 = vcmask 1041408
      %vm1740 = vsmask.f32 1280
      %vm1741 = vmand %vm1739, %vm1740
      %v1742 = vsel %vm1741, %v1579, %v1600
      %v1745 = vsel %vm985, %v1742, %v1610
      %vm1747 = vcmask 1044480
      %vm1748 = vsmask.f32 4352
      %vm1749 = vmand %vm1747, %vm1748
      %v1750 = vsel %vm1749, %v1745, %v1621
      %v1753 = vsel %vm994, %v1750, %v1629
      %vm1755 = vcmask 1047552
      %vm1756 = vsmask.f32 7424
      %vm1757 = vmand %vm1755, %vm1756
      %v1758 = vsel %vm1757, %v1753, %v1642
      %v1761 = vsel %vm979, %v1643, %v1651
      %vm1763 = vcmask 1042432
      %vm1764 = vsmask.f32 2304
      %vm1765 = vmand %vm1763, %vm1764
      %v1766 = vsel %vm1765, %v1761, %v1662
      %v1769 = vsel %vm988, %v1766, %v1670
      %vm1771 = vcmask 1045504
      %vm1772 = vsmask.f32 5376
      %vm1773 = vmand %vm1771, %vm1772
      %v1774 = vsel %vm1773, %v1769, %v1681
      %v1777 = vsel %vm997, %v1774, %v1689
      %vm1779 = vcmask 1040384
      %vm1780 = vsmask.f32 256
      %vm1781 = vmand %vm1779, %vm1780
      %v1782 = vsel %vm1781, %v1689, %v1699
      %v1785 = vsel %vm982, %v1782, %v1707
      %vm1787 = vcmask 1043456
      %vm1788 = vsmask.f32 3328
      %vm1789 = vmand %vm1787, %vm1788
      %v1790 = vsel %vm1789, %v1785, %v1718
      %v1793 = vsel %vm991, %v1790, %v1726
      %vm1795 = vcmask 1046528
      %vm1796 = vsmask.f32 6400
      %vm1797 = vmand %vm1795, %vm1796
      %v1798 = vsel %vm1797, %v1793, %v1737
      %1799 = vrot.lane.b32.xlu0 %v1579, 112
      %v1800 = vpop.permute.xlu0 %1799
      %1801 = vrot.lane.b32.xlu0 %v1581, 112
      %v1802 = vpop.permute.xlu0 %1801
      %v1803 = vsel %vm1021, %v1800, %v1802
      %v1804 = vld [vmem:[%s5] sm:$0xf]
      %1806 = vset.pattern.permute.xlu0 0
      %1807 = vperm.xlu0 %1806, %v1804
      %v1808 = vpop.permute.xlu0 %1807
      %vm1810 = vcmask 416768
      %v1812 = vsel %vm1810, %v1571, 0
      %v1814 = vsel %vm979, 4294967295, 65535
      %v1815 = vsel %vm982, %v1814, 0
      %v1817 = vand.u32 %v1803, %v1815
      %1819 = vmatpush.bf16.msra.mxu0 0
      %1820 = vmatpush.bf16.msra.mxu0 0
      %1821 = vmatpush.bf16.msra.mxu0 0
      %1822 = vmatpush.bf16.msra.mxu0 0
      %1823 = vmatpush.bf16.msra.mxu0 %v1817
      %1824 = vmatpush.bf16.msra.mxu0 %v1798
      %1825 = vmatpush.bf16.msra.mxu0 %v1777
      %1826 = vmatpush.bf16.msra.mxu0 %v1758
      %1827 = vmatmul.bf16.gmra.mxu0 %v1812
      %v1828 = vpop.f32.mrf.mxu0
      %v1829 = vadd.f32 %v1808, %v1828
      %v1830 = vpop.f32.mrf.mxu0
      %1831 = vdwg.mxu0
      %v1832 = vld [vmem:[%s17] sm:$0xff]
      %v1833 = vld [vmem:[%s16] sm:$0xf]
      %v1834 = vpack.c.bf16 %v1829, %v1829
      %v1836 = vsel %vm1052, %v1833, 0
      %v1839 = vsel %vm982, %v1834, 0
      %1841 = vmatpush.bf16.msra.mxu0 0
      %1842 = vmatpush.bf16.msra.mxu0 0
      %1843 = vmatpush.bf16.msra.mxu0 0
      %1844 = vmatpush.bf16.msra.mxu0 0
      %1845 = vmatpush.bf16.msra.mxu0 0
      %1846 = vmatpush.bf16.msra.mxu0 0
      %1847 = vmatpush.bf16.msra.mxu0 0
      %1848 = vmatpush.bf16.msra.mxu0 %v1839
      %1849 = vmatmul.bf16.gmra.mxu0 %v1836
      %v1850 = vpop.f32.mrf.mxu0
      %v1851 = vadd.f32 0.0, %v1850
      %v1852 = vpop.f32.mrf.mxu0
      %1853 = vdwg.mxu0
      %1855 = vset.pattern.permute.xlu0 0
      %1856 = vperm.xlu0 %1855, %v1832
      %v1857 = vpop.permute.xlu0 %1856
      %v1859 = vadd.f32 %v1857, %v1851
      %v1860 = vld [vmem:[%s13] sm:$0xff]
      %v1861 = vld [vmem:[%s12] sm:$0xf]
      %1862 = vrot.lane.b32.xlu0 %v1829, 1
      %v1863 = vpop.permute.xlu0 %1862
      %v1864 = vsel %vm1084, %v1863, 0.0
      %v1865 = vpack.c.bf16 %v1864, %v1864
      %1866 = vrot.lane.b32.xlu0 %v1829, 127
      %v1867 = vpop.permute.xlu0 %1866
      %v1868 = vsel %vm1089, %v1867, 0.0
      %v1869 = vpack.c.bf16 %v1868, %v1868
      %v1871 = vunpack.c.l.b16 %v1834
      %v1872 = vpack.c.b16 %v1871, %v1871
      %v1873 = vrot.slane %v1872, 6
      %v1875 = vunpack.c.l.b16 %v1869
      %v1876 = vpack.c.b16 %v1875, %v1875
      %v1879 = vsel %vm982, %v1865, %v1873
      %v1881 = vsel %vm988, %v1879, %v1876
      %v1883 = vsel %vm1104, %v1861, 0
      %v1885 = vsel %vm994, %v1881, 0
      %1887 = vmatpush.bf16.msra.mxu0 0
      %1888 = vmatpush.bf16.msra.mxu0 0
      %1889 = vmatpush.bf16.msra.mxu0 0
      %1890 = vmatpush.bf16.msra.mxu0 0
      %1891 = vmatpush.bf16.msra.mxu0 0
      %1892 = vmatpush.bf16.msra.mxu0 0
      %1893 = vmatpush.bf16.msra.mxu0 0
      %1894 = vmatpush.bf16.msra.mxu0 %v1885
      %1895 = vmatmul.bf16.gmra.mxu0 %v1883
      %v1896 = vpop.f32.mrf.mxu0
      %v1897 = vadd.f32 0.0, %v1896
      %v1898 = vpop.f32.mrf.mxu0
      %1899 = vdwg.mxu0
      %1901 = vset.pattern.permute.xlu0 0
      %1902 = vperm.xlu0 %1901, %v1860
      %v1903 = vpop.permute.xlu0 %1902
      %v1905 = vadd.f32 %v1903, %v1897
      %v1906 = vadd.f32 %v1859, %v1905
      %v1907 = vmul.f32 %v1905, 0.2
      %v1908 = vmax.f32 %v1905, %v1907
      %v1909 = vld [vmem:[%s14] sm:$0xf]
      %v1910 = vpack.c.bf16 %v1908, %v1908
      %1911 = vrot.lane.b32.xlu0 %v1908, 2
      %v1912 = vpop.permute.xlu0 %1911
      %v1913 = vsel %vm1136, %v1912, 0.0
      %v1914 = vpack.c.bf16 %v1913, %v1913
      %1915 = vrot.lane.b32.xlu0 %v1908, 126
      %v1916 = vpop.permute.xlu0 %1915
      %v1917 = vsel %vm1141, %v1916, 0.0
      %v1918 = vpack.c.bf16 %v1917, %v1917
      %v1920 = vunpack.c.l.b16 %v1910
      %v1921 = vpack.c.b16 %v1920, %v1920
      %v1924 = vsel %vm988, %v1914, %v1921
      %v1926 = vld [vmem:[%s15] sm:$0xff]
      %1928 = vset.pattern.permute.xlu0 0
      %1929 = vperm.xlu0 %1928, %v1926
      %v1930 = vpop.permute.xlu0 %1929
      %v1933 = vsel %vm1157, %v1909, 0
      %v1936 = vsel %vm988, %v1918, 0
      %1938 = vmatpush.bf16.msra.mxu0 0
      %1939 = vmatpush.bf16.msra.mxu0 0
      %1940 = vmatpush.bf16.msra.mxu0 0
      %1941 = vmatpush.bf16.msra.mxu0 0
      %1942 = vmatpush.bf16.msra.mxu0 0
      %1943 = vmatpush.bf16.msra.mxu0 0
      %1944 = vmatpush.bf16.msra.mxu0 %v1936
      %1945 = vmatpush.bf16.msra.mxu0 %v1924
      %1946 = vmatmul.bf16.gmra.mxu0 %v1933
      %v1947 = vpop.f32.mrf.mxu0
      %v1948 = vadd.f32 %v1930, %v1947
      %v1949 = vpop.f32.mrf.mxu0
      %1950 = vdwg.mxu0
      %v1951 = vadd.f32 %v1906, %v1948
      %v1952 = vmul.f32 %v1948, 0.2
      %v1953 = vmax.f32 %v1948, %v1952
      %s1954 = scalar_lea.vmem %s14, 4
      %v1955 = vld [vmem:[%s1954] sm:$0xf]
      %v1956 = vpack.c.bf16 %v1953, %v1953
      %1957 = vrot.lane.b32.xlu0 %v1953, 4
      %v1958 = vpop.permute.xlu0 %1957
      %v1959 = vsel %vm1185, %v1958, 0.0
      %v1960 = vpack.c.bf16 %v1959, %v1959
      %1961 = vrot.lane.b32.xlu0 %v1953, 124
      %v1962 = vpop.permute.xlu0 %1961
      %v1963 = vsel %vm1190, %v1962, 0.0
      %v1964 = vpack.c.bf16 %v1963, %v1963
      %v1966 = vunpack.c.l.b16 %v1956
      %v1967 = vpack.c.b16 %v1966, %v1966
      %v1970 = vsel %vm988, %v1960, %v1967
      %s1972 = scalar_lea.vmem %s15, 8
      %v1973 = vld [vmem:[%s1972] sm:$0xff]
      %1975 = vset.pattern.permute.xlu0 0
      %1976 = vperm.xlu0 %1975, %v1973
      %v1977 = vpop.permute.xlu0 %1976
      %v1980 = vsel %vm1157, %v1955, 0
      %v1983 = vsel %vm988, %v1964, 0
      %1985 = vmatpush.bf16.msra.mxu0 0
      %1986 = vmatpush.bf16.msra.mxu0 0
      %1987 = vmatpush.bf16.msra.mxu0 0
      %1988 = vmatpush.bf16.msra.mxu0 0
      %1989 = vmatpush.bf16.msra.mxu0 0
      %1990 = vmatpush.bf16.msra.mxu0 0
      %1991 = vmatpush.bf16.msra.mxu0 %v1983
      %1992 = vmatpush.bf16.msra.mxu0 %v1970
      %1993 = vmatmul.bf16.gmra.mxu0 %v1980
      %v1994 = vpop.f32.mrf.mxu0
      %v1995 = vadd.f32 %v1977, %v1994
      %v1996 = vpop.f32.mrf.mxu0
      %1997 = vdwg.mxu0
      %v1998 = vadd.f32 %v1951, %v1995
      %v1999 = vmul.f32 %v1995, 0.2
      %v2000 = vmax.f32 %v1995, %v1999
      %s2001 = scalar_lea.vmem %s14, 8
      %v2002 = vld [vmem:[%s2001] sm:$0xf]
      %v2003 = vpack.c.bf16 %v2000, %v2000
      %2004 = vrot.lane.b32.xlu0 %v2000, 8
      %v2005 = vpop.permute.xlu0 %2004
      %v2006 = vsel %vm1234, %v2005, 0.0
      %v2007 = vpack.c.bf16 %v2006, %v2006
      %2008 = vrot.lane.b32.xlu0 %v2000, 120
      %v2009 = vpop.permute.xlu0 %2008
      %v2010 = vsel %vm1239, %v2009, 0.0
      %v2011 = vpack.c.bf16 %v2010, %v2010
      %v2013 = vunpack.c.l.b16 %v2003
      %v2014 = vpack.c.b16 %v2013, %v2013
      %v2017 = vsel %vm988, %v2007, %v2014
      %s2019 = scalar_lea.vmem %s15, 16
      %v2020 = vld [vmem:[%s2019] sm:$0xff]
      %2022 = vset.pattern.permute.xlu0 0
      %2023 = vperm.xlu0 %2022, %v2020
      %v2024 = vpop.permute.xlu0 %2023
      %v2027 = vsel %vm1157, %v2002, 0
      %v2030 = vsel %vm988, %v2011, 0
      %2032 = vmatpush.bf16.msra.mxu0 0
      %2033 = vmatpush.bf16.msra.mxu0 0
      %2034 = vmatpush.bf16.msra.mxu0 0
      %2035 = vmatpush.bf16.msra.mxu0 0
      %2036 = vmatpush.bf16.msra.mxu0 0
      %2037 = vmatpush.bf16.msra.mxu0 0
      %2038 = vmatpush.bf16.msra.mxu0 %v2030
      %2039 = vmatpush.bf16.msra.mxu0 %v2017
      %2040 = vmatmul.bf16.gmra.mxu0 %v2027
      %v2041 = vpop.f32.mrf.mxu0
      %v2042 = vadd.f32 %v2024, %v2041
      %v2043 = vpop.f32.mrf.mxu0
      %2044 = vdwg.mxu0
      %v2045 = vadd.f32 %v1998, %v2042
      %v2046 = vmul.f32 %v2042, 0.2
      %v2047 = vmax.f32 %v2042, %v2046
      %s2048 = scalar_lea.vmem %s14, 12
      %v2049 = vld [vmem:[%s2048] sm:$0xf]
      %v2050 = vpack.c.bf16 %v2047, %v2047
      %2051 = vrot.lane.b32.xlu0 %v2047, 16
      %v2052 = vpop.permute.xlu0 %2051
      %v2053 = vsel %vm1283, %v2052, 0.0
      %v2054 = vpack.c.bf16 %v2053, %v2053
      %2055 = vrot.lane.b32.xlu0 %v2047, 112
      %v2056 = vpop.permute.xlu0 %2055
      %v2057 = vsel %vm1288, %v2056, 0.0
      %v2058 = vpack.c.bf16 %v2057, %v2057
      %v2060 = vunpack.c.l.b16 %v2050
      %v2061 = vpack.c.b16 %v2060, %v2060
      %v2064 = vsel %vm988, %v2054, %v2061
      %s2066 = scalar_lea.vmem %s15, 24
      %v2067 = vld [vmem:[%s2066] sm:$0xff]
      %2069 = vset.pattern.permute.xlu0 0
      %2070 = vperm.xlu0 %2069, %v2067
      %v2071 = vpop.permute.xlu0 %2070
      %v2074 = vsel %vm1157, %v2049, 0
      %v2077 = vsel %vm988, %v2058, 0
      %2079 = vmatpush.bf16.msra.mxu0 0
      %2080 = vmatpush.bf16.msra.mxu0 0
      %2081 = vmatpush.bf16.msra.mxu0 0
      %2082 = vmatpush.bf16.msra.mxu0 0
      %2083 = vmatpush.bf16.msra.mxu0 0
      %2084 = vmatpush.bf16.msra.mxu0 0
      %2085 = vmatpush.bf16.msra.mxu0 %v2077
      %2086 = vmatpush.bf16.msra.mxu0 %v2064
      %2087 = vmatmul.bf16.gmra.mxu0 %v2074
      %v2088 = vpop.f32.mrf.mxu0
      %v2089 = vadd.f32 %v2071, %v2088
      %v2090 = vpop.f32.mrf.mxu0
      %2091 = vdwg.mxu0
      %v2092 = vadd.f32 %v2045, %v2089
      %v2093 = vmul.f32 %v2089, 0.2
      %v2094 = vmax.f32 %v2089, %v2093
      %s2095 = scalar_lea.vmem %s14, 16
      %v2096 = vld [vmem:[%s2095] sm:$0xf]
      %v2097 = vpack.c.bf16 %v2094, %v2094
      %2098 = vrot.lane.b32.xlu0 %v2094, 32
      %v2099 = vpop.permute.xlu0 %2098
      %v2100 = vsel %vm1332, %v2099, 0.0
      %v2101 = vpack.c.bf16 %v2100, %v2100
      %2102 = vrot.lane.b32.xlu0 %v2094, 96
      %v2103 = vpop.permute.xlu0 %2102
      %v2104 = vsel %vm1337, %v2103, 0.0
      %v2105 = vpack.c.bf16 %v2104, %v2104
      %v2107 = vunpack.c.l.b16 %v2097
      %v2108 = vpack.c.b16 %v2107, %v2107
      %v2111 = vsel %vm988, %v2101, %v2108
      %s2113 = scalar_lea.vmem %s15, 32
      %v2114 = vld [vmem:[%s2113] sm:$0xff]
      %2116 = vset.pattern.permute.xlu0 0
      %2117 = vperm.xlu0 %2116, %v2114
      %v2118 = vpop.permute.xlu0 %2117
      %v2121 = vsel %vm1157, %v2096, 0
      %v2124 = vsel %vm988, %v2105, 0
      %2126 = vmatpush.bf16.msra.mxu0 0
      %2127 = vmatpush.bf16.msra.mxu0 0
      %2128 = vmatpush.bf16.msra.mxu0 0
      %2129 = vmatpush.bf16.msra.mxu0 0
      %2130 = vmatpush.bf16.msra.mxu0 0
      %2131 = vmatpush.bf16.msra.mxu0 0
      %2132 = vmatpush.bf16.msra.mxu0 %v2124
      %2133 = vmatpush.bf16.msra.mxu0 %v2111
      %2134 = vmatmul.bf16.gmra.mxu0 %v2121
      %v2135 = vpop.f32.mrf.mxu0
      %v2136 = vadd.f32 %v2118, %v2135
      %v2137 = vpop.f32.mrf.mxu0
      %2138 = vdwg.mxu0
      %v2139 = vadd.f32 %v2092, %v2136
      %v2140 = vmul.f32 %v2136, 0.2
      %v2141 = vmax.f32 %v2136, %v2140
      %s2142 = scalar_lea.vmem %s14, 20
      %v2143 = vld [vmem:[%s2142] sm:$0xf]
      %v2144 = vpack.c.bf16 %v2141, %v2141
      %2145 = vrot.lane.b32.xlu0 %v2141, 64
      %v2146 = vpop.permute.xlu0 %2145
      %v2147 = vsel %vm1381, %v2146, 0.0
      %v2148 = vpack.c.bf16 %v2147, %v2147
      %v2149 = vsel %vm1384, %v2146, 0.0
      %v2150 = vpack.c.bf16 %v2149, %v2149
      %v2152 = vunpack.c.l.b16 %v2144
      %v2153 = vpack.c.b16 %v2152, %v2152
      %v2156 = vsel %vm988, %v2148, %v2153
      %s2158 = scalar_lea.vmem %s15, 40
      %v2159 = vld [vmem:[%s2158] sm:$0xff]
      %2161 = vset.pattern.permute.xlu0 0
      %2162 = vperm.xlu0 %2161, %v2159
      %v2163 = vpop.permute.xlu0 %2162
      %v2166 = vsel %vm1157, %v2143, 0
      %v2169 = vsel %vm988, %v2150, 0
      %2171 = vmatpush.bf16.msra.mxu0 0
      %2172 = vmatpush.bf16.msra.mxu0 0
      %2173 = vmatpush.bf16.msra.mxu0 0
      %2174 = vmatpush.bf16.msra.mxu0 0
      %2175 = vmatpush.bf16.msra.mxu0 0
      %2176 = vmatpush.bf16.msra.mxu0 0
      %2177 = vmatpush.bf16.msra.mxu0 %v2169
      %2178 = vmatpush.bf16.msra.mxu0 %v2156
      %2179 = vmatmul.bf16.gmra.mxu0 %v2166
      %v2180 = vpop.f32.mrf.mxu0
      %v2181 = vadd.f32 %v2163, %v2180
      %v2182 = vpop.f32.mrf.mxu0
      %2183 = vdwg.mxu0
      %v2184 = vadd.f32 %v2139, %v2181
      %v2185 = vmul.f32 %v2181, 0.2
      %v2186 = vmax.f32 %v2181, %v2185
      %s2187 = scalar_lea.vmem %s14, 24
      %v2188 = vld [vmem:[%s2187] sm:$0xf]
      %v2189 = vpack.c.bf16 %v2186, %v2186
      %s2190 = scalar_lea.vmem %s15, 48
      %v2191 = vld [vmem:[%s2190] sm:$0xff]
      %2193 = vset.pattern.permute.xlu0 0
      %2194 = vperm.xlu0 %2193, %v2191
      %v2195 = vpop.permute.xlu0 %2194
      %v2198 = vunpack.c.l.b16 %v2188
      %v2199 = vpack.c.b16 %v2198, %v2198
      %2200 = vrot.lane.b32.xlu0 %v2199, 120
      %v2201 = vpop.permute.xlu0 %2200
      %v2203 = vsel %vm868, %v2201, 0
      %v2206 = vsel %vm988, %v2189, 0
      %2208 = vmatpush.bf16.msra.mxu0 0
      %2209 = vmatpush.bf16.msra.mxu0 0
      %2210 = vmatpush.bf16.msra.mxu0 0
      %2211 = vmatpush.bf16.msra.mxu0 0
      %2212 = vmatpush.bf16.msra.mxu0 0
      %2213 = vmatpush.bf16.msra.mxu0 0
      %2214 = vmatpush.bf16.msra.mxu0 0
      %2215 = vmatpush.bf16.msra.mxu0 %v2206
      %2216 = vmatmul.bf16.gmra.mxu0 %v2203
      %v2217 = vpop.f32.mrf.mxu0
      %v2218 = vadd.f32 %v2195, %v2217
      %v2219 = vpop.f32.mrf.mxu0
      %2220 = vdwg.mxu0
      %v2221 = vadd.f32 %v2184, %v2218
      %v2222 = vmul.f32 %v2218, 0.2
      %v2223 = vmax.f32 %v2218, %v2222
      %s2224 = scalar_lea.vmem %s14, 28
      %v2225 = vld [vmem:[%s2224] sm:$0xf]
      %v2226 = vpack.c.bf16 %v2223, %v2223
      %s2227 = scalar_lea.vmem %s15, 56
      %v2228 = vld [vmem:[%s2227] sm:$0xff]
      %2230 = vset.pattern.permute.xlu0 0
      %2231 = vperm.xlu0 %2230, %v2228
      %v2232 = vpop.permute.xlu0 %2231
      %v2235 = vunpack.c.l.b16 %v2225
      %v2236 = vpack.c.b16 %v2235, %v2235
      %2237 = vrot.lane.b32.xlu0 %v2236, 120
      %v2238 = vpop.permute.xlu0 %2237
      %v2240 = vsel %vm868, %v2238, 0
      %v2243 = vsel %vm988, %v2226, 0
      %2245 = vmatpush.bf16.msra.mxu0 0
      %2246 = vmatpush.bf16.msra.mxu0 0
      %2247 = vmatpush.bf16.msra.mxu0 0
      %2248 = vmatpush.bf16.msra.mxu0 0
      %2249 = vmatpush.bf16.msra.mxu0 0
      %2250 = vmatpush.bf16.msra.mxu0 0
      %2251 = vmatpush.bf16.msra.mxu0 0
      %2252 = vmatpush.bf16.msra.mxu0 %v2243
      %2253 = vmatmul.bf16.gmra.mxu0 %v2240
      %v2254 = vpop.f32.mrf.mxu0
      %v2255 = vadd.f32 %v2232, %v2254
      %v2256 = vpop.f32.mrf.mxu0
      %2257 = vdwg.mxu0
      %v2258 = vadd.f32 %v2221, %v2255
      %v2259 = vmul.f32 %v2255, 0.2
      %v2260 = vmax.f32 %v2255, %v2259
      %s2261 = scalar_lea.vmem %s14, 32
      %v2262 = vld [vmem:[%s2261] sm:$0xf]
      %v2263 = vpack.c.bf16 %v2260, %v2260
      %s2264 = scalar_lea.vmem %s15, 64
      %v2265 = vld [vmem:[%s2264] sm:$0xff]
      %2267 = vset.pattern.permute.xlu0 0
      %2268 = vperm.xlu0 %2267, %v2265
      %v2269 = vpop.permute.xlu0 %2268
      %v2272 = vunpack.c.l.b16 %v2262
      %v2273 = vpack.c.b16 %v2272, %v2272
      %2274 = vrot.lane.b32.xlu0 %v2273, 120
      %v2275 = vpop.permute.xlu0 %2274
      %v2277 = vsel %vm868, %v2275, 0
      %v2280 = vsel %vm988, %v2263, 0
      %2282 = vmatpush.bf16.msra.mxu0 0
      %2283 = vmatpush.bf16.msra.mxu0 0
      %2284 = vmatpush.bf16.msra.mxu0 0
      %2285 = vmatpush.bf16.msra.mxu0 0
      %2286 = vmatpush.bf16.msra.mxu0 0
      %2287 = vmatpush.bf16.msra.mxu0 0
      %2288 = vmatpush.bf16.msra.mxu0 0
      %2289 = vmatpush.bf16.msra.mxu0 %v2280
      %2290 = vmatmul.bf16.gmra.mxu0 %v2277
      %v2291 = vpop.f32.mrf.mxu0
      %v2292 = vadd.f32 %v2269, %v2291
      %v2293 = vpop.f32.mrf.mxu0
      %2294 = vdwg.mxu0
      %v2295 = vadd.f32 %v2258, %v2292
      %v2296 = vmul.f32 %v2292, 0.2
      %v2297 = vmax.f32 %v2292, %v2296
      %s2298 = scalar_lea.vmem %s14, 36
      %v2299 = vld [vmem:[%s2298] sm:$0xf]
      %v2300 = vpack.c.bf16 %v2297, %v2297
      %s2301 = scalar_lea.vmem %s15, 72
      %v2302 = vld [vmem:[%s2301] sm:$0xff]
      %2304 = vset.pattern.permute.xlu0 0
      %2305 = vperm.xlu0 %2304, %v2302
      %v2306 = vpop.permute.xlu0 %2305
      %v2309 = vunpack.c.l.b16 %v2299
      %v2310 = vpack.c.b16 %v2309, %v2309
      %2311 = vrot.lane.b32.xlu0 %v2310, 120
      %v2312 = vpop.permute.xlu0 %2311
      %v2314 = vsel %vm868, %v2312, 0
      %v2317 = vsel %vm988, %v2300, 0
      %2319 = vmatpush.bf16.msra.mxu0 0
      %2320 = vmatpush.bf16.msra.mxu0 0
      %2321 = vmatpush.bf16.msra.mxu0 0
      %2322 = vmatpush.bf16.msra.mxu0 0
      %2323 = vmatpush.bf16.msra.mxu0 0
      %2324 = vmatpush.bf16.msra.mxu0 0
      %2325 = vmatpush.bf16.msra.mxu0 0
      %2326 = vmatpush.bf16.msra.mxu0 %v2317
      %2327 = vmatmul.bf16.gmra.mxu0 %v2314
      %v2328 = vpop.f32.mrf.mxu0
      %v2329 = vadd.f32 %v2306, %v2328
      %v2330 = vpop.f32.mrf.mxu0
      %2331 = vdwg.mxu0
      %v2332 = vadd.f32 %v2295, %v2329
      %v2333 = vmul.f32 %v2332, 0.2
      %v2334 = vmax.f32 %v2332, %v2333
      %v2335 = vld [vmem:[%s25] sm:$0xff]
      %v2336 = vld [vmem:[%s25 + $0x8] sm:$0xff]
      %v2337 = vld [vmem:[%s25 + $0x10] sm:$0xff]
      %v2338 = vld [vmem:[%s23] sm:$0xf]
      %v2339 = vld [vmem:[%s23 + $0x4] sm:$0xf]
      %v2340 = vld [vmem:[%s23 + $0x8] sm:$0xf]
      %v2341 = vpack.c.bf16 %v2334, %v2334
      %v2345 = vunpack.c.l.b16 %v2338
      %v2346 = vunpack.c.l.b16 %v2339
      %v2347 = vunpack.c.l.b16 %v2340
      %v2348 = vpack.c.b16 %v2346, %v2345
      %v2349 = vpack.c.b16 %v2347, %v2347
      %v2351 = vsel %vm868, %v2348, 0
      %v2354 = vsel %vm868, %v2349, 0
      %v2357 = vsel %vm988, %v2341, 0
      %2359 = vmatpush.bf16.msra.mxu0 0
      %2360 = vmatpush.bf16.msra.mxu0 0
      %2361 = vmatpush.bf16.msra.mxu0 0
      %2362 = vmatpush.bf16.msra.mxu0 0
      %2363 = vmatpush.bf16.msra.mxu0 0
      %2364 = vmatpush.bf16.msra.mxu0 0
      %2365 = vmatpush.bf16.msra.mxu0 0
      %2366 = vmatpush.bf16.msra.mxu0 %v2357
      %2367 = vmatmul.bf16.gmra.mxu0 %v2351
      %v2368 = vpop.f32.mrf.mxu0
      %v2369 = vadd.f32 0.0, %v2368
      %v2370 = vpop.f32.mrf.mxu0
      %v2371 = vadd.f32 0.0, %v2370
      %2372 = vmatmul.bf16.gmra.mxu0 %v2354
      %v2373 = vpop.f32.mrf.mxu0
      %v2374 = vadd.f32 0.0, %v2373
      %v2375 = vpop.f32.mrf.mxu0
      %2376 = vdwg.mxu0
      %2378 = vset.pattern.permute.xlu0 0
      %2379 = vperm.xlu0 %2378, %v2335
      %v2380 = vpop.permute.xlu0 %2379
      %2383 = vset.pattern.permute.xlu0 0
      %2384 = vperm.xlu0 %2383, %v2336
      %v2385 = vpop.permute.xlu0 %2384
      %2388 = vset.pattern.permute.xlu0 0
      %2389 = vperm.xlu0 %2388, %v2337
      %v2390 = vpop.permute.xlu0 %2389
      %v2392 = vadd.f32 %v2380, %v2369
      %v2393 = vadd.f32 %v2385, %v2371
      %v2394 = vadd.f32 %v2390, %v2374
      %v2395 = vld [vmem:[%s24] sm:$0xf]
      %v2396 = vld [vmem:[%s24 + $0x4] sm:$0xf]
      %v2397 = vld [vmem:[%s24 + $0x8] sm:$0xf]
      %v2398 = vpack.c.bf16 %v1570, %v1570
      %v2402 = vunpack.c.l.b16 %v2395
      %v2403 = vunpack.c.l.b16 %v2396
      %v2404 = vunpack.c.l.b16 %v2397
      %v2405 = vpack.c.b16 %v2403, %v2402
      %v2406 = vpack.c.b16 %v2404, %v2404
      %v2408 = vsel %vm868, %v2405, 0
      %v2411 = vsel %vm868, %v2406, 0
      %v2414 = vsel %vm988, %v2398, 0
      %2416 = vmatpush.bf16.msra.mxu0 0
      %2417 = vmatpush.bf16.msra.mxu0 0
      %2418 = vmatpush.bf16.msra.mxu0 0
      %2419 = vmatpush.bf16.msra.mxu0 0
      %2420 = vmatpush.bf16.msra.mxu0 0
      %2421 = vmatpush.bf16.msra.mxu0 0
      %2422 = vmatpush.bf16.msra.mxu0 0
      %2423 = vmatpush.bf16.msra.mxu0 %v2414
      %2424 = vmatmul.bf16.gmra.mxu0 %v2408
      %v2425 = vpop.f32.mrf.mxu0
      %v2426 = vadd.f32 0.0, %v2425
      %v2427 = vpop.f32.mrf.mxu0
      %v2428 = vadd.f32 0.0, %v2427
      %2429 = vmatmul.bf16.gmra.mxu0 %v2411
      %v2430 = vpop.f32.mrf.mxu0
      %v2431 = vadd.f32 0.0, %v2430
      %v2432 = vpop.f32.mrf.mxu0
      %2433 = vdwg.mxu0
      %v2434 = vadd.f32 %v2392, %v2426
      %v2435 = vadd.f32 %v2393, %v2428
      %v2436 = vadd.f32 %v2394, %v2431
      %v2437 = vld [vmem:[%s20] sm:$0xff]
      %v2438 = vld [vmem:[%s20 + $0x8] sm:$0xff]
      %v2439 = vld [vmem:[%s20 + $0x10] sm:$0xff]
      %v2440 = vld [vmem:[%s18] sm:$0xf]
      %v2441 = vld [vmem:[%s18 + $0x4] sm:$0xf]
      %v2442 = vld [vmem:[%s18 + $0x8] sm:$0xf]
      %2443 = vrot.lane.b32.xlu0 %v2334, 1
      %v2444 = vpop.permute.xlu0 %2443
      %v2445 = vsel %vm1084, %v2444, 0.0
      %v2446 = vpack.c.bf16 %v2445, %v2445
      %2447 = vrot.lane.b32.xlu0 %v2334, 127
      %v2448 = vpop.permute.xlu0 %2447
      %v2449 = vsel %vm1089, %v2448, 0.0
      %v2450 = vpack.c.bf16 %v2449, %v2449
      %v2452 = vunpack.c.l.b16 %v2341
      %v2453 = vpack.c.b16 %v2452, %v2452
      %v2456 = vsel %vm988, %v2446, %v2453
      %v2461 = vunpack.c.l.b16 %v2440
      %v2462 = vunpack.c.l.b16 %v2441
      %v2463 = vunpack.c.l.b16 %v2442
      %v2464 = vpack.c.b16 %v2462, %v2461
      %v2465 = vpack.c.b16 %v2463, %v2463
      %v2467 = vsel %vm1157, %v2464, 0
      %v2470 = vsel %vm1157, %v2465, 0
      %v2473 = vsel %vm988, %v2450, 0
      %2475 = vmatpush.bf16.msra.mxu0 0
      %2476 = vmatpush.bf16.msra.mxu0 0
      %2477 = vmatpush.bf16.msra.mxu0 0
      %2478 = vmatpush.bf16.msra.mxu0 0
      %2479 = vmatpush.bf16.msra.mxu0 0
      %2480 = vmatpush.bf16.msra.mxu0 0
      %2481 = vmatpush.bf16.msra.mxu0 %v2473
      %2482 = vmatpush.bf16.msra.mxu0 %v2456
      %2483 = vmatmul.bf16.gmra.mxu0 %v2467
      %v2484 = vpop.f32.mrf.mxu0
      %v2485 = vadd.f32 0.0, %v2484
      %v2486 = vpop.f32.mrf.mxu0
      %v2487 = vadd.f32 0.0, %v2486
      %2488 = vmatmul.bf16.gmra.mxu0 %v2470
      %v2489 = vpop.f32.mrf.mxu0
      %v2490 = vadd.f32 0.0, %v2489
      %v2491 = vpop.f32.mrf.mxu0
      %2492 = vdwg.mxu0
      %2494 = vset.pattern.permute.xlu0 0
      %2495 = vperm.xlu0 %2494, %v2437
      %v2496 = vpop.permute.xlu0 %2495
      %2499 = vset.pattern.permute.xlu0 0
      %2500 = vperm.xlu0 %2499, %v2438
      %v2501 = vpop.permute.xlu0 %2500
      %2504 = vset.pattern.permute.xlu0 0
      %2505 = vperm.xlu0 %2504, %v2439
      %v2506 = vpop.permute.xlu0 %2505
      %v2508 = vadd.f32 %v2496, %v2485
      %v2509 = vadd.f32 %v2501, %v2487
      %v2510 = vadd.f32 %v2506, %v2490
      %v2511 = vld [vmem:[%s19] sm:$0xf]
      %v2512 = vld [vmem:[%s19 + $0x4] sm:$0xf]
      %v2513 = vld [vmem:[%s19 + $0x8] sm:$0xf]
      %2514 = vrot.lane.b32.xlu0 %v1570, 1
      %v2515 = vpop.permute.xlu0 %2514
      %v2516 = vsel %vm1084, %v2515, 0.0
      %v2517 = vpack.c.bf16 %v2516, %v2516
      %2518 = vrot.lane.b32.xlu0 %v1570, 127
      %v2519 = vpop.permute.xlu0 %2518
      %v2520 = vsel %vm1089, %v2519, 0.0
      %v2521 = vpack.c.bf16 %v2520, %v2520
      %v2523 = vunpack.c.l.b16 %v2398
      %v2524 = vpack.c.b16 %v2523, %v2523
      %v2527 = vsel %vm988, %v2517, %v2524
      %v2532 = vunpack.c.l.b16 %v2511
      %v2533 = vunpack.c.l.b16 %v2512
      %v2534 = vunpack.c.l.b16 %v2513
      %v2535 = vpack.c.b16 %v2533, %v2532
      %v2536 = vpack.c.b16 %v2534, %v2534
      %v2538 = vsel %vm1157, %v2535, 0
      %v2541 = vsel %vm1157, %v2536, 0
      %v2544 = vsel %vm988, %v2521, 0
      %2546 = vmatpush.bf16.msra.mxu0 0
      %2547 = vmatpush.bf16.msra.mxu0 0
      %2548 = vmatpush.bf16.msra.mxu0 0
      %2549 = vmatpush.bf16.msra.mxu0 0
      %2550 = vmatpush.bf16.msra.mxu0 0
      %2551 = vmatpush.bf16.msra.mxu0 0
      %2552 = vmatpush.bf16.msra.mxu0 %v2544
      %2553 = vmatpush.bf16.msra.mxu0 %v2527
      %2554 = vmatmul.bf16.gmra.mxu0 %v2538
      %v2555 = vpop.f32.mrf.mxu0
      %v2556 = vadd.f32 0.0, %v2555
      %v2557 = vpop.f32.mrf.mxu0
      %v2558 = vadd.f32 0.0, %v2557
      %2559 = vmatmul.bf16.gmra.mxu0 %v2541
      %v2560 = vpop.f32.mrf.mxu0
      %v2561 = vadd.f32 0.0, %v2560
      %v2562 = vpop.f32.mrf.mxu0
      %2563 = vdwg.mxu0
      %v2564 = vadd.f32 %v2508, %v2556
      %v2565 = vadd.f32 %v2509, %v2558
      %v2566 = vadd.f32 %v2510, %v2561
      %v2567 = vadd.f32 %v2434, %v2564
      %v2568 = vadd.f32 %v2435, %v2565
      %v2569 = vadd.f32 %v2436, %v2566
      %v2570 = vmul.f32 %v2564, 0.2
      %v2571 = vmul.f32 %v2565, 0.2
      %v2572 = vmul.f32 %v2566, 0.2
      %v2573 = vmax.f32 %v2564, %v2570
      %v2574 = vmax.f32 %v2565, %v2571
      %v2575 = vmax.f32 %v2566, %v2572
      %v2576 = vld [vmem:[%s21] sm:$0xf]
      %v2577 = vld [vmem:[%s21 + $0x4] sm:$0xf]
      %v2578 = vld [vmem:[%s21 + $0x8] sm:$0xf]
      %v2579 = vpack.c.bf16 %v2573, %v2573
      %v2580 = vpack.c.bf16 %v2574, %v2574
      %v2581 = vpack.c.bf16 %v2575, %v2575
      %2582 = vrot.lane.b32.xlu0 %v2573, 2
      %v2583 = vpop.permute.xlu0 %2582
      %2584 = vrot.lane.b32.xlu0 %v2574, 2
      %v2585 = vpop.permute.xlu0 %2584
      %2586 = vrot.lane.b32.xlu0 %v2575, 2
      %v2587 = vpop.permute.xlu0 %2586
      %v2588 = vsel %vm1136, %v2583, 0.0
      %v2589 = vsel %vm1136, %v2585, 0.0
      %v2590 = vsel %vm1136, %v2587, 0.0
      %v2591 = vpack.c.bf16 %v2588, %v2588
      %v2592 = vpack.c.bf16 %v2589, %v2589
      %v2593 = vpack.c.bf16 %v2590, %v2590
      %2594 = vrot.lane.b32.xlu0 %v2573, 126
      %v2595 = vpop.permute.xlu0 %2594
      %2596 = vrot.lane.b32.xlu0 %v2574, 126
      %v2597 = vpop.permute.xlu0 %2596
      %2598 = vrot.lane.b32.xlu0 %v2575, 126
      %v2599 = vpop.permute.xlu0 %2598
      %v2600 = vsel %vm1141, %v2595, 0.0
      %v2601 = vsel %vm1141, %v2597, 0.0
      %v2602 = vsel %vm1141, %v2599, 0.0
      %v2603 = vpack.c.bf16 %v2600, %v2600
      %v2604 = vpack.c.bf16 %v2601, %v2601
      %v2605 = vpack.c.bf16 %v2602, %v2602
      %v2609 = vunpack.c.l.b16 %v2591
      %v2610 = vunpack.c.l.b16 %v2592
      %v2611 = vunpack.c.l.b16 %v2593
      %v2612 = vpack.c.b16 %v2610, %v2609
      %v2613 = vpack.c.b16 %v2611, %v2611
      %v2618 = vunpack.c.l.b16 %v2579
      %v2619 = vunpack.c.l.b16 %v2580
      %v2620 = vunpack.c.l.b16 %v2581
      %v2621 = vpack.c.b16 %v2618, %v2618
      %v2622 = vpack.c.b16 %v2620, %v2619
      %v2627 = vunpack.c.l.b16 %v2603
      %v2628 = vunpack.c.l.b16 %v2604
      %v2629 = vunpack.c.l.b16 %v2605
      %v2630 = vpack.c.b16 %v2628, %v2627
      %v2631 = vpack.c.b16 %v2629, %v2629
      %v2635 = vsel %vm988, %v2613, %v2621
      %v2637 = vld [vmem:[%s22] sm:$0xff]
      %v2638 = vld [vmem:[%s22 + $0x8] sm:$0xff]
      %v2639 = vld [vmem:[%s22 + $0x10] sm:$0xff]
      %2641 = vset.pattern.permute.xlu0 0
      %2642 = vperm.xlu0 %2641, %v2637
      %v2643 = vpop.permute.xlu0 %2642
      %2646 = vset.pattern.permute.xlu0 0
      %2647 = vperm.xlu0 %2646, %v2638
      %v2648 = vpop.permute.xlu0 %2647
      %2651 = vset.pattern.permute.xlu0 0
      %2652 = vperm.xlu0 %2651, %v2639
      %v2653 = vpop.permute.xlu0 %2652
      %v2658 = vunpack.c.l.b16 %v2576
      %v2659 = vunpack.c.l.b16 %v2577
      %v2660 = vunpack.c.l.b16 %v2578
      %v2661 = vpack.c.b16 %v2659, %v2658
      %v2662 = vpack.c.b16 %v2660, %v2660
      %vm2663 = vcmask 588800
      %v2665 = vsel %vm2663, %v2661, 0
      %v2668 = vsel %vm2663, %v2662, 0
      %v2671 = vsel %vm988, %v2631, 0
      %2673 = vmatpush.bf16.msra.mxu0 0
      %2674 = vmatpush.bf16.msra.mxu0 0
      %2675 = vmatpush.bf16.msra.mxu0 0
      %2676 = vmatpush.bf16.msra.mxu0 %v2671
      %2677 = vmatpush.bf16.msra.mxu0 %v2630
      %2678 = vmatpush.bf16.msra.mxu0 %v2622
      %2679 = vmatpush.bf16.msra.mxu0 %v2635
      %2680 = vmatpush.bf16.msra.mxu0 %v2612
      %2681 = vmatmul.bf16.gmra.mxu0 %v2665
      %v2682 = vpop.f32.mrf.mxu0
      %v2683 = vadd.f32 %v2643, %v2682
      %v2684 = vpop.f32.mrf.mxu0
      %v2685 = vadd.f32 %v2648, %v2684
      %2686 = vmatmul.bf16.gmra.mxu0 %v2668
      %v2687 = vpop.f32.mrf.mxu0
      %v2688 = vadd.f32 %v2653, %v2687
      %v2689 = vpop.f32.mrf.mxu0
      %2690 = vdwg.mxu0
      %v2691 = vadd.f32 %v2567, %v2683
      %v2692 = vadd.f32 %v2568, %v2685
      %v2693 = vadd.f32 %v2569, %v2688
      %v2694 = vmul.f32 %v2683, 0.2
      %v2695 = vmul.f32 %v2685, 0.2
      %v2696 = vmul.f32 %v2688, 0.2
      %v2697 = vmax.f32 %v2683, %v2694
      %v2698 = vmax.f32 %v2685, %v2695
      %v2699 = vmax.f32 %v2688, %v2696
      %s2700 = scalar_lea.vmem %s21, 12
      %v2701 = vld [vmem:[%s2700] sm:$0xf]
      %v2702 = vld [vmem:[%s2700 + $0x4] sm:$0xf]
      %v2703 = vld [vmem:[%s2700 + $0x8] sm:$0xf]
      %v2704 = vpack.c.bf16 %v2697, %v2697
      %v2705 = vpack.c.bf16 %v2698, %v2698
      %v2706 = vpack.c.bf16 %v2699, %v2699
      %2707 = vrot.lane.b32.xlu0 %v2697, 4
      %v2708 = vpop.permute.xlu0 %2707
      %2709 = vrot.lane.b32.xlu0 %v2698, 4
      %v2710 = vpop.permute.xlu0 %2709
      %2711 = vrot.lane.b32.xlu0 %v2699, 4
      %v2712 = vpop.permute.xlu0 %2711
      %v2713 = vsel %vm1185, %v2708, 0.0
      %v2714 = vsel %vm1185, %v2710, 0.0
      %v2715 = vsel %vm1185, %v2712, 0.0
      %v2716 = vpack.c.bf16 %v2713, %v2713
      %v2717 = vpack.c.bf16 %v2714, %v2714
      %v2718 = vpack.c.bf16 %v2715, %v2715
      %2719 = vrot.lane.b32.xlu0 %v2697, 124
      %v2720 = vpop.permute.xlu0 %2719
      %2721 = vrot.lane.b32.xlu0 %v2698, 124
      %v2722 = vpop.permute.xlu0 %2721
      %2723 = vrot.lane.b32.xlu0 %v2699, 124
      %v2724 = vpop.permute.xlu0 %2723
      %v2725 = vsel %vm1190, %v2720, 0.0
      %v2726 = vsel %vm1190, %v2722, 0.0
      %v2727 = vsel %vm1190, %v2724, 0.0
      %v2728 = vpack.c.bf16 %v2725, %v2725
      %v2729 = vpack.c.bf16 %v2726, %v2726
      %v2730 = vpack.c.bf16 %v2727, %v2727
      %v2734 = vunpack.c.l.b16 %v2716
      %v2735 = vunpack.c.l.b16 %v2717
      %v2736 = vunpack.c.l.b16 %v2718
      %v2737 = vpack.c.b16 %v2735, %v2734
      %v2738 = vpack.c.b16 %v2736, %v2736
      %v2743 = vunpack.c.l.b16 %v2704
      %v2744 = vunpack.c.l.b16 %v2705
      %v2745 = vunpack.c.l.b16 %v2706
      %v2746 = vpack.c.b16 %v2743, %v2743
      %v2747 = vpack.c.b16 %v2745, %v2744
      %v2752 = vunpack.c.l.b16 %v2728
      %v2753 = vunpack.c.l.b16 %v2729
      %v2754 = vunpack.c.l.b16 %v2730
      %v2755 = vpack.c.b16 %v2753, %v2752
      %v2756 = vpack.c.b16 %v2754, %v2754
      %v2760 = vsel %vm988, %v2738, %v2746
      %s2762 = scalar_lea.vmem %s22, 24
      %v2763 = vld [vmem:[%s2762] sm:$0xff]
      %v2764 = vld [vmem:[%s2762 + $0x8] sm:$0xff]
      %v2765 = vld [vmem:[%s2762 + $0x10] sm:$0xff]
      %2767 = vset.pattern.permute.xlu0 0
      %2768 = vperm.xlu0 %2767, %v2763
      %v2769 = vpop.permute.xlu0 %2768
      %2772 = vset.pattern.permute.xlu0 0
      %2773 = vperm.xlu0 %2772, %v2764
      %v2774 = vpop.permute.xlu0 %2773
      %2777 = vset.pattern.permute.xlu0 0
      %2778 = vperm.xlu0 %2777, %v2765
      %v2779 = vpop.permute.xlu0 %2778
      %v2784 = vunpack.c.l.b16 %v2701
      %v2785 = vunpack.c.l.b16 %v2702
      %v2786 = vunpack.c.l.b16 %v2703
      %v2787 = vpack.c.b16 %v2785, %v2784
      %v2788 = vpack.c.b16 %v2786, %v2786
      %v2790 = vsel %vm2663, %v2787, 0
      %v2793 = vsel %vm2663, %v2788, 0
      %v2796 = vsel %vm988, %v2756, 0
      %2798 = vmatpush.bf16.msra.mxu0 0
      %2799 = vmatpush.bf16.msra.mxu0 0
      %2800 = vmatpush.bf16.msra.mxu0 0
      %2801 = vmatpush.bf16.msra.mxu0 %v2796
      %2802 = vmatpush.bf16.msra.mxu0 %v2755
      %2803 = vmatpush.bf16.msra.mxu0 %v2747
      %2804 = vmatpush.bf16.msra.mxu0 %v2760
      %2805 = vmatpush.bf16.msra.mxu0 %v2737
      %2806 = vmatmul.bf16.gmra.mxu0 %v2790
      %v2807 = vpop.f32.mrf.mxu0
      %v2808 = vadd.f32 %v2769, %v2807
      %v2809 = vpop.f32.mrf.mxu0
      %v2810 = vadd.f32 %v2774, %v2809
      %2811 = vmatmul.bf16.gmra.mxu0 %v2793
      %v2812 = vpop.f32.mrf.mxu0
      %v2813 = vadd.f32 %v2779, %v2812
      %v2814 = vpop.f32.mrf.mxu0
      %2815 = vdwg.mxu0
      %v2816 = vadd.f32 %v2691, %v2808
      %v2817 = vadd.f32 %v2692, %v2810
      %v2818 = vadd.f32 %v2693, %v2813
      %v2819 = vmul.f32 %v2808, 0.2
      %v2820 = vmul.f32 %v2810, 0.2
      %v2821 = vmul.f32 %v2813, 0.2
      %v2822 = vmax.f32 %v2808, %v2819
      %v2823 = vmax.f32 %v2810, %v2820
      %v2824 = vmax.f32 %v2813, %v2821
      %s2825 = scalar_lea.vmem %s21, 24
      %v2826 = vld [vmem:[%s2825] sm:$0xf]
      %v2827 = vld [vmem:[%s2825 + $0x4] sm:$0xf]
      %v2828 = vld [vmem:[%s2825 + $0x8] sm:$0xf]
      %v2829 = vpack.c.bf16 %v2822, %v2822
      %v2830 = vpack.c.bf16 %v2823, %v2823
      %v2831 = vpack.c.bf16 %v2824, %v2824
      %2832 = vrot.lane.b32.xlu0 %v2822, 8
      %v2833 = vpop.permute.xlu0 %2832
      %2834 = vrot.lane.b32.xlu0 %v2823, 8
      %v2835 = vpop.permute.xlu0 %2834
      %2836 = vrot.lane.b32.xlu0 %v2824, 8
      %v2837 = vpop.permute.xlu0 %2836
      %v2838 = vsel %vm1234, %v2833, 0.0
      %v2839 = vsel %vm1234, %v2835, 0.0
      %v2840 = vsel %vm1234, %v2837, 0.0
      %v2841 = vpack.c.bf16 %v2838, %v2838
      %v2842 = vpack.c.bf16 %v2839, %v2839
      %v2843 = vpack.c.bf16 %v2840, %v2840
      %2844 = vrot.lane.b32.xlu0 %v2822, 120
      %v2845 = vpop.permute.xlu0 %2844
      %2846 = vrot.lane.b32.xlu0 %v2823, 120
      %v2847 = vpop.permute.xlu0 %2846
      %2848 = vrot.lane.b32.xlu0 %v2824, 120
      %v2849 = vpop.permute.xlu0 %2848
      %v2850 = vsel %vm1239, %v2845, 0.0
      %v2851 = vsel %vm1239, %v2847, 0.0
      %v2852 = vsel %vm1239, %v2849, 0.0
      %v2853 = vpack.c.bf16 %v2850, %v2850
      %v2854 = vpack.c.bf16 %v2851, %v2851
      %v2855 = vpack.c.bf16 %v2852, %v2852
      %v2859 = vunpack.c.l.b16 %v2841
      %v2860 = vunpack.c.l.b16 %v2842
      %v2861 = vunpack.c.l.b16 %v2843
      %v2862 = vpack.c.b16 %v2860, %v2859
      %v2863 = vpack.c.b16 %v2861, %v2861
      %v2868 = vunpack.c.l.b16 %v2829
      %v2869 = vunpack.c.l.b16 %v2830
      %v2870 = vunpack.c.l.b16 %v2831
      %v2871 = vpack.c.b16 %v2868, %v2868
      %v2872 = vpack.c.b16 %v2870, %v2869
      %v2877 = vunpack.c.l.b16 %v2853
      %v2878 = vunpack.c.l.b16 %v2854
      %v2879 = vunpack.c.l.b16 %v2855
      %v2880 = vpack.c.b16 %v2878, %v2877
      %v2881 = vpack.c.b16 %v2879, %v2879
      %v2885 = vsel %vm988, %v2863, %v2871
      %s2887 = scalar_lea.vmem %s22, 48
      %v2888 = vld [vmem:[%s2887] sm:$0xff]
      %v2889 = vld [vmem:[%s2887 + $0x8] sm:$0xff]
      %v2890 = vld [vmem:[%s2887 + $0x10] sm:$0xff]
      %2892 = vset.pattern.permute.xlu0 0
      %2893 = vperm.xlu0 %2892, %v2888
      %v2894 = vpop.permute.xlu0 %2893
      %2897 = vset.pattern.permute.xlu0 0
      %2898 = vperm.xlu0 %2897, %v2889
      %v2899 = vpop.permute.xlu0 %2898
      %2902 = vset.pattern.permute.xlu0 0
      %2903 = vperm.xlu0 %2902, %v2890
      %v2904 = vpop.permute.xlu0 %2903
      %v2909 = vunpack.c.l.b16 %v2826
      %v2910 = vunpack.c.l.b16 %v2827
      %v2911 = vunpack.c.l.b16 %v2828
      %v2912 = vpack.c.b16 %v2910, %v2909
      %v2913 = vpack.c.b16 %v2911, %v2911
      %v2915 = vsel %vm2663, %v2912, 0
      %v2918 = vsel %vm2663, %v2913, 0
      %v2921 = vsel %vm988, %v2881, 0
      %2923 = vmatpush.bf16.msra.mxu0 0
      %2924 = vmatpush.bf16.msra.mxu0 0
      %2925 = vmatpush.bf16.msra.mxu0 0
      %2926 = vmatpush.bf16.msra.mxu0 %v2921
      %2927 = vmatpush.bf16.msra.mxu0 %v2880
      %2928 = vmatpush.bf16.msra.mxu0 %v2872
      %2929 = vmatpush.bf16.msra.mxu0 %v2885
      %2930 = vmatpush.bf16.msra.mxu0 %v2862
      %2931 = vmatmul.bf16.gmra.mxu0 %v2915
      %v2932 = vpop.f32.mrf.mxu0
      %v2933 = vadd.f32 %v2894, %v2932
      %v2934 = vpop.f32.mrf.mxu0
      %v2935 = vadd.f32 %v2899, %v2934
      %2936 = vmatmul.bf16.gmra.mxu0 %v2918
      %v2937 = vpop.f32.mrf.mxu0
      %v2938 = vadd.f32 %v2904, %v2937
      %v2939 = vpop.f32.mrf.mxu0
      %2940 = vdwg.mxu0
      %v2941 = vadd.f32 %v2816, %v2933
      %v2942 = vadd.f32 %v2817, %v2935
      %v2943 = vadd.f32 %v2818, %v2938
      %v2944 = vmul.f32 %v2933, 0.2
      %v2945 = vmul.f32 %v2935, 0.2
      %v2946 = vmul.f32 %v2938, 0.2
      %v2947 = vmax.f32 %v2933, %v2944
      %v2948 = vmax.f32 %v2935, %v2945
      %v2949 = vmax.f32 %v2938, %v2946
      %s2950 = scalar_lea.vmem %s21, 36
      %v2951 = vld [vmem:[%s2950] sm:$0xf]
      %v2952 = vld [vmem:[%s2950 + $0x4] sm:$0xf]
      %v2953 = vld [vmem:[%s2950 + $0x8] sm:$0xf]
      %v2954 = vpack.c.bf16 %v2947, %v2947
      %v2955 = vpack.c.bf16 %v2948, %v2948
      %v2956 = vpack.c.bf16 %v2949, %v2949
      %2957 = vrot.lane.b32.xlu0 %v2947, 16
      %v2958 = vpop.permute.xlu0 %2957
      %2959 = vrot.lane.b32.xlu0 %v2948, 16
      %v2960 = vpop.permute.xlu0 %2959
      %2961 = vrot.lane.b32.xlu0 %v2949, 16
      %v2962 = vpop.permute.xlu0 %2961
      %v2963 = vsel %vm1283, %v2958, 0.0
      %v2964 = vsel %vm1283, %v2960, 0.0
      %v2965 = vsel %vm1283, %v2962, 0.0
      %v2966 = vpack.c.bf16 %v2963, %v2963
      %v2967 = vpack.c.bf16 %v2964, %v2964
      %v2968 = vpack.c.bf16 %v2965, %v2965
      %2969 = vrot.lane.b32.xlu0 %v2947, 112
      %v2970 = vpop.permute.xlu0 %2969
      %2971 = vrot.lane.b32.xlu0 %v2948, 112
      %v2972 = vpop.permute.xlu0 %2971
      %2973 = vrot.lane.b32.xlu0 %v2949, 112
      %v2974 = vpop.permute.xlu0 %2973
      %v2975 = vsel %vm1288, %v2970, 0.0
      %v2976 = vsel %vm1288, %v2972, 0.0
      %v2977 = vsel %vm1288, %v2974, 0.0
      %v2978 = vpack.c.bf16 %v2975, %v2975
      %v2979 = vpack.c.bf16 %v2976, %v2976
      %v2980 = vpack.c.bf16 %v2977, %v2977
      %v2984 = vunpack.c.l.b16 %v2966
      %v2985 = vunpack.c.l.b16 %v2967
      %v2986 = vunpack.c.l.b16 %v2968
      %v2987 = vpack.c.b16 %v2985, %v2984
      %v2988 = vpack.c.b16 %v2986, %v2986
      %v2993 = vunpack.c.l.b16 %v2954
      %v2994 = vunpack.c.l.b16 %v2955
      %v2995 = vunpack.c.l.b16 %v2956
      %v2996 = vpack.c.b16 %v2993, %v2993
      %v2997 = vpack.c.b16 %v2995, %v2994
      %v3002 = vunpack.c.l.b16 %v2978
      %v3003 = vunpack.c.l.b16 %v2979
      %v3004 = vunpack.c.l.b16 %v2980
      %v3005 = vpack.c.b16 %v3003, %v3002
      %v3006 = vpack.c.b16 %v3004, %v3004
      %v3010 = vsel %vm988, %v2988, %v2996
      %s3012 = scalar_lea.vmem %s22, 72
      %v3013 = vld [vmem:[%s3012] sm:$0xff]
      %v3014 = vld [vmem:[%s3012 + $0x8] sm:$0xff]
      %v3015 = vld [vmem:[%s3012 + $0x10] sm:$0xff]
      %3017 = vset.pattern.permute.xlu0 0
      %3018 = vperm.xlu0 %3017, %v3013
      %v3019 = vpop.permute.xlu0 %3018
      %3022 = vset.pattern.permute.xlu0 0
      %3023 = vperm.xlu0 %3022, %v3014
      %v3024 = vpop.permute.xlu0 %3023
      %3027 = vset.pattern.permute.xlu0 0
      %3028 = vperm.xlu0 %3027, %v3015
      %v3029 = vpop.permute.xlu0 %3028
      %v3034 = vunpack.c.l.b16 %v2951
      %v3035 = vunpack.c.l.b16 %v2952
      %v3036 = vunpack.c.l.b16 %v2953
      %v3037 = vpack.c.b16 %v3035, %v3034
      %v3038 = vpack.c.b16 %v3036, %v3036
      %v3040 = vsel %vm2663, %v3037, 0
      %v3043 = vsel %vm2663, %v3038, 0
      %v3046 = vsel %vm988, %v3006, 0
      %3048 = vmatpush.bf16.msra.mxu0 0
      %3049 = vmatpush.bf16.msra.mxu0 0
      %3050 = vmatpush.bf16.msra.mxu0 0
      %3051 = vmatpush.bf16.msra.mxu0 %v3046
      %3052 = vmatpush.bf16.msra.mxu0 %v3005
      %3053 = vmatpush.bf16.msra.mxu0 %v2997
      %3054 = vmatpush.bf16.msra.mxu0 %v3010
      %3055 = vmatpush.bf16.msra.mxu0 %v2987
      %3056 = vmatmul.bf16.gmra.mxu0 %v3040
      %v3057 = vpop.f32.mrf.mxu0
      %v3058 = vadd.f32 %v3019, %v3057
      %v3059 = vpop.f32.mrf.mxu0
      %v3060 = vadd.f32 %v3024, %v3059
      %3061 = vmatmul.bf16.gmra.mxu0 %v3043
      %v3062 = vpop.f32.mrf.mxu0
      %v3063 = vadd.f32 %v3029, %v3062
      %v3064 = vpop.f32.mrf.mxu0
      %3065 = vdwg.mxu0
      %v3066 = vadd.f32 %v2941, %v3058
      %v3067 = vadd.f32 %v2942, %v3060
      %v3068 = vadd.f32 %v2943, %v3063
      %v3069 = vmul.f32 %v3058, 0.2
      %v3070 = vmul.f32 %v3060, 0.2
      %v3071 = vmul.f32 %v3063, 0.2
      %v3072 = vmax.f32 %v3058, %v3069
      %v3073 = vmax.f32 %v3060, %v3070
      %v3074 = vmax.f32 %v3063, %v3071
      %s3075 = scalar_lea.vmem %s21, 48
      %v3076 = vld [vmem:[%s3075] sm:$0xf]
      %v3077 = vld [vmem:[%s3075 + $0x4] sm:$0xf]
      %v3078 = vld [vmem:[%s3075 + $0x8] sm:$0xf]
      %v3079 = vpack.c.bf16 %v3072, %v3072
      %v3080 = vpack.c.bf16 %v3073, %v3073
      %v3081 = vpack.c.bf16 %v3074, %v3074
      %3082 = vrot.lane.b32.xlu0 %v3072, 32
      %v3083 = vpop.permute.xlu0 %3082
      %3084 = vrot.lane.b32.xlu0 %v3073, 32
      %v3085 = vpop.permute.xlu0 %3084
      %3086 = vrot.lane.b32.xlu0 %v3074, 32
      %v3087 = vpop.permute.xlu0 %3086
      %v3088 = vsel %vm1332, %v3083, 0.0
      %v3089 = vsel %vm1332, %v3085, 0.0
      %v3090 = vsel %vm1332, %v3087, 0.0
      %v3091 = vpack.c.bf16 %v3088, %v3088
      %v3092 = vpack.c.bf16 %v3089, %v3089
      %v3093 = vpack.c.bf16 %v3090, %v3090
      %3094 = vrot.lane.b32.xlu0 %v3072, 96
      %v3095 = vpop.permute.xlu0 %3094
      %3096 = vrot.lane.b32.xlu0 %v3073, 96
      %v3097 = vpop.permute.xlu0 %3096
      %3098 = vrot.lane.b32.xlu0 %v3074, 96
      %v3099 = vpop.permute.xlu0 %3098
      %v3100 = vsel %vm1337, %v3095, 0.0
      %v3101 = vsel %vm1337, %v3097, 0.0
      %v3102 = vsel %vm1337, %v3099, 0.0
      %v3103 = vpack.c.bf16 %v3100, %v3100
      %v3104 = vpack.c.bf16 %v3101, %v3101
      %v3105 = vpack.c.bf16 %v3102, %v3102
      %v3109 = vunpack.c.l.b16 %v3091
      %v3110 = vunpack.c.l.b16 %v3092
      %v3111 = vunpack.c.l.b16 %v3093
      %v3112 = vpack.c.b16 %v3110, %v3109
      %v3113 = vpack.c.b16 %v3111, %v3111
      %v3118 = vunpack.c.l.b16 %v3079
      %v3119 = vunpack.c.l.b16 %v3080
      %v3120 = vunpack.c.l.b16 %v3081
      %v3121 = vpack.c.b16 %v3118, %v3118
      %v3122 = vpack.c.b16 %v3120, %v3119
      %v3127 = vunpack.c.l.b16 %v3103
      %v3128 = vunpack.c.l.b16 %v3104
      %v3129 = vunpack.c.l.b16 %v3105
      %v3130 = vpack.c.b16 %v3128, %v3127
      %v3131 = vpack.c.b16 %v3129, %v3129
      %v3135 = vsel %vm988, %v3113, %v3121
      %s3137 = scalar_lea.vmem %s22, 96
      %v3138 = vld [vmem:[%s3137] sm:$0xff]
      %v3139 = vld [vmem:[%s3137 + $0x8] sm:$0xff]
      %v3140 = vld [vmem:[%s3137 + $0x10] sm:$0xff]
      %3142 = vset.pattern.permute.xlu0 0
      %3143 = vperm.xlu0 %3142, %v3138
      %v3144 = vpop.permute.xlu0 %3143
      %3147 = vset.pattern.permute.xlu0 0
      %3148 = vperm.xlu0 %3147, %v3139
      %v3149 = vpop.permute.xlu0 %3148
      %3152 = vset.pattern.permute.xlu0 0
      %3153 = vperm.xlu0 %3152, %v3140
      %v3154 = vpop.permute.xlu0 %3153
      %v3159 = vunpack.c.l.b16 %v3076
      %v3160 = vunpack.c.l.b16 %v3077
      %v3161 = vunpack.c.l.b16 %v3078
      %v3162 = vpack.c.b16 %v3160, %v3159
      %v3163 = vpack.c.b16 %v3161, %v3161
      %v3165 = vsel %vm2663, %v3162, 0
      %v3168 = vsel %vm2663, %v3163, 0
      %v3171 = vsel %vm988, %v3131, 0
      %3173 = vmatpush.bf16.msra.mxu0 0
      %3174 = vmatpush.bf16.msra.mxu0 0
      %3175 = vmatpush.bf16.msra.mxu0 0
      %3176 = vmatpush.bf16.msra.mxu0 %v3171
      %3177 = vmatpush.bf16.msra.mxu0 %v3130
      %3178 = vmatpush.bf16.msra.mxu0 %v3122
      %3179 = vmatpush.bf16.msra.mxu0 %v3135
      %3180 = vmatpush.bf16.msra.mxu0 %v3112
      %3181 = vmatmul.bf16.gmra.mxu0 %v3165
      %v3182 = vpop.f32.mrf.mxu0
      %v3183 = vadd.f32 %v3144, %v3182
      %v3184 = vpop.f32.mrf.mxu0
      %v3185 = vadd.f32 %v3149, %v3184
      %3186 = vmatmul.bf16.gmra.mxu0 %v3168
      %v3187 = vpop.f32.mrf.mxu0
      %v3188 = vadd.f32 %v3154, %v3187
      %v3189 = vpop.f32.mrf.mxu0
      %3190 = vdwg.mxu0
      %v3191 = vadd.f32 %v3066, %v3183
      %v3192 = vadd.f32 %v3067, %v3185
      %v3193 = vadd.f32 %v3068, %v3188
      %v3194 = vmul.f32 %v3183, 0.2
      %v3195 = vmul.f32 %v3185, 0.2
      %v3196 = vmul.f32 %v3188, 0.2
      %v3197 = vmax.f32 %v3183, %v3194
      %v3198 = vmax.f32 %v3185, %v3195
      %v3199 = vmax.f32 %v3188, %v3196
      %s3200 = scalar_lea.vmem %s21, 60
      %v3201 = vld [vmem:[%s3200] sm:$0xf]
      %v3202 = vld [vmem:[%s3200 + $0x4] sm:$0xf]
      %v3203 = vld [vmem:[%s3200 + $0x8] sm:$0xf]
      %v3204 = vpack.c.bf16 %v3197, %v3197
      %v3205 = vpack.c.bf16 %v3198, %v3198
      %v3206 = vpack.c.bf16 %v3199, %v3199
      %3207 = vrot.lane.b32.xlu0 %v3197, 64
      %v3208 = vpop.permute.xlu0 %3207
      %3209 = vrot.lane.b32.xlu0 %v3198, 64
      %v3210 = vpop.permute.xlu0 %3209
      %3211 = vrot.lane.b32.xlu0 %v3199, 64
      %v3212 = vpop.permute.xlu0 %3211
      %v3213 = vsel %vm1381, %v3208, 0.0
      %v3214 = vsel %vm1381, %v3210, 0.0
      %v3215 = vsel %vm1381, %v3212, 0.0
      %v3216 = vpack.c.bf16 %v3213, %v3213
      %v3217 = vpack.c.bf16 %v3214, %v3214
      %v3218 = vpack.c.bf16 %v3215, %v3215
      %v3219 = vsel %vm1384, %v3208, 0.0
      %v3220 = vsel %vm1384, %v3210, 0.0
      %v3221 = vsel %vm1384, %v3212, 0.0
      %v3222 = vpack.c.bf16 %v3219, %v3219
      %v3223 = vpack.c.bf16 %v3220, %v3220
      %v3224 = vpack.c.bf16 %v3221, %v3221
      %v3228 = vunpack.c.l.b16 %v3216
      %v3229 = vunpack.c.l.b16 %v3217
      %v3230 = vunpack.c.l.b16 %v3218
      %v3231 = vpack.c.b16 %v3229, %v3228
      %v3232 = vpack.c.b16 %v3230, %v3230
      %v3237 = vunpack.c.l.b16 %v3204
      %v3238 = vunpack.c.l.b16 %v3205
      %v3239 = vunpack.c.l.b16 %v3206
      %v3240 = vpack.c.b16 %v3237, %v3237
      %v3241 = vpack.c.b16 %v3239, %v3238
      %v3246 = vunpack.c.l.b16 %v3222
      %v3247 = vunpack.c.l.b16 %v3223
      %v3248 = vunpack.c.l.b16 %v3224
      %v3249 = vpack.c.b16 %v3247, %v3246
      %v3250 = vpack.c.b16 %v3248, %v3248
      %v3254 = vsel %vm988, %v3232, %v3240
      %s3256 = scalar_lea.vmem %s22, 120
      %v3257 = vld [vmem:[%s3256] sm:$0xff]
      %v3258 = vld [vmem:[%s3256 + $0x8] sm:$0xff]
      %v3259 = vld [vmem:[%s3256 + $0x10] sm:$0xff]
      %3261 = vset.pattern.permute.xlu0 0
      %3262 = vperm.xlu0 %3261, %v3257
      %v3263 = vpop.permute.xlu0 %3262
      %3266 = vset.pattern.permute.xlu0 0
      %3267 = vperm.xlu0 %3266, %v3258
      %v3268 = vpop.permute.xlu0 %3267
      %3271 = vset.pattern.permute.xlu0 0
      %3272 = vperm.xlu0 %3271, %v3259
      %v3273 = vpop.permute.xlu0 %3272
      %v3278 = vunpack.c.l.b16 %v3201
      %v3279 = vunpack.c.l.b16 %v3202
      %v3280 = vunpack.c.l.b16 %v3203
      %v3281 = vpack.c.b16 %v3279, %v3278
      %v3282 = vpack.c.b16 %v3280, %v3280
      %v3284 = vsel %vm2663, %v3281, 0
      %v3287 = vsel %vm2663, %v3282, 0
      %v3290 = vsel %vm988, %v3250, 0
      %3292 = vmatpush.bf16.msra.mxu0 0
      %3293 = vmatpush.bf16.msra.mxu0 0
      %3294 = vmatpush.bf16.msra.mxu0 0
      %3295 = vmatpush.bf16.msra.mxu0 %v3290
      %3296 = vmatpush.bf16.msra.mxu0 %v3249
      %3297 = vmatpush.bf16.msra.mxu0 %v3241
      %3298 = vmatpush.bf16.msra.mxu0 %v3254
      %3299 = vmatpush.bf16.msra.mxu0 %v3231
      %3300 = vmatmul.bf16.gmra.mxu0 %v3284
      %v3301 = vpop.f32.mrf.mxu0
      %v3302 = vadd.f32 %v3263, %v3301
      %v3303 = vpop.f32.mrf.mxu0
      %v3304 = vadd.f32 %v3268, %v3303
      %3305 = vmatmul.bf16.gmra.mxu0 %v3287
      %v3306 = vpop.f32.mrf.mxu0
      %v3307 = vadd.f32 %v3273, %v3306
      %v3308 = vpop.f32.mrf.mxu0
      %3309 = vdwg.mxu0
      %v3310 = vadd.f32 %v3191, %v3302
      %v3311 = vadd.f32 %v3192, %v3304
      %v3312 = vadd.f32 %v3193, %v3307
      %v3313 = vmul.f32 %v3302, 0.2
      %v3314 = vmul.f32 %v3304, 0.2
      %v3315 = vmul.f32 %v3307, 0.2
      %v3316 = vmax.f32 %v3302, %v3313
      %v3317 = vmax.f32 %v3304, %v3314
      %v3318 = vmax.f32 %v3307, %v3315
      %s3319 = scalar_lea.vmem %s21, 72
      %v3320 = vld [vmem:[%s3319] sm:$0xf]
      %v3321 = vld [vmem:[%s3319 + $0x4] sm:$0xf]
      %v3322 = vld [vmem:[%s3319 + $0x8] sm:$0xf]
      %v3323 = vpack.c.bf16 %v3317, %v3316
      %v3324 = vpack.c.bf16 %v3318, %v3318
      %s3325 = scalar_lea.vmem %s22, 144
      %v3326 = vld [vmem:[%s3325] sm:$0xff]
      %v3327 = vld [vmem:[%s3325 + $0x8] sm:$0xff]
      %v3328 = vld [vmem:[%s3325 + $0x10] sm:$0xff]
      %3330 = vset.pattern.permute.xlu0 0
      %3331 = vperm.xlu0 %3330, %v3326
      %v3332 = vpop.permute.xlu0 %3331
      %3335 = vset.pattern.permute.xlu0 0
      %3336 = vperm.xlu0 %3335, %v3327
      %v3337 = vpop.permute.xlu0 %3336
      %3340 = vset.pattern.permute.xlu0 0
      %3341 = vperm.xlu0 %3340, %v3328
      %v3342 = vpop.permute.xlu0 %3341
      %v3347 = vunpack.c.l.b16 %v3320
      %v3348 = vunpack.c.l.b16 %v3321
      %v3349 = vunpack.c.l.b16 %v3322
      %v3350 = vpack.c.b16 %v3348, %v3347
      %v3351 = vpack.c.b16 %v3349, %v3349
      %3352 = vrot.lane.b32.xlu0 %v3350, 104
      %v3353 = vpop.permute.xlu0 %3352
      %3354 = vrot.lane.b32.xlu0 %v3351, 104
      %v3355 = vpop.permute.xlu0 %3354
      %v3357 = vsel %vm1157, %v3353, 0
      %v3360 = vsel %vm1157, %v3355, 0
      %v3363 = vsel %vm988, %v3324, 0
      %3365 = vmatpush.bf16.msra.mxu0 0
      %3366 = vmatpush.bf16.msra.mxu0 0
      %3367 = vmatpush.bf16.msra.mxu0 0
      %3368 = vmatpush.bf16.msra.mxu0 0
      %3369 = vmatpush.bf16.msra.mxu0 0
      %3370 = vmatpush.bf16.msra.mxu0 0
      %3371 = vmatpush.bf16.msra.mxu0 %v3363
      %3372 = vmatpush.bf16.msra.mxu0 %v3323
      %3373 = vmatmul.bf16.gmra.mxu0 %v3357
      %v3374 = vpop.f32.mrf.mxu0
      %v3375 = vadd.f32 %v3332, %v3374
      %v3376 = vpop.f32.mrf.mxu0
      %v3377 = vadd.f32 %v3337, %v3376
      %3378 = vmatmul.bf16.gmra.mxu0 %v3360
      %v3379 = vpop.f32.mrf.mxu0
      %v3380 = vadd.f32 %v3342, %v3379
      %v3381 = vpop.f32.mrf.mxu0
      %3382 = vdwg.mxu0
      %v3383 = vadd.f32 %v3310, %v3375
      %v3384 = vadd.f32 %v3311, %v3377
      %v3385 = vadd.f32 %v3312, %v3380
      %v3386 = vmul.f32 %v3375, 0.2
      %v3387 = vmul.f32 %v3377, 0.2
      %v3388 = vmul.f32 %v3380, 0.2
      %v3389 = vmax.f32 %v3375, %v3386
      %v3390 = vmax.f32 %v3377, %v3387
      %v3391 = vmax.f32 %v3380, %v3388
      %s3392 = scalar_lea.vmem %s21, 84
      %v3393 = vld [vmem:[%s3392] sm:$0xf]
      %v3394 = vld [vmem:[%s3392 + $0x4] sm:$0xf]
      %v3395 = vld [vmem:[%s3392 + $0x8] sm:$0xf]
      %v3396 = vpack.c.bf16 %v3390, %v3389
      %v3397 = vpack.c.bf16 %v3391, %v3391
      %s3398 = scalar_lea.vmem %s22, 168
      %v3399 = vld [vmem:[%s3398] sm:$0xff]
      %v3400 = vld [vmem:[%s3398 + $0x8] sm:$0xff]
      %v3401 = vld [vmem:[%s3398 + $0x10] sm:$0xff]
      %3403 = vset.pattern.permute.xlu0 0
      %3404 = vperm.xlu0 %3403, %v3399
      %v3405 = vpop.permute.xlu0 %3404
      %3408 = vset.pattern.permute.xlu0 0
      %3409 = vperm.xlu0 %3408, %v3400
      %v3410 = vpop.permute.xlu0 %3409
      %3413 = vset.pattern.permute.xlu0 0
      %3414 = vperm.xlu0 %3413, %v3401
      %v3415 = vpop.permute.xlu0 %3414
      %v3420 = vunpack.c.l.b16 %v3393
      %v3421 = vunpack.c.l.b16 %v3394
      %v3422 = vunpack.c.l.b16 %v3395
      %v3423 = vpack.c.b16 %v3421, %v3420
      %v3424 = vpack.c.b16 %v3422, %v3422
      %3425 = vrot.lane.b32.xlu0 %v3423, 104
      %v3426 = vpop.permute.xlu0 %3425
      %3427 = vrot.lane.b32.xlu0 %v3424, 104
      %v3428 = vpop.permute.xlu0 %3427
      %v3430 = vsel %vm1157, %v3426, 0
      %v3433 = vsel %vm1157, %v3428, 0
      %v3436 = vsel %vm988, %v3397, 0
      %3438 = vmatpush.bf16.msra.mxu0 0
      %3439 = vmatpush.bf16.msra.mxu0 0
      %3440 = vmatpush.bf16.msra.mxu0 0
      %3441 = vmatpush.bf16.msra.mxu0 0
      %3442 = vmatpush.bf16.msra.mxu0 0
      %3443 = vmatpush.bf16.msra.mxu0 0
      %3444 = vmatpush.bf16.msra.mxu0 %v3436
      %3445 = vmatpush.bf16.msra.mxu0 %v3396
      %3446 = vmatmul.bf16.gmra.mxu0 %v3430
      %v3447 = vpop.f32.mrf.mxu0
      %v3448 = vadd.f32 %v3405, %v3447
      %v3449 = vpop.f32.mrf.mxu0
      %v3450 = vadd.f32 %v3410, %v3449
      %3451 = vmatmul.bf16.gmra.mxu0 %v3433
      %v3452 = vpop.f32.mrf.mxu0
      %v3453 = vadd.f32 %v3415, %v3452
      %v3454 = vpop.f32.mrf.mxu0
      %3455 = vdwg.mxu0
      %v3456 = vadd.f32 %v3383, %v3448
      %v3457 = vadd.f32 %v3384, %v3450
      %v3458 = vadd.f32 %v3385, %v3453
      %v3459 = vmul.f32 %v3448, 0.2
      %v3460 = vmul.f32 %v3450, 0.2
      %v3461 = vmul.f32 %v3453, 0.2
      %v3462 = vmax.f32 %v3448, %v3459
      %v3463 = vmax.f32 %v3450, %v3460
      %v3464 = vmax.f32 %v3453, %v3461
      %s3465 = scalar_lea.vmem %s21, 96
      %v3466 = vld [vmem:[%s3465] sm:$0xf]
      %v3467 = vld [vmem:[%s3465 + $0x4] sm:$0xf]
      %v3468 = vld [vmem:[%s3465 + $0x8] sm:$0xf]
      %v3469 = vpack.c.bf16 %v3463, %v3462
      %v3470 = vpack.c.bf16 %v3464, %v3464
      %s3471 = scalar_lea.vmem %s22, 192
      %v3472 = vld [vmem:[%s3471] sm:$0xff]
      %v3473 = vld [vmem:[%s3471 + $0x8] sm:$0xff]
      %v3474 = vld [vmem:[%s3471 + $0x10] sm:$0xff]
      %3476 = vset.pattern.permute.xlu0 0
      %3477 = vperm.xlu0 %3476, %v3472
      %v3478 = vpop.permute.xlu0 %3477
      %3481 = vset.pattern.permute.xlu0 0
      %3482 = vperm.xlu0 %3481, %v3473
      %v3483 = vpop.permute.xlu0 %3482
      %3486 = vset.pattern.permute.xlu0 0
      %3487 = vperm.xlu0 %3486, %v3474
      %v3488 = vpop.permute.xlu0 %3487
      %v3493 = vunpack.c.l.b16 %v3466
      %v3494 = vunpack.c.l.b16 %v3467
      %v3495 = vunpack.c.l.b16 %v3468
      %v3496 = vpack.c.b16 %v3494, %v3493
      %v3497 = vpack.c.b16 %v3495, %v3495
      %3498 = vrot.lane.b32.xlu0 %v3496, 104
      %v3499 = vpop.permute.xlu0 %3498
      %3500 = vrot.lane.b32.xlu0 %v3497, 104
      %v3501 = vpop.permute.xlu0 %3500
      %v3503 = vsel %vm1157, %v3499, 0
      %v3506 = vsel %vm1157, %v3501, 0
      %v3509 = vsel %vm988, %v3470, 0
      %3511 = vmatpush.bf16.msra.mxu0 0
      %3512 = vmatpush.bf16.msra.mxu0 0
      %3513 = vmatpush.bf16.msra.mxu0 0
      %3514 = vmatpush.bf16.msra.mxu0 0
      %3515 = vmatpush.bf16.msra.mxu0 0
      %3516 = vmatpush.bf16.msra.mxu0 0
      %3517 = vmatpush.bf16.msra.mxu0 %v3509
      %3518 = vmatpush.bf16.msra.mxu0 %v3469
      %3519 = vmatmul.bf16.gmra.mxu0 %v3503
      %v3520 = vpop.f32.mrf.mxu0
      %v3521 = vadd.f32 %v3478, %v3520
      %v3522 = vpop.f32.mrf.mxu0
      %v3523 = vadd.f32 %v3483, %v3522
      %3524 = vmatmul.bf16.gmra.mxu0 %v3506
      %v3525 = vpop.f32.mrf.mxu0
      %v3526 = vadd.f32 %v3488, %v3525
      %v3527 = vpop.f32.mrf.mxu0
      %3528 = vdwg.mxu0
      %v3529 = vadd.f32 %v3456, %v3521
      %v3530 = vadd.f32 %v3457, %v3523
      %v3531 = vadd.f32 %v3458, %v3526
      %v3532 = vmul.f32 %v3521, 0.2
      %v3533 = vmul.f32 %v3523, 0.2
      %v3534 = vmul.f32 %v3526, 0.2
      %v3535 = vmax.f32 %v3521, %v3532
      %v3536 = vmax.f32 %v3523, %v3533
      %v3537 = vmax.f32 %v3526, %v3534
      %s3538 = scalar_lea.vmem %s21, 108
      %v3539 = vld [vmem:[%s3538] sm:$0xf]
      %v3540 = vld [vmem:[%s3538 + $0x4] sm:$0xf]
      %v3541 = vld [vmem:[%s3538 + $0x8] sm:$0xf]
      %v3542 = vpack.c.bf16 %v3536, %v3535
      %v3543 = vpack.c.bf16 %v3537, %v3537
      %s3544 = scalar_lea.vmem %s22, 216
      %v3545 = vld [vmem:[%s3544] sm:$0xff]
      %v3546 = vld [vmem:[%s3544 + $0x8] sm:$0xff]
      %v3547 = vld [vmem:[%s3544 + $0x10] sm:$0xff]
      %3549 = vset.pattern.permute.xlu0 0
      %3550 = vperm.xlu0 %3549, %v3545
      %v3551 = vpop.permute.xlu0 %3550
      %3554 = vset.pattern.permute.xlu0 0
      %3555 = vperm.xlu0 %3554, %v3546
      %v3556 = vpop.permute.xlu0 %3555
      %3559 = vset.pattern.permute.xlu0 0
      %3560 = vperm.xlu0 %3559, %v3547
      %v3561 = vpop.permute.xlu0 %3560
      %v3566 = vunpack.c.l.b16 %v3539
      %v3567 = vunpack.c.l.b16 %v3540
      %v3568 = vunpack.c.l.b16 %v3541
      %v3569 = vpack.c.b16 %v3567, %v3566
      %v3570 = vpack.c.b16 %v3568, %v3568
      %3571 = vrot.lane.b32.xlu0 %v3569, 104
      %v3572 = vpop.permute.xlu0 %3571
      %3573 = vrot.lane.b32.xlu0 %v3570, 104
      %v3574 = vpop.permute.xlu0 %3573
      %v3576 = vsel %vm1157, %v3572, 0
      %v3579 = vsel %vm1157, %v3574, 0
      %v3582 = vsel %vm988, %v3543, 0
      %3584 = vmatpush.bf16.msra.mxu0 0
      %3585 = vmatpush.bf16.msra.mxu0 0
      %3586 = vmatpush.bf16.msra.mxu0 0
      %3587 = vmatpush.bf16.msra.mxu0 0
      %3588 = vmatpush.bf16.msra.mxu0 0
      %3589 = vmatpush.bf16.msra.mxu0 0
      %3590 = vmatpush.bf16.msra.mxu0 %v3582
      %3591 = vmatpush.bf16.msra.mxu0 %v3542
      %3592 = vmatmul.bf16.gmra.mxu0 %v3576
      %v3593 = vpop.f32.mrf.mxu0
      %v3594 = vadd.f32 %v3551, %v3593
      %v3595 = vpop.f32.mrf.mxu0
      %v3596 = vadd.f32 %v3556, %v3595
      %3597 = vmatmul.bf16.gmra.mxu0 %v3579
      %v3598 = vpop.f32.mrf.mxu0
      %v3599 = vadd.f32 %v3561, %v3598
      %v3600 = vpop.f32.mrf.mxu0
      %3601 = vdwg.mxu0
      %v3602 = vadd.f32 %v3529, %v3594
      %v3603 = vadd.f32 %v3530, %v3596
      %v3604 = vadd.f32 %v3531, %v3599
      %v3605 = vmul.f32 %v3602, 0.2
      %v3606 = vmul.f32 %v3603, 0.2
      %v3607 = vmul.f32 %v3604, 0.2
      %v3608 = vmax.f32 %v3602, %v3605
      %v3609 = vmax.f32 %v3603, %v3606
      %v3610 = vmax.f32 %v3604, %v3607
      %v3611 = vld [vmem:[%s26] sm:$0xff]
      %v3612 = vld [vmem:[%s26 + $0x8] sm:$0xff]
      %v3613 = vld [vmem:[%s26 + $0x10] sm:$0xff]
      %v3614 = vmul.f32 %v3608, %v3611
      %v3615 = vmul.f32 %v3609, %v3612
      %v3616 = vmul.f32 %v3610, %v3613
      %3617 = vadd.xlane.f32.xlu0 %v3614
      %v3618 = vpop.xlane.xlu0 %3617
      %3619 = vadd.xlane.f32.xlu0 %v3615
      %v3620 = vpop.xlane.xlu0 %3619
      %3621 = vadd.xlane.f32.xlu0 %v3616
      %v3622 = vpop.xlane.xlu0 %3621
      %v3623 = vadd.f32 %v3618, %v3620
      %v3624 = vadd.f32 %v3623, %v3622
      %v3625 = vrot.slane %v3624, 4
      %v3626 = vadd.f32 %v3624, %v3625
      %v3627 = vrot.slane %v3626, 2
      %v3628 = vadd.f32 %v3626, %v3627
      %v3629 = vrot.slane %v3628, 1
      %v3630 = vadd.f32 %v3628, %v3629
      %v3631 = vld [vmem:[#allocation2] sm:$0x1]
      %v3632 = vadd.f32 %v3630, %v3631
      %vm3633 = vcmask 0
      %3634 = vst.msk [vmem:[%s857] sm:$0x1] %vm3633, %v3632
      %p3635 = scmp.lt.s32.totalorder %s41, 1
      %s3636 = scalar_select %p3635, %s41, 1
      %s3637 = scalar_lea.vmem %s28, %s3636
      // Predicated region
      $region133: #{tpu_custom_call.1} parent=131 // pred_check
        %p3638 = pneg %p657
      $region134: #{tpu_custom_call.1} parent=131 // pred_check_branch
        %3640 = sbr.rel (%p3638) target = $region136
      $region135: #{tpu_custom_call.1} parent=131 // pred_region
        _
      $region136: #{tpu_custom_call.1} parent=131 // pred_fallthru
        _
    $region132: #{tpu_custom_call.1} parent=5 // pred_fallthru
      _
    %p3641 = scmp.le.s32.totalorder 2, %s36
    // Predicated region
    $region137: #{tpu_custom_call.1} parent=5 // pred_check
      %p3642 = pneg %p3641
    $region138: #{tpu_custom_call.1} parent=5 // pred_check_branch
      %3644 = sbr.rel (%p3642) target = $region140
    $region139: #{tpu_custom_call.1} parent=5 // pred_region
      %s3645 = ssub.s32 %s36, 2
      // Predicated region
      $region141: #{tpu_custom_call.1} parent=139 // pred_check
        %p3646 = pneg %p663
      $region142: #{tpu_custom_call.1} parent=139 // pred_check_branch
        %3648 = sbr.rel (%p3646) target = $region144
      $region143: #{tpu_custom_call.1} parent=139 // pred_region
        %p3649 = scmp.lt.s32.totalorder %s42, 1
        %s3650 = scalar_select %p3649, %s42, 1
        %s3651 = scalar_lea.vmem %s28, %s3650
      $region144: #{tpu_custom_call.1} parent=139 // pred_fallthru
        _
    $region140: #{tpu_custom_call.1} parent=5 // pred_fallthru
      _
  $region6: #{tpu_custom_call.1} parent=0 // loop_footer
    %s40 = sadd.s32 1, %s36
  $region7: #{tpu_custom_call.1} parent=0 // loop_footer_branch
    %35 = sbr.rel target = $region3
  $region8: #{tpu_custom_call.1} parent=0 // loop_exit
    _

// kernel: tpu_custom_call.1
$region0: #{tpu_custom_call.1}
  #allocation0 [shape = 'u32[]', space=smem, size = 0x4, offset = 0x4, fixed_abs, tag = 'smem constant byte address 0x4 - core index']
  #allocation1 [shape = 'u32[72,128]{1,0:T(1,128)}', space=vmem, size = 0x9000, scoped, tag = 'internal scratch']
  #allocation2 [shape = 'f32[1,1]{1,0:T(1,128)S(1)}', space=vmem, size = 0x200, scoped, tag = 'scoped memory for tpu_custom_call.1']
  %s0 = inlined_call_operand.vmem [shape: f32[2,3,128], index: 0, kind: input, shape index: {}]
  %s1 = inlined_call_operand.vmem [shape: f32[2,2,128], index: 1, kind: input, shape index: {}]
  %s2 = inlined_call_operand.vmem [shape: bf16[4,34], index: 2, kind: input, shape index: {}]
  %s3 = inlined_call_operand.vmem [shape: f32[4,1], index: 3, kind: input, shape index: {}]
  %s4 = inlined_call_operand.vmem [shape: bf16[4,51], index: 4, kind: input, shape index: {}]
  %s5 = inlined_call_operand.vmem [shape: f32[4,1], index: 5, kind: input, shape index: {}]
  %s6 = inlined_call_operand.vmem [shape: bf16[8,12], index: 6, kind: input, shape index: {}]
  %s7 = inlined_call_operand.vmem [shape: f32[8,1], index: 7, kind: input, shape index: {}]
  %s8 = inlined_call_operand.vmem [shape: bf16[10,8,24], index: 8, kind: input, shape index: {}]
  %s9 = inlined_call_operand.vmem [shape: f32[10,8,1], index: 9, kind: input, shape index: {}]
  %s10 = inlined_call_operand.vmem [shape: bf16[8,4], index: 10, kind: input, shape index: {}]
  %s11 = inlined_call_operand.vmem [shape: f32[8,1], index: 11, kind: input, shape index: {}]
  %s12 = inlined_call_operand.vmem [shape: bf16[8,12], index: 12, kind: input, shape index: {}]
  %s13 = inlined_call_operand.vmem [shape: f32[8,1], index: 13, kind: input, shape index: {}]
  %s14 = inlined_call_operand.vmem [shape: bf16[10,8,24], index: 14, kind: input, shape index: {}]
  %s15 = inlined_call_operand.vmem [shape: f32[10,8,1], index: 15, kind: input, shape index: {}]
  %s16 = inlined_call_operand.vmem [shape: bf16[8,4], index: 16, kind: input, shape index: {}]
  %s17 = inlined_call_operand.vmem [shape: f32[8,1], index: 17, kind: input, shape index: {}]
  %s18 = inlined_call_operand.vmem [shape: bf16[24,24], index: 18, kind: input, shape index: {}]
  %s19 = inlined_call_operand.vmem [shape: bf16[24,24], index: 19, kind: input, shape index: {}]
  %s20 = inlined_call_operand.vmem [shape: f32[24,1], index: 20, kind: input, shape index: {}]
  %s21 = inlined_call_operand.vmem [shape: bf16[10,24,72], index: 21, kind: input, shape index: {}]
  %s22 = inlined_call_operand.vmem [shape: f32[10,24,1], index: 22, kind: input, shape index: {}]
  %s23 = inlined_call_operand.vmem [shape: bf16[24,8], index: 23, kind: input, shape index: {}]
  %s24 = inlined_call_operand.vmem [shape: bf16[24,8], index: 24, kind: input, shape index: {}]
  %s25 = inlined_call_operand.vmem [shape: f32[24,1], index: 25, kind: input, shape index: {}]
  %s26 = inlined_call_operand.vmem [shape: f32[24,128], index: 26, kind: input, shape index: {}]
  %s27 = inlined_call_operand.<no memory space> [shape: f32[1,1], index: 27, kind: input, shape index: {}]
  %s28 = inlined_call_operand.vmem [shape: f32[2,1,1], index: 28, kind: output, shape index: {}]
  %s29 = sld [smem:[#allocation0]]
  $region145: #{tpu_custom_call.1} parent=0
    _
  %s31 = ssub.s32 1, %s29
  %s32 = scalar_select 0, %s31, %s29
  %v33 = vstv %s27
  %34 = vst [vmem:[#allocation2] sm:$0x1] %v33
  loop: start=0, step=1, limit=4
  $region2: #{tpu_custom_call.1} parent=0 // loop_pre_header
    _
  $region3: #{tpu_custom_call.1} parent=0 // loop_header
    %s36 = sphi 0, %s40
    %p37 = scmp.ge.s32.totalorder %s36, 4
    %s46 = sphi 0, %s48
    %s49 = sphi 0, %s46
    %s50 = sphi 0, %s49
    %s66 = sphi 0, %s50
    %s72 = sphi 0, %s74
    %s75 = sphi 0, %s72
    %s76 = sphi 0, %s75
    %s92 = sphi 0, %s76
    %s96 = sphi 0, %s96
    %s98 = sphi 0, %s96
    %s99 = sphi 0, %s98
    %s113 = sphi 0, %s99
    %s117 = sphi 0, %s117
    %s119 = sphi 0, %s117
    %s120 = sphi 0, %s119
    %s134 = sphi 0, %s120
    %s138 = sphi 0, %s138
    %s140 = sphi 0, %s138
    %s141 = sphi 0, %s140
    %s155 = sphi 0, %s141
    %s159 = sphi 0, %s159
    %s161 = sphi 0, %s159
    %s162 = sphi 0, %s161
    %s176 = sphi 0, %s162
    %s180 = sphi 0, %s180
    %s182 = sphi 0, %s180
    %s183 = sphi 0, %s182
    %s197 = sphi 0, %s183
    %s201 = sphi 0, %s201
    %s203 = sphi 0, %s201
    %s204 = sphi 0, %s203
    %s218 = sphi 0, %s204
    %s222 = sphi 0, %s222
    %s224 = sphi 0, %s222
    %s225 = sphi 0, %s224
    %s239 = sphi 0, %s225
    %s243 = sphi 0, %s243
    %s245 = sphi 0, %s243
    %s246 = sphi 0, %s245
    %s260 = sphi 0, %s246
    %s264 = sphi 0, %s264
    %s266 = sphi 0, %s264
    %s267 = sphi 0, %s266
    %s281 = sphi 0, %s267
    %s285 = sphi 0, %s285
    %s287 = sphi 0, %s285
    %s288 = sphi 0, %s287
    %s302 = sphi 0, %s288
    %s306 = sphi 0, %s306
    %s308 = sphi 0, %s306
    %s309 = sphi 0, %s308
    %s323 = sphi 0, %s309
    %s327 = sphi 0, %s327
    %s329 = sphi 0, %s327
    %s330 = sphi 0, %s329
    %s344 = sphi 0, %s330
    %s348 = sphi 0, %s348
    %s350 = sphi 0, %s348
    %s351 = sphi 0, %s350
    %s365 = sphi 0, %s351
    %s369 = sphi 0, %s369
    %s371 = sphi 0, %s369
    %s372 = sphi 0, %s371
    %s386 = sphi 0, %s372
    %s390 = sphi 0, %s390
    %s392 = sphi 0, %s390
    %s393 = sphi 0, %s392
    %s407 = sphi 0, %s393
    %s411 = sphi 0, %s411
    %s413 = sphi 0, %s411
    %s414 = sphi 0, %s413
    %s428 = sphi 0, %s414
    %s432 = sphi 0, %s432
    %s434 = sphi 0, %s432
    %s435 = sphi 0, %s434
    %s449 = sphi 0, %s435
    %s453 = sphi 0, %s453
    %s455 = sphi 0, %s453
    %s456 = sphi 0, %s455
    %s470 = sphi 0, %s456
    %s474 = sphi 0, %s474
    %s476 = sphi 0, %s474
    %s477 = sphi 0, %s476
    %s491 = sphi 0, %s477
    %s495 = sphi 0, %s495
    %s497 = sphi 0, %s495
    %s498 = sphi 0, %s497
    %s512 = sphi 0, %s498
    %s516 = sphi 0, %s516
    %s518 = sphi 0, %s516
    %s519 = sphi 0, %s518
    %s533 = sphi 0, %s519
    %s537 = sphi 0, %s537
    %s539 = sphi 0, %s537
    %s540 = sphi 0, %s539
    %s554 = sphi 0, %s540
    %s558 = sphi 0, %s558
    %s560 = sphi 0, %s558
    %s561 = sphi 0, %s560
    %s575 = sphi 0, %s561
    %s579 = sphi 0, %s579
    %s581 = sphi 0, %s579
    %s582 = sphi 0, %s581
    %s596 = sphi 0, %s582
    %s600 = sphi 0, %s600
    %s602 = sphi 0, %s600
    %s603 = sphi 0, %s602
    %s617 = sphi 0, %s603
    %s621 = sphi 0, %s621
    %s623 = sphi 0, %s621
    %s624 = sphi 0, %s623
    %s638 = sphi 0, %s624
    %s644 = sphi 0, %s646
    %s647 = sphi 0, %s644
    %s648 = sphi 0, %s647
    %s664 = sphi 0, %s648
  $region4: #{tpu_custom_call.1} parent=0 // loop_header_branch
    %39 = sbr.rel (%p37) target = $region8
  $region5: #{tpu_custom_call.1} parent=0 // loop_body
    %s41 = ssub.s32 %s36, 1
    %s42 = ssub.s32 %s36, 2
    %s43 = sadd.s32 %s36, 1
    %s44 = ssub.s32 %s36, %s43
    %p45 = scmp.eq.s32.totalorder %s44, 0
    %s47 = sadd.s32 %s46, 1
    %s48 = scalar_select %p45, %s46, %s47
    %p51 = pneg %p45
    %p52 = scmp.eq.s32.totalorder %s36, 1
    %p53 = por %p51, %p52
    %p54 = scmp.ne.s32.totalorder %s46, %s49
    %p55 = scmp.eq.s32.totalorder %s36, 0
    %p56 = por %p54, %p55
    %p57 = scmp.ne.s32.totalorder %s46, %s49
    %p58 = scmp.eq.s32.totalorder %s41, 1
    %p59 = por %p57, %p58
    %p60 = scmp.ne.s32.totalorder %s49, %s50
    %p61 = scmp.eq.s32.totalorder %s41, 0
    %p62 = por %p60, %p61
    %p63 = scmp.ne.s32.totalorder %s49, %s50
    %p64 = scmp.eq.s32.totalorder %s42, 1
    %p65 = por %p63, %p64
    %p67 = scmp.ne.s32.totalorder %s50, %s66
    %p68 = scmp.eq.s32.totalorder %s42, 0
    %p69 = por %p67, %p68
    %s70 = ssub.s32 %s36, %s43
    %p71 = scmp.eq.s32.totalorder %s70, 0
    %s73 = sadd.s32 %s72, 1
    %s74 = scalar_select %p71, %s72, %s73
    %p77 = pneg %p71
    %p78 = scmp.eq.s32.totalorder %s36, 1
    %p79 = por %p77, %p78
    %p80 = scmp.ne.s32.totalorder %s72, %s75
    %p81 = scmp.eq.s32.totalorder %s36, 0
    %p82 = por %p80, %p81
    %p83 = scmp.ne.s32.totalorder %s72, %s75
    %p84 = scmp.eq.s32.totalorder %s41, 1
    %p85 = por %p83, %p84
    %p86 = scmp.ne.s32.totalorder %s75, %s76
    %p87 = scmp.eq.s32.totalorder %s41, 0
    %p88 = por %p86, %p87
    %p89 = scmp.ne.s32.totalorder %s75, %s76
    %p90 = scmp.eq.s32.totalorder %s42, 1
    %p91 = por %p89, %p90
    %p93 = scmp.ne.s32.totalorder %s76, %s92
    %p94 = scmp.eq.s32.totalorder %s42, 0
    %p95 = por %p93, %p94
    %s97 = sadd.s32 %s96, 1
    %p100 = scmp.eq.s32.totalorder %s36, 1
    %p101 = scmp.ne.s32.totalorder %s96, %s98
    %p102 = scmp.eq.s32.totalorder %s36, 0
    %p103 = por %p101, %p102
    %p104 = scmp.ne.s32.totalorder %s96, %s98
    %p105 = scmp.eq.s32.totalorder %s41, 1
    %p106 = por %p104, %p105
    %p107 = scmp.ne.s32.totalorder %s98, %s99
    %p108 = scmp.eq.s32.totalorder %s41, 0
    %p109 = por %p107, %p108
    %p110 = scmp.ne.s32.totalorder %s98, %s99
    %p111 = scmp.eq.s32.totalorder %s42, 1
    %p112 = por %p110, %p111
    %p114 = scmp.ne.s32.totalorder %s99, %s113
    %p115 = scmp.eq.s32.totalorder %s42, 0
    %p116 = por %p114, %p115
    %s118 = sadd.s32 %s117, 1
    %p121 = scmp.eq.s32.totalorder %s36, 1
    %p122 = scmp.ne.s32.totalorder %s117, %s119
    %p123 = scmp.eq.s32.totalorder %s36, 0
    %p124 = por %p122, %p123
    %p125 = scmp.ne.s32.totalorder %s117, %s119
    %p126 = scmp.eq.s32.totalorder %s41, 1
    %p127 = por %p125, %p126
    %p128 = scmp.ne.s32.totalorder %s119, %s120
    %p129 = scmp.eq.s32.totalorder %s41, 0
    %p130 = por %p128, %p129
    %p131 = scmp.ne.s32.totalorder %s119, %s120
    %p132 = scmp.eq.s32.totalorder %s42, 1
    %p133 = por %p131, %p132
    %p135 = scmp.ne.s32.totalorder %s120, %s134
    %p136 = scmp.eq.s32.totalorder %s42, 0
    %p137 = por %p135, %p136
    %s139 = sadd.s32 %s138, 1
    %p142 = scmp.eq.s32.totalorder %s36, 1
    %p143 = scmp.ne.s32.totalorder %s138, %s140
    %p144 = scmp.eq.s32.totalorder %s36, 0
    %p145 = por %p143, %p144
    %p146 = scmp.ne.s32.totalorder %s138, %s140
    %p147 = scmp.eq.s32.totalorder %s41, 1
    %p148 = por %p146, %p147
    %p149 = scmp.ne.s32.totalorder %s140, %s141
    %p150 = scmp.eq.s32.totalorder %s41, 0
    %p151 = por %p149, %p150
    %p152 = scmp.ne.s32.totalorder %s140, %s141
    %p153 = scmp.eq.s32.totalorder %s42, 1
    %p154 = por %p152, %p153
    %p156 = scmp.ne.s32.totalorder %s141, %s155
    %p157 = scmp.eq.s32.totalorder %s42, 0
    %p158 = por %p156, %p157
    %s160 = sadd.s32 %s159, 1
    %p163 = scmp.eq.s32.totalorder %s36, 1
    %p164 = scmp.ne.s32.totalorder %s159, %s161
    %p165 = scmp.eq.s32.totalorder %s36, 0
    %p166 = por %p164, %p165
    %p167 = scmp.ne.s32.totalorder %s159, %s161
    %p168 = scmp.eq.s32.totalorder %s41, 1
    %p169 = por %p167, %p168
    %p170 = scmp.ne.s32.totalorder %s161, %s162
    %p171 = scmp.eq.s32.totalorder %s41, 0
    %p172 = por %p170, %p171
    %p173 = scmp.ne.s32.totalorder %s161, %s162
    %p174 = scmp.eq.s32.totalorder %s42, 1
    %p175 = por %p173, %p174
    %p177 = scmp.ne.s32.totalorder %s162, %s176
    %p178 = scmp.eq.s32.totalorder %s42, 0
    %p179 = por %p177, %p178
    %s181 = sadd.s32 %s180, 1
    %p184 = scmp.eq.s32.totalorder %s36, 1
    %p185 = scmp.ne.s32.totalorder %s180, %s182
    %p186 = scmp.eq.s32.totalorder %s36, 0
    %p187 = por %p185, %p186
    %p188 = scmp.ne.s32.totalorder %s180, %s182
    %p189 = scmp.eq.s32.totalorder %s41, 1
    %p190 = por %p188, %p189
    %p191 = scmp.ne.s32.totalorder %s182, %s183
    %p192 = scmp.eq.s32.totalorder %s41, 0
    %p193 = por %p191, %p192
    %p194 = scmp.ne.s32.totalorder %s182, %s183
    %p195 = scmp.eq.s32.totalorder %s42, 1
    %p196 = por %p194, %p195
    %p198 = scmp.ne.s32.totalorder %s183, %s197
    %p199 = scmp.eq.s32.totalorder %s42, 0
    %p200 = por %p198, %p199
    %s202 = sadd.s32 %s201, 1
    %p205 = scmp.eq.s32.totalorder %s36, 1
    %p206 = scmp.ne.s32.totalorder %s201, %s203
    %p207 = scmp.eq.s32.totalorder %s36, 0
    %p208 = por %p206, %p207
    %p209 = scmp.ne.s32.totalorder %s201, %s203
    %p210 = scmp.eq.s32.totalorder %s41, 1
    %p211 = por %p209, %p210
    %p212 = scmp.ne.s32.totalorder %s203, %s204
    %p213 = scmp.eq.s32.totalorder %s41, 0
    %p214 = por %p212, %p213
    %p215 = scmp.ne.s32.totalorder %s203, %s204
    %p216 = scmp.eq.s32.totalorder %s42, 1
    %p217 = por %p215, %p216
    %p219 = scmp.ne.s32.totalorder %s204, %s218
    %p220 = scmp.eq.s32.totalorder %s42, 0
    %p221 = por %p219, %p220
    %s223 = sadd.s32 %s222, 1
    %p226 = scmp.eq.s32.totalorder %s36, 1
    %p227 = scmp.ne.s32.totalorder %s222, %s224
    %p228 = scmp.eq.s32.totalorder %s36, 0
    %p229 = por %p227, %p228
    %p230 = scmp.ne.s32.totalorder %s222, %s224
    %p231 = scmp.eq.s32.totalorder %s41, 1
    %p232 = por %p230, %p231
    %p233 = scmp.ne.s32.totalorder %s224, %s225
    %p234 = scmp.eq.s32.totalorder %s41, 0
    %p235 = por %p233, %p234
    %p236 = scmp.ne.s32.totalorder %s224, %s225
    %p237 = scmp.eq.s32.totalorder %s42, 1
    %p238 = por %p236, %p237
    %p240 = scmp.ne.s32.totalorder %s225, %s239
    %p241 = scmp.eq.s32.totalorder %s42, 0
    %p242 = por %p240, %p241
    %s244 = sadd.s32 %s243, 1
    %p247 = scmp.eq.s32.totalorder %s36, 1
    %p248 = scmp.ne.s32.totalorder %s243, %s245
    %p249 = scmp.eq.s32.totalorder %s36, 0
    %p250 = por %p248, %p249
    %p251 = scmp.ne.s32.totalorder %s243, %s245
    %p252 = scmp.eq.s32.totalorder %s41, 1
    %p253 = por %p251, %p252
    %p254 = scmp.ne.s32.totalorder %s245, %s246
    %p255 = scmp.eq.s32.totalorder %s41, 0
    %p256 = por %p254, %p255
    %p257 = scmp.ne.s32.totalorder %s245, %s246
    %p258 = scmp.eq.s32.totalorder %s42, 1
    %p259 = por %p257, %p258
    %p261 = scmp.ne.s32.totalorder %s246, %s260
    %p262 = scmp.eq.s32.totalorder %s42, 0
    %p263 = por %p261, %p262
    %s265 = sadd.s32 %s264, 1
    %p268 = scmp.eq.s32.totalorder %s36, 1
    %p269 = scmp.ne.s32.totalorder %s264, %s266
    %p270 = scmp.eq.s32.totalorder %s36, 0
    %p271 = por %p269, %p270
    %p272 = scmp.ne.s32.totalorder %s264, %s266
    %p273 = scmp.eq.s32.totalorder %s41, 1
    %p274 = por %p272, %p273
    %p275 = scmp.ne.s32.totalorder %s266, %s267
    %p276 = scmp.eq.s32.totalorder %s41, 0
    %p277 = por %p275, %p276
    %p278 = scmp.ne.s32.totalorder %s266, %s267
    %p279 = scmp.eq.s32.totalorder %s42, 1
    %p280 = por %p278, %p279
    %p282 = scmp.ne.s32.totalorder %s267, %s281
    %p283 = scmp.eq.s32.totalorder %s42, 0
    %p284 = por %p282, %p283
    %s286 = sadd.s32 %s285, 1
    %p289 = scmp.eq.s32.totalorder %s36, 1
    %p290 = scmp.ne.s32.totalorder %s285, %s287
    %p291 = scmp.eq.s32.totalorder %s36, 0
    %p292 = por %p290, %p291
    %p293 = scmp.ne.s32.totalorder %s285, %s287
    %p294 = scmp.eq.s32.totalorder %s41, 1
    %p295 = por %p293, %p294
    %p296 = scmp.ne.s32.totalorder %s287, %s288
    %p297 = scmp.eq.s32.totalorder %s41, 0
    %p298 = por %p296, %p297
    %p299 = scmp.ne.s32.totalorder %s287, %s288
    %p300 = scmp.eq.s32.totalorder %s42, 1
    %p301 = por %p299, %p300
    %p303 = scmp.ne.s32.totalorder %s288, %s302
    %p304 = scmp.eq.s32.totalorder %s42, 0
    %p305 = por %p303, %p304
    %s307 = sadd.s32 %s306, 1
    %p310 = scmp.eq.s32.totalorder %s36, 1
    %p311 = scmp.ne.s32.totalorder %s306, %s308
    %p312 = scmp.eq.s32.totalorder %s36, 0
    %p313 = por %p311, %p312
    %p314 = scmp.ne.s32.totalorder %s306, %s308
    %p315 = scmp.eq.s32.totalorder %s41, 1
    %p316 = por %p314, %p315
    %p317 = scmp.ne.s32.totalorder %s308, %s309
    %p318 = scmp.eq.s32.totalorder %s41, 0
    %p319 = por %p317, %p318
    %p320 = scmp.ne.s32.totalorder %s308, %s309
    %p321 = scmp.eq.s32.totalorder %s42, 1
    %p322 = por %p320, %p321
    %p324 = scmp.ne.s32.totalorder %s309, %s323
    %p325 = scmp.eq.s32.totalorder %s42, 0
    %p326 = por %p324, %p325
    %s328 = sadd.s32 %s327, 1
    %p331 = scmp.eq.s32.totalorder %s36, 1
    %p332 = scmp.ne.s32.totalorder %s327, %s329
    %p333 = scmp.eq.s32.totalorder %s36, 0
    %p334 = por %p332, %p333
    %p335 = scmp.ne.s32.totalorder %s327, %s329
    %p336 = scmp.eq.s32.totalorder %s41, 1
    %p337 = por %p335, %p336
    %p338 = scmp.ne.s32.totalorder %s329, %s330
    %p339 = scmp.eq.s32.totalorder %s41, 0
    %p340 = por %p338, %p339
    %p341 = scmp.ne.s32.totalorder %s329, %s330
    %p342 = scmp.eq.s32.totalorder %s42, 1
    %p343 = por %p341, %p342
    %p345 = scmp.ne.s32.totalorder %s330, %s344
    %p346 = scmp.eq.s32.totalorder %s42, 0
    %p347 = por %p345, %p346
    %s349 = sadd.s32 %s348, 1
    %p352 = scmp.eq.s32.totalorder %s36, 1
    %p353 = scmp.ne.s32.totalorder %s348, %s350
    %p354 = scmp.eq.s32.totalorder %s36, 0
    %p355 = por %p353, %p354
    %p356 = scmp.ne.s32.totalorder %s348, %s350
    %p357 = scmp.eq.s32.totalorder %s41, 1
    %p358 = por %p356, %p357
    %p359 = scmp.ne.s32.totalorder %s350, %s351
    %p360 = scmp.eq.s32.totalorder %s41, 0
    %p361 = por %p359, %p360
    %p362 = scmp.ne.s32.totalorder %s350, %s351
    %p363 = scmp.eq.s32.totalorder %s42, 1
    %p364 = por %p362, %p363
    %p366 = scmp.ne.s32.totalorder %s351, %s365
    %p367 = scmp.eq.s32.totalorder %s42, 0
    %p368 = por %p366, %p367
    %s370 = sadd.s32 %s369, 1
    %p373 = scmp.eq.s32.totalorder %s36, 1
    %p374 = scmp.ne.s32.totalorder %s369, %s371
    %p375 = scmp.eq.s32.totalorder %s36, 0
    %p376 = por %p374, %p375
    %p377 = scmp.ne.s32.totalorder %s369, %s371
    %p378 = scmp.eq.s32.totalorder %s41, 1
    %p379 = por %p377, %p378
    %p380 = scmp.ne.s32.totalorder %s371, %s372
    %p381 = scmp.eq.s32.totalorder %s41, 0
    %p382 = por %p380, %p381
    %p383 = scmp.ne.s32.totalorder %s371, %s372
    %p384 = scmp.eq.s32.totalorder %s42, 1
    %p385 = por %p383, %p384
    %p387 = scmp.ne.s32.totalorder %s372, %s386
    %p388 = scmp.eq.s32.totalorder %s42, 0
    %p389 = por %p387, %p388
    %s391 = sadd.s32 %s390, 1
    %p394 = scmp.eq.s32.totalorder %s36, 1
    %p395 = scmp.ne.s32.totalorder %s390, %s392
    %p396 = scmp.eq.s32.totalorder %s36, 0
    %p397 = por %p395, %p396
    %p398 = scmp.ne.s32.totalorder %s390, %s392
    %p399 = scmp.eq.s32.totalorder %s41, 1
    %p400 = por %p398, %p399
    %p401 = scmp.ne.s32.totalorder %s392, %s393
    %p402 = scmp.eq.s32.totalorder %s41, 0
    %p403 = por %p401, %p402
    %p404 = scmp.ne.s32.totalorder %s392, %s393
    %p405 = scmp.eq.s32.totalorder %s42, 1
    %p406 = por %p404, %p405
    %p408 = scmp.ne.s32.totalorder %s393, %s407
    %p409 = scmp.eq.s32.totalorder %s42, 0
    %p410 = por %p408, %p409
    %s412 = sadd.s32 %s411, 1
    %p415 = scmp.eq.s32.totalorder %s36, 1
    %p416 = scmp.ne.s32.totalorder %s411, %s413
    %p417 = scmp.eq.s32.totalorder %s36, 0
    %p418 = por %p416, %p417
    %p419 = scmp.ne.s32.totalorder %s411, %s413
    %p420 = scmp.eq.s32.totalorder %s41, 1
    %p421 = por %p419, %p420
    %p422 = scmp.ne.s32.totalorder %s413, %s414
    %p423 = scmp.eq.s32.totalorder %s41, 0
    %p424 = por %p422, %p423
    %p425 = scmp.ne.s32.totalorder %s413, %s414
    %p426 = scmp.eq.s32.totalorder %s42, 1
    %p427 = por %p425, %p426
    %p429 = scmp.ne.s32.totalorder %s414, %s428
    %p430 = scmp.eq.s32.totalorder %s42, 0
    %p431 = por %p429, %p430
    %s433 = sadd.s32 %s432, 1
    %p436 = scmp.eq.s32.totalorder %s36, 1
    %p437 = scmp.ne.s32.totalorder %s432, %s434
    %p438 = scmp.eq.s32.totalorder %s36, 0
    %p439 = por %p437, %p438
    %p440 = scmp.ne.s32.totalorder %s432, %s434
    %p441 = scmp.eq.s32.totalorder %s41, 1
    %p442 = por %p440, %p441
    %p443 = scmp.ne.s32.totalorder %s434, %s435
    %p444 = scmp.eq.s32.totalorder %s41, 0
    %p445 = por %p443, %p444
    %p446 = scmp.ne.s32.totalorder %s434, %s435
    %p447 = scmp.eq.s32.totalorder %s42, 1
    %p448 = por %p446, %p447
    %p450 = scmp.ne.s32.totalorder %s435, %s449
    %p451 = scmp.eq.s32.totalorder %s42, 0
    %p452 = por %p450, %p451
    %s454 = sadd.s32 %s453, 1
    %p457 = scmp.eq.s32.totalorder %s36, 1
    %p458 = scmp.ne.s32.totalorder %s453, %s455
    %p459 = scmp.eq.s32.totalorder %s36, 0
    %p460 = por %p458, %p459
    %p461 = scmp.ne.s32.totalorder %s453, %s455
    %p462 = scmp.eq.s32.totalorder %s41, 1
    %p463 = por %p461, %p462
    %p464 = scmp.ne.s32.totalorder %s455, %s456
    %p465 = scmp.eq.s32.totalorder %s41, 0
    %p466 = por %p464, %p465
    %p467 = scmp.ne.s32.totalorder %s455, %s456
    %p468 = scmp.eq.s32.totalorder %s42, 1
    %p469 = por %p467, %p468
    %p471 = scmp.ne.s32.totalorder %s456, %s470
    %p472 = scmp.eq.s32.totalorder %s42, 0
    %p473 = por %p471, %p472
    %s475 = sadd.s32 %s474, 1
    %p478 = scmp.eq.s32.totalorder %s36, 1
    %p479 = scmp.ne.s32.totalorder %s474, %s476
    %p480 = scmp.eq.s32.totalorder %s36, 0
    %p481 = por %p479, %p480
    %p482 = scmp.ne.s32.totalorder %s474, %s476
    %p483 = scmp.eq.s32.totalorder %s41, 1
    %p484 = por %p482, %p483
    %p485 = scmp.ne.s32.totalorder %s476, %s477
    %p486 = scmp.eq.s32.totalorder %s41, 0
    %p487 = por %p485, %p486
    %p488 = scmp.ne.s32.totalorder %s476, %s477
    %p489 = scmp.eq.s32.totalorder %s42, 1
    %p490 = por %p488, %p489
    %p492 = scmp.ne.s32.totalorder %s477, %s491
    %p493 = scmp.eq.s32.totalorder %s42, 0
    %p494 = por %p492, %p493
    %s496 = sadd.s32 %s495, 1
    %p499 = scmp.eq.s32.totalorder %s36, 1
    %p500 = scmp.ne.s32.totalorder %s495, %s497
    %p501 = scmp.eq.s32.totalorder %s36, 0
    %p502 = por %p500, %p501
    %p503 = scmp.ne.s32.totalorder %s495, %s497
    %p504 = scmp.eq.s32.totalorder %s41, 1
    %p505 = por %p503, %p504
    %p506 = scmp.ne.s32.totalorder %s497, %s498
    %p507 = scmp.eq.s32.totalorder %s41, 0
    %p508 = por %p506, %p507
    %p509 = scmp.ne.s32.totalorder %s497, %s498
    %p510 = scmp.eq.s32.totalorder %s42, 1
    %p511 = por %p509, %p510
    %p513 = scmp.ne.s32.totalorder %s498, %s512
    %p514 = scmp.eq.s32.totalorder %s42, 0
    %p515 = por %p513, %p514
    %s517 = sadd.s32 %s516, 1
    %p520 = scmp.eq.s32.totalorder %s36, 1
    %p521 = scmp.ne.s32.totalorder %s516, %s518
    %p522 = scmp.eq.s32.totalorder %s36, 0
    %p523 = por %p521, %p522
    %p524 = scmp.ne.s32.totalorder %s516, %s518
    %p525 = scmp.eq.s32.totalorder %s41, 1
    %p526 = por %p524, %p525
    %p527 = scmp.ne.s32.totalorder %s518, %s519
    %p528 = scmp.eq.s32.totalorder %s41, 0
    %p529 = por %p527, %p528
    %p530 = scmp.ne.s32.totalorder %s518, %s519
    %p531 = scmp.eq.s32.totalorder %s42, 1
    %p532 = por %p530, %p531
    %p534 = scmp.ne.s32.totalorder %s519, %s533
    %p535 = scmp.eq.s32.totalorder %s42, 0
    %p536 = por %p534, %p535
    %s538 = sadd.s32 %s537, 1
    %p541 = scmp.eq.s32.totalorder %s36, 1
    %p542 = scmp.ne.s32.totalorder %s537, %s539
    %p543 = scmp.eq.s32.totalorder %s36, 0
    %p544 = por %p542, %p543
    %p545 = scmp.ne.s32.totalorder %s537, %s539
    %p546 = scmp.eq.s32.totalorder %s41, 1
    %p547 = por %p545, %p546
    %p548 = scmp.ne.s32.totalorder %s539, %s540
    %p549 = scmp.eq.s32.totalorder %s41, 0
    %p550 = por %p548, %p549
    %p551 = scmp.ne.s32.totalorder %s539, %s540
    %p552 = scmp.eq.s32.totalorder %s42, 1
    %p553 = por %p551, %p552
    %p555 = scmp.ne.s32.totalorder %s540, %s554
    %p556 = scmp.eq.s32.totalorder %s42, 0
    %p557 = por %p555, %p556
    %s559 = sadd.s32 %s558, 1
    %p562 = scmp.eq.s32.totalorder %s36, 1
    %p563 = scmp.ne.s32.totalorder %s558, %s560
    %p564 = scmp.eq.s32.totalorder %s36, 0
    %p565 = por %p563, %p564
    %p566 = scmp.ne.s32.totalorder %s558, %s560
    %p567 = scmp.eq.s32.totalorder %s41, 1
    %p568 = por %p566, %p567
    %p569 = scmp.ne.s32.totalorder %s560, %s561
    %p570 = scmp.eq.s32.totalorder %s41, 0
    %p571 = por %p569, %p570
    %p572 = scmp.ne.s32.totalorder %s560, %s561
    %p573 = scmp.eq.s32.totalorder %s42, 1
    %p574 = por %p572, %p573
    %p576 = scmp.ne.s32.totalorder %s561, %s575
    %p577 = scmp.eq.s32.totalorder %s42, 0
    %p578 = por %p576, %p577
    %s580 = sadd.s32 %s579, 1
    %p583 = scmp.eq.s32.totalorder %s36, 1
    %p584 = scmp.ne.s32.totalorder %s579, %s581
    %p585 = scmp.eq.s32.totalorder %s36, 0
    %p586 = por %p584, %p585
    %p587 = scmp.ne.s32.totalorder %s579, %s581
    %p588 = scmp.eq.s32.totalorder %s41, 1
    %p589 = por %p587, %p588
    %p590 = scmp.ne.s32.totalorder %s581, %s582
    %p591 = scmp.eq.s32.totalorder %s41, 0
    %p592 = por %p590, %p591
    %p593 = scmp.ne.s32.totalorder %s581, %s582
    %p594 = scmp.eq.s32.totalorder %s42, 1
    %p595 = por %p593, %p594
    %p597 = scmp.ne.s32.totalorder %s582, %s596
    %p598 = scmp.eq.s32.totalorder %s42, 0
    %p599 = por %p597, %p598
    %s601 = sadd.s32 %s600, 1
    %p604 = scmp.eq.s32.totalorder %s36, 1
    %p605 = scmp.ne.s32.totalorder %s600, %s602
    %p606 = scmp.eq.s32.totalorder %s36, 0
    %p607 = por %p605, %p606
    %p608 = scmp.ne.s32.totalorder %s600, %s602
    %p609 = scmp.eq.s32.totalorder %s41, 1
    %p610 = por %p608, %p609
    %p611 = scmp.ne.s32.totalorder %s602, %s603
    %p612 = scmp.eq.s32.totalorder %s41, 0
    %p613 = por %p611, %p612
    %p614 = scmp.ne.s32.totalorder %s602, %s603
    %p615 = scmp.eq.s32.totalorder %s42, 1
    %p616 = por %p614, %p615
    %p618 = scmp.ne.s32.totalorder %s603, %s617
    %p619 = scmp.eq.s32.totalorder %s42, 0
    %p620 = por %p618, %p619
    %s622 = sadd.s32 %s621, 1
    %p625 = scmp.eq.s32.totalorder %s36, 1
    %p626 = scmp.ne.s32.totalorder %s621, %s623
    %p627 = scmp.eq.s32.totalorder %s36, 0
    %p628 = por %p626, %p627
    %p629 = scmp.ne.s32.totalorder %s621, %s623
    %p630 = scmp.eq.s32.totalorder %s41, 1
    %p631 = por %p629, %p630
    %p632 = scmp.ne.s32.totalorder %s623, %s624
    %p633 = scmp.eq.s32.totalorder %s41, 0
    %p634 = por %p632, %p633
    %p635 = scmp.ne.s32.totalorder %s623, %s624
    %p636 = scmp.eq.s32.totalorder %s42, 1
    %p637 = por %p635, %p636
    %p639 = scmp.ne.s32.totalorder %s624, %s638
    %p640 = scmp.eq.s32.totalorder %s42, 0
    %p641 = por %p639, %p640
    %s642 = ssub.s32 %s36, %s43
    %p643 = scmp.eq.s32.totalorder %s642, 0
    %s645 = sadd.s32 %s644, 1
    %s646 = scalar_select %p643, %s644, %s645
    %p649 = pneg %p643
    %p650 = scmp.eq.s32.totalorder %s36, 1
    %p651 = por %p649, %p650
    %p652 = scmp.ne.s32.totalorder %s644, %s647
    %p653 = scmp.eq.s32.totalorder %s36, 0
    %p654 = por %p652, %p653
    %p655 = scmp.ne.s32.totalorder %s644, %s647
    %p656 = scmp.eq.s32.totalorder %s41, 1
    %p657 = por %p655, %p656
    %p658 = scmp.ne.s32.totalorder %s647, %s648
    %p659 = scmp.eq.s32.totalorder %s41, 0
    %p660 = por %p658, %p659
    %p661 = scmp.ne.s32.totalorder %s647, %s648
    %p662 = scmp.eq.s32.totalorder %s42, 1
    %p663 = por %p661, %p662
    %p665 = scmp.ne.s32.totalorder %s648, %s664
    %p666 = scmp.eq.s32.totalorder %s42, 0
    %p667 = por %p665, %p666
    %p668 = scmp.le.s32.totalorder 1, %s36
    %p669 = scmp.lt.s32.totalorder %s36, 3
    %p670 = pnand %p668, %p669
    %p671 = pneg %p670
    // Predicated region
    $region9: #{tpu_custom_call.1} parent=5 // pred_check
      _
    $region10: #{tpu_custom_call.1} parent=5 // pred_check_branch
      %673 = sbr.rel (%p670) target = $region12
    $region11: #{tpu_custom_call.1} parent=5 // pred_region
      %s674 = ssub.s32 %s36, 1
      // Predicated region
      $region13: #{tpu_custom_call.1} parent=11 // pred_check
        %p675 = pneg %p109
      $region14: #{tpu_custom_call.1} parent=11 // pred_check_branch
        %677 = sbr.rel (%p675) target = $region16
      $region15: #{tpu_custom_call.1} parent=11 // pred_region
        _
      $region16: #{tpu_custom_call.1} parent=11 // pred_fallthru
        _
      // Predicated region
      $region17: #{tpu_custom_call.1} parent=11 // pred_check
        %p678 = pneg %p130
      $region18: #{tpu_custom_call.1} parent=11 // pred_check_branch
        %680 = sbr.rel (%p678) target = $region20
      $region19: #{tpu_custom_call.1} parent=11 // pred_region
        _
      $region20: #{tpu_custom_call.1} parent=11 // pred_fallthru
        _
      // Predicated region
      $region21: #{tpu_custom_call.1} parent=11 // pred_check
        %p681 = pneg %p151
      $region22: #{tpu_custom_call.1} parent=11 // pred_check_branch
        %683 = sbr.rel (%p681) target = $region24
      $region23: #{tpu_custom_call.1} parent=11 // pred_region
        _
      $region24: #{tpu_custom_call.1} parent=11 // pred_fallthru
        _
      // Predicated region
      $region25: #{tpu_custom_call.1} parent=11 // pred_check
        %p684 = pneg %p172
      $region26: #{tpu_custom_call.1} parent=11 // pred_check_branch
        %686 = sbr.rel (%p684) target = $region28
      $region27: #{tpu_custom_call.1} parent=11 // pred_region
        _
      $region28: #{tpu_custom_call.1} parent=11 // pred_fallthru
        _
      // Predicated region
      $region29: #{tpu_custom_call.1} parent=11 // pred_check
        %p687 = pneg %p193
      $region30: #{tpu_custom_call.1} parent=11 // pred_check_branch
        %689 = sbr.rel (%p687) target = $region32
      $region31: #{tpu_custom_call.1} parent=11 // pred_region
        _
      $region32: #{tpu_custom_call.1} parent=11 // pred_fallthru
        _
      // Predicated region
      $region33: #{tpu_custom_call.1} parent=11 // pred_check
        %p690 = pneg %p214
      $region34: #{tpu_custom_call.1} parent=11 // pred_check_branch
        %692 = sbr.rel (%p690) target = $region36
      $region35: #{tpu_custom_call.1} parent=11 // pred_region
        _
      $region36: #{tpu_custom_call.1} parent=11 // pred_fallthru
        _
      // Predicated region
      $region37: #{tpu_custom_call.1} parent=11 // pred_check
        %p693 = pneg %p235
      $region38: #{tpu_custom_call.1} parent=11 // pred_check_branch
        %695 = sbr.rel (%p693) target = $region40
      $region39: #{tpu_custom_call.1} parent=11 // pred_region
        _
      $region40: #{tpu_custom_call.1} parent=11 // pred_fallthru
        _
      // Predicated region
      $region41: #{tpu_custom_call.1} parent=11 // pred_check
        %p696 = pneg %p256
      $region42: #{tpu_custom_call.1} parent=11 // pred_check_branch
        %698 = sbr.rel (%p696) target = $region44
      $region43: #{tpu_custom_call.1} parent=11 // pred_region
        _
      $region44: #{tpu_custom_call.1} parent=11 // pred_fallthru
        _
      // Predicated region
      $region45: #{tpu_custom_call.1} parent=11 // pred_check
        %p699 = pneg %p277
      $region46: #{tpu_custom_call.1} parent=11 // pred_check_branch
        %701 = sbr.rel (%p699) target = $region48
      $region47: #{tpu_custom_call.1} parent=11 // pred_region
        _
      $region48: #{tpu_custom_call.1} parent=11 // pred_fallthru
        _
      // Predicated region
      $region49: #{tpu_custom_call.1} parent=11 // pred_check
        %p702 = pneg %p298
      $region50: #{tpu_custom_call.1} parent=11 // pred_check_branch
        %704 = sbr.rel (%p702) target = $region52
      $region51: #{tpu_custom_call.1} parent=11 // pred_region
        _
      $region52: #{tpu_custom_call.1} parent=11 // pred_fallthru
        _
      // Predicated region
      $region53: #{tpu_custom_call.1} parent=11 // pred_check
        %p705 = pneg %p319
      $region54: #{tpu_custom_call.1} parent=11 // pred_check_branch
        %707 = sbr.rel (%p705) target = $region56
      $region55: #{tpu_custom_call.1} parent=11 // pred_region
        _
      $region56: #{tpu_custom_call.1} parent=11 // pred_fallthru
        _
      // Predicated region
      $region57: #{tpu_custom_call.1} parent=11 // pred_check
        %p708 = pneg %p340
      $region58: #{tpu_custom_call.1} parent=11 // pred_check_branch
        %710 = sbr.rel (%p708) target = $region60
      $region59: #{tpu_custom_call.1} parent=11 // pred_region
        _
      $region60: #{tpu_custom_call.1} parent=11 // pred_fallthru
        _
      // Predicated region
      $region61: #{tpu_custom_call.1} parent=11 // pred_check
        %p711 = pneg %p361
      $region62: #{tpu_custom_call.1} parent=11 // pred_check_branch
        %713 = sbr.rel (%p711) target = $region64
      $region63: #{tpu_custom_call.1} parent=11 // pred_region
        _
      $region64: #{tpu_custom_call.1} parent=11 // pred_fallthru
        _
      // Predicated region
      $region65: #{tpu_custom_call.1} parent=11 // pred_check
        %p714 = pneg %p382
      $region66: #{tpu_custom_call.1} parent=11 // pred_check_branch
        %716 = sbr.rel (%p714) target = $region68
      $region67: #{tpu_custom_call.1} parent=11 // pred_region
        _
      $region68: #{tpu_custom_call.1} parent=11 // pred_fallthru
        _
      // Predicated region
      $region69: #{tpu_custom_call.1} parent=11 // pred_check
        %p717 = pneg %p403
      $region70: #{tpu_custom_call.1} parent=11 // pred_check_branch
        %719 = sbr.rel (%p717) target = $region72
      $region71: #{tpu_custom_call.1} parent=11 // pred_region
        _
      $region72: #{tpu_custom_call.1} parent=11 // pred_fallthru
        _
      // Predicated region
      $region73: #{tpu_custom_call.1} parent=11 // pred_check
        %p720 = pneg %p424
      $region74: #{tpu_custom_call.1} parent=11 // pred_check_branch
        %722 = sbr.rel (%p720) target = $region76
      $region75: #{tpu_custom_call.1} parent=11 // pred_region
        _
      $region76: #{tpu_custom_call.1} parent=11 // pred_fallthru
        _
      // Predicated region
      $region77: #{tpu_custom_call.1} parent=11 // pred_check
        %p723 = pneg %p445
      $region78: #{tpu_custom_call.1} parent=11 // pred_check_branch
        %725 = sbr.rel (%p723) target = $region80
      $region79: #{tpu_custom_call.1} parent=11 // pred_region
        _
      $region80: #{tpu_custom_call.1} parent=11 // pred_fallthru
        _
      // Predicated region
      $region81: #{tpu_custom_call.1} parent=11 // pred_check
        %p726 = pneg %p466
      $region82: #{tpu_custom_call.1} parent=11 // pred_check_branch
        %728 = sbr.rel (%p726) target = $region84
      $region83: #{tpu_custom_call.1} parent=11 // pred_region
        _
      $region84: #{tpu_custom_call.1} parent=11 // pred_fallthru
        _
      // Predicated region
      $region85: #{tpu_custom_call.1} parent=11 // pred_check
        %p729 = pneg %p487
      $region86: #{tpu_custom_call.1} parent=11 // pred_check_branch
        %731 = sbr.rel (%p729) target = $region88
      $region87: #{tpu_custom_call.1} parent=11 // pred_region
        _
      $region88: #{tpu_custom_call.1} parent=11 // pred_fallthru
        _
      // Predicated region
      $region89: #{tpu_custom_call.1} parent=11 // pred_check
        %p732 = pneg %p508
      $region90: #{tpu_custom_call.1} parent=11 // pred_check_branch
        %734 = sbr.rel (%p732) target = $region92
      $region91: #{tpu_custom_call.1} parent=11 // pred_region
        _
      $region92: #{tpu_custom_call.1} parent=11 // pred_fallthru
        _
      // Predicated region
      $region93: #{tpu_custom_call.1} parent=11 // pred_check
        %p735 = pneg %p529
      $region94: #{tpu_custom_call.1} parent=11 // pred_check_branch
        %737 = sbr.rel (%p735) target = $region96
      $region95: #{tpu_custom_call.1} parent=11 // pred_region
        _
      $region96: #{tpu_custom_call.1} parent=11 // pred_fallthru
        _
      // Predicated region
      $region97: #{tpu_custom_call.1} parent=11 // pred_check
        %p738 = pneg %p550
      $region98: #{tpu_custom_call.1} parent=11 // pred_check_branch
        %740 = sbr.rel (%p738) target = $region100
      $region99: #{tpu_custom_call.1} parent=11 // pred_region
        _
      $region100: #{tpu_custom_call.1} parent=11 // pred_fallthru
        _
      // Predicated region
      $region101: #{tpu_custom_call.1} parent=11 // pred_check
        %p741 = pneg %p571
      $region102: #{tpu_custom_call.1} parent=11 // pred_check_branch
        %743 = sbr.rel (%p741) target = $region104
      $region103: #{tpu_custom_call.1} parent=11 // pred_region
        _
      $region104: #{tpu_custom_call.1} parent=11 // pred_fallthru
        _
      // Predicated region
      $region105: #{tpu_custom_call.1} parent=11 // pred_check
        %p744 = pneg %p592
      $region106: #{tpu_custom_call.1} parent=11 // pred_check_branch
        %746 = sbr.rel (%p744) target = $region108
      $region107: #{tpu_custom_call.1} parent=11 // pred_region
        _
      $region108: #{tpu_custom_call.1} parent=11 // pred_fallthru
        _
      // Predicated region
      $region109: #{tpu_custom_call.1} parent=11 // pred_check
        %p747 = pneg %p613
      $region110: #{tpu_custom_call.1} parent=11 // pred_check_branch
        %749 = sbr.rel (%p747) target = $region112
      $region111: #{tpu_custom_call.1} parent=11 // pred_region
        _
      $region112: #{tpu_custom_call.1} parent=11 // pred_fallthru
        _
      // Predicated region
      $region113: #{tpu_custom_call.1} parent=11 // pred_check
        %p750 = pneg %p634
      $region114: #{tpu_custom_call.1} parent=11 // pred_check_branch
        %752 = sbr.rel (%p750) target = $region116
      $region115: #{tpu_custom_call.1} parent=11 // pred_region
        _
      $region116: #{tpu_custom_call.1} parent=11 // pred_fallthru
        _
    $region12: #{tpu_custom_call.1} parent=5 // pred_fallthru
      _
    %p753 = scmp.lt.s32.totalorder %s36, 2
    // Predicated region
    $region117: #{tpu_custom_call.1} parent=5 // pred_check
      %p754 = pneg %p753
    $region118: #{tpu_custom_call.1} parent=5 // pred_check_branch
      %756 = sbr.rel (%p754) target = $region120
    $region119: #{tpu_custom_call.1} parent=5 // pred_region
      // Predicated region
      $region121: #{tpu_custom_call.1} parent=119 // pred_check
        %p757 = pneg %p56
      $region122: #{tpu_custom_call.1} parent=119 // pred_check_branch
        %759 = sbr.rel (%p757) target = $region124
      $region123: #{tpu_custom_call.1} parent=119 // pred_region
        %p760 = scmp.lt.s32.totalorder %s36, 1
        %s761 = scalar_select %p760, %s36, 1
        %s762 = smul.addr %s761, 4
        %s763 = scalar_lea.vmem %s0, %s762
      $region124: #{tpu_custom_call.1} parent=119 // pred_fallthru
        _
      // Predicated region
      $region125: #{tpu_custom_call.1} parent=119 // pred_check
        %p764 = pneg %p82
      $region126: #{tpu_custom_call.1} parent=119 // pred_check_branch
        %766 = sbr.rel (%p764) target = $region128
      $region127: #{tpu_custom_call.1} parent=119 // pred_region
        %p767 = scmp.lt.s32.totalorder %s36, 1
        %s768 = scalar_select %p767, %s36, 1
        %s769 = smul.addr %s768, 2
        %s770 = scalar_lea.vmem %s1, %s769
      $region128: #{tpu_custom_call.1} parent=119 // pred_fallthru
        _
    $region120: #{tpu_custom_call.1} parent=5 // pred_fallthru
      _
    %p771 = scmp.le.s32.totalorder 1, %s36
    %p772 = scmp.lt.s32.totalorder %s36, 3
    %p773 = pnand %p771, %p772
    %p774 = pneg %p773
    // Predicated region
    $region129: #{tpu_custom_call.1} parent=5 // pred_check
      _
    $region130: #{tpu_custom_call.1} parent=5 // pred_check_branch
      %776 = sbr.rel (%p773) target = $region132
    $region131: #{tpu_custom_call.1} parent=5 // pred_region
      %s777 = ssub.s32 %s36, 1
      %p778 = scmp.lt.s32.totalorder %s41, 1
      %s779 = scalar_select %p778, %s41, 1
      %s780 = smul.addr %s779, 4
      %s781 = scalar_lea.vmem %s0, %s780
      %p782 = pneg %p62
      %p783 = pneg %p59
      %p784 = scmp.lt.s32.totalorder %s41, 1
      %s785 = scalar_select %p784, %s41, 1
      %s786 = smul.addr %s785, 2
      %s787 = scalar_lea.vmem %s1, %s786
      %p788 = pneg %p88
      %p789 = pneg %p85
      %p790 = pneg %p109
      %p791 = pneg %p106
      %p792 = pneg %p130
      %p793 = pneg %p127
      %p794 = pneg %p151
      %p795 = pneg %p148
      %p796 = pneg %p172
      %p797 = pneg %p169
      %p798 = pneg %p193
      %p799 = pneg %p190
      %p800 = pneg %p214
      %p801 = pneg %p211
      %p802 = pneg %p235
      %p803 = pneg %p232
      %p804 = pneg %p256
      %p805 = pneg %p253
      %p806 = pneg %p277
      %p807 = pneg %p274
      %p808 = pneg %p298
      %p809 = pneg %p295
      %p810 = pneg %p319
      %p811 = pneg %p316
      %p812 = pneg %p340
      %p813 = pneg %p337
      %p814 = pneg %p361
      %p815 = pneg %p358
      %p816 = pneg %p382
      %p817 = pneg %p379
      %p818 = pneg %p403
      %p819 = pneg %p400
      %p820 = pneg %p424
      %p821 = pneg %p421
      %p822 = pneg %p445
      %p823 = pneg %p442
      %p824 = pneg %p466
      %p825 = pneg %p463
      %p826 = pneg %p487
      %p827 = pneg %p484
      %p828 = pneg %p508
      %p829 = pneg %p505
      %p830 = pneg %p529
      %p831 = pneg %p526
      %p832 = pneg %p550
      %p833 = pneg %p547
      %p834 = pneg %p571
      %p835 = pneg %p568
      %p836 = pneg %p592
      %p837 = pneg %p589
      %p838 = pneg %p613
      %p839 = pneg %p610
      %p840 = pneg %p634
      %p841 = pneg %p631
      %p842 = pneg %p660
      %p843 = pneg %p657
      %p844 = scmp.lt.s32.totalorder %s41, 1
      %s845 = scalar_select %p844, %s41, 1
      %s846 = scalar_lea.vmem %s28, %s845
      %p847 = scmp.lt.s32.totalorder %s41, 1
      %s848 = scalar_select %p847, %s41, 1
      %s849 = smul.addr %s848, 4
      %s850 = scalar_lea.vmem %s0, %s849
      %p851 = scmp.lt.s32.totalorder %s41, 1
      %s852 = scalar_select %p851, %s41, 1
      %s853 = smul.addr %s852, 2
      %s854 = scalar_lea.vmem %s1, %s853
      %p855 = scmp.lt.s32.totalorder %s41, 1
      %s856 = scalar_select %p855, %s41, 1
      %s857 = scalar_lea.vmem %s28, %s856
      %v859 = vld [vmem:[%s850] sm:$0x7]
      %v860 = vld [vmem:[%s854] sm:$0x3]
      %v861 = vld [vmem:[%s2] sm:$0x3]
      %v862 = vpack.c.bf16 %v860, %v860
      %v864 = vunpack.c.l.b16 %v862
      %v865 = vpack.c.b16 %v864, %v864
      %866 = vrot.lane.b32.xlu0 %v865, 8
      %v867 = vpop.permute.xlu0 %866
      %vm868 = vcmask 64512
      %v871 = vsel %vm868, 0, %v867
      %v872 = vsel %vm868, %v867, 0
      %v875 = vrot.slane %v871, 7
      %v876 = vrot.slane %v872, 7
      %877 = vrot.lane.b32.xlu0 %v875, 127
      %v878 = vpop.permute.xlu0 %877
      %879 = vrot.lane.b32.xlu0 %v876, 127
      %v880 = vpop.permute.xlu0 %879
      %vm881 = vcmask 1039360
      %v882 = vsel %vm881, %v878, %v880
      %v883 = vrot.slane %v871, 6
      %v884 = vrot.slane %v872, 6
      %885 = vrot.lane.b32.xlu0 %v883, 126
      %v886 = vpop.permute.xlu0 %885
      %887 = vrot.lane.b32.xlu0 %v884, 126
      %v888 = vpop.permute.xlu0 %887
      %vm889 = vcmask 1031168
      %v890 = vsel %vm889, %v886, %v888
      %v891 = vrot.slane %v871, 5
      %v892 = vrot.slane %v872, 5
      %893 = vrot.lane.b32.xlu0 %v891, 125
      %v894 = vpop.permute.xlu0 %893
      %895 = vrot.lane.b32.xlu0 %v892, 125
      %v896 = vpop.permute.xlu0 %895
      %vm897 = vcmask 1022976
      %v898 = vsel %vm897, %v894, %v896
      %v899 = vrot.slane %v871, 4
      %v900 = vrot.slane %v872, 4
      %901 = vrot.lane.b32.xlu0 %v899, 124
      %v902 = vpop.permute.xlu0 %901
      %903 = vrot.lane.b32.xlu0 %v900, 124
      %v904 = vpop.permute.xlu0 %903
      %vm905 = vcmask 1014784
      %v906 = vsel %vm905, %v902, %v904
      %v907 = vrot.slane %v871, 3
      %v908 = vrot.slane %v872, 3
      %909 = vrot.lane.b32.xlu0 %v907, 123
      %v910 = vpop.permute.xlu0 %909
      %911 = vrot.lane.b32.xlu0 %v908, 123
      %v912 = vpop.permute.xlu0 %911
      %vm913 = vcmask 1006592
      %v914 = vsel %vm913, %v910, %v912
      %v915 = vrot.slane %v871, 2
      %v916 = vrot.slane %v872, 2
      %917 = vrot.lane.b32.xlu0 %v915, 122
      %v918 = vpop.permute.xlu0 %917
      %919 = vrot.lane.b32.xlu0 %v916, 122
      %v920 = vpop.permute.xlu0 %919
      %vm921 = vcmask 998400
      %v922 = vsel %vm921, %v918, %v920
      %v923 = vrot.slane %v871, 1
      %v924 = vrot.slane %v872, 1
      %925 = vrot.lane.b32.xlu0 %v923, 121
      %v926 = vpop.permute.xlu0 %925
      %927 = vrot.lane.b32.xlu0 %v924, 121
      %v928 = vpop.permute.xlu0 %927
      %vm929 = vcmask 990208
      %v930 = vsel %vm929, %v926, %v928
      %931 = vrot.lane.b32.xlu0 %v871, 120
      %v932 = vpop.permute.xlu0 %931
      %933 = vrot.lane.b32.xlu0 %v872, 120
      %v934 = vpop.permute.xlu0 %933
      %vm935 = vcmask 982016
      %v936 = vsel %vm935, %v932, %v934
      %937 = vrot.lane.b32.xlu0 %v875, 119
      %v938 = vpop.permute.xlu0 %937
      %939 = vrot.lane.b32.xlu0 %v876, 119
      %v940 = vpop.permute.xlu0 %939
      %vm941 = vcmask 973824
      %v942 = vsel %vm941, %v938, %v940
      %943 = vrot.lane.b32.xlu0 %v883, 118
      %v944 = vpop.permute.xlu0 %943
      %945 = vrot.lane.b32.xlu0 %v884, 118
      %v946 = vpop.permute.xlu0 %945
      %vm947 = vcmask 965632
      %v948 = vsel %vm947, %v944, %v946
      %949 = vrot.lane.b32.xlu0 %v891, 117
      %v950 = vpop.permute.xlu0 %949
      %951 = vrot.lane.b32.xlu0 %v892, 117
      %v952 = vpop.permute.xlu0 %951
      %vm953 = vcmask 957440
      %v954 = vsel %vm953, %v950, %v952
      %955 = vrot.lane.b32.xlu0 %v899, 116
      %v956 = vpop.permute.xlu0 %955
      %957 = vrot.lane.b32.xlu0 %v900, 116
      %v958 = vpop.permute.xlu0 %957
      %vm959 = vcmask 949248
      %v960 = vsel %vm959, %v956, %v958
      %961 = vrot.lane.b32.xlu0 %v907, 115
      %v962 = vpop.permute.xlu0 %961
      %963 = vrot.lane.b32.xlu0 %v908, 115
      %v964 = vpop.permute.xlu0 %963
      %vm965 = vcmask 941056
      %v966 = vsel %vm965, %v962, %v964
      %967 = vrot.lane.b32.xlu0 %v915, 114
      %v968 = vpop.permute.xlu0 %967
      %969 = vrot.lane.b32.xlu0 %v916, 114
      %v970 = vpop.permute.xlu0 %969
      %vm971 = vcmask 932864
      %v972 = vsel %vm971, %v968, %v970
      %973 = vrot.lane.b32.xlu0 %v923, 113
      %v974 = vpop.permute.xlu0 %973
      %975 = vrot.lane.b32.xlu0 %v924, 113
      %v976 = vpop.permute.xlu0 %975
      %vm977 = vcmask 924672
      %v978 = vsel %vm977, %v974, %v976
      %vm979 = vcmask 1040384
      %v981 = vsel %vm979, %v871, %v882
      %vm982 = vcmask 1041408
      %v984 = vsel %vm982, %v981, %v890
      %vm985 = vcmask 1042432
      %v987 = vsel %vm985, %v984, %v898
      %vm988 = vcmask 1043456
      %v990 = vsel %vm988, %v987, %v906
      %vm991 = vcmask 1044480
      %v993 = vsel %vm991, %v990, %v914
      %vm994 = vcmask 1045504
      %v996 = vsel %vm994, %v993, %v922
      %vm997 = vcmask 1046528
      %v999 = vsel %vm997, %v996, %v930
      %v1003 = vsel %vm979, %v936, %v942
      %v1005 = vsel %vm982, %v1003, %v948
      %v1007 = vsel %vm985, %v1005, %v954
      %v1009 = vsel %vm988, %v1007, %v960
      %v1011 = vsel %vm991, %v1009, %v966
      %v1013 = vsel %vm994, %v1011, %v972
      %v1015 = vsel %vm997, %v1013, %v978
      %1017 = vrot.lane.b32.xlu0 %v871, 112
      %v1018 = vpop.permute.xlu0 %1017
      %1019 = vrot.lane.b32.xlu0 %v872, 112
      %v1020 = vpop.permute.xlu0 %1019
      %vm1021 = vcmask 916480
      %v1022 = vsel %vm1021, %v1018, %v1020
      %v1023 = vld [vmem:[%s3] sm:$0xf]
      %1025 = vset.pattern.permute.xlu0 0
      %1026 = vperm.xlu0 %1025, %v1023
      %v1027 = vpop.permute.xlu0 %1026
      %vm1029 = vcmask 277504
      %v1031 = vsel %vm1029, %v861, 0
      %v1034 = vsel %vm979, %v1022, 0
      %1036 = vmatpush.bf16.msra.mxu0 0
      %1037 = vmatpush.bf16.msra.mxu0 0
      %1038 = vmatpush.bf16.msra.mxu0 0
      %1039 = vmatpush.bf16.msra.mxu0 0
      %1040 = vmatpush.bf16.msra.mxu0 0
      %1041 = vmatpush.bf16.msra.mxu0 %v1034
      %1042 = vmatpush.bf16.msra.mxu0 %v1015
      %1043 = vmatpush.bf16.msra.mxu0 %v999
      %1044 = vmatmul.bf16.gmra.mxu0 %v1031
      %v1045 = vpop.f32.mrf.mxu0
      %v1046 = vadd.f32 %v1027, %v1045
      %v1047 = vpop.f32.mrf.mxu0
      %1048 = vdwg.mxu0
      %v1049 = vld [vmem:[%s11] sm:$0xff]
      %v1050 = vld [vmem:[%s10] sm:$0xf]
      %v1051 = vpack.c.bf16 %v1046, %v1046
      %vm1052 = vcmask 31744
      %v1054 = vsel %vm1052, %v1050, 0
      %v1057 = vsel %vm982, %v1051, 0
      %1059 = vmatpush.bf16.msra.mxu0 0
      %1060 = vmatpush.bf16.msra.mxu0 0
      %1061 = vmatpush.bf16.msra.mxu0 0
      %1062 = vmatpush.bf16.msra.mxu0 0
      %1063 = vmatpush.bf16.msra.mxu0 0
      %1064 = vmatpush.bf16.msra.mxu0 0
      %1065 = vmatpush.bf16.msra.mxu0 0
      %1066 = vmatpush.bf16.msra.mxu0 %v1057
      %1067 = vmatmul.bf16.gmra.mxu0 %v1054
      %v1068 = vpop.f32.mrf.mxu0
      %v1069 = vadd.f32 0.0, %v1068
      %v1070 = vpop.f32.mrf.mxu0
      %1071 = vdwg.mxu0
      %1073 = vset.pattern.permute.xlu0 0
      %1074 = vperm.xlu0 %1073, %v1049
      %v1075 = vpop.permute.xlu0 %1074
      %v1077 = vadd.f32 %v1075, %v1069
      %v1078 = vld [vmem:[%s7] sm:$0xff]
      %v1079 = vld [vmem:[%s6] sm:$0xf]
      %v1080 = vlaneseq
      %v1081 = vand.u32 %v1080, 127
      %1082 = vrot.lane.b32.xlu0 %v1046, 1
      %v1083 = vpop.permute.xlu0 %1082
      %vm1084 = vcmp.ge.s32.totalorder %v1081, 1
      %v1085 = vsel %vm1084, %v1083, 0.0
      %v1086 = vpack.c.bf16 %v1085, %v1085
      %1087 = vrot.lane.b32.xlu0 %v1046, 127
      %v1088 = vpop.permute.xlu0 %1087
      %vm1089 = vcmp.lt.s32.totalorder %v1081, 127
      %v1090 = vsel %vm1089, %v1088, 0.0
      %v1091 = vpack.c.bf16 %v1090, %v1090
      %v1093 = vunpack.c.l.b16 %v1051
      %v1094 = vpack.c.b16 %v1093, %v1093
      %v1095 = vrot.slane %v1094, 6
      %v1097 = vunpack.c.l.b16 %v1091
      %v1098 = vpack.c.b16 %v1097, %v1097
      %v1101 = vsel %vm982, %v1086, %v1095
      %v1103 = vsel %vm988, %v1101, %v1098
      %vm1104 = vcmask 97280
      %v1106 = vsel %vm1104, %v1079, 0
      %v1108 = vsel %vm994, %v1103, 0
      %1110 = vmatpush.bf16.msra.mxu0 0
      %1111 = vmatpush.bf16.msra.mxu0 0
      %1112 = vmatpush.bf16.msra.mxu0 0
      %1113 = vmatpush.bf16.msra.mxu0 0
      %1114 = vmatpush.bf16.msra.mxu0 0
      %1115 = vmatpush.bf16.msra.mxu0 0
      %1116 = vmatpush.bf16.msra.mxu0 0
      %1117 = vmatpush.bf16.msra.mxu0 %v1108
      %1118 = vmatmul.bf16.gmra.mxu0 %v1106
      %v1119 = vpop.f32.mrf.mxu0
      %v1120 = vadd.f32 0.0, %v1119
      %v1121 = vpop.f32.mrf.mxu0
      %1122 = vdwg.mxu0
      %1124 = vset.pattern.permute.xlu0 0
      %1125 = vperm.xlu0 %1124, %v1078
      %v1126 = vpop.permute.xlu0 %1125
      %v1128 = vadd.f32 %v1126, %v1120
      %v1129 = vadd.f32 %v1077, %v1128
      %v1130 = vmul.f32 %v1128, 0.2
      %v1131 = vmax.f32 %v1128, %v1130
      %v1132 = vld [vmem:[%s8] sm:$0xf]
      %v1133 = vpack.c.bf16 %v1131, %v1131
      %1134 = vrot.lane.b32.xlu0 %v1131, 2
      %v1135 = vpop.permute.xlu0 %1134
      %vm1136 = vcmp.ge.s32.totalorder %v1081, 2
      %v1137 = vsel %vm1136, %v1135, 0.0
      %v1138 = vpack.c.bf16 %v1137, %v1137
      %1139 = vrot.lane.b32.xlu0 %v1131, 126
      %v1140 = vpop.permute.xlu0 %1139
      %vm1141 = vcmp.lt.s32.totalorder %v1081, 126
      %v1142 = vsel %vm1141, %v1140, 0.0
      %v1143 = vpack.c.bf16 %v1142, %v1142
      %v1145 = vunpack.c.l.b16 %v1133
      %v1146 = vpack.c.b16 %v1145, %v1145
      %v1149 = vsel %vm988, %v1138, %v1146
      %v1151 = vld [vmem:[%s9] sm:$0xff]
      %1153 = vset.pattern.permute.xlu0 0
      %1154 = vperm.xlu0 %1153, %v1151
      %v1155 = vpop.permute.xlu0 %1154
      %vm1157 = vcmask 195584
      %v1159 = vsel %vm1157, %v1132, 0
      %v1162 = vsel %vm988, %v1143, 0
      %1164 = vmatpush.bf16.msra.mxu0 0
      %1165 = vmatpush.bf16.msra.mxu0 0
      %1166 = vmatpush.bf16.msra.mxu0 0
      %1167 = vmatpush.bf16.msra.mxu0 0
      %1168 = vmatpush.bf16.msra.mxu0 0
      %1169 = vmatpush.bf16.msra.mxu0 0
      %1170 = vmatpush.bf16.msra.mxu0 %v1162
      %1171 = vmatpush.bf16.msra.mxu0 %v1149
      %1172 = vmatmul.bf16.gmra.mxu0 %v1159
      %v1173 = vpop.f32.mrf.mxu0
      %v1174 = vadd.f32 %v1155, %v1173
      %v1175 = vpop.f32.mrf.mxu0
      %1176 = vdwg.mxu0
      %v1177 = vadd.f32 %v1129, %v1174
      %v1178 = vmul.f32 %v1174, 0.2
      %v1179 = vmax.f32 %v1174, %v1178
      %s1180 = scalar_lea.vmem %s8, 4
      %v1181 = vld [vmem:[%s1180] sm:$0xf]
      %v1182 = vpack.c.bf16 %v1179, %v1179
      %1183 = vrot.lane.b32.xlu0 %v1179, 4
      %v1184 = vpop.permute.xlu0 %1183
      %vm1185 = vcmp.ge.s32.totalorder %v1081, 4
      %v1186 = vsel %vm1185, %v1184, 0.0
      %v1187 = vpack.c.bf16 %v1186, %v1186
      %1188 = vrot.lane.b32.xlu0 %v1179, 124
      %v1189 = vpop.permute.xlu0 %1188
      %vm1190 = vcmp.lt.s32.totalorder %v1081, 124
      %v1191 = vsel %vm1190, %v1189, 0.0
      %v1192 = vpack.c.bf16 %v1191, %v1191
      %v1194 = vunpack.c.l.b16 %v1182
      %v1195 = vpack.c.b16 %v1194, %v1194
      %v1198 = vsel %vm988, %v1187, %v1195
      %s1200 = scalar_lea.vmem %s9, 8
      %v1201 = vld [vmem:[%s1200] sm:$0xff]
      %1203 = vset.pattern.permute.xlu0 0
      %1204 = vperm.xlu0 %1203, %v1201
      %v1205 = vpop.permute.xlu0 %1204
      %v1208 = vsel %vm1157, %v1181, 0
      %v1211 = vsel %vm988, %v1192, 0
      %1213 = vmatpush.bf16.msra.mxu0 0
      %1214 = vmatpush.bf16.msra.mxu0 0
      %1215 = vmatpush.bf16.msra.mxu0 0
      %1216 = vmatpush.bf16.msra.mxu0 0
      %1217 = vmatpush.bf16.msra.mxu0 0
      %1218 = vmatpush.bf16.msra.mxu0 0
      %1219 = vmatpush.bf16.msra.mxu0 %v1211
      %1220 = vmatpush.bf16.msra.mxu0 %v1198
      %1221 = vmatmul.bf16.gmra.mxu0 %v1208
      %v1222 = vpop.f32.mrf.mxu0
      %v1223 = vadd.f32 %v1205, %v1222
      %v1224 = vpop.f32.mrf.mxu0
      %1225 = vdwg.mxu0
      %v1226 = vadd.f32 %v1177, %v1223
      %v1227 = vmul.f32 %v1223, 0.2
      %v1228 = vmax.f32 %v1223, %v1227
      %s1229 = scalar_lea.vmem %s8, 8
      %v1230 = vld [vmem:[%s1229] sm:$0xf]
      %v1231 = vpack.c.bf16 %v1228, %v1228
      %1232 = vrot.lane.b32.xlu0 %v1228, 8
      %v1233 = vpop.permute.xlu0 %1232
      %vm1234 = vcmp.ge.s32.totalorder %v1081, 8
      %v1235 = vsel %vm1234, %v1233, 0.0
      %v1236 = vpack.c.bf16 %v1235, %v1235
      %1237 = vrot.lane.b32.xlu0 %v1228, 120
      %v1238 = vpop.permute.xlu0 %1237
      %vm1239 = vcmp.lt.s32.totalorder %v1081, 120
      %v1240 = vsel %vm1239, %v1238, 0.0
      %v1241 = vpack.c.bf16 %v1240, %v1240
      %v1243 = vunpack.c.l.b16 %v1231
      %v1244 = vpack.c.b16 %v1243, %v1243
      %v1247 = vsel %vm988, %v1236, %v1244
      %s1249 = scalar_lea.vmem %s9, 16
      %v1250 = vld [vmem:[%s1249] sm:$0xff]
      %1252 = vset.pattern.permute.xlu0 0
      %1253 = vperm.xlu0 %1252, %v1250
      %v1254 = vpop.permute.xlu0 %1253
      %v1257 = vsel %vm1157, %v1230, 0
      %v1260 = vsel %vm988, %v1241, 0
      %1262 = vmatpush.bf16.msra.mxu0 0
      %1263 = vmatpush.bf16.msra.mxu0 0
      %1264 = vmatpush.bf16.msra.mxu0 0
      %1265 = vmatpush.bf16.msra.mxu0 0
      %1266 = vmatpush.bf16.msra.mxu0 0
      %1267 = vmatpush.bf16.msra.mxu0 0
      %1268 = vmatpush.bf16.msra.mxu0 %v1260
      %1269 = vmatpush.bf16.msra.mxu0 %v1247
      %1270 = vmatmul.bf16.gmra.mxu0 %v1257
      %v1271 = vpop.f32.mrf.mxu0
      %v1272 = vadd.f32 %v1254, %v1271
      %v1273 = vpop.f32.mrf.mxu0
      %1274 = vdwg.mxu0
      %v1275 = vadd.f32 %v1226, %v1272
      %v1276 = vmul.f32 %v1272, 0.2
      %v1277 = vmax.f32 %v1272, %v1276
      %s1278 = scalar_lea.vmem %s8, 12
      %v1279 = vld [vmem:[%s1278] sm:$0xf]
      %v1280 = vpack.c.bf16 %v1277, %v1277
      %1281 = vrot.lane.b32.xlu0 %v1277, 16
      %v1282 = vpop.permute.xlu0 %1281
      %vm1283 = vcmp.ge.s32.totalorder %v1081, 16
      %v1284 = vsel %vm1283, %v1282, 0.0
      %v1285 = vpack.c.bf16 %v1284, %v1284
      %1286 = vrot.lane.b32.xlu0 %v1277, 112
      %v1287 = vpop.permute.xlu0 %1286
      %vm1288 = vcmp.lt.s32.totalorder %v1081, 112
      %v1289 = vsel %vm1288, %v1287, 0.0
      %v1290 = vpack.c.bf16 %v1289, %v1289
      %v1292 = vunpack.c.l.b16 %v1280
      %v1293 = vpack.c.b16 %v1292, %v1292
      %v1296 = vsel %vm988, %v1285, %v1293
      %s1298 = scalar_lea.vmem %s9, 24
      %v1299 = vld [vmem:[%s1298] sm:$0xff]
      %1301 = vset.pattern.permute.xlu0 0
      %1302 = vperm.xlu0 %1301, %v1299
      %v1303 = vpop.permute.xlu0 %1302
      %v1306 = vsel %vm1157, %v1279, 0
      %v1309 = vsel %vm988, %v1290, 0
      %1311 = vmatpush.bf16.msra.mxu0 0
      %1312 = vmatpush.bf16.msra.mxu0 0
      %1313 = vmatpush.bf16.msra.mxu0 0
      %1314 = vmatpush.bf16.msra.mxu0 0
      %1315 = vmatpush.bf16.msra.mxu0 0
      %1316 = vmatpush.bf16.msra.mxu0 0
      %1317 = vmatpush.bf16.msra.mxu0 %v1309
      %1318 = vmatpush.bf16.msra.mxu0 %v1296
      %1319 = vmatmul.bf16.gmra.mxu0 %v1306
      %v1320 = vpop.f32.mrf.mxu0
      %v1321 = vadd.f32 %v1303, %v1320
      %v1322 = vpop.f32.mrf.mxu0
      %1323 = vdwg.mxu0
      %v1324 = vadd.f32 %v1275, %v1321
      %v1325 = vmul.f32 %v1321, 0.2
      %v1326 = vmax.f32 %v1321, %v1325
      %s1327 = scalar_lea.vmem %s8, 16
      %v1328 = vld [vmem:[%s1327] sm:$0xf]
      %v1329 = vpack.c.bf16 %v1326, %v1326
      %1330 = vrot.lane.b32.xlu0 %v1326, 32
      %v1331 = vpop.permute.xlu0 %1330
      %vm1332 = vcmp.ge.s32.totalorder %v1081, 32
      %v1333 = vsel %vm1332, %v1331, 0.0
      %v1334 = vpack.c.bf16 %v1333, %v1333
      %1335 = vrot.lane.b32.xlu0 %v1326, 96
      %v1336 = vpop.permute.xlu0 %1335
      %vm1337 = vcmp.lt.s32.totalorder %v1081, 96
      %v1338 = vsel %vm1337, %v1336, 0.0
      %v1339 = vpack.c.bf16 %v1338, %v1338
      %v1341 = vunpack.c.l.b16 %v1329
      %v1342 = vpack.c.b16 %v1341, %v1341
      %v1345 = vsel %vm988, %v1334, %v1342
      %s1347 = scalar_lea.vmem %s9, 32
      %v1348 = vld [vmem:[%s1347] sm:$0xff]
      %1350 = vset.pattern.permute.xlu0 0
      %1351 = vperm.xlu0 %1350, %v1348
      %v1352 = vpop.permute.xlu0 %1351
      %v1355 = vsel %vm1157, %v1328, 0
      %v1358 = vsel %vm988, %v1339, 0
      %1360 = vmatpush.bf16.msra.mxu0 0
      %1361 = vmatpush.bf16.msra.mxu0 0
      %1362 = vmatpush.bf16.msra.mxu0 0
      %1363 = vmatpush.bf16.msra.mxu0 0
      %1364 = vmatpush.bf16.msra.mxu0 0
      %1365 = vmatpush.bf16.msra.mxu0 0
      %1366 = vmatpush.bf16.msra.mxu0 %v1358
      %1367 = vmatpush.bf16.msra.mxu0 %v1345
      %1368 = vmatmul.bf16.gmra.mxu0 %v1355
      %v1369 = vpop.f32.mrf.mxu0
      %v1370 = vadd.f32 %v1352, %v1369
      %v1371 = vpop.f32.mrf.mxu0
      %1372 = vdwg.mxu0
      %v1373 = vadd.f32 %v1324, %v1370
      %v1374 = vmul.f32 %v1370, 0.2
      %v1375 = vmax.f32 %v1370, %v1374
      %s1376 = scalar_lea.vmem %s8, 20
      %v1377 = vld [vmem:[%s1376] sm:$0xf]
      %v1378 = vpack.c.bf16 %v1375, %v1375
      %1379 = vrot.lane.b32.xlu0 %v1375, 64
      %v1380 = vpop.permute.xlu0 %1379
      %vm1381 = vcmp.ge.s32.totalorder %v1081, 64
      %v1382 = vsel %vm1381, %v1380, 0.0
      %v1383 = vpack.c.bf16 %v1382, %v1382
      %vm1384 = vcmp.lt.s32.totalorder %v1081, 64
      %v1385 = vsel %vm1384, %v1380, 0.0
      %v1386 = vpack.c.bf16 %v1385, %v1385
      %v1388 = vunpack.c.l.b16 %v1378
      %v1389 = vpack.c.b16 %v1388, %v1388
      %v1392 = vsel %vm988, %v1383, %v1389
      %s1394 = scalar_lea.vmem %s9, 40
      %v1395 = vld [vmem:[%s1394] sm:$0xff]
      %1397 = vset.pattern.permute.xlu0 0
      %1398 = vperm.xlu0 %1397, %v1395
      %v1399 = vpop.permute.xlu0 %1398
      %v1402 = vsel %vm1157, %v1377, 0
      %v1405 = vsel %vm988, %v1386, 0
      %1407 = vmatpush.bf16.msra.mxu0 0
      %1408 = vmatpush.bf16.msra.mxu0 0
      %1409 = vmatpush.bf16.msra.mxu0 0
      %1410 = vmatpush.bf16.msra.mxu0 0
      %1411 = vmatpush.bf16.msra.mxu0 0
      %1412 = vmatpush.bf16.msra.mxu0 0
      %1413 = vmatpush.bf16.msra.mxu0 %v1405
      %1414 = vmatpush.bf16.msra.mxu0 %v1392
      %1415 = vmatmul.bf16.gmra.mxu0 %v1402
      %v1416 = vpop.f32.mrf.mxu0
      %v1417 = vadd.f32 %v1399, %v1416
      %v1418 = vpop.f32.mrf.mxu0
      %1419 = vdwg.mxu0
      %v1420 = vadd.f32 %v1373, %v1417
      %v1421 = vmul.f32 %v1417, 0.2
      %v1422 = vmax.f32 %v1417, %v1421
      %s1423 = scalar_lea.vmem %s8, 24
      %v1424 = vld [vmem:[%s1423] sm:$0xf]
      %v1425 = vpack.c.bf16 %v1422, %v1422
      %s1426 = scalar_lea.vmem %s9, 48
      %v1427 = vld [vmem:[%s1426] sm:$0xff]
      %1429 = vset.pattern.permute.xlu0 0
      %1430 = vperm.xlu0 %1429, %v1427
      %v1431 = vpop.permute.xlu0 %1430
      %v1434 = vunpack.c.l.b16 %v1424
      %v1435 = vpack.c.b16 %v1434, %v1434
      %1436 = vrot.lane.b32.xlu0 %v1435, 120
      %v1437 = vpop.permute.xlu0 %1436
      %v1439 = vsel %vm868, %v1437, 0
      %v1442 = vsel %vm988, %v1425, 0
      %1444 = vmatpush.bf16.msra.mxu0 0
      %1445 = vmatpush.bf16.msra.mxu0 0
      %1446 = vmatpush.bf16.msra.mxu0 0
      %1447 = vmatpush.bf16.msra.mxu0 0
      %1448 = vmatpush.bf16.msra.mxu0 0
      %1449 = vmatpush.bf16.msra.mxu0 0
      %1450 = vmatpush.bf16.msra.mxu0 0
      %1451 = vmatpush.bf16.msra.mxu0 %v1442
      %1452 = vmatmul.bf16.gmra.mxu0 %v1439
      %v1453 = vpop.f32.mrf.mxu0
      %v1454 = vadd.f32 %v1431, %v1453
      %v1455 = vpop.f32.mrf.mxu0
      %1456 = vdwg.mxu0
      %v1457 = vadd.f32 %v1420, %v1454
      %v1458 = vmul.f32 %v1454, 0.2
      %v1459 = vmax.f32 %v1454, %v1458
      %s1460 = scalar_lea.vmem %s8, 28
      %v1461 = vld [vmem:[%s1460] sm:$0xf]
      %v1462 = vpack.c.bf16 %v1459, %v1459
      %s1463 = scalar_lea.vmem %s9, 56
      %v1464 = vld [vmem:[%s1463] sm:$0xff]
      %1466 = vset.pattern.permute.xlu0 0
      %1467 = vperm.xlu0 %1466, %v1464
      %v1468 = vpop.permute.xlu0 %1467
      %v1471 = vunpack.c.l.b16 %v1461
      %v1472 = vpack.c.b16 %v1471, %v1471
      %1473 = vrot.lane.b32.xlu0 %v1472, 120
      %v1474 = vpop.permute.xlu0 %1473
      %v1476 = vsel %vm868, %v1474, 0
      %v1479 = vsel %vm988, %v1462, 0
      %1481 = vmatpush.bf16.msra.mxu0 0
      %1482 = vmatpush.bf16.msra.mxu0 0
      %1483 = vmatpush.bf16.msra.mxu0 0
      %1484 = vmatpush.bf16.msra.mxu0 0
      %1485 = vmatpush.bf16.msra.mxu0 0
      %1486 = vmatpush.bf16.msra.mxu0 0
      %1487 = vmatpush.bf16.msra.mxu0 0
      %1488 = vmatpush.bf16.msra.mxu0 %v1479
      %1489 = vmatmul.bf16.gmra.mxu0 %v1476
      %v1490 = vpop.f32.mrf.mxu0
      %v1491 = vadd.f32 %v1468, %v1490
      %v1492 = vpop.f32.mrf.mxu0
      %1493 = vdwg.mxu0
      %v1494 = vadd.f32 %v1457, %v1491
      %v1495 = vmul.f32 %v1491, 0.2
      %v1496 = vmax.f32 %v1491, %v1495
      %s1497 = scalar_lea.vmem %s8, 32
      %v1498 = vld [vmem:[%s1497] sm:$0xf]
      %v1499 = vpack.c.bf16 %v1496, %v1496
      %s1500 = scalar_lea.vmem %s9, 64
      %v1501 = vld [vmem:[%s1500] sm:$0xff]
      %1503 = vset.pattern.permute.xlu0 0
      %1504 = vperm.xlu0 %1503, %v1501
      %v1505 = vpop.permute.xlu0 %1504
      %v1508 = vunpack.c.l.b16 %v1498
      %v1509 = vpack.c.b16 %v1508, %v1508
      %1510 = vrot.lane.b32.xlu0 %v1509, 120
      %v1511 = vpop.permute.xlu0 %1510
      %v1513 = vsel %vm868, %v1511, 0
      %v1516 = vsel %vm988, %v1499, 0
      %1518 = vmatpush.bf16.msra.mxu0 0
      %1519 = vmatpush.bf16.msra.mxu0 0
      %1520 = vmatpush.bf16.msra.mxu0 0
      %1521 = vmatpush.bf16.msra.mxu0 0
      %1522 = vmatpush.bf16.msra.mxu0 0
      %1523 = vmatpush.bf16.msra.mxu0 0
      %1524 = vmatpush.bf16.msra.mxu0 0
      %1525 = vmatpush.bf16.msra.mxu0 %v1516
      %1526 = vmatmul.bf16.gmra.mxu0 %v1513
      %v1527 = vpop.f32.mrf.mxu0
      %v1528 = vadd.f32 %v1505, %v1527
      %v1529 = vpop.f32.mrf.mxu0
      %1530 = vdwg.mxu0
      %v1531 = vadd.f32 %v1494, %v1528
      %v1532 = vmul.f32 %v1528, 0.2
      %v1533 = vmax.f32 %v1528, %v1532
      %s1534 = scalar_lea.vmem %s8, 36
      %v1535 = vld [vmem:[%s1534] sm:$0xf]
      %v1536 = vpack.c.bf16 %v1533, %v1533
      %s1537 = scalar_lea.vmem %s9, 72
      %v1538 = vld [vmem:[%s1537] sm:$0xff]
      %1540 = vset.pattern.permute.xlu0 0
      %1541 = vperm.xlu0 %1540, %v1538
      %v1542 = vpop.permute.xlu0 %1541
      %v1545 = vunpack.c.l.b16 %v1535
      %v1546 = vpack.c.b16 %v1545, %v1545
      %1547 = vrot.lane.b32.xlu0 %v1546, 120
      %v1548 = vpop.permute.xlu0 %1547
      %v1550 = vsel %vm868, %v1548, 0
      %v1553 = vsel %vm988, %v1536, 0
      %1555 = vmatpush.bf16.msra.mxu0 0
      %1556 = vmatpush.bf16.msra.mxu0 0
      %1557 = vmatpush.bf16.msra.mxu0 0
      %1558 = vmatpush.bf16.msra.mxu0 0
      %1559 = vmatpush.bf16.msra.mxu0 0
      %1560 = vmatpush.bf16.msra.mxu0 0
      %1561 = vmatpush.bf16.msra.mxu0 0
      %1562 = vmatpush.bf16.msra.mxu0 %v1553
      %1563 = vmatmul.bf16.gmra.mxu0 %v1550
      %v1564 = vpop.f32.mrf.mxu0
      %v1565 = vadd.f32 %v1542, %v1564
      %v1566 = vpop.f32.mrf.mxu0
      %1567 = vdwg.mxu0
      %v1568 = vadd.f32 %v1531, %v1565
      %v1569 = vmul.f32 %v1568, 0.2
      %v1570 = vmax.f32 %v1568, %v1569
      %v1571 = vld [vmem:[%s4] sm:$0x3]
      %v1572 = vpack.c.bf16 %v859, %v859
      %v1574 = vunpack.c.l.b16 %v1572
      %v1575 = vpack.c.b16 %v1574, %v1574
      %1576 = vrot.lane.b32.xlu0 %v1575, 8
      %v1577 = vpop.permute.xlu0 %1576
      %v1579 = vsel %vm868, 0, %v1577
      %v1581 = vsel %vm868, %v1577, 0
      %v1582 = vshrl.u32 %v1579, 16
      %v1584 = vrot.slane %v1582, 6
      %v1585 = vshll.u32 %v1579, 16
      %v1587 = vrot.slane %v1585, 7
      %v1588 = vor.u32 %v1584, %v1587
      %v1589 = vshrl.u32 %v1581, 16
      %v1591 = vrot.slane %v1589, 6
      %v1592 = vshll.u32 %v1581, 16
      %v1594 = vrot.slane %v1592, 7
      %v1595 = vor.u32 %v1591, %v1594
      %1596 = vrot.lane.b32.xlu0 %v1588, 127
      %v1597 = vpop.permute.xlu0 %1596
      %1598 = vrot.lane.b32.xlu0 %v1595, 127
      %v1599 = vpop.permute.xlu0 %1598
      %v1600 = vsel %vm881, %v1597, %v1599
      %v1604 = vrot.slane %v1579, 5
      %v1605 = vrot.slane %v1581, 5
      %1606 = vrot.lane.b32.xlu0 %v1604, 126
      %v1607 = vpop.permute.xlu0 %1606
      %1608 = vrot.lane.b32.xlu0 %v1605, 126
      %v1609 = vpop.permute.xlu0 %1608
      %v1610 = vsel %vm889, %v1607, %v1609
      %v1611 = vrot.slane %v1582, 3
      %v1612 = vrot.slane %v1585, 4
      %v1613 = vor.u32 %v1611, %v1612
      %v1614 = vrot.slane %v1589, 3
      %v1615 = vrot.slane %v1592, 4
      %v1616 = vor.u32 %v1614, %v1615
      %1617 = vrot.lane.b32.xlu0 %v1613, 125
      %v1618 = vpop.permute.xlu0 %1617
      %1619 = vrot.lane.b32.xlu0 %v1616, 125
      %v1620 = vpop.permute.xlu0 %1619
      %v1621 = vsel %vm897, %v1618, %v1620
      %v1623 = vrot.slane %v1579, 2
      %v1624 = vrot.slane %v1581, 2
      %1625 = vrot.lane.b32.xlu0 %v1623, 124
      %v1626 = vpop.permute.xlu0 %1625
      %1627 = vrot.lane.b32.xlu0 %v1624, 124
      %v1628 = vpop.permute.xlu0 %1627
      %v1629 = vsel %vm905, %v1626, %v1628
      %v1630 = vrot.slane %v1585, 1
      %v1631 = vrot.slane %v1592, 1
      %v1632 = vor.u32 %v1582, %v1630
      %v1633 = vor.u32 %v1589, %v1631
      %1634 = vrot.lane.b32.xlu0 %v1630, 123
      %v1635 = vpop.permute.xlu0 %1634
      %1636 = vrot.lane.b32.xlu0 %v1631, 123
      %v1637 = vpop.permute.xlu0 %1636
      %1638 = vrot.lane.b32.xlu0 %v1632, 123
      %v1639 = vpop.permute.xlu0 %1638
      %1640 = vrot.lane.b32.xlu0 %v1633, 123
      %v1641 = vpop.permute.xlu0 %1640
      %v1642 = vsel %vm913, %v1635, %v1637
      %v1643 = vsel %vm913, %v1639, %v1641
      %v1645 = vrot.slane %v1579, 7
      %v1646 = vrot.slane %v1581, 7
      %1647 = vrot.lane.b32.xlu0 %v1645, 122
      %v1648 = vpop.permute.xlu0 %1647
      %1649 = vrot.lane.b32.xlu0 %v1646, 122
      %v1650 = vpop.permute.xlu0 %1649
      %v1651 = vsel %vm921, %v1648, %v1650
      %v1652 = vrot.slane %v1582, 5
      %v1653 = vrot.slane %v1585, 6
      %v1654 = vor.u32 %v1652, %v1653
      %v1655 = vrot.slane %v1589, 5
      %v1656 = vrot.slane %v1592, 6
      %v1657 = vor.u32 %v1655, %v1656
      %1658 = vrot.lane.b32.xlu0 %v1654, 121
      %v1659 = vpop.permute.xlu0 %1658
      %1660 = vrot.lane.b32.xlu0 %v1657, 121
      %v1661 = vpop.permute.xlu0 %1660
      %v1662 = vsel %vm929, %v1659, %v1661
      %v1664 = vrot.slane %v1579, 4
      %v1665 = vrot.slane %v1581, 4
      %1666 = vrot.lane.b32.xlu0 %v1664, 120
      %v1667 = vpop.permute.xlu0 %1666
      %1668 = vrot.lane.b32.xlu0 %v1665, 120
      %v1669 = vpop.permute.xlu0 %1668
      %v1670 = vsel %vm935, %v1667, %v1669
      %v1671 = vrot.slane %v1582, 2
      %v1672 = vrot.slane %v1585, 3
      %v1673 = vor.u32 %v1671, %v1672
      %v1674 = vrot.slane %v1589, 2
      %v1675 = vrot.slane %v1592, 3
      %v1676 = vor.u32 %v1674, %v1675
      %1677 = vrot.lane.b32.xlu0 %v1673, 119
      %v1678 = vpop.permute.xlu0 %1677
      %1679 = vrot.lane.b32.xlu0 %v1676, 119
      %v1680 = vpop.permute.xlu0 %1679
      %v1681 = vsel %vm941, %v1678, %v1680
      %v1683 = vrot.slane %v1579, 1
      %v1684 = vrot.slane %v1581, 1
      %1685 = vrot.lane.b32.xlu0 %v1683, 118
      %v1686 = vpop.permute.xlu0 %1685
      %1687 = vrot.lane.b32.xlu0 %v1684, 118
      %v1688 = vpop.permute.xlu0 %1687
      %v1689 = vsel %vm947, %v1686, %v1688
      %v1691 = vrot.slane %v1582, 7
      %v1692 = vor.u32 %v1691, %v1585
      %v1693 = vrot.slane %v1589, 7
      %v1694 = vor.u32 %v1693, %v1592
      %1695 = vrot.lane.b32.xlu0 %v1692, 117
      %v1696 = vpop.permute.xlu0 %1695
      %1697 = vrot.lane.b32.xlu0 %v1694, 117
      %v1698 = vpop.permute.xlu0 %1697
      %v1699 = vsel %vm953, %v1696, %v1698
      %v1701 = vrot.slane %v1579, 6
      %v1702 = vrot.slane %v1581, 6
      %1703 = vrot.lane.b32.xlu0 %v1701, 116
      %v1704 = vpop.permute.xlu0 %1703
      %1705 = vrot.lane.b32.xlu0 %v1702, 116
      %v1706 = vpop.permute.xlu0 %1705
      %v1707 = vsel %vm959, %v1704, %v1706
      %v1708 = vrot.slane %v1582, 4
      %v1709 = vrot.slane %v1585, 5
      %v1710 = vor.u32 %v1708, %v1709
      %v1711 = vrot.slane %v1589, 4
      %v1712 = vrot.slane %v1592, 5
      %v1713 = vor.u32 %v1711, %v1712
      %1714 = vrot.lane.b32.xlu0 %v1710, 115
      %v1715 = vpop.permute.xlu0 %1714
      %1716 = vrot.lane.b32.xlu0 %v1713, 115
      %v1717 = vpop.permute.xlu0 %1716
      %v1718 = vsel %vm965, %v1715, %v1717
      %v1720 = vrot.slane %v1579, 3
      %v1721 = vrot.slane %v1581, 3
      %1722 = vrot.lane.b32.xlu0 %v1720, 114
      %v1723 = vpop.permute.xlu0 %1722
      %1724 = vrot.lane.b32.xlu0 %v1721, 114
      %v1725 = vpop.permute.xlu0 %1724
      %v1726 = vsel %vm971, %v1723, %v1725
      %v1727 = vrot.slane %v1582, 1
      %v1728 = vrot.slane %v1585, 2
      %v1729 = vor.u32 %v1727, %v1728
      %v1730 = vrot.slane %v1589, 1
      %v1731 = vrot.slane %v1592, 2
      %v1732 = vor.u32 %v1730, %v1731
      %1733 = vrot.lane.b32.xlu0 %v1729, 113
      %v1734 = vpop.permute.xlu0 %1733
      %1735 = vrot.lane.b32.xlu0 %v1732, 113
      %v1736 = vpop.permute.xlu0 %1735
      %v1737 = vsel %vm977, %v1734, %v1736
      %vm1739 = vcmask 1041408
      %vm1740 = vsmask.f32 1280
      %vm1741 = vmand %vm1739, %vm1740
      %v1742 = vsel %vm1741, %v1579, %v1600
      %v1745 = vsel %vm985, %v1742, %v1610
      %vm1747 = vcmask 1044480
      %vm1748 = vsmask.f32 4352
      %vm1749 = vmand %vm1747, %vm1748
      %v1750 = vsel %vm1749, %v1745, %v1621
      %v1753 = vsel %vm994, %v1750, %v1629
      %vm1755 = vcmask 1047552
      %vm1756 = vsmask.f32 7424
      %vm1757 = vmand %vm1755, %vm1756
      %v1758 = vsel %vm1757, %v1753, %v1642
      %v1761 = vsel %vm979, %v1643, %v1651
      %vm1763 = vcmask 1042432
      %vm1764 = vsmask.f32 2304
      %vm1765 = vmand %vm1763, %vm1764
      %v1766 = vsel %vm1765, %v1761, %v1662
      %v1769 = vsel %vm988, %v1766, %v1670
      %vm1771 = vcmask 1045504
      %vm1772 = vsmask.f32 5376
      %vm1773 = vmand %vm1771, %vm1772
      %v1774 = vsel %vm1773, %v1769, %v1681
      %v1777 = vsel %vm997, %v1774, %v1689
      %vm1779 = vcmask 1040384
      %vm1780 = vsmask.f32 256
      %vm1781 = vmand %vm1779, %vm1780
      %v1782 = vsel %vm1781, %v1689, %v1699
      %v1785 = vsel %vm982, %v1782, %v1707
      %vm1787 = vcmask 1043456
      %vm1788 = vsmask.f32 3328
      %vm1789 = vmand %vm1787, %vm1788
      %v1790 = vsel %vm1789, %v1785, %v1718
      %v1793 = vsel %vm991, %v1790, %v1726
      %vm1795 = vcmask 1046528
      %vm1796 = vsmask.f32 6400
      %vm1797 = vmand %vm1795, %vm1796
      %v1798 = vsel %vm1797, %v1793, %v1737
      %1799 = vrot.lane.b32.xlu0 %v1579, 112
      %v1800 = vpop.permute.xlu0 %1799
      %1801 = vrot.lane.b32.xlu0 %v1581, 112
      %v1802 = vpop.permute.xlu0 %1801
      %v1803 = vsel %vm1021, %v1800, %v1802
      %v1804 = vld [vmem:[%s5] sm:$0xf]
      %1806 = vset.pattern.permute.xlu0 0
      %1807 = vperm.xlu0 %1806, %v1804
      %v1808 = vpop.permute.xlu0 %1807
      %vm1810 = vcmask 416768
      %v1812 = vsel %vm1810, %v1571, 0
      %v1814 = vsel %vm979, 4294967295, 65535
      %v1815 = vsel %vm982, %v1814, 0
      %v1817 = vand.u32 %v1803, %v1815
      %1819 = vmatpush.bf16.msra.mxu0 0
      %1820 = vmatpush.bf16.msra.mxu0 0
      %1821 = vmatpush.bf16.msra.mxu0 0
      %1822 = vmatpush.bf16.msra.mxu0 0
      %1823 = vmatpush.bf16.msra.mxu0 %v1817
      %1824 = vmatpush.bf16.msra.mxu0 %v1798
      %1825 = vmatpush.bf16.msra.mxu0 %v1777
      %1826 = vmatpush.bf16.msra.mxu0 %v1758
      %1827 = vmatmul.bf16.gmra.mxu0 %v1812
      %v1828 = vpop.f32.mrf.mxu0
      %v1829 = vadd.f32 %v1808, %v1828
      %v1830 = vpop.f32.mrf.mxu0
      %1831 = vdwg.mxu0
      %v1832 = vld [vmem:[%s17] sm:$0xff]
      %v1833 = vld [vmem:[%s16] sm:$0xf]
      %v1834 = vpack.c.bf16 %v1829, %v1829
      %v1836 = vsel %vm1052, %v1833, 0
      %v1839 = vsel %vm982, %v1834, 0
      %1841 = vmatpush.bf16.msra.mxu0 0
      %1842 = vmatpush.bf16.msra.mxu0 0
      %1843 = vmatpush.bf16.msra.mxu0 0
      %1844 = vmatpush.bf16.msra.mxu0 0
      %1845 = vmatpush.bf16.msra.mxu0 0
      %1846 = vmatpush.bf16.msra.mxu0 0
      %1847 = vmatpush.bf16.msra.mxu0 0
      %1848 = vmatpush.bf16.msra.mxu0 %v1839
      %1849 = vmatmul.bf16.gmra.mxu0 %v1836
      %v1850 = vpop.f32.mrf.mxu0
      %v1851 = vadd.f32 0.0, %v1850
      %v1852 = vpop.f32.mrf.mxu0
      %1853 = vdwg.mxu0
      %1855 = vset.pattern.permute.xlu0 0
      %1856 = vperm.xlu0 %1855, %v1832
      %v1857 = vpop.permute.xlu0 %1856
      %v1859 = vadd.f32 %v1857, %v1851
      %v1860 = vld [vmem:[%s13] sm:$0xff]
      %v1861 = vld [vmem:[%s12] sm:$0xf]
      %1862 = vrot.lane.b32.xlu0 %v1829, 1
      %v1863 = vpop.permute.xlu0 %1862
      %v1864 = vsel %vm1084, %v1863, 0.0
      %v1865 = vpack.c.bf16 %v1864, %v1864
      %1866 = vrot.lane.b32.xlu0 %v1829, 127
      %v1867 = vpop.permute.xlu0 %1866
      %v1868 = vsel %vm1089, %v1867, 0.0
      %v1869 = vpack.c.bf16 %v1868, %v1868
      %v1871 = vunpack.c.l.b16 %v1834
      %v1872 = vpack.c.b16 %v1871, %v1871
      %v1873 = vrot.slane %v1872, 6
      %v1875 = vunpack.c.l.b16 %v1869
      %v1876 = vpack.c.b16 %v1875, %v1875
      %v1879 = vsel %vm982, %v1865, %v1873
      %v1881 = vsel %vm988, %v1879, %v1876
      %v1883 = vsel %vm1104, %v1861, 0
      %v1885 = vsel %vm994, %v1881, 0
      %1887 = vmatpush.bf16.msra.mxu0 0
      %1888 = vmatpush.bf16.msra.mxu0 0
      %1889 = vmatpush.bf16.msra.mxu0 0
      %1890 = vmatpush.bf16.msra.mxu0 0
      %1891 = vmatpush.bf16.msra.mxu0 0
      %1892 = vmatpush.bf16.msra.mxu0 0
      %1893 = vmatpush.bf16.msra.mxu0 0
      %1894 = vmatpush.bf16.msra.mxu0 %v1885
      %1895 = vmatmul.bf16.gmra.mxu0 %v1883
      %v1896 = vpop.f32.mrf.mxu0
      %v1897 = vadd.f32 0.0, %v1896
      %v1898 = vpop.f32.mrf.mxu0
      %1899 = vdwg.mxu0
      %1901 = vset.pattern.permute.xlu0 0
      %1902 = vperm.xlu0 %1901, %v1860
      %v1903 = vpop.permute.xlu0 %1902
      %v1905 = vadd.f32 %v1903, %v1897
      %v1906 = vadd.f32 %v1859, %v1905
      %v1907 = vmul.f32 %v1905, 0.2
      %v1908 = vmax.f32 %v1905, %v1907
      %v1909 = vld [vmem:[%s14] sm:$0xf]
      %v1910 = vpack.c.bf16 %v1908, %v1908
      %1911 = vrot.lane.b32.xlu0 %v1908, 2
      %v1912 = vpop.permute.xlu0 %1911
      %v1913 = vsel %vm1136, %v1912, 0.0
      %v1914 = vpack.c.bf16 %v1913, %v1913
      %1915 = vrot.lane.b32.xlu0 %v1908, 126
      %v1916 = vpop.permute.xlu0 %1915
      %v1917 = vsel %vm1141, %v1916, 0.0
      %v1918 = vpack.c.bf16 %v1917, %v1917
      %v1920 = vunpack.c.l.b16 %v1910
      %v1921 = vpack.c.b16 %v1920, %v1920
      %v1924 = vsel %vm988, %v1914, %v1921
      %v1926 = vld [vmem:[%s15] sm:$0xff]
      %1928 = vset.pattern.permute.xlu0 0
      %1929 = vperm.xlu0 %1928, %v1926
      %v1930 = vpop.permute.xlu0 %1929
      %v1933 = vsel %vm1157, %v1909, 0
      %v1936 = vsel %vm988, %v1918, 0
      %1938 = vmatpush.bf16.msra.mxu0 0
      %1939 = vmatpush.bf16.msra.mxu0 0
      %1940 = vmatpush.bf16.msra.mxu0 0
      %1941 = vmatpush.bf16.msra.mxu0 0
      %1942 = vmatpush.bf16.msra.mxu0 0
      %1943 = vmatpush.bf16.msra.mxu0 0
      %1944 = vmatpush.bf16.msra.mxu0 %v1936
      %1945 = vmatpush.bf16.msra.mxu0 %v1924
      %1946 = vmatmul.bf16.gmra.mxu0 %v1933
      %v1947 = vpop.f32.mrf.mxu0
      %v1948 = vadd.f32 %v1930, %v1947
      %v1949 = vpop.f32.mrf.mxu0
      %1950 = vdwg.mxu0
      %v1951 = vadd.f32 %v1906, %v1948
      %v1952 = vmul.f32 %v1948, 0.2
      %v1953 = vmax.f32 %v1948, %v1952
      %s1954 = scalar_lea.vmem %s14, 4
      %v1955 = vld [vmem:[%s1954] sm:$0xf]
      %v1956 = vpack.c.bf16 %v1953, %v1953
      %1957 = vrot.lane.b32.xlu0 %v1953, 4
      %v1958 = vpop.permute.xlu0 %1957
      %v1959 = vsel %vm1185, %v1958, 0.0
      %v1960 = vpack.c.bf16 %v1959, %v1959
      %1961 = vrot.lane.b32.xlu0 %v1953, 124
      %v1962 = vpop.permute.xlu0 %1961
      %v1963 = vsel %vm1190, %v1962, 0.0
      %v1964 = vpack.c.bf16 %v1963, %v1963
      %v1966 = vunpack.c.l.b16 %v1956
      %v1967 = vpack.c.b16 %v1966, %v1966
      %v1970 = vsel %vm988, %v1960, %v1967
      %s1972 = scalar_lea.vmem %s15, 8
      %v1973 = vld [vmem:[%s1972] sm:$0xff]
      %1975 = vset.pattern.permute.xlu0 0
      %1976 = vperm.xlu0 %1975, %v1973
      %v1977 = vpop.permute.xlu0 %1976
      %v1980 = vsel %vm1157, %v1955, 0
      %v1983 = vsel %vm988, %v1964, 0
      %1985 = vmatpush.bf16.msra.mxu0 0
      %1986 = vmatpush.bf16.msra.mxu0 0
      %1987 = vmatpush.bf16.msra.mxu0 0
      %1988 = vmatpush.bf16.msra.mxu0 0
      %1989 = vmatpush.bf16.msra.mxu0 0
      %1990 = vmatpush.bf16.msra.mxu0 0
      %1991 = vmatpush.bf16.msra.mxu0 %v1983
      %1992 = vmatpush.bf16.msra.mxu0 %v1970
      %1993 = vmatmul.bf16.gmra.mxu0 %v1980
      %v1994 = vpop.f32.mrf.mxu0
      %v1995 = vadd.f32 %v1977, %v1994
      %v1996 = vpop.f32.mrf.mxu0
      %1997 = vdwg.mxu0
      %v1998 = vadd.f32 %v1951, %v1995
      %v1999 = vmul.f32 %v1995, 0.2
      %v2000 = vmax.f32 %v1995, %v1999
      %s2001 = scalar_lea.vmem %s14, 8
      %v2002 = vld [vmem:[%s2001] sm:$0xf]
      %v2003 = vpack.c.bf16 %v2000, %v2000
      %2004 = vrot.lane.b32.xlu0 %v2000, 8
      %v2005 = vpop.permute.xlu0 %2004
      %v2006 = vsel %vm1234, %v2005, 0.0
      %v2007 = vpack.c.bf16 %v2006, %v2006
      %2008 = vrot.lane.b32.xlu0 %v2000, 120
      %v2009 = vpop.permute.xlu0 %2008
      %v2010 = vsel %vm1239, %v2009, 0.0
      %v2011 = vpack.c.bf16 %v2010, %v2010
      %v2013 = vunpack.c.l.b16 %v2003
      %v2014 = vpack.c.b16 %v2013, %v2013
      %v2017 = vsel %vm988, %v2007, %v2014
      %s2019 = scalar_lea.vmem %s15, 16
      %v2020 = vld [vmem:[%s2019] sm:$0xff]
      %2022 = vset.pattern.permute.xlu0 0
      %2023 = vperm.xlu0 %2022, %v2020
      %v2024 = vpop.permute.xlu0 %2023
      %v2027 = vsel %vm1157, %v2002, 0
      %v2030 = vsel %vm988, %v2011, 0
      %2032 = vmatpush.bf16.msra.mxu0 0
      %2033 = vmatpush.bf16.msra.mxu0 0
      %2034 = vmatpush.bf16.msra.mxu0 0
      %2035 = vmatpush.bf16.msra.mxu0 0
      %2036 = vmatpush.bf16.msra.mxu0 0
      %2037 = vmatpush.bf16.msra.mxu0 0
      %2038 = vmatpush.bf16.msra.mxu0 %v2030
      %2039 = vmatpush.bf16.msra.mxu0 %v2017
      %2040 = vmatmul.bf16.gmra.mxu0 %v2027
      %v2041 = vpop.f32.mrf.mxu0
      %v2042 = vadd.f32 %v2024, %v2041
      %v2043 = vpop.f32.mrf.mxu0
      %2044 = vdwg.mxu0
      %v2045 = vadd.f32 %v1998, %v2042
      %v2046 = vmul.f32 %v2042, 0.2
      %v2047 = vmax.f32 %v2042, %v2046
      %s2048 = scalar_lea.vmem %s14, 12
      %v2049 = vld [vmem:[%s2048] sm:$0xf]
      %v2050 = vpack.c.bf16 %v2047, %v2047
      %2051 = vrot.lane.b32.xlu0 %v2047, 16
      %v2052 = vpop.permute.xlu0 %2051
      %v2053 = vsel %vm1283, %v2052, 0.0
      %v2054 = vpack.c.bf16 %v2053, %v2053
      %2055 = vrot.lane.b32.xlu0 %v2047, 112
      %v2056 = vpop.permute.xlu0 %2055
      %v2057 = vsel %vm1288, %v2056, 0.0
      %v2058 = vpack.c.bf16 %v2057, %v2057
      %v2060 = vunpack.c.l.b16 %v2050
      %v2061 = vpack.c.b16 %v2060, %v2060
      %v2064 = vsel %vm988, %v2054, %v2061
      %s2066 = scalar_lea.vmem %s15, 24
      %v2067 = vld [vmem:[%s2066] sm:$0xff]
      %2069 = vset.pattern.permute.xlu0 0
      %2070 = vperm.xlu0 %2069, %v2067
      %v2071 = vpop.permute.xlu0 %2070
      %v2074 = vsel %vm1157, %v2049, 0
      %v2077 = vsel %vm988, %v2058, 0
      %2079 = vmatpush.bf16.msra.mxu0 0
      %2080 = vmatpush.bf16.msra.mxu0 0
      %2081 = vmatpush.bf16.msra.mxu0 0
      %2082 = vmatpush.bf16.msra.mxu0 0
      %2083 = vmatpush.bf16.msra.mxu0 0
      %2084 = vmatpush.bf16.msra.mxu0 0
      %2085 = vmatpush.bf16.msra.mxu0 %v2077
      %2086 = vmatpush.bf16.msra.mxu0 %v2064
      %2087 = vmatmul.bf16.gmra.mxu0 %v2074
      %v2088 = vpop.f32.mrf.mxu0
      %v2089 = vadd.f32 %v2071, %v2088
      %v2090 = vpop.f32.mrf.mxu0
      %2091 = vdwg.mxu0
      %v2092 = vadd.f32 %v2045, %v2089
      %v2093 = vmul.f32 %v2089, 0.2
      %v2094 = vmax.f32 %v2089, %v2093
      %s2095 = scalar_lea.vmem %s14, 16
      %v2096 = vld [vmem:[%s2095] sm:$0xf]
      %v2097 = vpack.c.bf16 %v2094, %v2094
      %2098 = vrot.lane.b32.xlu0 %v2094, 32
      %v2099 = vpop.permute.xlu0 %2098
      %v2100 = vsel %vm1332, %v2099, 0.0
      %v2101 = vpack.c.bf16 %v2100, %v2100
      %2102 = vrot.lane.b32.xlu0 %v2094, 96
      %v2103 = vpop.permute.xlu0 %2102
      %v2104 = vsel %vm1337, %v2103, 0.0
      %v2105 = vpack.c.bf16 %v2104, %v2104
      %v2107 = vunpack.c.l.b16 %v2097
      %v2108 = vpack.c.b16 %v2107, %v2107
      %v2111 = vsel %vm988, %v2101, %v2108
      %s2113 = scalar_lea.vmem %s15, 32
      %v2114 = vld [vmem:[%s2113] sm:$0xff]
      %2116 = vset.pattern.permute.xlu0 0
      %2117 = vperm.xlu0 %2116, %v2114
      %v2118 = vpop.permute.xlu0 %2117
      %v2121 = vsel %vm1157, %v2096, 0
      %v2124 = vsel %vm988, %v2105, 0
      %2126 = vmatpush.bf16.msra.mxu0 0
      %2127 = vmatpush.bf16.msra.mxu0 0
      %2128 = vmatpush.bf16.msra.mxu0 0
      %2129 = vmatpush.bf16.msra.mxu0 0
      %2130 = vmatpush.bf16.msra.mxu0 0
      %2131 = vmatpush.bf16.msra.mxu0 0
      %2132 = vmatpush.bf16.msra.mxu0 %v2124
      %2133 = vmatpush.bf16.msra.mxu0 %v2111
      %2134 = vmatmul.bf16.gmra.mxu0 %v2121
      %v2135 = vpop.f32.mrf.mxu0
      %v2136 = vadd.f32 %v2118, %v2135
      %v2137 = vpop.f32.mrf.mxu0
      %2138 = vdwg.mxu0
      %v2139 = vadd.f32 %v2092, %v2136
      %v2140 = vmul.f32 %v2136, 0.2
      %v2141 = vmax.f32 %v2136, %v2140
      %s2142 = scalar_lea.vmem %s14, 20
      %v2143 = vld [vmem:[%s2142] sm:$0xf]
      %v2144 = vpack.c.bf16 %v2141, %v2141
      %2145 = vrot.lane.b32.xlu0 %v2141, 64
      %v2146 = vpop.permute.xlu0 %2145
      %v2147 = vsel %vm1381, %v2146, 0.0
      %v2148 = vpack.c.bf16 %v2147, %v2147
      %v2149 = vsel %vm1384, %v2146, 0.0
      %v2150 = vpack.c.bf16 %v2149, %v2149
      %v2152 = vunpack.c.l.b16 %v2144
      %v2153 = vpack.c.b16 %v2152, %v2152
      %v2156 = vsel %vm988, %v2148, %v2153
      %s2158 = scalar_lea.vmem %s15, 40
      %v2159 = vld [vmem:[%s2158] sm:$0xff]
      %2161 = vset.pattern.permute.xlu0 0
      %2162 = vperm.xlu0 %2161, %v2159
      %v2163 = vpop.permute.xlu0 %2162
      %v2166 = vsel %vm1157, %v2143, 0
      %v2169 = vsel %vm988, %v2150, 0
      %2171 = vmatpush.bf16.msra.mxu0 0
      %2172 = vmatpush.bf16.msra.mxu0 0
      %2173 = vmatpush.bf16.msra.mxu0 0
      %2174 = vmatpush.bf16.msra.mxu0 0
      %2175 = vmatpush.bf16.msra.mxu0 0
      %2176 = vmatpush.bf16.msra.mxu0 0
      %2177 = vmatpush.bf16.msra.mxu0 %v2169
      %2178 = vmatpush.bf16.msra.mxu0 %v2156
      %2179 = vmatmul.bf16.gmra.mxu0 %v2166
      %v2180 = vpop.f32.mrf.mxu0
      %v2181 = vadd.f32 %v2163, %v2180
      %v2182 = vpop.f32.mrf.mxu0
      %2183 = vdwg.mxu0
      %v2184 = vadd.f32 %v2139, %v2181
      %v2185 = vmul.f32 %v2181, 0.2
      %v2186 = vmax.f32 %v2181, %v2185
      %s2187 = scalar_lea.vmem %s14, 24
      %v2188 = vld [vmem:[%s2187] sm:$0xf]
      %v2189 = vpack.c.bf16 %v2186, %v2186
      %s2190 = scalar_lea.vmem %s15, 48
      %v2191 = vld [vmem:[%s2190] sm:$0xff]
      %2193 = vset.pattern.permute.xlu0 0
      %2194 = vperm.xlu0 %2193, %v2191
      %v2195 = vpop.permute.xlu0 %2194
      %v2198 = vunpack.c.l.b16 %v2188
      %v2199 = vpack.c.b16 %v2198, %v2198
      %2200 = vrot.lane.b32.xlu0 %v2199, 120
      %v2201 = vpop.permute.xlu0 %2200
      %v2203 = vsel %vm868, %v2201, 0
      %v2206 = vsel %vm988, %v2189, 0
      %2208 = vmatpush.bf16.msra.mxu0 0
      %2209 = vmatpush.bf16.msra.mxu0 0
      %2210 = vmatpush.bf16.msra.mxu0 0
      %2211 = vmatpush.bf16.msra.mxu0 0
      %2212 = vmatpush.bf16.msra.mxu0 0
      %2213 = vmatpush.bf16.msra.mxu0 0
      %2214 = vmatpush.bf16.msra.mxu0 0
      %2215 = vmatpush.bf16.msra.mxu0 %v2206
      %2216 = vmatmul.bf16.gmra.mxu0 %v2203
      %v2217 = vpop.f32.mrf.mxu0
      %v2218 = vadd.f32 %v2195, %v2217
      %v2219 = vpop.f32.mrf.mxu0
      %2220 = vdwg.mxu0
      %v2221 = vadd.f32 %v2184, %v2218
      %v2222 = vmul.f32 %v2218, 0.2
      %v2223 = vmax.f32 %v2218, %v2222
      %s2224 = scalar_lea.vmem %s14, 28
      %v2225 = vld [vmem:[%s2224] sm:$0xf]
      %v2226 = vpack.c.bf16 %v2223, %v2223
      %s2227 = scalar_lea.vmem %s15, 56
      %v2228 = vld [vmem:[%s2227] sm:$0xff]
      %2230 = vset.pattern.permute.xlu0 0
      %2231 = vperm.xlu0 %2230, %v2228
      %v2232 = vpop.permute.xlu0 %2231
      %v2235 = vunpack.c.l.b16 %v2225
      %v2236 = vpack.c.b16 %v2235, %v2235
      %2237 = vrot.lane.b32.xlu0 %v2236, 120
      %v2238 = vpop.permute.xlu0 %2237
      %v2240 = vsel %vm868, %v2238, 0
      %v2243 = vsel %vm988, %v2226, 0
      %2245 = vmatpush.bf16.msra.mxu0 0
      %2246 = vmatpush.bf16.msra.mxu0 0
      %2247 = vmatpush.bf16.msra.mxu0 0
      %2248 = vmatpush.bf16.msra.mxu0 0
      %2249 = vmatpush.bf16.msra.mxu0 0
      %2250 = vmatpush.bf16.msra.mxu0 0
      %2251 = vmatpush.bf16.msra.mxu0 0
      %2252 = vmatpush.bf16.msra.mxu0 %v2243
      %2253 = vmatmul.bf16.gmra.mxu0 %v2240
      %v2254 = vpop.f32.mrf.mxu0
      %v2255 = vadd.f32 %v2232, %v2254
      %v2256 = vpop.f32.mrf.mxu0
      %2257 = vdwg.mxu0
      %v2258 = vadd.f32 %v2221, %v2255
      %v2259 = vmul.f32 %v2255, 0.2
      %v2260 = vmax.f32 %v2255, %v2259
      %s2261 = scalar_lea.vmem %s14, 32
      %v2262 = vld [vmem:[%s2261] sm:$0xf]
      %v2263 = vpack.c.bf16 %v2260, %v2260
      %s2264 = scalar_lea.vmem %s15, 64
      %v2265 = vld [vmem:[%s2264] sm:$0xff]
      %2267 = vset.pattern.permute.xlu0 0
      %2268 = vperm.xlu0 %2267, %v2265
      %v2269 = vpop.permute.xlu0 %2268
      %v2272 = vunpack.c.l.b16 %v2262
      %v2273 = vpack.c.b16 %v2272, %v2272
      %2274 = vrot.lane.b32.xlu0 %v2273, 120
      %v2275 = vpop.permute.xlu0 %2274
      %v2277 = vsel %vm868, %v2275, 0
      %v2280 = vsel %vm988, %v2263, 0
      %2282 = vmatpush.bf16.msra.mxu0 0
      %2283 = vmatpush.bf16.msra.mxu0 0
      %2284 = vmatpush.bf16.msra.mxu0 0
      %2285 = vmatpush.bf16.msra.mxu0 0
      %2286 = vmatpush.bf16.msra.mxu0 0
      %2287 = vmatpush.bf16.msra.mxu0 0
      %2288 = vmatpush.bf16.msra.mxu0 0
      %2289 = vmatpush.bf16.msra.mxu0 %v2280
      %2290 = vmatmul.bf16.gmra.mxu0 %v2277
      %v2291 = vpop.f32.mrf.mxu0
      %v2292 = vadd.f32 %v2269, %v2291
      %v2293 = vpop.f32.mrf.mxu0
      %2294 = vdwg.mxu0
      %v2295 = vadd.f32 %v2258, %v2292
      %v2296 = vmul.f32 %v2292, 0.2
      %v2297 = vmax.f32 %v2292, %v2296
      %s2298 = scalar_lea.vmem %s14, 36
      %v2299 = vld [vmem:[%s2298] sm:$0xf]
      %v2300 = vpack.c.bf16 %v2297, %v2297
      %s2301 = scalar_lea.vmem %s15, 72
      %v2302 = vld [vmem:[%s2301] sm:$0xff]
      %2304 = vset.pattern.permute.xlu0 0
      %2305 = vperm.xlu0 %2304, %v2302
      %v2306 = vpop.permute.xlu0 %2305
      %v2309 = vunpack.c.l.b16 %v2299
      %v2310 = vpack.c.b16 %v2309, %v2309
      %2311 = vrot.lane.b32.xlu0 %v2310, 120
      %v2312 = vpop.permute.xlu0 %2311
      %v2314 = vsel %vm868, %v2312, 0
      %v2317 = vsel %vm988, %v2300, 0
      %2319 = vmatpush.bf16.msra.mxu0 0
      %2320 = vmatpush.bf16.msra.mxu0 0
      %2321 = vmatpush.bf16.msra.mxu0 0
      %2322 = vmatpush.bf16.msra.mxu0 0
      %2323 = vmatpush.bf16.msra.mxu0 0
      %2324 = vmatpush.bf16.msra.mxu0 0
      %2325 = vmatpush.bf16.msra.mxu0 0
      %2326 = vmatpush.bf16.msra.mxu0 %v2317
      %2327 = vmatmul.bf16.gmra.mxu0 %v2314
      %v2328 = vpop.f32.mrf.mxu0
      %v2329 = vadd.f32 %v2306, %v2328
      %v2330 = vpop.f32.mrf.mxu0
      %2331 = vdwg.mxu0
      %v2332 = vadd.f32 %v2295, %v2329
      %v2333 = vmul.f32 %v2332, 0.2
      %v2334 = vmax.f32 %v2332, %v2333
      %v2335 = vld [vmem:[%s25] sm:$0xff]
      %v2336 = vld [vmem:[%s25 + $0x8] sm:$0xff]
      %v2337 = vld [vmem:[%s25 + $0x10] sm:$0xff]
      %v2338 = vld [vmem:[%s23] sm:$0xf]
      %v2339 = vld [vmem:[%s23 + $0x4] sm:$0xf]
      %v2340 = vld [vmem:[%s23 + $0x8] sm:$0xf]
      %v2341 = vpack.c.bf16 %v2334, %v2334
      %v2345 = vunpack.c.l.b16 %v2338
      %v2346 = vunpack.c.l.b16 %v2339
      %v2347 = vunpack.c.l.b16 %v2340
      %v2348 = vpack.c.b16 %v2346, %v2345
      %v2349 = vpack.c.b16 %v2347, %v2347
      %v2351 = vsel %vm868, %v2348, 0
      %v2354 = vsel %vm868, %v2349, 0
      %v2357 = vsel %vm988, %v2341, 0
      %2359 = vmatpush.bf16.msra.mxu0 0
      %2360 = vmatpush.bf16.msra.mxu0 0
      %2361 = vmatpush.bf16.msra.mxu0 0
      %2362 = vmatpush.bf16.msra.mxu0 0
      %2363 = vmatpush.bf16.msra.mxu0 0
      %2364 = vmatpush.bf16.msra.mxu0 0
      %2365 = vmatpush.bf16.msra.mxu0 0
      %2366 = vmatpush.bf16.msra.mxu0 %v2357
      %2367 = vmatmul.bf16.gmra.mxu0 %v2351
      %v2368 = vpop.f32.mrf.mxu0
      %v2369 = vadd.f32 0.0, %v2368
      %v2370 = vpop.f32.mrf.mxu0
      %v2371 = vadd.f32 0.0, %v2370
      %2372 = vmatmul.bf16.gmra.mxu0 %v2354
      %v2373 = vpop.f32.mrf.mxu0
      %v2374 = vadd.f32 0.0, %v2373
      %v2375 = vpop.f32.mrf.mxu0
      %2376 = vdwg.mxu0
      %2378 = vset.pattern.permute.xlu0 0
      %2379 = vperm.xlu0 %2378, %v2335
      %v2380 = vpop.permute.xlu0 %2379
      %2383 = vset.pattern.permute.xlu0 0
      %2384 = vperm.xlu0 %2383, %v2336
      %v2385 = vpop.permute.xlu0 %2384
      %2388 = vset.pattern.permute.xlu0 0
      %2389 = vperm.xlu0 %2388, %v2337
      %v2390 = vpop.permute.xlu0 %2389
      %v2392 = vadd.f32 %v2380, %v2369
      %v2393 = vadd.f32 %v2385, %v2371
      %v2394 = vadd.f32 %v2390, %v2374
      %v2395 = vld [vmem:[%s24] sm:$0xf]
      %v2396 = vld [vmem:[%s24 + $0x4] sm:$0xf]
      %v2397 = vld [vmem:[%s24 + $0x8] sm:$0xf]
      %v2398 = vpack.c.bf16 %v1570, %v1570
      %v2402 = vunpack.c.l.b16 %v2395
      %v2403 = vunpack.c.l.b16 %v2396
      %v2404 = vunpack.c.l.b16 %v2397
      %v2405 = vpack.c.b16 %v2403, %v2402
      %v2406 = vpack.c.b16 %v2404, %v2404
      %v2408 = vsel %vm868, %v2405, 0
      %v2411 = vsel %vm868, %v2406, 0
      %v2414 = vsel %vm988, %v2398, 0
      %2416 = vmatpush.bf16.msra.mxu0 0
      %2417 = vmatpush.bf16.msra.mxu0 0
      %2418 = vmatpush.bf16.msra.mxu0 0
      %2419 = vmatpush.bf16.msra.mxu0 0
      %2420 = vmatpush.bf16.msra.mxu0 0
      %2421 = vmatpush.bf16.msra.mxu0 0
      %2422 = vmatpush.bf16.msra.mxu0 0
      %2423 = vmatpush.bf16.msra.mxu0 %v2414
      %2424 = vmatmul.bf16.gmra.mxu0 %v2408
      %v2425 = vpop.f32.mrf.mxu0
      %v2426 = vadd.f32 0.0, %v2425
      %v2427 = vpop.f32.mrf.mxu0
      %v2428 = vadd.f32 0.0, %v2427
      %2429 = vmatmul.bf16.gmra.mxu0 %v2411
      %v2430 = vpop.f32.mrf.mxu0
      %v2431 = vadd.f32 0.0, %v2430
      %v2432 = vpop.f32.mrf.mxu0
      %2433 = vdwg.mxu0
      %v2434 = vadd.f32 %v2392, %v2426
      %v2435 = vadd.f32 %v2393, %v2428
      %v2436 = vadd.f32 %v2394, %v2431
      %v2437 = vld [vmem:[%s20] sm:$0xff]
      %v2438 = vld [vmem:[%s20 + $0x8] sm:$0xff]
      %v2439 = vld [vmem:[%s20 + $0x10] sm:$0xff]
      %v2440 = vld [vmem:[%s18] sm:$0xf]
      %v2441 = vld [vmem:[%s18 + $0x4] sm:$0xf]
      %v2442 = vld [vmem:[%s18 + $0x8] sm:$0xf]
      %2443 = vrot.lane.b32.xlu0 %v2334, 1
      %v2444 = vpop.permute.xlu0 %2443
      %v2445 = vsel %vm1084, %v2444, 0.0
      %v2446 = vpack.c.bf16 %v2445, %v2445
      %2447 = vrot.lane.b32.xlu0 %v2334, 127
      %v2448 = vpop.permute.xlu0 %2447
      %v2449 = vsel %vm1089, %v2448, 0.0
      %v2450 = vpack.c.bf16 %v2449, %v2449
      %v2452 = vunpack.c.l.b16 %v2341
      %v2453 = vpack.c.b16 %v2452, %v2452
      %v2456 = vsel %vm988, %v2446, %v2453
      %v2461 = vunpack.c.l.b16 %v2440
      %v2462 = vunpack.c.l.b16 %v2441
      %v2463 = vunpack.c.l.b16 %v2442
      %v2464 = vpack.c.b16 %v2462, %v2461
      %v2465 = vpack.c.b16 %v2463, %v2463
      %v2467 = vsel %vm1157, %v2464, 0
      %v2470 = vsel %vm1157, %v2465, 0
      %v2473 = vsel %vm988, %v2450, 0
      %2475 = vmatpush.bf16.msra.mxu0 0
      %2476 = vmatpush.bf16.msra.mxu0 0
      %2477 = vmatpush.bf16.msra.mxu0 0
      %2478 = vmatpush.bf16.msra.mxu0 0
      %2479 = vmatpush.bf16.msra.mxu0 0
      %2480 = vmatpush.bf16.msra.mxu0 0
      %2481 = vmatpush.bf16.msra.mxu0 %v2473
      %2482 = vmatpush.bf16.msra.mxu0 %v2456
      %2483 = vmatmul.bf16.gmra.mxu0 %v2467
      %v2484 = vpop.f32.mrf.mxu0
      %v2485 = vadd.f32 0.0, %v2484
      %v2486 = vpop.f32.mrf.mxu0
      %v2487 = vadd.f32 0.0, %v2486
      %2488 = vmatmul.bf16.gmra.mxu0 %v2470
      %v2489 = vpop.f32.mrf.mxu0
      %v2490 = vadd.f32 0.0, %v2489
      %v2491 = vpop.f32.mrf.mxu0
      %2492 = vdwg.mxu0
      %2494 = vset.pattern.permute.xlu0 0
      %2495 = vperm.xlu0 %2494, %v2437
      %v2496 = vpop.permute.xlu0 %2495
      %2499 = vset.pattern.permute.xlu0 0
      %2500 = vperm.xlu0 %2499, %v2438
      %v2501 = vpop.permute.xlu0 %2500
      %2504 = vset.pattern.permute.xlu0 0
      %2505 = vperm.xlu0 %2504, %v2439
      %v2506 = vpop.permute.xlu0 %2505
      %v2508 = vadd.f32 %v2496, %v2485
      %v2509 = vadd.f32 %v2501, %v2487
      %v2510 = vadd.f32 %v2506, %v2490
      %v2511 = vld [vmem:[%s19] sm:$0xf]
      %v2512 = vld [vmem:[%s19 + $0x4] sm:$0xf]
      %v2513 = vld [vmem:[%s19 + $0x8] sm:$0xf]
      %2514 = vrot.lane.b32.xlu0 %v1570, 1
      %v2515 = vpop.permute.xlu0 %2514
      %v2516 = vsel %vm1084, %v2515, 0.0
      %v2517 = vpack.c.bf16 %v2516, %v2516
      %2518 = vrot.lane.b32.xlu0 %v1570, 127
      %v2519 = vpop.permute.xlu0 %2518
      %v2520 = vsel %vm1089, %v2519, 0.0
      %v2521 = vpack.c.bf16 %v2520, %v2520
      %v2523 = vunpack.c.l.b16 %v2398
      %v2524 = vpack.c.b16 %v2523, %v2523
      %v2527 = vsel %vm988, %v2517, %v2524
      %v2532 = vunpack.c.l.b16 %v2511
      %v2533 = vunpack.c.l.b16 %v2512
      %v2534 = vunpack.c.l.b16 %v2513
      %v2535 = vpack.c.b16 %v2533, %v2532
      %v2536 = vpack.c.b16 %v2534, %v2534
      %v2538 = vsel %vm1157, %v2535, 0
      %v2541 = vsel %vm1157, %v2536, 0
      %v2544 = vsel %vm988, %v2521, 0
      %2546 = vmatpush.bf16.msra.mxu0 0
      %2547 = vmatpush.bf16.msra.mxu0 0
      %2548 = vmatpush.bf16.msra.mxu0 0
      %2549 = vmatpush.bf16.msra.mxu0 0
      %2550 = vmatpush.bf16.msra.mxu0 0
      %2551 = vmatpush.bf16.msra.mxu0 0
      %2552 = vmatpush.bf16.msra.mxu0 %v2544
      %2553 = vmatpush.bf16.msra.mxu0 %v2527
      %2554 = vmatmul.bf16.gmra.mxu0 %v2538
      %v2555 = vpop.f32.mrf.mxu0
      %v2556 = vadd.f32 0.0, %v2555
      %v2557 = vpop.f32.mrf.mxu0
      %v2558 = vadd.f32 0.0, %v2557
      %2559 = vmatmul.bf16.gmra.mxu0 %v2541
      %v2560 = vpop.f32.mrf.mxu0
      %v2561 = vadd.f32 0.0, %v2560
      %v2562 = vpop.f32.mrf.mxu0
      %2563 = vdwg.mxu0
      %v2564 = vadd.f32 %v2508, %v2556
      %v2565 = vadd.f32 %v2509, %v2558
      %v2566 = vadd.f32 %v2510, %v2561
      %v2567 = vadd.f32 %v2434, %v2564
      %v2568 = vadd.f32 %v2435, %v2565
      %v2569 = vadd.f32 %v2436, %v2566
      %v2570 = vmul.f32 %v2564, 0.2
      %v2571 = vmul.f32 %v2565, 0.2
      %v2572 = vmul.f32 %v2566, 0.2
      %v2573 = vmax.f32 %v2564, %v2570
      %v2574 = vmax.f32 %v2565, %v2571
      %v2575 = vmax.f32 %v2566, %v2572
      %v2576 = vld [vmem:[%s21] sm:$0xf]
      %v2577 = vld [vmem:[%s21 + $0x4] sm:$0xf]
      %v2578 = vld [vmem:[%s21 + $0x8] sm:$0xf]
      %v2579 = vpack.c.bf16 %v2573, %v2573
      %v2580 = vpack.c.bf16 %v2574, %v2574
      %v2581 = vpack.c.bf16 %v2575, %v2575
      %2582 = vrot.lane.b32.xlu0 %v2573, 2
      %v2583 = vpop.permute.xlu0 %2582
      %2584 = vrot.lane.b32.xlu0 %v2574, 2
      %v2585 = vpop.permute.xlu0 %2584
      %2586 = vrot.lane.b32.xlu0 %v2575, 2
      %v2587 = vpop.permute.xlu0 %2586
      %v2588 = vsel %vm1136, %v2583, 0.0
      %v2589 = vsel %vm1136, %v2585, 0.0
      %v2590 = vsel %vm1136, %v2587, 0.0
      %v2591 = vpack.c.bf16 %v2588, %v2588
      %v2592 = vpack.c.bf16 %v2589, %v2589
      %v2593 = vpack.c.bf16 %v2590, %v2590
      %2594 = vrot.lane.b32.xlu0 %v2573, 126
      %v2595 = vpop.permute.xlu0 %2594
      %2596 = vrot.lane.b32.xlu0 %v2574, 126
      %v2597 = vpop.permute.xlu0 %2596
      %2598 = vrot.lane.b32.xlu0 %v2575, 126
      %v2599 = vpop.permute.xlu0 %2598
      %v2600 = vsel %vm1141, %v2595, 0.0
      %v2601 = vsel %vm1141, %v2597, 0.0
      %v2602 = vsel %vm1141, %v2599, 0.0
      %v2603 = vpack.c.bf16 %v2600, %v2600
      %v2604 = vpack.c.bf16 %v2601, %v2601
      %v2605 = vpack.c.bf16 %v2602, %v2602
      %v2609 = vunpack.c.l.b16 %v2591
      %v2610 = vunpack.c.l.b16 %v2592
      %v2611 = vunpack.c.l.b16 %v2593
      %v2612 = vpack.c.b16 %v2610, %v2609
      %v2613 = vpack.c.b16 %v2611, %v2611
      %v2618 = vunpack.c.l.b16 %v2579
      %v2619 = vunpack.c.l.b16 %v2580
      %v2620 = vunpack.c.l.b16 %v2581
      %v2621 = vpack.c.b16 %v2618, %v2618
      %v2622 = vpack.c.b16 %v2620, %v2619
      %v2627 = vunpack.c.l.b16 %v2603
      %v2628 = vunpack.c.l.b16 %v2604
      %v2629 = vunpack.c.l.b16 %v2605
      %v2630 = vpack.c.b16 %v2628, %v2627
      %v2631 = vpack.c.b16 %v2629, %v2629
      %v2635 = vsel %vm988, %v2613, %v2621
      %v2637 = vld [vmem:[%s22] sm:$0xff]
      %v2638 = vld [vmem:[%s22 + $0x8] sm:$0xff]
      %v2639 = vld [vmem:[%s22 + $0x10] sm:$0xff]
      %2641 = vset.pattern.permute.xlu0 0
      %2642 = vperm.xlu0 %2641, %v2637
      %v2643 = vpop.permute.xlu0 %2642
      %2646 = vset.pattern.permute.xlu0 0
      %2647 = vperm.xlu0 %2646, %v2638
      %v2648 = vpop.permute.xlu0 %2647
      %2651 = vset.pattern.permute.xlu0 0
      %2652 = vperm.xlu0 %2651, %v2639
      %v2653 = vpop.permute.xlu0 %2652
      %v2658 = vunpack.c.l.b16 %v2576
      %v2659 = vunpack.c.l.b16 %v2577
      %v2660 = vunpack.c.l.b16 %v2578
      %v2661 = vpack.c.b16 %v2659, %v2658
      %v2662 = vpack.c.b16 %v2660, %v2660
      %vm2663 = vcmask 588800
      %v2665 = vsel %vm2663, %v2661, 0
      %v2668 = vsel %vm2663, %v2662, 0
      %v2671 = vsel %vm988, %v2631, 0
      %2673 = vmatpush.bf16.msra.mxu0 0
      %2674 = vmatpush.bf16.msra.mxu0 0
      %2675 = vmatpush.bf16.msra.mxu0 0
      %2676 = vmatpush.bf16.msra.mxu0 %v2671
      %2677 = vmatpush.bf16.msra.mxu0 %v2630
      %2678 = vmatpush.bf16.msra.mxu0 %v2622
      %2679 = vmatpush.bf16.msra.mxu0 %v2635
      %2680 = vmatpush.bf16.msra.mxu0 %v2612
      %2681 = vmatmul.bf16.gmra.mxu0 %v2665
      %v2682 = vpop.f32.mrf.mxu0
      %v2683 = vadd.f32 %v2643, %v2682
      %v2684 = vpop.f32.mrf.mxu0
      %v2685 = vadd.f32 %v2648, %v2684
      %2686 = vmatmul.bf16.gmra.mxu0 %v2668
      %v2687 = vpop.f32.mrf.mxu0
      %v2688 = vadd.f32 %v2653, %v2687
      %v2689 = vpop.f32.mrf.mxu0
      %2690 = vdwg.mxu0
      %v2691 = vadd.f32 %v2567, %v2683
      %v2692 = vadd.f32 %v2568, %v2685
      %v2693 = vadd.f32 %v2569, %v2688
      %v2694 = vmul.f32 %v2683, 0.2
      %v2695 = vmul.f32 %v2685, 0.2
      %v2696 = vmul.f32 %v2688, 0.2
      %v2697 = vmax.f32 %v2683, %v2694
      %v2698 = vmax.f32 %v2685, %v2695
      %v2699 = vmax.f32 %v2688, %v2696
      %s2700 = scalar_lea.vmem %s21, 12
      %v2701 = vld [vmem:[%s2700] sm:$0xf]
      %v2702 = vld [vmem:[%s2700 + $0x4] sm:$0xf]
      %v2703 = vld [vmem:[%s2700 + $0x8] sm:$0xf]
      %v2704 = vpack.c.bf16 %v2697, %v2697
      %v2705 = vpack.c.bf16 %v2698, %v2698
      %v2706 = vpack.c.bf16 %v2699, %v2699
      %2707 = vrot.lane.b32.xlu0 %v2697, 4
      %v2708 = vpop.permute.xlu0 %2707
      %2709 = vrot.lane.b32.xlu0 %v2698, 4
      %v2710 = vpop.permute.xlu0 %2709
      %2711 = vrot.lane.b32.xlu0 %v2699, 4
      %v2712 = vpop.permute.xlu0 %2711
      %v2713 = vsel %vm1185, %v2708, 0.0
      %v2714 = vsel %vm1185, %v2710, 0.0
      %v2715 = vsel %vm1185, %v2712, 0.0
      %v2716 = vpack.c.bf16 %v2713, %v2713
      %v2717 = vpack.c.bf16 %v2714, %v2714
      %v2718 = vpack.c.bf16 %v2715, %v2715
      %2719 = vrot.lane.b32.xlu0 %v2697, 124
      %v2720 = vpop.permute.xlu0 %2719
      %2721 = vrot.lane.b32.xlu0 %v2698, 124
      %v2722 = vpop.permute.xlu0 %2721
      %2723 = vrot.lane.b32.xlu0 %v2699, 124
      %v2724 = vpop.permute.xlu0 %2723
      %v2725 = vsel %vm1190, %v2720, 0.0
      %v2726 = vsel %vm1190, %v2722, 0.0
      %v2727 = vsel %vm1190, %v2724, 0.0
      %v2728 = vpack.c.bf16 %v2725, %v2725
      %v2729 = vpack.c.bf16 %v2726, %v2726
      %v2730 = vpack.c.bf16 %v2727, %v2727
      %v2734 = vunpack.c.l.b16 %v2716
      %v2735 = vunpack.c.l.b16 %v2717
      %v2736 = vunpack.c.l.b16 %v2718
      %v2737 = vpack.c.b16 %v2735, %v2734
      %v2738 = vpack.c.b16 %v2736, %v2736
      %v2743 = vunpack.c.l.b16 %v2704
      %v2744 = vunpack.c.l.b16 %v2705
      %v2745 = vunpack.c.l.b16 %v2706
      %v2746 = vpack.c.b16 %v2743, %v2743
      %v2747 = vpack.c.b16 %v2745, %v2744
      %v2752 = vunpack.c.l.b16 %v2728
      %v2753 = vunpack.c.l.b16 %v2729
      %v2754 = vunpack.c.l.b16 %v2730
      %v2755 = vpack.c.b16 %v2753, %v2752
      %v2756 = vpack.c.b16 %v2754, %v2754
      %v2760 = vsel %vm988, %v2738, %v2746
      %s2762 = scalar_lea.vmem %s22, 24
      %v2763 = vld [vmem:[%s2762] sm:$0xff]
      %v2764 = vld [vmem:[%s2762 + $0x8] sm:$0xff]
      %v2765 = vld [vmem:[%s2762 + $0x10] sm:$0xff]
      %2767 = vset.pattern.permute.xlu0 0
      %2768 = vperm.xlu0 %2767, %v2763
      %v2769 = vpop.permute.xlu0 %2768
      %2772 = vset.pattern.permute.xlu0 0
      %2773 = vperm.xlu0 %2772, %v2764
      %v2774 = vpop.permute.xlu0 %2773
      %2777 = vset.pattern.permute.xlu0 0
      %2778 = vperm.xlu0 %2777, %v2765
      %v2779 = vpop.permute.xlu0 %2778
      %v2784 = vunpack.c.l.b16 %v2701
      %v2785 = vunpack.c.l.b16 %v2702
      %v2786 = vunpack.c.l.b16 %v2703
      %v2787 = vpack.c.b16 %v2785, %v2784
      %v2788 = vpack.c.b16 %v2786, %v2786
      %v2790 = vsel %vm2663, %v2787, 0
      %v2793 = vsel %vm2663, %v2788, 0
      %v2796 = vsel %vm988, %v2756, 0
      %2798 = vmatpush.bf16.msra.mxu0 0
      %2799 = vmatpush.bf16.msra.mxu0 0
      %2800 = vmatpush.bf16.msra.mxu0 0
      %2801 = vmatpush.bf16.msra.mxu0 %v2796
      %2802 = vmatpush.bf16.msra.mxu0 %v2755
      %2803 = vmatpush.bf16.msra.mxu0 %v2747
      %2804 = vmatpush.bf16.msra.mxu0 %v2760
      %2805 = vmatpush.bf16.msra.mxu0 %v2737
      %2806 = vmatmul.bf16.gmra.mxu0 %v2790
      %v2807 = vpop.f32.mrf.mxu0
      %v2808 = vadd.f32 %v2769, %v2807
      %v2809 = vpop.f32.mrf.mxu0
      %v2810 = vadd.f32 %v2774, %v2809
      %2811 = vmatmul.bf16.gmra.mxu0 %v2793
      %v2812 = vpop.f32.mrf.mxu0
      %v2813 = vadd.f32 %v2779, %v2812
      %v2814 = vpop.f32.mrf.mxu0
      %2815 = vdwg.mxu0
      %v2816 = vadd.f32 %v2691, %v2808
      %v2817 = vadd.f32 %v2692, %v2810
      %v2818 = vadd.f32 %v2693, %v2813
      %v2819 = vmul.f32 %v2808, 0.2
      %v2820 = vmul.f32 %v2810, 0.2
      %v2821 = vmul.f32 %v2813, 0.2
      %v2822 = vmax.f32 %v2808, %v2819
      %v2823 = vmax.f32 %v2810, %v2820
      %v2824 = vmax.f32 %v2813, %v2821
      %s2825 = scalar_lea.vmem %s21, 24
      %v2826 = vld [vmem:[%s2825] sm:$0xf]
      %v2827 = vld [vmem:[%s2825 + $0x4] sm:$0xf]
      %v2828 = vld [vmem:[%s2825 + $0x8] sm:$0xf]
      %v2829 = vpack.c.bf16 %v2822, %v2822
      %v2830 = vpack.c.bf16 %v2823, %v2823
      %v2831 = vpack.c.bf16 %v2824, %v2824
      %2832 = vrot.lane.b32.xlu0 %v2822, 8
      %v2833 = vpop.permute.xlu0 %2832
      %2834 = vrot.lane.b32.xlu0 %v2823, 8
      %v2835 = vpop.permute.xlu0 %2834
      %2836 = vrot.lane.b32.xlu0 %v2824, 8
      %v2837 = vpop.permute.xlu0 %2836
      %v2838 = vsel %vm1234, %v2833, 0.0
      %v2839 = vsel %vm1234, %v2835, 0.0
      %v2840 = vsel %vm1234, %v2837, 0.0
      %v2841 = vpack.c.bf16 %v2838, %v2838
      %v2842 = vpack.c.bf16 %v2839, %v2839
      %v2843 = vpack.c.bf16 %v2840, %v2840
      %2844 = vrot.lane.b32.xlu0 %v2822, 120
      %v2845 = vpop.permute.xlu0 %2844
      %2846 = vrot.lane.b32.xlu0 %v2823, 120
      %v2847 = vpop.permute.xlu0 %2846
      %2848 = vrot.lane.b32.xlu0 %v2824, 120
      %v2849 = vpop.permute.xlu0 %2848
      %v2850 = vsel %vm1239, %v2845, 0.0
      %v2851 = vsel %vm1239, %v2847, 0.0
      %v2852 = vsel %vm1239, %v2849, 0.0
      %v2853 = vpack.c.bf16 %v2850, %v2850
      %v2854 = vpack.c.bf16 %v2851, %v2851
      %v2855 = vpack.c.bf16 %v2852, %v2852
      %v2859 = vunpack.c.l.b16 %v2841
      %v2860 = vunpack.c.l.b16 %v2842
      %v2861 = vunpack.c.l.b16 %v2843
      %v2862 = vpack.c.b16 %v2860, %v2859
      %v2863 = vpack.c.b16 %v2861, %v2861
      %v2868 = vunpack.c.l.b16 %v2829
      %v2869 = vunpack.c.l.b16 %v2830
      %v2870 = vunpack.c.l.b16 %v2831
      %v2871 = vpack.c.b16 %v2868, %v2868
      %v2872 = vpack.c.b16 %v2870, %v2869
      %v2877 = vunpack.c.l.b16 %v2853
      %v2878 = vunpack.c.l.b16 %v2854
      %v2879 = vunpack.c.l.b16 %v2855
      %v2880 = vpack.c.b16 %v2878, %v2877
      %v2881 = vpack.c.b16 %v2879, %v2879
      %v2885 = vsel %vm988, %v2863, %v2871
      %s2887 = scalar_lea.vmem %s22, 48
      %v2888 = vld [vmem:[%s2887] sm:$0xff]
      %v2889 = vld [vmem:[%s2887 + $0x8] sm:$0xff]
      %v2890 = vld [vmem:[%s2887 + $0x10] sm:$0xff]
      %2892 = vset.pattern.permute.xlu0 0
      %2893 = vperm.xlu0 %2892, %v2888
      %v2894 = vpop.permute.xlu0 %2893
      %2897 = vset.pattern.permute.xlu0 0
      %2898 = vperm.xlu0 %2897, %v2889
      %v2899 = vpop.permute.xlu0 %2898
      %2902 = vset.pattern.permute.xlu0 0
      %2903 = vperm.xlu0 %2902, %v2890
      %v2904 = vpop.permute.xlu0 %2903
      %v2909 = vunpack.c.l.b16 %v2826
      %v2910 = vunpack.c.l.b16 %v2827
      %v2911 = vunpack.c.l.b16 %v2828
      %v2912 = vpack.c.b16 %v2910, %v2909
      %v2913 = vpack.c.b16 %v2911, %v2911
      %v2915 = vsel %vm2663, %v2912, 0
      %v2918 = vsel %vm2663, %v2913, 0
      %v2921 = vsel %vm988, %v2881, 0
      %2923 = vmatpush.bf16.msra.mxu0 0
      %2924 = vmatpush.bf16.msra.mxu0 0
      %2925 = vmatpush.bf16.msra.mxu0 0
      %2926 = vmatpush.bf16.msra.mxu0 %v2921
      %2927 = vmatpush.bf16.msra.mxu0 %v2880
      %2928 = vmatpush.bf16.msra.mxu0 %v2872
      %2929 = vmatpush.bf16.msra.mxu0 %v2885
      %2930 = vmatpush.bf16.msra.mxu0 %v2862
      %2931 = vmatmul.bf16.gmra.mxu0 %v2915
      %v2932 = vpop.f32.mrf.mxu0
      %v2933 = vadd.f32 %v2894, %v2932
      %v2934 = vpop.f32.mrf.mxu0
      %v2935 = vadd.f32 %v2899, %v2934
      %2936 = vmatmul.bf16.gmra.mxu0 %v2918
      %v2937 = vpop.f32.mrf.mxu0
      %v2938 = vadd.f32 %v2904, %v2937
      %v2939 = vpop.f32.mrf.mxu0
      %2940 = vdwg.mxu0
      %v2941 = vadd.f32 %v2816, %v2933
      %v2942 = vadd.f32 %v2817, %v2935
      %v2943 = vadd.f32 %v2818, %v2938
      %v2944 = vmul.f32 %v2933, 0.2
      %v2945 = vmul.f32 %v2935, 0.2
      %v2946 = vmul.f32 %v2938, 0.2
      %v2947 = vmax.f32 %v2933, %v2944
      %v2948 = vmax.f32 %v2935, %v2945
      %v2949 = vmax.f32 %v2938, %v2946
      %s2950 = scalar_lea.vmem %s21, 36
      %v2951 = vld [vmem:[%s2950] sm:$0xf]
      %v2952 = vld [vmem:[%s2950 + $0x4] sm:$0xf]
      %v2953 = vld [vmem:[%s2950 + $0x8] sm:$0xf]
      %v2954 = vpack.c.bf16 %v2947, %v2947
      %v2955 = vpack.c.bf16 %v2948, %v2948
      %v2956 = vpack.c.bf16 %v2949, %v2949
      %2957 = vrot.lane.b32.xlu0 %v2947, 16
      %v2958 = vpop.permute.xlu0 %2957
      %2959 = vrot.lane.b32.xlu0 %v2948, 16
      %v2960 = vpop.permute.xlu0 %2959
      %2961 = vrot.lane.b32.xlu0 %v2949, 16
      %v2962 = vpop.permute.xlu0 %2961
      %v2963 = vsel %vm1283, %v2958, 0.0
      %v2964 = vsel %vm1283, %v2960, 0.0
      %v2965 = vsel %vm1283, %v2962, 0.0
      %v2966 = vpack.c.bf16 %v2963, %v2963
      %v2967 = vpack.c.bf16 %v2964, %v2964
      %v2968 = vpack.c.bf16 %v2965, %v2965
      %2969 = vrot.lane.b32.xlu0 %v2947, 112
      %v2970 = vpop.permute.xlu0 %2969
      %2971 = vrot.lane.b32.xlu0 %v2948, 112
      %v2972 = vpop.permute.xlu0 %2971
      %2973 = vrot.lane.b32.xlu0 %v2949, 112
      %v2974 = vpop.permute.xlu0 %2973
      %v2975 = vsel %vm1288, %v2970, 0.0
      %v2976 = vsel %vm1288, %v2972, 0.0
      %v2977 = vsel %vm1288, %v2974, 0.0
      %v2978 = vpack.c.bf16 %v2975, %v2975
      %v2979 = vpack.c.bf16 %v2976, %v2976
      %v2980 = vpack.c.bf16 %v2977, %v2977
      %v2984 = vunpack.c.l.b16 %v2966
      %v2985 = vunpack.c.l.b16 %v2967
      %v2986 = vunpack.c.l.b16 %v2968
      %v2987 = vpack.c.b16 %v2985, %v2984
      %v2988 = vpack.c.b16 %v2986, %v2986
      %v2993 = vunpack.c.l.b16 %v2954
      %v2994 = vunpack.c.l.b16 %v2955
      %v2995 = vunpack.c.l.b16 %v2956
      %v2996 = vpack.c.b16 %v2993, %v2993
      %v2997 = vpack.c.b16 %v2995, %v2994
      %v3002 = vunpack.c.l.b16 %v2978
      %v3003 = vunpack.c.l.b16 %v2979
      %v3004 = vunpack.c.l.b16 %v2980
      %v3005 = vpack.c.b16 %v3003, %v3002
      %v3006 = vpack.c.b16 %v3004, %v3004
      %v3010 = vsel %vm988, %v2988, %v2996
      %s3012 = scalar_lea.vmem %s22, 72
      %v3013 = vld [vmem:[%s3012] sm:$0xff]
      %v3014 = vld [vmem:[%s3012 + $0x8] sm:$0xff]
      %v3015 = vld [vmem:[%s3012 + $0x10] sm:$0xff]
      %3017 = vset.pattern.permute.xlu0 0
      %3018 = vperm.xlu0 %3017, %v3013
      %v3019 = vpop.permute.xlu0 %3018
      %3022 = vset.pattern.permute.xlu0 0
      %3023 = vperm.xlu0 %3022, %v3014
      %v3024 = vpop.permute.xlu0 %3023
      %3027 = vset.pattern.permute.xlu0 0
      %3028 = vperm.xlu0 %3027, %v3015
      %v3029 = vpop.permute.xlu0 %3028
      %v3034 = vunpack.c.l.b16 %v2951
      %v3035 = vunpack.c.l.b16 %v2952
      %v3036 = vunpack.c.l.b16 %v2953
      %v3037 = vpack.c.b16 %v3035, %v3034
      %v3038 = vpack.c.b16 %v3036, %v3036
      %v3040 = vsel %vm2663, %v3037, 0
      %v3043 = vsel %vm2663, %v3038, 0
      %v3046 = vsel %vm988, %v3006, 0
      %3048 = vmatpush.bf16.msra.mxu0 0
      %3049 = vmatpush.bf16.msra.mxu0 0
      %3050 = vmatpush.bf16.msra.mxu0 0
      %3051 = vmatpush.bf16.msra.mxu0 %v3046
      %3052 = vmatpush.bf16.msra.mxu0 %v3005
      %3053 = vmatpush.bf16.msra.mxu0 %v2997
      %3054 = vmatpush.bf16.msra.mxu0 %v3010
      %3055 = vmatpush.bf16.msra.mxu0 %v2987
      %3056 = vmatmul.bf16.gmra.mxu0 %v3040
      %v3057 = vpop.f32.mrf.mxu0
      %v3058 = vadd.f32 %v3019, %v3057
      %v3059 = vpop.f32.mrf.mxu0
      %v3060 = vadd.f32 %v3024, %v3059
      %3061 = vmatmul.bf16.gmra.mxu0 %v3043
      %v3062 = vpop.f32.mrf.mxu0
      %v3063 = vadd.f32 %v3029, %v3062
      %v3064 = vpop.f32.mrf.mxu0
      %3065 = vdwg.mxu0
      %v3066 = vadd.f32 %v2941, %v3058
      %v3067 = vadd.f32 %v2942, %v3060
      %v3068 = vadd.f32 %v2943, %v3063
      %v3069 = vmul.f32 %v3058, 0.2
      %v3070 = vmul.f32 %v3060, 0.2
      %v3071 = vmul.f32 %v3063, 0.2
      %v3072 = vmax.f32 %v3058, %v3069
      %v3073 = vmax.f32 %v3060, %v3070
      %v3074 = vmax.f32 %v3063, %v3071
      %s3075 = scalar_lea.vmem %s21, 48
      %v3076 = vld [vmem:[%s3075] sm:$0xf]
      %v3077 = vld [vmem:[%s3075 + $0x4] sm:$0xf]
      %v3078 = vld [vmem:[%s3075 + $0x8] sm:$0xf]
      %v3079 = vpack.c.bf16 %v3072, %v3072
      %v3080 = vpack.c.bf16 %v3073, %v3073
      %v3081 = vpack.c.bf16 %v3074, %v3074
      %3082 = vrot.lane.b32.xlu0 %v3072, 32
      %v3083 = vpop.permute.xlu0 %3082
      %3084 = vrot.lane.b32.xlu0 %v3073, 32
      %v3085 = vpop.permute.xlu0 %3084
      %3086 = vrot.lane.b32.xlu0 %v3074, 32
      %v3087 = vpop.permute.xlu0 %3086
      %v3088 = vsel %vm1332, %v3083, 0.0
      %v3089 = vsel %vm1332, %v3085, 0.0
      %v3090 = vsel %vm1332, %v3087, 0.0
      %v3091 = vpack.c.bf16 %v3088, %v3088
      %v3092 = vpack.c.bf16 %v3089, %v3089
      %v3093 = vpack.c.bf16 %v3090, %v3090
      %3094 = vrot.lane.b32.xlu0 %v3072, 96
      %v3095 = vpop.permute.xlu0 %3094
      %3096 = vrot.lane.b32.xlu0 %v3073, 96
      %v3097 = vpop.permute.xlu0 %3096
      %3098 = vrot.lane.b32.xlu0 %v3074, 96
      %v3099 = vpop.permute.xlu0 %3098
      %v3100 = vsel %vm1337, %v3095, 0.0
      %v3101 = vsel %vm1337, %v3097, 0.0
      %v3102 = vsel %vm1337, %v3099, 0.0
      %v3103 = vpack.c.bf16 %v3100, %v3100
      %v3104 = vpack.c.bf16 %v3101, %v3101
      %v3105 = vpack.c.bf16 %v3102, %v3102
      %v3109 = vunpack.c.l.b16 %v3091
      %v3110 = vunpack.c.l.b16 %v3092
      %v3111 = vunpack.c.l.b16 %v3093
      %v3112 = vpack.c.b16 %v3110, %v3109
      %v3113 = vpack.c.b16 %v3111, %v3111
      %v3118 = vunpack.c.l.b16 %v3079
      %v3119 = vunpack.c.l.b16 %v3080
      %v3120 = vunpack.c.l.b16 %v3081
      %v3121 = vpack.c.b16 %v3118, %v3118
      %v3122 = vpack.c.b16 %v3120, %v3119
      %v3127 = vunpack.c.l.b16 %v3103
      %v3128 = vunpack.c.l.b16 %v3104
      %v3129 = vunpack.c.l.b16 %v3105
      %v3130 = vpack.c.b16 %v3128, %v3127
      %v3131 = vpack.c.b16 %v3129, %v3129
      %v3135 = vsel %vm988, %v3113, %v3121
      %s3137 = scalar_lea.vmem %s22, 96
      %v3138 = vld [vmem:[%s3137] sm:$0xff]
      %v3139 = vld [vmem:[%s3137 + $0x8] sm:$0xff]
      %v3140 = vld [vmem:[%s3137 + $0x10] sm:$0xff]
      %3142 = vset.pattern.permute.xlu0 0
      %3143 = vperm.xlu0 %3142, %v3138
      %v3144 = vpop.permute.xlu0 %3143
      %3147 = vset.pattern.permute.xlu0 0
      %3148 = vperm.xlu0 %3147, %v3139
      %v3149 = vpop.permute.xlu0 %3148
      %3152 = vset.pattern.permute.xlu0 0
      %3153 = vperm.xlu0 %3152, %v3140
      %v3154 = vpop.permute.xlu0 %3153
      %v3159 = vunpack.c.l.b16 %v3076
      %v3160 = vunpack.c.l.b16 %v3077
      %v3161 = vunpack.c.l.b16 %v3078
      %v3162 = vpack.c.b16 %v3160, %v3159
      %v3163 = vpack.c.b16 %v3161, %v3161
      %v3165 = vsel %vm2663, %v3162, 0
      %v3168 = vsel %vm2663, %v3163, 0
      %v3171 = vsel %vm988, %v3131, 0
      %3173 = vmatpush.bf16.msra.mxu0 0
      %3174 = vmatpush.bf16.msra.mxu0 0
      %3175 = vmatpush.bf16.msra.mxu0 0
      %3176 = vmatpush.bf16.msra.mxu0 %v3171
      %3177 = vmatpush.bf16.msra.mxu0 %v3130
      %3178 = vmatpush.bf16.msra.mxu0 %v3122
      %3179 = vmatpush.bf16.msra.mxu0 %v3135
      %3180 = vmatpush.bf16.msra.mxu0 %v3112
      %3181 = vmatmul.bf16.gmra.mxu0 %v3165
      %v3182 = vpop.f32.mrf.mxu0
      %v3183 = vadd.f32 %v3144, %v3182
      %v3184 = vpop.f32.mrf.mxu0
      %v3185 = vadd.f32 %v3149, %v3184
      %3186 = vmatmul.bf16.gmra.mxu0 %v3168
      %v3187 = vpop.f32.mrf.mxu0
      %v3188 = vadd.f32 %v3154, %v3187
      %v3189 = vpop.f32.mrf.mxu0
      %3190 = vdwg.mxu0
      %v3191 = vadd.f32 %v3066, %v3183
      %v3192 = vadd.f32 %v3067, %v3185
      %v3193 = vadd.f32 %v3068, %v3188
      %v3194 = vmul.f32 %v3183, 0.2
      %v3195 = vmul.f32 %v3185, 0.2
      %v3196 = vmul.f32 %v3188, 0.2
      %v3197 = vmax.f32 %v3183, %v3194
      %v3198 = vmax.f32 %v3185, %v3195
      %v3199 = vmax.f32 %v3188, %v3196
      %s3200 = scalar_lea.vmem %s21, 60
      %v3201 = vld [vmem:[%s3200] sm:$0xf]
      %v3202 = vld [vmem:[%s3200 + $0x4] sm:$0xf]
      %v3203 = vld [vmem:[%s3200 + $0x8] sm:$0xf]
      %v3204 = vpack.c.bf16 %v3197, %v3197
      %v3205 = vpack.c.bf16 %v3198, %v3198
      %v3206 = vpack.c.bf16 %v3199, %v3199
      %3207 = vrot.lane.b32.xlu0 %v3197, 64
      %v3208 = vpop.permute.xlu0 %3207
      %3209 = vrot.lane.b32.xlu0 %v3198, 64
      %v3210 = vpop.permute.xlu0 %3209
      %3211 = vrot.lane.b32.xlu0 %v3199, 64
      %v3212 = vpop.permute.xlu0 %3211
      %v3213 = vsel %vm1381, %v3208, 0.0
      %v3214 = vsel %vm1381, %v3210, 0.0
      %v3215 = vsel %vm1381, %v3212, 0.0
      %v3216 = vpack.c.bf16 %v3213, %v3213
      %v3217 = vpack.c.bf16 %v3214, %v3214
      %v3218 = vpack.c.bf16 %v3215, %v3215
      %v3219 = vsel %vm1384, %v3208, 0.0
      %v3220 = vsel %vm1384, %v3210, 0.0
      %v3221 = vsel %vm1384, %v3212, 0.0
      %v3222 = vpack.c.bf16 %v3219, %v3219
      %v3223 = vpack.c.bf16 %v3220, %v3220
      %v3224 = vpack.c.bf16 %v3221, %v3221
      %v3228 = vunpack.c.l.b16 %v3216
      %v3229 = vunpack.c.l.b16 %v3217
      %v3230 = vunpack.c.l.b16 %v3218
      %v3231 = vpack.c.b16 %v3229, %v3228
      %v3232 = vpack.c.b16 %v3230, %v3230
      %v3237 = vunpack.c.l.b16 %v3204
      %v3238 = vunpack.c.l.b16 %v3205
      %v3239 = vunpack.c.l.b16 %v3206
      %v3240 = vpack.c.b16 %v3237, %v3237
      %v3241 = vpack.c.b16 %v3239, %v3238
      %v3246 = vunpack.c.l.b16 %v3222
      %v3247 = vunpack.c.l.b16 %v3223
      %v3248 = vunpack.c.l.b16 %v3224
      %v3249 = vpack.c.b16 %v3247, %v3246
      %v3250 = vpack.c.b16 %v3248, %v3248
      %v3254 = vsel %vm988, %v3232, %v3240
      %s3256 = scalar_lea.vmem %s22, 120
      %v3257 = vld [vmem:[%s3256] sm:$0xff]
      %v3258 = vld [vmem:[%s3256 + $0x8] sm:$0xff]
      %v3259 = vld [vmem:[%s3256 + $0x10] sm:$0xff]
      %3261 = vset.pattern.permute.xlu0 0
      %3262 = vperm.xlu0 %3261, %v3257
      %v3263 = vpop.permute.xlu0 %3262
      %3266 = vset.pattern.permute.xlu0 0
      %3267 = vperm.xlu0 %3266, %v3258
      %v3268 = vpop.permute.xlu0 %3267
      %3271 = vset.pattern.permute.xlu0 0
      %3272 = vperm.xlu0 %3271, %v3259
      %v3273 = vpop.permute.xlu0 %3272
      %v3278 = vunpack.c.l.b16 %v3201
      %v3279 = vunpack.c.l.b16 %v3202
      %v3280 = vunpack.c.l.b16 %v3203
      %v3281 = vpack.c.b16 %v3279, %v3278
      %v3282 = vpack.c.b16 %v3280, %v3280
      %v3284 = vsel %vm2663, %v3281, 0
      %v3287 = vsel %vm2663, %v3282, 0
      %v3290 = vsel %vm988, %v3250, 0
      %3292 = vmatpush.bf16.msra.mxu0 0
      %3293 = vmatpush.bf16.msra.mxu0 0
      %3294 = vmatpush.bf16.msra.mxu0 0
      %3295 = vmatpush.bf16.msra.mxu0 %v3290
      %3296 = vmatpush.bf16.msra.mxu0 %v3249
      %3297 = vmatpush.bf16.msra.mxu0 %v3241
      %3298 = vmatpush.bf16.msra.mxu0 %v3254
      %3299 = vmatpush.bf16.msra.mxu0 %v3231
      %3300 = vmatmul.bf16.gmra.mxu0 %v3284
      %v3301 = vpop.f32.mrf.mxu0
      %v3302 = vadd.f32 %v3263, %v3301
      %v3303 = vpop.f32.mrf.mxu0
      %v3304 = vadd.f32 %v3268, %v3303
      %3305 = vmatmul.bf16.gmra.mxu0 %v3287
      %v3306 = vpop.f32.mrf.mxu0
      %v3307 = vadd.f32 %v3273, %v3306
      %v3308 = vpop.f32.mrf.mxu0
      %3309 = vdwg.mxu0
      %v3310 = vadd.f32 %v3191, %v3302
      %v3311 = vadd.f32 %v3192, %v3304
      %v3312 = vadd.f32 %v3193, %v3307
      %v3313 = vmul.f32 %v3302, 0.2
      %v3314 = vmul.f32 %v3304, 0.2
      %v3315 = vmul.f32 %v3307, 0.2
      %v3316 = vmax.f32 %v3302, %v3313
      %v3317 = vmax.f32 %v3304, %v3314
      %v3318 = vmax.f32 %v3307, %v3315
      %s3319 = scalar_lea.vmem %s21, 72
      %v3320 = vld [vmem:[%s3319] sm:$0xf]
      %v3321 = vld [vmem:[%s3319 + $0x4] sm:$0xf]
      %v3322 = vld [vmem:[%s3319 + $0x8] sm:$0xf]
      %v3323 = vpack.c.bf16 %v3317, %v3316
      %v3324 = vpack.c.bf16 %v3318, %v3318
      %s3325 = scalar_lea.vmem %s22, 144
      %v3326 = vld [vmem:[%s3325] sm:$0xff]
      %v3327 = vld [vmem:[%s3325 + $0x8] sm:$0xff]
      %v3328 = vld [vmem:[%s3325 + $0x10] sm:$0xff]
      %3330 = vset.pattern.permute.xlu0 0
      %3331 = vperm.xlu0 %3330, %v3326
      %v3332 = vpop.permute.xlu0 %3331
      %3335 = vset.pattern.permute.xlu0 0
      %3336 = vperm.xlu0 %3335, %v3327
      %v3337 = vpop.permute.xlu0 %3336
      %3340 = vset.pattern.permute.xlu0 0
      %3341 = vperm.xlu0 %3340, %v3328
      %v3342 = vpop.permute.xlu0 %3341
      %v3347 = vunpack.c.l.b16 %v3320
      %v3348 = vunpack.c.l.b16 %v3321
      %v3349 = vunpack.c.l.b16 %v3322
      %v3350 = vpack.c.b16 %v3348, %v3347
      %v3351 = vpack.c.b16 %v3349, %v3349
      %3352 = vrot.lane.b32.xlu0 %v3350, 104
      %v3353 = vpop.permute.xlu0 %3352
      %3354 = vrot.lane.b32.xlu0 %v3351, 104
      %v3355 = vpop.permute.xlu0 %3354
      %v3357 = vsel %vm1157, %v3353, 0
      %v3360 = vsel %vm1157, %v3355, 0
      %v3363 = vsel %vm988, %v3324, 0
      %3365 = vmatpush.bf16.msra.mxu0 0
      %3366 = vmatpush.bf16.msra.mxu0 0
      %3367 = vmatpush.bf16.msra.mxu0 0
      %3368 = vmatpush.bf16.msra.mxu0 0
      %3369 = vmatpush.bf16.msra.mxu0 0
      %3370 = vmatpush.bf16.msra.mxu0 0
      %3371 = vmatpush.bf16.msra.mxu0 %v3363
      %3372 = vmatpush.bf16.msra.mxu0 %v3323
      %3373 = vmatmul.bf16.gmra.mxu0 %v3357
      %v3374 = vpop.f32.mrf.mxu0
      %v3375 = vadd.f32 %v3332, %v3374
      %v3376 = vpop.f32.mrf.mxu0
      %v3377 = vadd.f32 %v3337, %v3376
      %3378 = vmatmul.bf16.gmra.mxu0 %v3360
      %v3379 = vpop.f32.mrf.mxu0
      %v3380 = vadd.f32 %v3342, %v3379
      %v3381 = vpop.f32.mrf.mxu0
      %3382 = vdwg.mxu0
      %v3383 = vadd.f32 %v3310, %v3375
      %v3384 = vadd.f32 %v3311, %v3377
      %v3385 = vadd.f32 %v3312, %v3380
      %v3386 = vmul.f32 %v3375, 0.2
      %v3387 = vmul.f32 %v3377, 0.2
      %v3388 = vmul.f32 %v3380, 0.2
      %v3389 = vmax.f32 %v3375, %v3386
      %v3390 = vmax.f32 %v3377, %v3387
      %v3391 = vmax.f32 %v3380, %v3388
      %s3392 = scalar_lea.vmem %s21, 84
      %v3393 = vld [vmem:[%s3392] sm:$0xf]
      %v3394 = vld [vmem:[%s3392 + $0x4] sm:$0xf]
      %v3395 = vld [vmem:[%s3392 + $0x8] sm:$0xf]
      %v3396 = vpack.c.bf16 %v3390, %v3389
      %v3397 = vpack.c.bf16 %v3391, %v3391
      %s3398 = scalar_lea.vmem %s22, 168
      %v3399 = vld [vmem:[%s3398] sm:$0xff]
      %v3400 = vld [vmem:[%s3398 + $0x8] sm:$0xff]
      %v3401 = vld [vmem:[%s3398 + $0x10] sm:$0xff]
      %3403 = vset.pattern.permute.xlu0 0
      %3404 = vperm.xlu0 %3403, %v3399
      %v3405 = vpop.permute.xlu0 %3404
      %3408 = vset.pattern.permute.xlu0 0
      %3409 = vperm.xlu0 %3408, %v3400
      %v3410 = vpop.permute.xlu0 %3409
      %3413 = vset.pattern.permute.xlu0 0
      %3414 = vperm.xlu0 %3413, %v3401
      %v3415 = vpop.permute.xlu0 %3414
      %v3420 = vunpack.c.l.b16 %v3393
      %v3421 = vunpack.c.l.b16 %v3394
      %v3422 = vunpack.c.l.b16 %v3395
      %v3423 = vpack.c.b16 %v3421, %v3420
      %v3424 = vpack.c.b16 %v3422, %v3422
      %3425 = vrot.lane.b32.xlu0 %v3423, 104
      %v3426 = vpop.permute.xlu0 %3425
      %3427 = vrot.lane.b32.xlu0 %v3424, 104
      %v3428 = vpop.permute.xlu0 %3427
      %v3430 = vsel %vm1157, %v3426, 0
      %v3433 = vsel %vm1157, %v3428, 0
      %v3436 = vsel %vm988, %v3397, 0
      %3438 = vmatpush.bf16.msra.mxu0 0
      %3439 = vmatpush.bf16.msra.mxu0 0
      %3440 = vmatpush.bf16.msra.mxu0 0
      %3441 = vmatpush.bf16.msra.mxu0 0
      %3442 = vmatpush.bf16.msra.mxu0 0
      %3443 = vmatpush.bf16.msra.mxu0 0
      %3444 = vmatpush.bf16.msra.mxu0 %v3436
      %3445 = vmatpush.bf16.msra.mxu0 %v3396
      %3446 = vmatmul.bf16.gmra.mxu0 %v3430
      %v3447 = vpop.f32.mrf.mxu0
      %v3448 = vadd.f32 %v3405, %v3447
      %v3449 = vpop.f32.mrf.mxu0
      %v3450 = vadd.f32 %v3410, %v3449
      %3451 = vmatmul.bf16.gmra.mxu0 %v3433
      %v3452 = vpop.f32.mrf.mxu0
      %v3453 = vadd.f32 %v3415, %v3452
      %v3454 = vpop.f32.mrf.mxu0
      %3455 = vdwg.mxu0
      %v3456 = vadd.f32 %v3383, %v3448
      %v3457 = vadd.f32 %v3384, %v3450
      %v3458 = vadd.f32 %v3385, %v3453
      %v3459 = vmul.f32 %v3448, 0.2
      %v3460 = vmul.f32 %v3450, 0.2
      %v3461 = vmul.f32 %v3453, 0.2
      %v3462 = vmax.f32 %v3448, %v3459
      %v3463 = vmax.f32 %v3450, %v3460
      %v3464 = vmax.f32 %v3453, %v3461
      %s3465 = scalar_lea.vmem %s21, 96
      %v3466 = vld [vmem:[%s3465] sm:$0xf]
      %v3467 = vld [vmem:[%s3465 + $0x4] sm:$0xf]
      %v3468 = vld [vmem:[%s3465 + $0x8] sm:$0xf]
      %v3469 = vpack.c.bf16 %v3463, %v3462
      %v3470 = vpack.c.bf16 %v3464, %v3464
      %s3471 = scalar_lea.vmem %s22, 192
      %v3472 = vld [vmem:[%s3471] sm:$0xff]
      %v3473 = vld [vmem:[%s3471 + $0x8] sm:$0xff]
      %v3474 = vld [vmem:[%s3471 + $0x10] sm:$0xff]
      %3476 = vset.pattern.permute.xlu0 0
      %3477 = vperm.xlu0 %3476, %v3472
      %v3478 = vpop.permute.xlu0 %3477
      %3481 = vset.pattern.permute.xlu0 0
      %3482 = vperm.xlu0 %3481, %v3473
      %v3483 = vpop.permute.xlu0 %3482
      %3486 = vset.pattern.permute.xlu0 0
      %3487 = vperm.xlu0 %3486, %v3474
      %v3488 = vpop.permute.xlu0 %3487
      %v3493 = vunpack.c.l.b16 %v3466
      %v3494 = vunpack.c.l.b16 %v3467
      %v3495 = vunpack.c.l.b16 %v3468
      %v3496 = vpack.c.b16 %v3494, %v3493
      %v3497 = vpack.c.b16 %v3495, %v3495
      %3498 = vrot.lane.b32.xlu0 %v3496, 104
      %v3499 = vpop.permute.xlu0 %3498
      %3500 = vrot.lane.b32.xlu0 %v3497, 104
      %v3501 = vpop.permute.xlu0 %3500
      %v3503 = vsel %vm1157, %v3499, 0
      %v3506 = vsel %vm1157, %v3501, 0
      %v3509 = vsel %vm988, %v3470, 0
      %3511 = vmatpush.bf16.msra.mxu0 0
      %3512 = vmatpush.bf16.msra.mxu0 0
      %3513 = vmatpush.bf16.msra.mxu0 0
      %3514 = vmatpush.bf16.msra.mxu0 0
      %3515 = vmatpush.bf16.msra.mxu0 0
      %3516 = vmatpush.bf16.msra.mxu0 0
      %3517 = vmatpush.bf16.msra.mxu0 %v3509
      %3518 = vmatpush.bf16.msra.mxu0 %v3469
      %3519 = vmatmul.bf16.gmra.mxu0 %v3503
      %v3520 = vpop.f32.mrf.mxu0
      %v3521 = vadd.f32 %v3478, %v3520
      %v3522 = vpop.f32.mrf.mxu0
      %v3523 = vadd.f32 %v3483, %v3522
      %3524 = vmatmul.bf16.gmra.mxu0 %v3506
      %v3525 = vpop.f32.mrf.mxu0
      %v3526 = vadd.f32 %v3488, %v3525
      %v3527 = vpop.f32.mrf.mxu0
      %3528 = vdwg.mxu0
      %v3529 = vadd.f32 %v3456, %v3521
      %v3530 = vadd.f32 %v3457, %v3523
      %v3531 = vadd.f32 %v3458, %v3526
      %v3532 = vmul.f32 %v3521, 0.2
      %v3533 = vmul.f32 %v3523, 0.2
      %v3534 = vmul.f32 %v3526, 0.2
      %v3535 = vmax.f32 %v3521, %v3532
      %v3536 = vmax.f32 %v3523, %v3533
      %v3537 = vmax.f32 %v3526, %v3534
      %s3538 = scalar_lea.vmem %s21, 108
      %v3539 = vld [vmem:[%s3538] sm:$0xf]
      %v3540 = vld [vmem:[%s3538 + $0x4] sm:$0xf]
      %v3541 = vld [vmem:[%s3538 + $0x8] sm:$0xf]
      %v3542 = vpack.c.bf16 %v3536, %v3535
      %v3543 = vpack.c.bf16 %v3537, %v3537
      %s3544 = scalar_lea.vmem %s22, 216
      %v3545 = vld [vmem:[%s3544] sm:$0xff]
      %v3546 = vld [vmem:[%s3544 + $0x8] sm:$0xff]
      %v3547 = vld [vmem:[%s3544 + $0x10] sm:$0xff]
      %3549 = vset.pattern.permute.xlu0 0
      %3550 = vperm.xlu0 %3549, %v3545
      %v3551 = vpop.permute.xlu0 %3550
      %3554 = vset.pattern.permute.xlu0 0
      %3555 = vperm.xlu0 %3554, %v3546
      %v3556 = vpop.permute.xlu0 %3555
      %3559 = vset.pattern.permute.xlu0 0
      %3560 = vperm.xlu0 %3559, %v3547
      %v3561 = vpop.permute.xlu0 %3560
      %v3566 = vunpack.c.l.b16 %v3539
      %v3567 = vunpack.c.l.b16 %v3540
      %v3568 = vunpack.c.l.b16 %v3541
      %v3569 = vpack.c.b16 %v3567, %v3566
      %v3570 = vpack.c.b16 %v3568, %v3568
      %3571 = vrot.lane.b32.xlu0 %v3569, 104
      %v3572 = vpop.permute.xlu0 %3571
      %3573 = vrot.lane.b32.xlu0 %v3570, 104
      %v3574 = vpop.permute.xlu0 %3573
      %v3576 = vsel %vm1157, %v3572, 0
      %v3579 = vsel %vm1157, %v3574, 0
      %v3582 = vsel %vm988, %v3543, 0
      %3584 = vmatpush.bf16.msra.mxu0 0
      %3585 = vmatpush.bf16.msra.mxu0 0
      %3586 = vmatpush.bf16.msra.mxu0 0
      %3587 = vmatpush.bf16.msra.mxu0 0
      %3588 = vmatpush.bf16.msra.mxu0 0
      %3589 = vmatpush.bf16.msra.mxu0 0
      %3590 = vmatpush.bf16.msra.mxu0 %v3582
      %3591 = vmatpush.bf16.msra.mxu0 %v3542
      %3592 = vmatmul.bf16.gmra.mxu0 %v3576
      %v3593 = vpop.f32.mrf.mxu0
      %v3594 = vadd.f32 %v3551, %v3593
      %v3595 = vpop.f32.mrf.mxu0
      %v3596 = vadd.f32 %v3556, %v3595
      %3597 = vmatmul.bf16.gmra.mxu0 %v3579
      %v3598 = vpop.f32.mrf.mxu0
      %v3599 = vadd.f32 %v3561, %v3598
      %v3600 = vpop.f32.mrf.mxu0
      %3601 = vdwg.mxu0
      %v3602 = vadd.f32 %v3529, %v3594
      %v3603 = vadd.f32 %v3530, %v3596
      %v3604 = vadd.f32 %v3531, %v3599
      %v3605 = vmul.f32 %v3602, 0.2
      %v3606 = vmul.f32 %v3603, 0.2
      %v3607 = vmul.f32 %v3604, 0.2
      %v3608 = vmax.f32 %v3602, %v3605
      %v3609 = vmax.f32 %v3603, %v3606
      %v3610 = vmax.f32 %v3604, %v3607
      %v3611 = vld [vmem:[%s26] sm:$0xff]
      %v3612 = vld [vmem:[%s26 + $0x8] sm:$0xff]
      %v3613 = vld [vmem:[%s26 + $0x10] sm:$0xff]
      %v3614 = vmul.f32 %v3608, %v3611
      %v3615 = vmul.f32 %v3609, %v3612
      %v3616 = vmul.f32 %v3610, %v3613
      %3617 = vadd.xlane.f32.xlu0 %v3614
      %v3618 = vpop.xlane.xlu0 %3617
      %3619 = vadd.xlane.f32.xlu0 %v3615
      %v3620 = vpop.xlane.xlu0 %3619
      %3621 = vadd.xlane.f32.xlu0 %v3616
      %v3622 = vpop.xlane.xlu0 %3621
      %v3623 = vadd.f32 %v3618, %v3620
      %v3624 = vadd.f32 %v3623, %v3622
      %v3625 = vrot.slane %v3624, 4
      %v3626 = vadd.f32 %v3624, %v3625
      %v3627 = vrot.slane %v3626, 2
      %v3628 = vadd.f32 %v3626, %v3627
      %v3629 = vrot.slane %v3628, 1
      %v3630 = vadd.f32 %v3628, %v3629
      %v3631 = vld [vmem:[#allocation2] sm:$0x1]
      %v3632 = vadd.f32 %v3630, %v3631
      %vm3633 = vcmask 0
      %3634 = vst.msk [vmem:[%s857] sm:$0x1] %vm3633, %v3632
      %p3635 = scmp.lt.s32.totalorder %s41, 1
      %s3636 = scalar_select %p3635, %s41, 1
      %s3637 = scalar_lea.vmem %s28, %s3636
      // Predicated region
      $region133: #{tpu_custom_call.1} parent=131 // pred_check
        %p3638 = pneg %p657
      $region134: #{tpu_custom_call.1} parent=131 // pred_check_branch
        %3640 = sbr.rel (%p3638) target = $region136
      $region135: #{tpu_custom_call.1} parent=131 // pred_region
        _
      $region136: #{tpu_custom_call.1} parent=131 // pred_fallthru
        _
    $region132: #{tpu_custom_call.1} parent=5 // pred_fallthru
      _
    %p3641 = scmp.le.s32.totalorder 2, %s36
    // Predicated region
    $region137: #{tpu_custom_call.1} parent=5 // pred_check
      %p3642 = pneg %p3641
    $region138: #{tpu_custom_call.1} parent=5 // pred_check_branch
      %3644 = sbr.rel (%p3642) target = $region140
    $region139: #{tpu_custom_call.1} parent=5 // pred_region
      %s3645 = ssub.s32 %s36, 2
      // Predicated region
      $region141: #{tpu_custom_call.1} parent=139 // pred_check
        %p3646 = pneg %p663
      $region142: #{tpu_custom_call.1} parent=139 // pred_check_branch
        %3648 = sbr.rel (%p3646) target = $region144
      $region143: #{tpu_custom_call.1} parent=139 // pred_region
        %p3649 = scmp.lt.s32.totalorder %s42, 1
        %s3650 = scalar_select %p3649, %s42, 1
        %s3651 = scalar_lea.vmem %s28, %s3650
      $region144: #{tpu_custom_call.1} parent=139 // pred_fallthru
        _
    $region140: #{tpu_custom_call.1} parent=5 // pred_fallthru
      _
  $region6: #{tpu_custom_call.1} parent=0 // loop_footer
    %s40 = sadd.s32 1, %s36
  $region7: #{tpu_custom_call.1} parent=0 // loop_footer_branch
    %35 = sbr.rel target = $region3
  $region8: #{tpu_custom_call.1} parent=0 // loop_exit
    _

</llo_original>
